<compile_context>
chip_gen: v7x
topology: tpu7x:2x2x1
jax: 0.10.0
libtpu: 0.0.40
codegen_flags: <defaults>
</compile_context>

<pallas_src>
import functools
import math

import jax
import jax.numpy as jnp
from jax import lax
from jax.experimental import pallas as pl
from jax.experimental.pallas import tpu as pltpu

LEAKY_SLOPE = 0.2
ACT_DTYPE = jnp.bfloat16          # storage dtype for activations / weights


def _pick_mt(m, cap=512):
    """Largest row-tile <= cap that divides M (falls back to full M)."""
    for t in (cap, 256, 128, 64, 32, 16, 8):
        if t <= m and m % t == 0:
            return t
    return m


# ----------------------------------------------------------------------------
# Pallas kernels
# ----------------------------------------------------------------------------
def _bmm_kernel(x_ref, w_ref, b_ref, o_ref, *, act):
    # x: (1, Mt, Kd)  w: (1, Kd, N)  b: (1, 1, N)  o: (1, Mt, N)
    acc = jnp.dot(x_ref[0], w_ref[0], preferred_element_type=jnp.float32)
    acc = acc + b_ref[0].astype(jnp.float32)
    if act == "lrelu":
        acc = jnp.where(acc >= 0, acc, LEAKY_SLOPE * acc)
    o_ref[0] = acc.astype(o_ref.dtype)


def _tnext_attn_kernel(p_ref, w_ref, b_ref, sc4_ref, satt_ref, tatt_ref, tt_ref,
                       seg_ref, segt_ref, o_ref, *, C, scale):
    # t_next = conv3x3(T_t) fused with the tau-softmax temporal attention and
    # the sigmoid gate between T_t and the attended trend.
    t_next = jnp.dot(p_ref[0], w_ref[0], preferred_element_type=jnp.float32)
    t_next = t_next + b_ref[0].astype(jnp.float32)                   # (M, C)
    s_next = sc4_ref[0][:, 3 * C:].astype(jnp.float32)               # (M, C)
    s_att = satt_ref[0].astype(jnp.float32)                          # (tau, M, C)
    t_att = tatt_ref[0].astype(jnp.float32)                          # (tau, M, C)
    seg = seg_ref[...]                                               # (M, B) one-hot batch
    seg_t = segt_ref[...]                                            # (B, M)

    # per-batch attention scores over tau (reduce over spatial*channel)
    row = jnp.sum(s_att * s_next[None, :, :], axis=-1)               # (tau, M)
    scores = jnp.sum(row[:, :, None] * seg[None, :, :], axis=1)      # (tau, B)
    scores = scores * scale
    scores = scores - jnp.max(scores, axis=0, keepdims=True)
    e = jnp.exp(scores)
    watt = e / jnp.sum(e, axis=0, keepdims=True)                     # (tau, B)
    w_rows = jnp.sum(watt[:, :, None] * seg_t[None, :, :], axis=1)   # (tau, M)
    t_trend = jnp.sum(t_att * w_rows[:, :, None], axis=0)            # (M, C)

    gate = jax.nn.sigmoid(t_next)
    t_t = tt_ref[0].astype(jnp.float32)
    o_ref[0] = (t_t * gate + (1.0 - gate) * t_trend).astype(o_ref.dtype)


def _tcat_gate_kernel(p_ref, w_ref, b_ref, sc4_ref, sagg_ref, tnew_ref, snew_ref, *, C):
    # t_concat = conv3x3(t_fusion) fused with the sigmoid T/S mixing gates and
    # the residual S connection (s_concat comes from the earlier fused matmul).
    tcat = jnp.dot(p_ref[0], w_ref[0], preferred_element_type=jnp.float32)
    tcat = tcat + b_ref[0].astype(jnp.float32)                        # (Mt, 3C)
    sc = sc4_ref[0].astype(jnp.float32)                               # (Mt, 4C) = [s_concat | s_next]
    t_g, t_t, t_s = tcat[:, 0:C], tcat[:, C:2 * C], tcat[:, 2 * C:3 * C]
    s_g, s_t, s_s = sc[:, 0:C], sc[:, C:2 * C], sc[:, 2 * C:3 * C]
    tg = jax.nn.sigmoid(t_g)
    sg = jax.nn.sigmoid(s_g)
    tnew_ref[0] = (tg * t_t + (1.0 - tg) * s_t).astype(tnew_ref.dtype)
    snew_ref[0] = (sg * s_s + (1.0 - sg) * t_s
                   + sagg_ref[0].astype(jnp.float32)).astype(snew_ref.dtype)


# ----------------------------------------------------------------------------
# Pallas wrappers
# ----------------------------------------------------------------------------
def bmm(x, w, b, act=None):
    """Batched matmul + bias (+ fused LeakyReLU) on the MXU.

    x: (Gx, M, Kd) with Gx in {1, G} (Gx=1 broadcasts x across the G axis)
    w: (G, Kd, N)   b: (G, 1, N)   ->   (G, M, N) in ACT_DTYPE
    """
    Gx, M, Kd = x.shape
    G, _, N = w.shape
    Mt = _pick_mt(M)
    x_map = (lambda g, m: (0, m, 0)) if Gx == 1 else (lambda g, m: (g, m, 0))
    return pl.pallas_call(
        functools.partial(_bmm_kernel, act=act),
        grid=(G, M // Mt),
        out_shape=jax.ShapeDtypeStruct((G, M, N), ACT_DTYPE),
        in_specs=[
            pl.BlockSpec((1, Mt, Kd), x_map),
            pl.BlockSpec((1, Kd, N), lambda g, m: (g, 0, 0)),
            pl.BlockSpec((1, 1, N), lambda g, m: (g, 0, 0)),
        ],
        out_specs=pl.BlockSpec((1, Mt, N), lambda g, m: (g, m, 0)),
        compiler_params=pltpu.CompilerParams(
            dimension_semantics=("parallel", "parallel")),
    )(x, w, b)


def tnext_attn(patches, w, b, sc4, s_att, t_att, t_t, seg, seg_t, *, C, scale):
    G, M, K9 = patches.shape
    tau = s_att.shape[1]
    N = w.shape[2]
    B = seg.shape[1]
    return pl.pallas_call(
        functools.partial(_tnext_attn_kernel, C=C, scale=scale),
        grid=(G,),
        out_shape=jax.ShapeDtypeStruct((G, M, C), ACT_DTYPE),
        in_specs=[
            pl.BlockSpec((1, M, K9), lambda g: (g, 0, 0)),
            pl.BlockSpec((1, K9, N), lambda g: (g, 0, 0)),
            pl.BlockSpec((1, 1, N), lambda g: (g, 0, 0)),
            pl.BlockSpec((1, M, sc4.shape[2]), lambda g: (g, 0, 0)),
            pl.BlockSpec((1, tau, M, C), lambda g: (g, 0, 0, 0)),
            pl.BlockSpec((1, tau, M, C), lambda g: (g, 0, 0, 0)),
            pl.BlockSpec((1, M, C), lambda g: (g, 0, 0)),
            pl.BlockSpec((M, B), lambda g: (0, 0)),
            pl.BlockSpec((B, M), lambda g: (0, 0)),
        ],
        out_specs=pl.BlockSpec((1, M, C), lambda g: (g, 0, 0)),
        compiler_params=pltpu.CompilerParams(dimension_semantics=("parallel",)),
    )(patches, w, b, sc4, s_att, t_att, t_t, seg, seg_t)


def tcat_gate(patches, w, b, sc4, s_agg, *, C):
    G, M, K9 = patches.shape
    Mt = _pick_mt(M)
    return pl.pallas_call(
        functools.partial(_tcat_gate_kernel, C=C),
        grid=(G, M // Mt),
        out_shape=(jax.ShapeDtypeStruct((G, M, C), ACT_DTYPE),
                   jax.ShapeDtypeStruct((G, M, C), ACT_DTYPE)),
        in_specs=[
            pl.BlockSpec((1, Mt, K9), lambda g, m: (g, m, 0)),
            pl.BlockSpec((1, K9, 3 * C), lambda g, m: (g, 0, 0)),
            pl.BlockSpec((1, 1, 3 * C), lambda g, m: (g, 0, 0)),
            pl.BlockSpec((1, Mt, 4 * C), lambda g, m: (g, m, 0)),
            pl.BlockSpec((1, Mt, C), lambda g, m: (g, m, 0)),
        ],
        out_specs=(pl.BlockSpec((1, Mt, C), lambda g, m: (g, m, 0)),
                   pl.BlockSpec((1, Mt, C), lambda g, m: (g, m, 0))),
        compiler_params=pltpu.CompilerParams(
            dimension_semantics=("parallel", "parallel")),
    )(patches, w, b, sc4, s_agg)


# ----------------------------------------------------------------------------
# Conv lowering glue (im2col / sub-pixel transpose), batched over the K scales
# ----------------------------------------------------------------------------
def im2col_batched(x, k, stride, pad):
    # x: (G, B, H, W, C) -> (G, B*Ho*Wo, k*k*C)
    # TODO(synk): patches are still materialized by XLA slicing/concat; an
    # in-kernel 9-tap accumulation over a grid axis would avoid the 9x slab.
    G, B, H, W, C = x.shape
    xf = x.reshape(G * B, H, W, C)
    if pad:
        xf = jnp.pad(xf, ((0, 0), (pad, pad), (pad, pad), (0, 0)))
    Hp, Wp = xf.shape[1], xf.shape[2]
    Ho = (Hp - k) // stride + 1
    Wo = (Wp - k) // stride + 1
    cols = []
    for kh in range(k):
        for kw in range(k):
            cols.append(xf[:, kh:kh + stride * (Ho - 1) + 1:stride,
                           kw:kw + stride * (Wo - 1) + 1:stride, :])
    pat = jnp.concatenate(cols, axis=-1)
    return pat.reshape(G, B * Ho * Wo, k * k * C), Ho, Wo


def conv_transpose_s2_subpixel(x, w_comb, b4, act):
    """ConvTranspose2d(k=3, s=2, p=1, op=1) via 4-phase sub-pixel matmul.

    x: (K, B, H, W, C); w_comb: (K, 4C, 4Cout); output (K, B, 2H, 2W, Cout).
    """
    K_, B, H, W, C = x.shape
    Cout = w_comb.shape[2] // 4
    xp = jnp.pad(x, ((0, 0), (0, 0), (0, 1), (0, 1), (0, 0)))
    p00 = xp[:, :, :H, :W, :]
    p01 = xp[:, :, :H, 1:, :]
    p10 = xp[:, :, 1:, :W, :]
    p11 = xp[:, :, 1:, 1:, :]
    patches = jnp.concatenate([p00, p01, p10, p11], axis=-1).reshape(K_, B * H * W, 4 * C)
    y = bmm(patches, w_comb, b4, act=act)                          # (K, BHW, 4*Cout)
    y = y.reshape(K_, B, H, W, 2, 2, Cout)
    y = jnp.transpose(y, (0, 1, 2, 4, 3, 5, 6)).reshape(K_, B, 2 * H, 2 * W, Cout)
    return y


def _segment_matrices(B, HW):
    idx = jnp.arange(B * HW, dtype=jnp.int32) // HW
    seg = (idx[:, None] == jnp.arange(B, dtype=jnp.int32)[None, :]).astype(jnp.float32)
    return seg, seg.T


# ----------------------------------------------------------------------------
# Parameters (deterministic synthetic init; weights pre-stacked over K, bf16)
# ----------------------------------------------------------------------------
def init_params(key, in_ch, mid_ch, out_ch, layer, K):
    keys = iter(jax.random.split(key, 64 + 16 * layer))

    def nrm(shape, scale=0.1, dtype=ACT_DTYPE):
        return (scale * jax.random.normal(next(keys), shape, jnp.float32)).astype(dtype)

    def bias(shape, scale=0.01):
        return scale * jax.random.normal(next(keys), shape, jnp.float32)   # keep f32

    C = mid_ch

    # encoders: per-k Conv2d(in,mid,1) + 3x Conv2d(mid,mid,3,s=2,p=1), all lrelu.
    # 3x3 weights are stored directly in im2col order (kh, kw, cin) x cout;
    # a PyTorch (Cout,Cin,kh,kw) weight maps via transpose(2,3,1,0).reshape(9Cin,Cout).
    enc = {"w0": nrm((K, in_ch, C)), "b0": bias((K, 1, C))}
    for i in (1, 2, 3):
        enc[f"w{i}"] = nrm((K, 9 * C, C))
        enc[f"b{i}"] = bias((K, 1, C))

    def subpixel_weight(w_t):
        # w_t: (K, Cin, Cout, 3, 3) in PyTorch ConvTranspose2d layout.
        Cin, Cout = w_t.shape[1], w_t.shape[2]
        Z = jnp.zeros((K, Cin, Cout), w_t.dtype)
        # column blocks: [even/even, even/odd, odd/even, odd/odd] output phases
        row0 = jnp.concatenate([w_t[..., 1, 1], w_t[..., 1, 2], w_t[..., 2, 1], w_t[..., 2, 2]], -1)
        row1 = jnp.concatenate([Z,              w_t[..., 1, 0], Z,              w_t[..., 2, 0]], -1)
        row2 = jnp.concatenate([Z,              Z,              w_t[..., 0, 1], w_t[..., 0, 2]], -1)
        row3 = jnp.concatenate([Z,              Z,              Z,              w_t[..., 0, 0]], -1)
        return jnp.concatenate([row0, row1, row2, row3], axis=1)    # (K, 4Cin, 4Cout)

    dec = {}
    for i in (0, 1, 2):
        w_t = nrm((K, C, C, 3, 3), dtype=jnp.float32)
        dec[f"w{i}"] = subpixel_weight(w_t).astype(ACT_DTYPE)
        dec[f"b{i}"] = jnp.tile(bias((K, 1, C)), (1, 1, 4))
    w3 = nrm((K, C, out_ch, 1, 1), dtype=jnp.float32)
    dec["w3"] = w3[..., 0, 0].astype(ACT_DTYPE)                      # 1x1 transpose conv == matmul
    dec["b3"] = bias((K, 1, out_ch))

    cells = []
    for _ in range(layer):
        c = {"agg_w": nrm((K, K * C, C)), "agg_b": bias((K, 1, C))}
        w_s = nrm((K, 9 * C, 3 * C))
        w_s_next = nrm((K, 9 * C, C))
        b_s = bias((K, 1, 3 * C))
        b_s_next = bias((K, 1, C))
        # fused weights: one matmul produces [s_concat (3C) | s_next (C)]
        c["w_sfused"] = jnp.concatenate([w_s, w_s_next], axis=-1)
        c["b_sfused"] = jnp.concatenate([b_s, b_s_next], axis=-1)
        c["w_t_next"] = nrm((K, 9 * C, C))
        c["b_t_next"] = bias((K, 1, C))
        c["w_t"] = nrm((K, 9 * C, 3 * C))
        c["b_t"] = bias((K, 1, 3 * C))
        cells.append(c)

    return {"enc": enc, "dec": dec, "cell": cells}


# ----------------------------------------------------------------------------
# Model forward (mirrors MSTAU_Pred.forward)
# ----------------------------------------------------------------------------
def encode_all(p, x_t):
    # x_t: (K, B, H, W, Cin) -> (K, B, H/8, W/8, mid)
    K_, B, H, W, Cin = x_t.shape
    y = bmm(x_t.reshape(K_, B * H * W, Cin), p["w0"], p["b0"], act="lrelu")
    C = y.shape[-1]
    y = y.reshape(K_, B, H, W, C)
    for i in (1, 2, 3):
        patches, Ho, Wo = im2col_batched(y, 3, 2, 1)
        y = bmm(patches, p[f"w{i}"], p[f"b{i}"], act="lrelu").reshape(K_, B, Ho, Wo, C)
    return y


def decode_all(p, s):
    # s: (K, B, H/8, W/8, mid) -> (K, B, H, W, out_ch)
    y = s
    for i in (0, 1, 2):
        y = conv_transpose_s2_subpixel(y, p[f"w{i}"], p[f"b{i}"], act="lrelu")
    K_, B, H, W, C = y.shape
    out_ch = p["w3"].shape[-1]
    y = bmm(y.reshape(K_, B * H * W, C), p["w3"], p["b3"], act="lrelu")
    return y.reshape(K_, B, H, W, out_ch)


def cell_all(p, t_t, s_t, t_att, s_att):
    # All K cells of one layer in batched Pallas calls.
    # t_t/s_t: (K, B, h, w, C)   t_att/s_att: (K, tau, B, h, w, C)
    K_, B, h, w, C = t_t.shape
    tau = t_att.shape[1]
    M = B * h * w

    # 1) cross-scale aggregation: same concatenated input, per-k 1x1 weights
    s_cat = jnp.transpose(s_t, (1, 2, 3, 0, 4)).reshape(1, M, K_ * C)
    s_agg = bmm(s_cat, p["agg_w"], p["agg_b"], act="lrelu")           # (K, M, C)

    # 2) one im2col slab of s_agg feeds the fused [s_concat | s_next] matmul
    pat_s, _, _ = im2col_batched(s_agg.reshape(K_, B, h, w, C), 3, 1, 1)
    sc4 = bmm(pat_s, p["w_sfused"], p["b_sfused"], act=None)          # (K, M, 4C)

    # 3) t_next conv fused with tau-softmax temporal attention + T gating
    pat_t, _, _ = im2col_batched(t_t, 3, 1, 1)
    seg, seg_t = _segment_matrices(B, h * w)
    t_fusion = tnext_attn(pat_t, p["w_t_next"], p["b_t_next"], sc4,
                          s_att.reshape(K_, tau, M, C),
                          t_att.reshape(K_, tau, M, C),
                          t_t.reshape(K_, M, C), seg, seg_t,
                          C=C, scale=1.0 / math.sqrt(h * w * C))      # (K, M, C)

    # 4) t_concat conv fused with the sigmoid T/S mixing (+ residual S)
    pat_f, _, _ = im2col_batched(t_fusion.reshape(K_, B, h, w, C), 3, 1, 1)
    t_new, s_new = tcat_gate(pat_f, p["w_t"], p["b_t"], sc4, s_agg, C=C)
    return t_new.reshape(K_, B, h, w, C), s_new.reshape(K_, B, h, w, C)


def mstau_pred_forward(params, x, *, mid_ch, layer, tau, K):
    assert x.ndim == 6
    B, T, Kx, Cin, H, W = x.shape
    assert Kx == K
    hm, wm = H // 8, W // 8

    xs = jnp.transpose(x, (1, 2, 0, 4, 5, 3)).astype(ACT_DTYPE)       # (T, K, B, H, W, Cin)
    hist0 = jnp.zeros((layer, K, tau, B, hm, wm, mid_ch), ACT_DTYPE)
    s0 = jnp.zeros((K, B, hm, wm, mid_ch), ACT_DTYPE)

    def step(carry, x_t):
        T_hist, S_hist, _ = carry
        s_t = encode_all(params["enc"], x_t)                          # (K, B, hm, wm, mid)
        for l in range(layer):
            t_att = T_hist[l]                                         # (K, tau, B, hm, wm, mid)
            s_att = S_hist[l]
            t_t = t_att[:, -1]
            t_out, s_out = cell_all(params["cell"][l], t_t, s_t, t_att, s_att)
            T_hist = T_hist.at[l].set(
                jnp.concatenate([t_att[:, 1:], t_out[:, None]], axis=1))
            S_hist = S_hist.at[l].set(
                jnp.concatenate([s_att[:, 1:], s_out[:, None]], axis=1))
            s_t = s_out
        return (T_hist, S_hist, s_t), None

    (_, _, s_final), _ = lax.scan(step, (hist0, hist0, s0), xs)
    y = decode_all(params["dec"], s_final)                            # (K, B, H, W, out_ch)
    return jnp.transpose(y, (1, 0, 4, 2, 3)).astype(jnp.float32)      # (B, K, out_ch, H, W)


# ----------------------------------------------------------------------------
if __name__ == "__main__":
    B, T, K = 2, 3, 2
    in_ch, mid_ch, out_ch = 2, 16, 2
    layer, tau = 2, 4
    H = W = 16

    key = jax.random.PRNGKey(0)
    pkey, xkey = jax.random.split(key)
    params = init_params(pkey, in_ch, mid_ch, out_ch, layer, K)
    x = jax.random.normal(xkey, (B, T, K, in_ch, H, W), jnp.float32)

    fwd = jax.jit(functools.partial(mstau_pred_forward, mid_ch=mid_ch,
                                    layer=layer, tau=tau, K=K))
    y = jax.block_until_ready(fwd(params, x))
    assert y.shape == (B, K, out_ch, H, W), y.shape
    assert bool(jnp.all(jnp.isfinite(y)))
    print("KERNEL_OK")
</pallas_src>

<mosaic_0001>
module attributes {stable_mosaic.version = 11 : i64} {
  func.func @_bmm_kernel(%arg0: i32, %arg1: i32, %arg2: memref<1x512x2xbf16, #tpu.memory_space<vmem>>, %arg3: memref<1x2x16xbf16, #tpu.memory_space<vmem>>, %arg4: memref<1x1x16xf32, #tpu.memory_space<vmem>>, %arg5: memref<1x512x16xbf16, #tpu.memory_space<vmem>>) attributes {dimension_semantics = [#tpu.dimension_semantics<parallel>, #tpu.dimension_semantics<parallel>], iteration_bounds = array<i64: 2, 1>, scalar_prefetch = 0 : i64, scratch_operands = 0 : i64, tpu.core_type = #tpu.core_type<tc>, window_params = [{transform_indices = @transform_0, window_bounds = array<i64: 1, 512, 2>}, {transform_indices = @transform_1, window_bounds = array<i64: 1, 2, 16>}, {transform_indices = @transform_2, window_bounds = array<i64: 1, 1, 16>}, {transform_indices = @transform_3, window_bounds = array<i64: 1, 512, 16>}]} {
    %c0 = arith.constant 0 : index
    %c0_0 = arith.constant 0 : index
    %c0_1 = arith.constant 0 : index
    %0 = vector.load %arg2[%c0, %c0_0, %c0_1] : memref<1x512x2xbf16, #tpu.memory_space<vmem>>, vector<1x512x2xbf16>
    %1 = vector.shape_cast %0 : vector<1x512x2xbf16> to vector<512x2xbf16>
    %c0_2 = arith.constant 0 : index
    %c0_3 = arith.constant 0 : index
    %c0_4 = arith.constant 0 : index
    %2 = vector.load %arg3[%c0_2, %c0_3, %c0_4] : memref<1x2x16xbf16, #tpu.memory_space<vmem>>, vector<1x2x16xbf16>
    %3 = vector.shape_cast %2 : vector<1x2x16xbf16> to vector<2x16xbf16>
    %cst = arith.constant dense<0.000000e+00> : vector<512x16xf32>
    %4 = tpu.matmul %1, %3, %cst {dimension_numbers = #tpu.dot_dimension_numbers<[1], [0], [0], [1], [0, 0, 1, 1], [], []>} : vector<512x2xbf16>, vector<2x16xbf16>, vector<512x16xf32> -> vector<512x16xf32>
    %c0_5 = arith.constant 0 : index
    %c0_6 = arith.constant 0 : index
    %c0_7 = arith.constant 0 : index
    %5 = vector.load %arg4[%c0_5, %c0_6, %c0_7] : memref<1x1x16xf32, #tpu.memory_space<vmem>>, vector<1x1x16xf32>
    %6 = vector.shape_cast %5 : vector<1x1x16xf32> to vector<1x16xf32>
    %7 = vector.broadcast %6 : vector<1x16xf32> to vector<512x16xf32>
    %8 = arith.addf %4, %7 : vector<512x16xf32>
    %cst_8 = arith.constant 0.000000e+00 : f32
    %9 = vector.broadcast %cst_8 : f32 to vector<512x16xf32>
    %10 = arith.cmpf oge, %8, %9 : vector<512x16xf32>
    %cst_9 = arith.constant 2.000000e-01 : f32
    %11 = vector.broadcast %cst_9 : f32 to vector<512x16xf32>
    %12 = arith.mulf %11, %8 : vector<512x16xf32>
    %13 = arith.select %10, %8, %12 : vector<512x16xi1>, vector<512x16xf32>
    %14 = arith.truncf %13 : vector<512x16xf32> to vector<512x16xbf16>
    %c0_10 = arith.constant 0 : index
    %c0_11 = arith.constant 0 : index
    %c0_12 = arith.constant 0 : index
    %15 = vector.load %arg5[%c0_10, %c0_11, %c0_12] : memref<1x512x16xbf16, #tpu.memory_space<vmem>>, vector<1x512x16xbf16>
    %16 = vector.shape_cast %15 : vector<1x512x16xbf16> to vector<512x16xbf16>
    %17 = vector.shape_cast %14 : vector<512x16xbf16> to vector<1x512x16xbf16>
    tpu.vector_store %arg5[%c0_10, %c0_11, %c0_12], %17 {strides = array<i32>} : memref<1x512x16xbf16, #tpu.memory_space<vmem>>, vector<1x512x16xbf16>,
    return
  }
  func.func @transform_0(%arg0: i32, %arg1: i32) -> (i32, i32, i32) {
    %c0_i32 = arith.constant 0 : i32
    %c0_i32_0 = arith.constant 0 : i32
    return %arg0, %arg1, %c0_i32 : i32, i32, i32
  }
  func.func @transform_1(%arg0: i32, %arg1: i32) -> (i32, i32, i32) {
    %c0_i32 = arith.constant 0 : i32
    %c0_i32_0 = arith.constant 0 : i32
    %c0_i32_1 = arith.constant 0 : i32
    return %arg0, %c0_i32, %c0_i32_0 : i32, i32, i32
  }
  func.func @transform_2(%arg0: i32, %arg1: i32) -> (i32, i32, i32) {
    %c0_i32 = arith.constant 0 : i32
    %c0_i32_0 = arith.constant 0 : i32
    %c0_i32_1 = arith.constant 0 : i32
    return %arg0, %c0_i32, %c0_i32_0 : i32, i32, i32
  }
  func.func @transform_3(%arg0: i32, %arg1: i32) -> (i32, i32, i32) {
    %c0_i32 = arith.constant 0 : i32
    %c0_i32_0 = arith.constant 0 : i32
    return %arg0, %arg1, %c0_i32 : i32, i32, i32
  }
}

module attributes {stable_mosaic.version = 11 : i64} {
  func.func @_bmm_kernel(%arg0: i32, %arg1: i32, %arg2: memref<1x128x144xbf16, #tpu.memory_space<vmem>>, %arg3: memref<1x144x16xbf16, #tpu.memory_space<vmem>>, %arg4: memref<1x1x16xf32, #tpu.memory_space<vmem>>, %arg5: memref<1x128x16xbf16, #tpu.memory_space<vmem>>) attributes {dimension_semantics = [#tpu.dimension_semantics<parallel>, #tpu.dimension_semantics<parallel>], iteration_bounds = array<i64: 2, 1>, scalar_prefetch = 0 : i64, scratch_operands = 0 : i64, tpu.core_type = #tpu.core_type<tc>, window_params = [{transform_indices = @transform_0, window_bounds = array<i64: 1, 128, 144>}, {transform_indices = @transform_1, window_bounds = array<i64: 1, 144, 16>}, {transform_indices = @transform_2, window_bounds = array<i64: 1, 1, 16>}, {transform_indices = @transform_3, window_bounds = array<i64: 1, 128, 16>}]} {
    %c0 = arith.constant 0 : index
    %c0_0 = arith.constant 0 : index
    %c0_1 = arith.constant 0 : index
    %0 = vector.load %arg2[%c0, %c0_0, %c0_1] : memref<1x128x144xbf16, #tpu.memory_space<vmem>>, vector<1x128x144xbf16>
    %1 = vector.shape_cast %0 : vector<1x128x144xbf16> to vector<128x144xbf16>
    %c0_2 = arith.constant 0 : index
    %c0_3 = arith.constant 0 : index
    %c0_4 = arith.constant 0 : index
    %2 = vector.load %arg3[%c0_2, %c0_3, %c0_4] : memref<1x144x16xbf16, #tpu.memory_space<vmem>>, vector<1x144x16xbf16>
    %3 = vector.shape_cast %2 : vector<1x144x16xbf16> to vector<144x16xbf16>
    %cst = arith.constant dense<0.000000e+00> : vector<128x16xf32>
    %4 = tpu.matmul %1, %3, %cst {dimension_numbers = #tpu.dot_dimension_numbers<[1], [0], [0], [1], [0, 0, 1, 1], [], []>} : vector<128x144xbf16>, vector<144x16xbf16>, vector<128x16xf32> -> vector<128x16xf32>
    %c0_5 = arith.constant 0 : index
    %c0_6 = arith.constant 0 : index
    %c0_7 = arith.constant 0 : index
    %5 = vector.load %arg4[%c0_5, %c0_6, %c0_7] : memref<1x1x16xf32, #tpu.memory_space<vmem>>, vector<1x1x16xf32>
    %6 = vector.shape_cast %5 : vector<1x1x16xf32> to vector<1x16xf32>
    %7 = vector.broadcast %6 : vector<1x16xf32> to vector<128x16xf32>
    %8 = arith.addf %4, %7 : vector<128x16xf32>
    %cst_8 = arith.constant 0.000000e+00 : f32
    %9 = vector.broadcast %cst_8 : f32 to vector<128x16xf32>
    %10 = arith.cmpf oge, %8, %9 : vector<128x16xf32>
    %cst_9 = arith.constant 2.000000e-01 : f32
    %11 = vector.broadcast %cst_9 : f32 to vector<128x16xf32>
    %12 = arith.mulf %11, %8 : vector<128x16xf32>
    %13 = arith.select %10, %8, %12 : vector<128x16xi1>, vector<128x16xf32>
    %14 = arith.truncf %13 : vector<128x16xf32> to vector<128x16xbf16>
    %c0_10 = arith.constant 0 : index
    %c0_11 = arith.constant 0 : index
    %c0_12 = arith.constant 0 : index
    %15 = vector.load %arg5[%c0_10, %c0_11, %c0_12] : memref<1x128x16xbf16, #tpu.memory_space<vmem>>, vector<1x128x16xbf16>
    %16 = vector.shape_cast %15 : vector<1x128x16xbf16> to vector<128x16xbf16>
    %17 = vector.shape_cast %14 : vector<128x16xbf16> to vector<1x128x16xbf16>
    tpu.vector_store %arg5[%c0_10, %c0_11, %c0_12], %17 {strides = array<i32>} : memref<1x128x16xbf16, #tpu.memory_space<vmem>>, vector<1x128x16xbf16>,
    return
  }
  func.func @transform_0(%arg0: i32, %arg1: i32) -> (i32, i32, i32) {
    %c0_i32 = arith.constant 0 : i32
    %c0_i32_0 = arith.constant 0 : i32
    return %arg0, %arg1, %c0_i32 : i32, i32, i32
  }
  func.func @transform_1(%arg0: i32, %arg1: i32) -> (i32, i32, i32) {
    %c0_i32 = arith.constant 0 : i32
    %c0_i32_0 = arith.constant 0 : i32
    %c0_i32_1 = arith.constant 0 : i32
    return %arg0, %c0_i32, %c0_i32_0 : i32, i32, i32
  }
  func.func @transform_2(%arg0: i32, %arg1: i32) -> (i32, i32, i32) {
    %c0_i32 = arith.constant 0 : i32
    %c0_i32_0 = arith.constant 0 : i32
    %c0_i32_1 = arith.constant 0 : i32
    return %arg0, %c0_i32, %c0_i32_0 : i32, i32, i32
  }
  func.func @transform_3(%arg0: i32, %arg1: i32) -> (i32, i32, i32) {
    %c0_i32 = arith.constant 0 : i32
    %c0_i32_0 = arith.constant 0 : i32
    return %arg0, %arg1, %c0_i32 : i32, i32, i32
  }
}

module attributes {stable_mosaic.version = 11 : i64} {
  func.func @_bmm_kernel(%arg0: i32, %arg1: i32, %arg2: memref<1x32x144xbf16, #tpu.memory_space<vmem>>, %arg3: memref<1x144x16xbf16, #tpu.memory_space<vmem>>, %arg4: memref<1x1x16xf32, #tpu.memory_space<vmem>>, %arg5: memref<1x32x16xbf16, #tpu.memory_space<vmem>>) attributes {dimension_semantics = [#tpu.dimension_semantics<parallel>, #tpu.dimension_semantics<parallel>], iteration_bounds = array<i64: 2, 1>, scalar_prefetch = 0 : i64, scratch_operands = 0 : i64, tpu.core_type = #tpu.core_type<tc>, window_params = [{transform_indices = @transform_0, window_bounds = array<i64: 1, 32, 144>}, {transform_indices = @transform_1, window_bounds = array<i64: 1, 144, 16>}, {transform_indices = @transform_2, window_bounds = array<i64: 1, 1, 16>}, {transform_indices = @transform_3, window_bounds = array<i64: 1, 32, 16>}]} {
    %c0 = arith.constant 0 : index
    %c0_0 = arith.constant 0 : index
    %c0_1 = arith.constant 0 : index
    %0 = vector.load %arg2[%c0, %c0_0, %c0_1] : memref<1x32x144xbf16, #tpu.memory_space<vmem>>, vector<1x32x144xbf16>
    %1 = vector.shape_cast %0 : vector<1x32x144xbf16> to vector<32x144xbf16>
    %c0_2 = arith.constant 0 : index
    %c0_3 = arith.constant 0 : index
    %c0_4 = arith.constant 0 : index
    %2 = vector.load %arg3[%c0_2, %c0_3, %c0_4] : memref<1x144x16xbf16, #tpu.memory_space<vmem>>, vector<1x144x16xbf16>
    %3 = vector.shape_cast %2 : vector<1x144x16xbf16> to vector<144x16xbf16>
    %cst = arith.constant dense<0.000000e+00> : vector<32x16xf32>
    %4 = tpu.matmul %1, %3, %cst {dimension_numbers = #tpu.dot_dimension_numbers<[1], [0], [0], [1], [0, 0, 1, 1], [], []>} : vector<32x144xbf16>, vector<144x16xbf16>, vector<32x16xf32> -> vector<32x16xf32>
    %c0_5 = arith.constant 0 : index
    %c0_6 = arith.constant 0 : index
    %c0_7 = arith.constant 0 : index
    %5 = vector.load %arg4[%c0_5, %c0_6, %c0_7] : memref<1x1x16xf32, #tpu.memory_space<vmem>>, vector<1x1x16xf32>
    %6 = vector.shape_cast %5 : vector<1x1x16xf32> to vector<1x16xf32>
    %7 = vector.broadcast %6 : vector<1x16xf32> to vector<32x16xf32>
    %8 = arith.addf %4, %7 : vector<32x16xf32>
    %cst_8 = arith.constant 0.000000e+00 : f32
    %9 = vector.broadcast %cst_8 : f32 to vector<32x16xf32>
    %10 = arith.cmpf oge, %8, %9 : vector<32x16xf32>
    %cst_9 = arith.constant 2.000000e-01 : f32
    %11 = vector.broadcast %cst_9 : f32 to vector<32x16xf32>
    %12 = arith.mulf %11, %8 : vector<32x16xf32>
    %13 = arith.select %10, %8, %12 : vector<32x16xi1>, vector<32x16xf32>
    %14 = arith.truncf %13 : vector<32x16xf32> to vector<32x16xbf16>
    %c0_10 = arith.constant 0 : index
    %c0_11 = arith.constant 0 : index
    %c0_12 = arith.constant 0 : index
    %15 = vector.load %arg5[%c0_10, %c0_11, %c0_12] : memref<1x32x16xbf16, #tpu.memory_space<vmem>>, vector<1x32x16xbf16>
    %16 = vector.shape_cast %15 : vector<1x32x16xbf16> to vector<32x16xbf16>
    %17 = vector.shape_cast %14 : vector<32x16xbf16> to vector<1x32x16xbf16>
    tpu.vector_store %arg5[%c0_10, %c0_11, %c0_12], %17 {strides = array<i32>} : memref<1x32x16xbf16, #tpu.memory_space<vmem>>, vector<1x32x16xbf16>,
    return
  }
  func.func @transform_0(%arg0: i32, %arg1: i32) -> (i32, i32, i32) {
    %c0_i32 = arith.constant 0 : i32
    %c0_i32_0 = arith.constant 0 : i32
    return %arg0, %arg1, %c0_i32 : i32, i32, i32
  }
  func.func @transform_1(%arg0: i32, %arg1: i32) -> (i32, i32, i32) {
    %c0_i32 = arith.constant 0 : i32
    %c0_i32_0 = arith.constant 0 : i32
    %c0_i32_1 = arith.constant 0 : i32
    return %arg0, %c0_i32, %c0_i32_0 : i32, i32, i32
  }
  func.func @transform_2(%arg0: i32, %arg1: i32) -> (i32, i32, i32) {
    %c0_i32 = arith.constant 0 : i32
    %c0_i32_0 = arith.constant 0 : i32
    %c0_i32_1 = arith.constant 0 : i32
    return %arg0, %c0_i32, %c0_i32_0 : i32, i32, i32
  }
  func.func @transform_3(%arg0: i32, %arg1: i32) -> (i32, i32, i32) {
    %c0_i32 = arith.constant 0 : i32
    %c0_i32_0 = arith.constant 0 : i32
    return %arg0, %arg1, %c0_i32 : i32, i32, i32
  }
}

module attributes {stable_mosaic.version = 11 : i64} {
  func.func @_bmm_kernel(%arg0: i32, %arg1: i32, %arg2: memref<1x8x144xbf16, #tpu.memory_space<vmem>>, %arg3: memref<1x144x16xbf16, #tpu.memory_space<vmem>>, %arg4: memref<1x1x16xf32, #tpu.memory_space<vmem>>, %arg5: memref<1x8x16xbf16, #tpu.memory_space<vmem>>) attributes {dimension_semantics = [#tpu.dimension_semantics<parallel>, #tpu.dimension_semantics<parallel>], iteration_bounds = array<i64: 2, 1>, scalar_prefetch = 0 : i64, scratch_operands = 0 : i64, tpu.core_type = #tpu.core_type<tc>, window_params = [{transform_indices = @transform_0, window_bounds = array<i64: 1, 8, 144>}, {transform_indices = @transform_1, window_bounds = array<i64: 1, 144, 16>}, {transform_indices = @transform_2, window_bounds = array<i64: 1, 1, 16>}, {transform_indices = @transform_3, window_bounds = array<i64: 1, 8, 16>}]} {
    %c0 = arith.constant 0 : index
    %c0_0 = arith.constant 0 : index
    %c0_1 = arith.constant 0 : index
    %0 = vector.load %arg2[%c0, %c0_0, %c0_1] : memref<1x8x144xbf16, #tpu.memory_space<vmem>>, vector<1x8x144xbf16>
    %1 = vector.shape_cast %0 : vector<1x8x144xbf16> to vector<8x144xbf16>
    %c0_2 = arith.constant 0 : index
    %c0_3 = arith.constant 0 : index
    %c0_4 = arith.constant 0 : index
    %2 = vector.load %arg3[%c0_2, %c0_3, %c0_4] : memref<1x144x16xbf16, #tpu.memory_space<vmem>>, vector<1x144x16xbf16>
    %3 = vector.shape_cast %2 : vector<1x144x16xbf16> to vector<144x16xbf16>
    %cst = arith.constant dense<0.000000e+00> : vector<8x16xf32>
    %4 = tpu.matmul %1, %3, %cst {dimension_numbers = #tpu.dot_dimension_numbers<[1], [0], [0], [1], [0, 0, 1, 1], [], []>} : vector<8x144xbf16>, vector<144x16xbf16>, vector<8x16xf32> -> vector<8x16xf32>
    %c0_5 = arith.constant 0 : index
    %c0_6 = arith.constant 0 : index
    %c0_7 = arith.constant 0 : index
    %5 = vector.load %arg4[%c0_5, %c0_6, %c0_7] : memref<1x1x16xf32, #tpu.memory_space<vmem>>, vector<1x1x16xf32>
    %6 = vector.shape_cast %5 : vector<1x1x16xf32> to vector<1x16xf32>
    %7 = vector.broadcast %6 : vector<1x16xf32> to vector<8x16xf32>
    %8 = arith.addf %4, %7 : vector<8x16xf32>
    %cst_8 = arith.constant 0.000000e+00 : f32
    %9 = vector.broadcast %cst_8 : f32 to vector<8x16xf32>
    %10 = arith.cmpf oge, %8, %9 : vector<8x16xf32>
    %cst_9 = arith.constant 2.000000e-01 : f32
    %11 = vector.broadcast %cst_9 : f32 to vector<8x16xf32>
    %12 = arith.mulf %11, %8 : vector<8x16xf32>
    %13 = arith.select %10, %8, %12 : vector<8x16xi1>, vector<8x16xf32>
    %14 = arith.truncf %13 : vector<8x16xf32> to vector<8x16xbf16>
    %c0_10 = arith.constant 0 : index
    %c0_11 = arith.constant 0 : index
    %c0_12 = arith.constant 0 : index
    %15 = vector.load %arg5[%c0_10, %c0_11, %c0_12] : memref<1x8x16xbf16, #tpu.memory_space<vmem>>, vector<1x8x16xbf16>
    %16 = vector.shape_cast %15 : vector<1x8x16xbf16> to vector<8x16xbf16>
    %17 = vector.shape_cast %14 : vector<8x16xbf16> to vector<1x8x16xbf16>
    tpu.vector_store %arg5[%c0_10, %c0_11, %c0_12], %17 {strides = array<i32>} : memref<1x8x16xbf16, #tpu.memory_space<vmem>>, vector<1x8x16xbf16>,
    return
  }
  func.func @transform_0(%arg0: i32, %arg1: i32) -> (i32, i32, i32) {
    %c0_i32 = arith.constant 0 : i32
    %c0_i32_0 = arith.constant 0 : i32
    return %arg0, %arg1, %c0_i32 : i32, i32, i32
  }
  func.func @transform_1(%arg0: i32, %arg1: i32) -> (i32, i32, i32) {
    %c0_i32 = arith.constant 0 : i32
    %c0_i32_0 = arith.constant 0 : i32
    %c0_i32_1 = arith.constant 0 : i32
    return %arg0, %c0_i32, %c0_i32_0 : i32, i32, i32
  }
  func.func @transform_2(%arg0: i32, %arg1: i32) -> (i32, i32, i32) {
    %c0_i32 = arith.constant 0 : i32
    %c0_i32_0 = arith.constant 0 : i32
    %c0_i32_1 = arith.constant 0 : i32
    return %arg0, %c0_i32, %c0_i32_0 : i32, i32, i32
  }
  func.func @transform_3(%arg0: i32, %arg1: i32) -> (i32, i32, i32) {
    %c0_i32 = arith.constant 0 : i32
    %c0_i32_0 = arith.constant 0 : i32
    return %arg0, %arg1, %c0_i32 : i32, i32, i32
  }
}

module attributes {stable_mosaic.version = 11 : i64} {
  func.func @_bmm_kernel(%arg0: i32, %arg1: i32, %arg2: memref<1x8x32xbf16, #tpu.memory_space<vmem>>, %arg3: memref<1x32x16xbf16, #tpu.memory_space<vmem>>, %arg4: memref<1x1x16xf32, #tpu.memory_space<vmem>>, %arg5: memref<1x8x16xbf16, #tpu.memory_space<vmem>>) attributes {dimension_semantics = [#tpu.dimension_semantics<parallel>, #tpu.dimension_semantics<parallel>], iteration_bounds = array<i64: 2, 1>, scalar_prefetch = 0 : i64, scratch_operands = 0 : i64, tpu.core_type = #tpu.core_type<tc>, window_params = [{transform_indices = @transform_0, window_bounds = array<i64: 1, 8, 32>}, {transform_indices = @transform_1, window_bounds = array<i64: 1, 32, 16>}, {transform_indices = @transform_2, window_bounds = array<i64: 1, 1, 16>}, {transform_indices = @transform_3, window_bounds = array<i64: 1, 8, 16>}]} {
    %c0 = arith.constant 0 : index
    %c0_0 = arith.constant 0 : index
    %c0_1 = arith.constant 0 : index
    %0 = vector.load %arg2[%c0, %c0_0, %c0_1] : memref<1x8x32xbf16, #tpu.memory_space<vmem>>, vector<1x8x32xbf16>
    %1 = vector.shape_cast %0 : vector<1x8x32xbf16> to vector<8x32xbf16>
    %c0_2 = arith.constant 0 : index
    %c0_3 = arith.constant 0 : index
    %c0_4 = arith.constant 0 : index
    %2 = vector.load %arg3[%c0_2, %c0_3, %c0_4] : memref<1x32x16xbf16, #tpu.memory_space<vmem>>, vector<1x32x16xbf16>
    %3 = vector.shape_cast %2 : vector<1x32x16xbf16> to vector<32x16xbf16>
    %cst = arith.constant dense<0.000000e+00> : vector<8x16xf32>
    %4 = tpu.matmul %1, %3, %cst {dimension_numbers = #tpu.dot_dimension_numbers<[1], [0], [0], [1], [0, 0, 1, 1], [], []>} : vector<8x32xbf16>, vector<32x16xbf16>, vector<8x16xf32> -> vector<8x16xf32>
    %c0_5 = arith.constant 0 : index
    %c0_6 = arith.constant 0 : index
    %c0_7 = arith.constant 0 : index
    %5 = vector.load %arg4[%c0_5, %c0_6, %c0_7] : memref<1x1x16xf32, #tpu.memory_space<vmem>>, vector<1x1x16xf32>
    %6 = vector.shape_cast %5 : vector<1x1x16xf32> to vector<1x16xf32>
    %7 = vector.broadcast %6 : vector<1x16xf32> to vector<8x16xf32>
    %8 = arith.addf %4, %7 : vector<8x16xf32>
    %cst_8 = arith.constant 0.000000e+00 : f32
    %9 = vector.broadcast %cst_8 : f32 to vector<8x16xf32>
    %10 = arith.cmpf oge, %8, %9 : vector<8x16xf32>
    %cst_9 = arith.constant 2.000000e-01 : f32
    %11 = vector.broadcast %cst_9 : f32 to vector<8x16xf32>
    %12 = arith.mulf %11, %8 : vector<8x16xf32>
    %13 = arith.select %10, %8, %12 : vector<8x16xi1>, vector<8x16xf32>
    %14 = arith.truncf %13 : vector<8x16xf32> to vector<8x16xbf16>
    %c0_10 = arith.constant 0 : index
    %c0_11 = arith.constant 0 : index
    %c0_12 = arith.constant 0 : index
    %15 = vector.load %arg5[%c0_10, %c0_11, %c0_12] : memref<1x8x16xbf16, #tpu.memory_space<vmem>>, vector<1x8x16xbf16>
    %16 = vector.shape_cast %15 : vector<1x8x16xbf16> to vector<8x16xbf16>
    %17 = vector.shape_cast %14 : vector<8x16xbf16> to vector<1x8x16xbf16>
    tpu.vector_store %arg5[%c0_10, %c0_11, %c0_12], %17 {strides = array<i32>} : memref<1x8x16xbf16, #tpu.memory_space<vmem>>, vector<1x8x16xbf16>,
    return
  }
  func.func @transform_0(%arg0: i32, %arg1: i32) -> (i32, i32, i32) {
    %c0_i32 = arith.constant 0 : i32
    %c0_i32_0 = arith.constant 0 : i32
    %c0_i32_1 = arith.constant 0 : i32
    return %c0_i32, %arg1, %c0_i32_0 : i32, i32, i32
  }
  func.func @transform_1(%arg0: i32, %arg1: i32) -> (i32, i32, i32) {
    %c0_i32 = arith.constant 0 : i32
    %c0_i32_0 = arith.constant 0 : i32
    %c0_i32_1 = arith.constant 0 : i32
    return %arg0, %c0_i32, %c0_i32_0 : i32, i32, i32
  }
  func.func @transform_2(%arg0: i32, %arg1: i32) -> (i32, i32, i32) {
    %c0_i32 = arith.constant 0 : i32
    %c0_i32_0 = arith.constant 0 : i32
    %c0_i32_1 = arith.constant 0 : i32
    return %arg0, %c0_i32, %c0_i32_0 : i32, i32, i32
  }
  func.func @transform_3(%arg0: i32, %arg1: i32) -> (i32, i32, i32) {
    %c0_i32 = arith.constant 0 : i32
    %c0_i32_0 = arith.constant 0 : i32
    return %arg0, %arg1, %c0_i32 : i32, i32, i32
  }
}

module attributes {stable_mosaic.version = 11 : i64} {
  func.func @_bmm_kernel(%arg0: i32, %arg1: i32, %arg2: memref<1x8x144xbf16, #tpu.memory_space<vmem>>, %arg3: memref<1x144x64xbf16, #tpu.memory_space<vmem>>, %arg4: memref<1x1x64xf32, #tpu.memory_space<vmem>>, %arg5: memref<1x8x64xbf16, #tpu.memory_space<vmem>>) attributes {dimension_semantics = [#tpu.dimension_semantics<parallel>, #tpu.dimension_semantics<parallel>], iteration_bounds = array<i64: 2, 1>, scalar_prefetch = 0 : i64, scratch_operands = 0 : i64, tpu.core_type = #tpu.core_type<tc>, window_params = [{transform_indices = @transform_0, window_bounds = array<i64: 1, 8, 144>}, {transform_indices = @transform_1, window_bounds = array<i64: 1, 144, 64>}, {transform_indices = @transform_2, window_bounds = array<i64: 1, 1, 64>}, {transform_indices = @transform_3, window_bounds = array<i64: 1, 8, 64>}]} {
    %c0 = arith.constant 0 : index
    %c0_0 = arith.constant 0 : index
    %c0_1 = arith.constant 0 : index
    %0 = vector.load %arg2[%c0, %c0_0, %c0_1] : memref<1x8x144xbf16, #tpu.memory_space<vmem>>, vector<1x8x144xbf16>
    %1 = vector.shape_cast %0 : vector<1x8x144xbf16> to vector<8x144xbf16>
    %c0_2 = arith.constant 0 : index
    %c0_3 = arith.constant 0 : index
    %c0_4 = arith.constant 0 : index
    %2 = vector.load %arg3[%c0_2, %c0_3, %c0_4] : memref<1x144x64xbf16, #tpu.memory_space<vmem>>, vector<1x144x64xbf16>
    %3 = vector.shape_cast %2 : vector<1x144x64xbf16> to vector<144x64xbf16>
    %cst = arith.constant dense<0.000000e+00> : vector<8x64xf32>
    %4 = tpu.matmul %1, %3, %cst {dimension_numbers = #tpu.dot_dimension_numbers<[1], [0], [0], [1], [0, 0, 1, 1], [], []>} : vector<8x144xbf16>, vector<144x64xbf16>, vector<8x64xf32> -> vector<8x64xf32>
    %c0_5 = arith.constant 0 : index
    %c0_6 = arith.constant 0 : index
    %c0_7 = arith.constant 0 : index
    %5 = vector.load %arg4[%c0_5, %c0_6, %c0_7] : memref<1x1x64xf32, #tpu.memory_space<vmem>>, vector<1x1x64xf32>
    %6 = vector.shape_cast %5 : vector<1x1x64xf32> to vector<1x64xf32>
    %7 = vector.broadcast %6 : vector<1x64xf32> to vector<8x64xf32>
    %8 = arith.addf %4, %7 : vector<8x64xf32>
    %9 = arith.truncf %8 : vector<8x64xf32> to vector<8x64xbf16>
    %c0_8 = arith.constant 0 : index
    %c0_9 = arith.constant 0 : index
    %c0_10 = arith.constant 0 : index
    %10 = vector.load %arg5[%c0_8, %c0_9, %c0_10] : memref<1x8x64xbf16, #tpu.memory_space<vmem>>, vector<1x8x64xbf16>
    %11 = vector.shape_cast %10 : vector<1x8x64xbf16> to vector<8x64xbf16>
    %12 = vector.shape_cast %9 : vector<8x64xbf16> to vector<1x8x64xbf16>
    tpu.vector_store %arg5[%c0_8, %c0_9, %c0_10], %12 {strides = array<i32>} : memref<1x8x64xbf16, #tpu.memory_space<vmem>>, vector<1x8x64xbf16>,
    return
  }
  func.func @transform_0(%arg0: i32, %arg1: i32) -> (i32, i32, i32) {
    %c0_i32 = arith.constant 0 : i32
    %c0_i32_0 = arith.constant 0 : i32
    return %arg0, %arg1, %c0_i32 : i32, i32, i32
  }
  func.func @transform_1(%arg0: i32, %arg1: i32) -> (i32, i32, i32) {
    %c0_i32 = arith.constant 0 : i32
    %c0_i32_0 = arith.constant 0 : i32
    %c0_i32_1 = arith.constant 0 : i32
    return %arg0, %c0_i32, %c0_i32_0 : i32, i32, i32
  }
  func.func @transform_2(%arg0: i32, %arg1: i32) -> (i32, i32, i32) {
    %c0_i32 = arith.constant 0 : i32
    %c0_i32_0 = arith.constant 0 : i32
    %c0_i32_1 = arith.constant 0 : i32
    return %arg0, %c0_i32, %c0_i32_0 : i32, i32, i32
  }
  func.func @transform_3(%arg0: i32, %arg1: i32) -> (i32, i32, i32) {
    %c0_i32 = arith.constant 0 : i32
    %c0_i32_0 = arith.constant 0 : i32
    return %arg0, %arg1, %c0_i32 : i32, i32, i32
  }
}

module attributes {stable_mosaic.version = 11 : i64} {
  func.func @_tnext_attn_kernel(%arg0: i32, %arg1: memref<1x8x144xbf16, #tpu.memory_space<vmem>>, %arg2: memref<1x144x16xbf16, #tpu.memory_space<vmem>>, %arg3: memref<1x1x16xf32, #tpu.memory_space<vmem>>, %arg4: memref<1x8x64xbf16, #tpu.memory_space<vmem>>, %arg5: memref<1x4x8x16xbf16, #tpu.memory_space<vmem>>, %arg6: memref<1x4x8x16xbf16, #tpu.memory_space<vmem>>, %arg7: memref<1x8x16xbf16, #tpu.memory_space<vmem>>, %arg8: memref<8x2xf32, #tpu.memory_space<vmem>>, %arg9: memref<2x8xf32, #tpu.memory_space<vmem>>, %arg10: memref<1x8x16xbf16, #tpu.memory_space<vmem>>) attributes {dimension_semantics = [#tpu.dimension_semantics<parallel>], iteration_bounds = array<i64: 2>, scalar_prefetch = 0 : i64, scratch_operands = 0 : i64, tpu.core_type = #tpu.core_type<tc>, window_params = [{transform_indices = @transform_0, window_bounds = array<i64: 1, 8, 144>}, {transform_indices = @transform_1, window_bounds = array<i64: 1, 144, 16>}, {transform_indices = @transform_2, window_bounds = array<i64: 1, 1, 16>}, {transform_indices = @transform_3, window_bounds = array<i64: 1, 8, 64>}, {transform_indices = @transform_4, window_bounds = array<i64: 1, 4, 8, 16>}, {transform_indices = @transform_5, window_bounds = array<i64: 1, 4, 8, 16>}, {transform_indices = @transform_6, window_bounds = array<i64: 1, 8, 16>}, {pipeline_mode = #tpu.pipeline_mode<synchronous>, transform_indices = @transform_7, window_bounds = array<i64: 8, 2>}, {pipeline_mode = #tpu.pipeline_mode<synchronous>, transform_indices = @transform_8, window_bounds = array<i64: 2, 8>}, {transform_indices = @transform_9, window_bounds = array<i64: 1, 8, 16>}]} {
    %c0 = arith.constant 0 : index
    %c0_0 = arith.constant 0 : index
    %c0_1 = arith.constant 0 : index
    %0 = vector.load %arg1[%c0, %c0_0, %c0_1] : memref<1x8x144xbf16, #tpu.memory_space<vmem>>, vector<1x8x144xbf16>
    %1 = vector.shape_cast %0 : vector<1x8x144xbf16> to vector<8x144xbf16>
    %c0_2 = arith.constant 0 : index
    %c0_3 = arith.constant 0 : index
    %c0_4 = arith.constant 0 : index
    %2 = vector.load %arg2[%c0_2, %c0_3, %c0_4] : memref<1x144x16xbf16, #tpu.memory_space<vmem>>, vector<1x144x16xbf16>
    %3 = vector.shape_cast %2 : vector<1x144x16xbf16> to vector<144x16xbf16>
    %cst = arith.constant dense<0.000000e+00> : vector<8x16xf32>
    %4 = tpu.matmul %1, %3, %cst {dimension_numbers = #tpu.dot_dimension_numbers<[1], [0], [0], [1], [0, 0, 1, 1], [], []>} : vector<8x144xbf16>, vector<144x16xbf16>, vector<8x16xf32> -> vector<8x16xf32>
    %c0_5 = arith.constant 0 : index
    %c0_6 = arith.constant 0 : index
    %c0_7 = arith.constant 0 : index
    %5 = vector.load %arg3[%c0_5, %c0_6, %c0_7] : memref<1x1x16xf32, #tpu.memory_space<vmem>>, vector<1x1x16xf32>
    %6 = vector.shape_cast %5 : vector<1x1x16xf32> to vector<1x16xf32>
    %7 = vector.broadcast %6 : vector<1x16xf32> to vector<8x16xf32>
    %8 = arith.addf %4, %7 : vector<8x16xf32>
    %c0_8 = arith.constant 0 : index
    %c0_9 = arith.constant 0 : index
    %c0_10 = arith.constant 0 : index
    %9 = vector.load %arg4[%c0_8, %c0_9, %c0_10] : memref<1x8x64xbf16, #tpu.memory_space<vmem>>, vector<1x8x64xbf16>
    %10 = vector.shape_cast %9 : vector<1x8x64xbf16> to vector<8x64xbf16>
    %11 = vector.extract_strided_slice %10 {offsets = [0, 48], sizes = [8, 16], strides = [1, 1]} : vector<8x64xbf16> to vector<8x16xbf16>
    %12 = arith.extf %11 : vector<8x16xbf16> to vector<8x16xf32>
    %c0_11 = arith.constant 0 : index
    %c0_12 = arith.constant 0 : index
    %c0_13 = arith.constant 0 : index
    %c0_14 = arith.constant 0 : index
    %13 = vector.load %arg5[%c0_11, %c0_12, %c0_13, %c0_14] : memref<1x4x8x16xbf16, #tpu.memory_space<vmem>>, vector<1x4x8x16xbf16>
    %14 = vector.shape_cast %13 : vector<1x4x8x16xbf16> to vector<4x8x16xbf16>
    %15 = arith.extf %14 : vector<4x8x16xbf16> to vector<4x8x16xf32>
    %c0_15 = arith.constant 0 : index
    %c0_16 = arith.constant 0 : index
    %c0_17 = arith.constant 0 : index
    %c0_18 = arith.constant 0 : index
    %16 = vector.load %arg6[%c0_15, %c0_16, %c0_17, %c0_18] : memref<1x4x8x16xbf16, #tpu.memory_space<vmem>>, vector<1x4x8x16xbf16>
    %17 = vector.shape_cast %16 : vector<1x4x8x16xbf16> to vector<4x8x16xbf16>
    %18 = arith.extf %17 : vector<4x8x16xbf16> to vector<4x8x16xf32>
    %c0_19 = arith.constant 0 : index
    %c0_20 = arith.constant 0 : index
    %19 = vector.load %arg8[%c0_19, %c0_20] : memref<8x2xf32, #tpu.memory_space<vmem>>, vector<8x2xf32>
    %c0_21 = arith.constant 0 : index
    %c0_22 = arith.constant 0 : index
    %20 = vector.load %arg9[%c0_21, %c0_22] : memref<2x8xf32, #tpu.memory_space<vmem>>, vector<2x8xf32>
    %21 = vector.shape_cast %12 : vector<8x16xf32> to vector<1x8x16xf32>
    %22 = vector.broadcast %21 : vector<1x8x16xf32> to vector<4x8x16xf32>
    %23 = arith.mulf %15, %22 : vector<4x8x16xf32>
    %cst_23 = arith.constant dense<0.000000e+00> : vector<4x8xf32>
    %24 = vector.multi_reduction <add>, %23, %cst_23 [2] : vector<4x8x16xf32> to vector<4x8xf32>
    %25 = vector.shape_cast %24 : vector<4x8xf32> to vector<4x8x1xf32>
    %26 = vector.shape_cast %19 : vector<8x2xf32> to vector<1x8x2xf32>
    %27 = vector.broadcast %25 : vector<4x8x1xf32> to vector<4x8x2xf32>
    %28 = vector.broadcast %26 : vector<1x8x2xf32> to vector<4x8x2xf32>
    %29 = arith.mulf %27, %28 : vector<4x8x2xf32>
    %cst_24 = arith.constant dense<0.000000e+00> : vector<4x2xf32>
    %30 = vector.multi_reduction <add>, %29, %cst_24 [1] : vector<4x8x2xf32> to vector<4x2xf32>
    %cst_25 = arith.constant 1.250000e-01 : f32
    %31 = vector.broadcast %cst_25 : f32 to vector<4x2xf32>
    %32 = arith.mulf %30, %31 : vector<4x2xf32>
    %cst_26 = arith.constant dense<0xFF800000> : vector<2xf32>
    %33 = vector.multi_reduction <maximumf>, %32, %cst_26 [0] : vector<4x2xf32> to vector<2xf32>
    %34 = vector.shape_cast %33 : vector<2xf32> to vector<1x2xf32>
    %35 = vector.broadcast %34 : vector<1x2xf32> to vector<4x2xf32>
    %36 = arith.subf %32, %35 : vector<4x2xf32>
    %37 = math.exp %36 : vector<4x2xf32>
    %cst_27 = arith.constant dense<0.000000e+00> : vector<2xf32>
    %38 = vector.multi_reduction <add>, %37, %cst_27 [0] : vector<4x2xf32> to vector<2xf32>
    %39 = vector.shape_cast %38 : vector<2xf32> to vector<1x2xf32>
    %40 = vector.broadcast %39 : vector<1x2xf32> to vector<4x2xf32>
    %41 = arith.divf %37, %40 : vector<4x2xf32>
    %42 = vector.shape_cast %41 : vector<4x2xf32> to vector<4x2x1xf32>
    %43 = vector.shape_cast %20 : vector<2x8xf32> to vector<1x2x8xf32>
    %44 = vector.broadcast %42 : vector<4x2x1xf32> to vector<4x2x8xf32>
    %45 = vector.broadcast %43 : vector<1x2x8xf32> to vector<4x2x8xf32>
    %46 = arith.mulf %44, %45 : vector<4x2x8xf32>
    %cst_28 = arith.constant dense<0.000000e+00> : vector<4x8xf32>
    %47 = vector.multi_reduction <add>, %46, %cst_28 [1] : vector<4x2x8xf32> to vector<4x8xf32>
    %48 = vector.shape_cast %47 : vector<4x8xf32> to vector<4x8x1xf32>
    %49 = vector.broadcast %48 : vector<4x8x1xf32> to vector<4x8x16xf32>
    %50 = arith.mulf %18, %49 : vector<4x8x16xf32>
    %cst_29 = arith.constant dense<0.000000e+00> : vector<8x16xf32>
    %51 = vector.multi_reduction <add>, %50, %cst_29 [0] : vector<4x8x16xf32> to vector<8x16xf32>
    %52 = arith.negf %8 : vector<8x16xf32>
    %53 = math.exp %52 : vector<8x16xf32>
    %cst_30 = arith.constant 1.000000e+00 : f32
    %54 = vector.broadcast %cst_30 : f32 to vector<8x16xf32>
    %55 = arith.addf %54, %53 : vector<8x16xf32>
    %56 = arith.divf %54, %55 : vector<8x16xf32>
    %c0_31 = arith.constant 0 : index
    %c0_32 = arith.constant 0 : index
    %c0_33 = arith.constant 0 : index
    %57 = vector.load %arg7[%c0_31, %c0_32, %c0_33] : memref<1x8x16xbf16, #tpu.memory_space<vmem>>, vector<1x8x16xbf16>
    %58 = vector.shape_cast %57 : vector<1x8x16xbf16> to vector<8x16xbf16>
    %59 = arith.extf %58 : vector<8x16xbf16> to vector<8x16xf32>
    %60 = arith.mulf %59, %56 : vector<8x16xf32>
    %cst_34 = arith.constant 1.000000e+00 : f32
    %61 = vector.broadcast %cst_34 : f32 to vector<8x16xf32>
    %62 = arith.subf %61, %56 : vector<8x16xf32>
    %63 = arith.mulf %62, %51 : vector<8x16xf32>
    %64 = arith.addf %60, %63 : vector<8x16xf32>
    %65 = arith.truncf %64 : vector<8x16xf32> to vector<8x16xbf16>
    %c0_35 = arith.constant 0 : index
    %c0_36 = arith.constant 0 : index
    %c0_37 = arith.constant 0 : index
    %66 = vector.load %arg10[%c0_35, %c0_36, %c0_37] : memref<1x8x16xbf16, #tpu.memory_space<vmem>>, vector<1x8x16xbf16>
    %67 = vector.shape_cast %66 : vector<1x8x16xbf16> to vector<8x16xbf16>
    %68 = vector.shape_cast %65 : vector<8x16xbf16> to vector<1x8x16xbf16>
    tpu.vector_store %arg10[%c0_35, %c0_36, %c0_37], %68 {strides = array<i32>} : memref<1x8x16xbf16, #tpu.memory_space<vmem>>, vector<1x8x16xbf16>,
    return
  }
  func.func @transform_0(%arg0: i32) -> (i32, i32, i32) {
    %c0_i32 = arith.constant 0 : i32
    %c0_i32_0 = arith.constant 0 : i32
    %c0_i32_1 = arith.constant 0 : i32
    return %arg0, %c0_i32, %c0_i32_0 : i32, i32, i32
  }
  func.func @transform_1(%arg0: i32) -> (i32, i32, i32) {
    %c0_i32 = arith.constant 0 : i32
    %c0_i32_0 = arith.constant 0 : i32
    %c0_i32_1 = arith.constant 0 : i32
    return %arg0, %c0_i32, %c0_i32_0 : i32, i32, i32
  }
  func.func @transform_2(%arg0: i32) -> (i32, i32, i32) {
    %c0_i32 = arith.constant 0 : i32
    %c0_i32_0 = arith.constant 0 : i32
    %c0_i32_1 = arith.constant 0 : i32
    return %arg0, %c0_i32, %c0_i32_0 : i32, i32, i32
  }
  func.func @transform_3(%arg0: i32) -> (i32, i32, i32) {
    %c0_i32 = arith.constant 0 : i32
    %c0_i32_0 = arith.constant 0 : i32
    %c0_i32_1 = arith.constant 0 : i32
    return %arg0, %c0_i32, %c0_i32_0 : i32, i32, i32
  }
  func.func @transform_4(%arg0: i32) -> (i32, i32, i32, i32) {
    %c0_i32 = arith.constant 0 : i32
    %c0_i32_0 = arith.constant 0 : i32
    %c0_i32_1 = arith.constant 0 : i32
    %c0_i32_2 = arith.constant 0 : i32
    return %arg0, %c0_i32, %c0_i32_0, %c0_i32_1 : i32, i32, i32, i32
  }
  func.func @transform_5(%arg0: i32) -> (i32, i32, i32, i32) {
    %c0_i32 = arith.constant 0 : i32
    %c0_i32_0 = arith.constant 0 : i32
    %c0_i32_1 = arith.constant 0 : i32
    %c0_i32_2 = arith.constant 0 : i32
    return %arg0, %c0_i32, %c0_i32_0, %c0_i32_1 : i32, i32, i32, i32
  }
  func.func @transform_6(%arg0: i32) -> (i32, i32, i32) {
    %c0_i32 = arith.constant 0 : i32
    %c0_i32_0 = arith.constant 0 : i32
    %c0_i32_1 = arith.constant 0 : i32
    return %arg0, %c0_i32, %c0_i32_0 : i32, i32, i32
  }
  func.func @transform_7(%arg0: i32) -> (i32, i32) {
    %c0_i32 = arith.constant 0 : i32
    %c0_i32_0 = arith.constant 0 : i32
    %c0_i32_1 = arith.constant 0 : i32
    return %c0_i32, %c0_i32_0 : i32, i32
  }
  func.func @transform_8(%arg0: i32) -> (i32, i32) {
    %c0_i32 = arith.constant 0 : i32
    %c0_i32_0 = arith.constant 0 : i32
    %c0_i32_1 = arith.constant 0 : i32
    return %c0_i32, %c0_i32_0 : i32, i32
  }
  func.func @transform_9(%arg0: i32) -> (i32, i32, i32) {
    %c0_i32 = arith.constant 0 : i32
    %c0_i32_0 = arith.constant 0 : i32
    %c0_i32_1 = arith.constant 0 : i32
    return %arg0, %c0_i32, %c0_i32_0 : i32, i32, i32
  }
}

module attributes {stable_mosaic.version = 11 : i64} {
  func.func @_tcat_gate_kernel(%arg0: i32, %arg1: i32, %arg2: memref<1x8x144xbf16, #tpu.memory_space<vmem>>, %arg3: memref<1x144x48xbf16, #tpu.memory_space<vmem>>, %arg4: memref<1x1x48xf32, #tpu.memory_space<vmem>>, %arg5: memref<1x8x64xbf16, #tpu.memory_space<vmem>>, %arg6: memref<1x8x16xbf16, #tpu.memory_space<vmem>>, %arg7: memref<1x8x16xbf16, #tpu.memory_space<vmem>>, %arg8: memref<1x8x16xbf16, #tpu.memory_space<vmem>>) attributes {dimension_semantics = [#tpu.dimension_semantics<parallel>, #tpu.dimension_semantics<parallel>], iteration_bounds = array<i64: 2, 1>, scalar_prefetch = 0 : i64, scratch_operands = 0 : i64, tpu.core_type = #tpu.core_type<tc>, window_params = [{transform_indices = @transform_0, window_bounds = array<i64: 1, 8, 144>}, {transform_indices = @transform_1, window_bounds = array<i64: 1, 144, 48>}, {transform_indices = @transform_2, window_bounds = array<i64: 1, 1, 48>}, {transform_indices = @transform_3, window_bounds = array<i64: 1, 8, 64>}, {transform_indices = @transform_4, window_bounds = array<i64: 1, 8, 16>}, {transform_indices = @transform_5, window_bounds = array<i64: 1, 8, 16>}, {transform_indices = @transform_6, window_bounds = array<i64: 1, 8, 16>}]} {
    %c0 = arith.constant 0 : index
    %c0_0 = arith.constant 0 : index
    %c0_1 = arith.constant 0 : index
    %0 = vector.load %arg2[%c0, %c0_0, %c0_1] : memref<1x8x144xbf16, #tpu.memory_space<vmem>>, vector<1x8x144xbf16>
    %1 = vector.shape_cast %0 : vector<1x8x144xbf16> to vector<8x144xbf16>
    %c0_2 = arith.constant 0 : index
    %c0_3 = arith.constant 0 : index
    %c0_4 = arith.constant 0 : index
    %2 = vector.load %arg3[%c0_2, %c0_3, %c0_4] : memref<1x144x48xbf16, #tpu.memory_space<vmem>>, vector<1x144x48xbf16>
    %3 = vector.shape_cast %2 : vector<1x144x48xbf16> to vector<144x48xbf16>
    %cst = arith.constant dense<0.000000e+00> : vector<8x48xf32>
    %4 = tpu.matmul %1, %3, %cst {dimension_numbers = #tpu.dot_dimension_numbers<[1], [0], [0], [1], [0, 0, 1, 1], [], []>} : vector<8x144xbf16>, vector<144x48xbf16>, vector<8x48xf32> -> vector<8x48xf32>
    %c0_5 = arith.constant 0 : index
    %c0_6 = arith.constant 0 : index
    %c0_7 = arith.constant 0 : index
    %5 = vector.load %arg4[%c0_5, %c0_6, %c0_7] : memref<1x1x48xf32, #tpu.memory_space<vmem>>, vector<1x1x48xf32>
    %6 = vector.shape_cast %5 : vector<1x1x48xf32> to vector<1x48xf32>
    %7 = vector.broadcast %6 : vector<1x48xf32> to vector<8x48xf32>
    %8 = arith.addf %4, %7 : vector<8x48xf32>
    %c0_8 = arith.constant 0 : index
    %c0_9 = arith.constant 0 : index
    %c0_10 = arith.constant 0 : index
    %9 = vector.load %arg5[%c0_8, %c0_9, %c0_10] : memref<1x8x64xbf16, #tpu.memory_space<vmem>>, vector<1x8x64xbf16>
    %10 = vector.shape_cast %9 : vector<1x8x64xbf16> to vector<8x64xbf16>
    %11 = arith.extf %10 : vector<8x64xbf16> to vector<8x64xf32>
    %12 = vector.extract_strided_slice %8 {offsets = [0, 0], sizes = [8, 16], strides = [1, 1]} : vector<8x48xf32> to vector<8x16xf32>
    %13 = vector.extract_strided_slice %8 {offsets = [0, 16], sizes = [8, 16], strides = [1, 1]} : vector<8x48xf32> to vector<8x16xf32>
    %14 = vector.extract_strided_slice %8 {offsets = [0, 32], sizes = [8, 16], strides = [1, 1]} : vector<8x48xf32> to vector<8x16xf32>
    %15 = vector.extract_strided_slice %11 {offsets = [0, 0], sizes = [8, 16], strides = [1, 1]} : vector<8x64xf32> to vector<8x16xf32>
    %16 = vector.extract_strided_slice %11 {offsets = [0, 16], sizes = [8, 16], strides = [1, 1]} : vector<8x64xf32> to vector<8x16xf32>
    %17 = vector.extract_strided_slice %11 {offsets = [0, 32], sizes = [8, 16], strides = [1, 1]} : vector<8x64xf32> to vector<8x16xf32>
    %18 = arith.negf %12 : vector<8x16xf32>
    %19 = math.exp %18 : vector<8x16xf32>
    %cst_11 = arith.constant 1.000000e+00 : f32
    %20 = vector.broadcast %cst_11 : f32 to vector<8x16xf32>
    %21 = arith.addf %20, %19 : vector<8x16xf32>
    %22 = arith.divf %20, %21 : vector<8x16xf32>
    %23 = arith.negf %15 : vector<8x16xf32>
    %24 = math.exp %23 : vector<8x16xf32>
    %cst_12 = arith.constant 1.000000e+00 : f32
    %25 = vector.broadcast %cst_12 : f32 to vector<8x16xf32>
    %26 = arith.addf %25, %24 : vector<8x16xf32>
    %27 = arith.divf %25, %26 : vector<8x16xf32>
    %28 = arith.mulf %22, %13 : vector<8x16xf32>
    %cst_13 = arith.constant 1.000000e+00 : f32
    %29 = vector.broadcast %cst_13 : f32 to vector<8x16xf32>
    %30 = arith.subf %29, %22 : vector<8x16xf32>
    %31 = arith.mulf %30, %16 : vector<8x16xf32>
    %32 = arith.addf %28, %31 : vector<8x16xf32>
    %33 = arith.truncf %32 : vector<8x16xf32> to vector<8x16xbf16>
    %c0_14 = arith.constant 0 : index
    %c0_15 = arith.constant 0 : index
    %c0_16 = arith.constant 0 : index
    %34 = vector.load %arg7[%c0_14, %c0_15, %c0_16] : memref<1x8x16xbf16, #tpu.memory_space<vmem>>, vector<1x8x16xbf16>
    %35 = vector.shape_cast %34 : vector<1x8x16xbf16> to vector<8x16xbf16>
    %36 = vector.shape_cast %33 : vector<8x16xbf16> to vector<1x8x16xbf16>
    tpu.vector_store %arg7[%c0_14, %c0_15, %c0_16], %36 {strides = array<i32>} : memref<1x8x16xbf16, #tpu.memory_space<vmem>>, vector<1x8x16xbf16>,
    %37 = arith.mulf %27, %17 : vector<8x16xf32>
    %cst_17 = arith.constant 1.000000e+00 : f32
    %38 = vector.broadcast %cst_17 : f32 to vector<8x16xf32>
    %39 = arith.subf %38, %27 : vector<8x16xf32>
    %40 = arith.mulf %39, %14 : vector<8x16xf32>
    %41 = arith.addf %37, %40 : vector<8x16xf32>
    %c0_18 = arith.constant 0 : index
    %c0_19 = arith.constant 0 : index
    %c0_20 = arith.constant 0 : index
    %42 = vector.load %arg6[%c0_18, %c0_19, %c0_20] : memref<1x8x16xbf16, #tpu.memory_space<vmem>>, vector<1x8x16xbf16>
    %43 = vector.shape_cast %42 : vector<1x8x16xbf16> to vector<8x16xbf16>
    %44 = arith.extf %43 : vector<8x16xbf16> to vector<8x16xf32>
    %45 = arith.addf %41, %44 : vector<8x16xf32>
    %46 = arith.truncf %45 : vector<8x16xf32> to vector<8x16xbf16>
    %c0_21 = arith.constant 0 : index
    %c0_22 = arith.constant 0 : index
    %c0_23 = arith.constant 0 : index
    %47 = vector.load %arg8[%c0_21, %c0_22, %c0_23] : memref<1x8x16xbf16, #tpu.memory_space<vmem>>, vector<1x8x16xbf16>
    %48 = vector.shape_cast %47 : vector<1x8x16xbf16> to vector<8x16xbf16>
    %49 = vector.shape_cast %46 : vector<8x16xbf16> to vector<1x8x16xbf16>
    tpu.vector_store %arg8[%c0_21, %c0_22, %c0_23], %49 {strides = array<i32>} : memref<1x8x16xbf16, #tpu.memory_space<vmem>>, vector<1x8x16xbf16>,
    return
  }
  func.func @transform_0(%arg0: i32, %arg1: i32) -> (i32, i32, i32) {
    %c0_i32 = arith.constant 0 : i32
    %c0_i32_0 = arith.constant 0 : i32
    return %arg0, %arg1, %c0_i32 : i32, i32, i32
  }
  func.func @transform_1(%arg0: i32, %arg1: i32) -> (i32, i32, i32) {
    %c0_i32 = arith.constant 0 : i32
    %c0_i32_0 = arith.constant 0 : i32
    %c0_i32_1 = arith.constant 0 : i32
    return %arg0, %c0_i32, %c0_i32_0 : i32, i32, i32
  }
  func.func @transform_2(%arg0: i32, %arg1: i32) -> (i32, i32, i32) {
    %c0_i32 = arith.constant 0 : i32
    %c0_i32_0 = arith.constant 0 : i32
    %c0_i32_1 = arith.constant 0 : i32
    return %arg0, %c0_i32, %c0_i32_0 : i32, i32, i32
  }
  func.func @transform_3(%arg0: i32, %arg1: i32) -> (i32, i32, i32) {
    %c0_i32 = arith.constant 0 : i32
    %c0_i32_0 = arith.constant 0 : i32
    return %arg0, %arg1, %c0_i32 : i32, i32, i32
  }
  func.func @transform_4(%arg0: i32, %arg1: i32) -> (i32, i32, i32) {
    %c0_i32 = arith.constant 0 : i32
    %c0_i32_0 = arith.constant 0 : i32
    return %arg0, %arg1, %c0_i32 : i32, i32, i32
  }
  func.func @transform_5(%arg0: i32, %arg1: i32) -> (i32, i32, i32) {
    %c0_i32 = arith.constant 0 : i32
    %c0_i32_0 = arith.constant 0 : i32
    return %arg0, %arg1, %c0_i32 : i32, i32, i32
  }
  func.func @transform_6(%arg0: i32, %arg1: i32) -> (i32, i32, i32) {
    %c0_i32 = arith.constant 0 : i32
    %c0_i32_0 = arith.constant 0 : i32
    return %arg0, %arg1, %c0_i32 : i32, i32, i32
  }
}

module attributes {stable_mosaic.version = 11 : i64} {
  func.func @_bmm_kernel(%arg0: i32, %arg1: i32, %arg2: memref<1x8x64xbf16, #tpu.memory_space<vmem>>, %arg3: memref<1x64x64xbf16, #tpu.memory_space<vmem>>, %arg4: memref<1x1x64xf32, #tpu.memory_space<vmem>>, %arg5: memref<1x8x64xbf16, #tpu.memory_space<vmem>>) attributes {dimension_semantics = [#tpu.dimension_semantics<parallel>, #tpu.dimension_semantics<parallel>], iteration_bounds = array<i64: 2, 1>, scalar_prefetch = 0 : i64, scratch_operands = 0 : i64, tpu.core_type = #tpu.core_type<tc>, window_params = [{transform_indices = @transform_0, window_bounds = array<i64: 1, 8, 64>}, {transform_indices = @transform_1, window_bounds = array<i64: 1, 64, 64>}, {transform_indices = @transform_2, window_bounds = array<i64: 1, 1, 64>}, {transform_indices = @transform_3, window_bounds = array<i64: 1, 8, 64>}]} {
    %c0 = arith.constant 0 : index
    %c0_0 = arith.constant 0 : index
    %c0_1 = arith.constant 0 : index
    %0 = vector.load %arg2[%c0, %c0_0, %c0_1] : memref<1x8x64xbf16, #tpu.memory_space<vmem>>, vector<1x8x64xbf16>
    %1 = vector.shape_cast %0 : vector<1x8x64xbf16> to vector<8x64xbf16>
    %c0_2 = arith.constant 0 : index
    %c0_3 = arith.constant 0 : index
    %c0_4 = arith.constant 0 : index
    %2 = vector.load %arg3[%c0_2, %c0_3, %c0_4] : memref<1x64x64xbf16, #tpu.memory_space<vmem>>, vector<1x64x64xbf16>
    %3 = vector.shape_cast %2 : vector<1x64x64xbf16> to vector<64x64xbf16>
    %cst = arith.constant dense<0.000000e+00> : vector<8x64xf32>
    %4 = tpu.matmul %1, %3, %cst {dimension_numbers = #tpu.dot_dimension_numbers<[1], [0], [0], [1], [0, 0, 1, 1], [], []>} : vector<8x64xbf16>, vector<64x64xbf16>, vector<8x64xf32> -> vector<8x64xf32>
    %c0_5 = arith.constant 0 : index
    %c0_6 = arith.constant 0 : index
    %c0_7 = arith.constant 0 : index
    %5 = vector.load %arg4[%c0_5, %c0_6, %c0_7] : memref<1x1x64xf32, #tpu.memory_space<vmem>>, vector<1x1x64xf32>
    %6 = vector.shape_cast %5 : vector<1x1x64xf32> to vector<1x64xf32>
    %7 = vector.broadcast %6 : vector<1x64xf32> to vector<8x64xf32>
    %8 = arith.addf %4, %7 : vector<8x64xf32>
    %cst_8 = arith.constant 0.000000e+00 : f32
    %9 = vector.broadcast %cst_8 : f32 to vector<8x64xf32>
    %10 = arith.cmpf oge, %8, %9 : vector<8x64xf32>
    %cst_9 = arith.constant 2.000000e-01 : f32
    %11 = vector.broadcast %cst_9 : f32 to vector<8x64xf32>
    %12 = arith.mulf %11, %8 : vector<8x64xf32>
    %13 = arith.select %10, %8, %12 : vector<8x64xi1>, vector<8x64xf32>
    %14 = arith.truncf %13 : vector<8x64xf32> to vector<8x64xbf16>
    %c0_10 = arith.constant 0 : index
    %c0_11 = arith.constant 0 : index
    %c0_12 = arith.constant 0 : index
    %15 = vector.load %arg5[%c0_10, %c0_11, %c0_12] : memref<1x8x64xbf16, #tpu.memory_space<vmem>>, vector<1x8x64xbf16>
    %16 = vector.shape_cast %15 : vector<1x8x64xbf16> to vector<8x64xbf16>
    %17 = vector.shape_cast %14 : vector<8x64xbf16> to vector<1x8x64xbf16>
    tpu.vector_store %arg5[%c0_10, %c0_11, %c0_12], %17 {strides = array<i32>} : memref<1x8x64xbf16, #tpu.memory_space<vmem>>, vector<1x8x64xbf16>,
    return
  }
  func.func @transform_0(%arg0: i32, %arg1: i32) -> (i32, i32, i32) {
    %c0_i32 = arith.constant 0 : i32
    %c0_i32_0 = arith.constant 0 : i32
    return %arg0, %arg1, %c0_i32 : i32, i32, i32
  }
  func.func @transform_1(%arg0: i32, %arg1: i32) -> (i32, i32, i32) {
    %c0_i32 = arith.constant 0 : i32
    %c0_i32_0 = arith.constant 0 : i32
    %c0_i32_1 = arith.constant 0 : i32
    return %arg0, %c0_i32, %c0_i32_0 : i32, i32, i32
  }
  func.func @transform_2(%arg0: i32, %arg1: i32) -> (i32, i32, i32) {
    %c0_i32 = arith.constant 0 : i32
    %c0_i32_0 = arith.constant 0 : i32
    %c0_i32_1 = arith.constant 0 : i32
    return %arg0, %c0_i32, %c0_i32_0 : i32, i32, i32
  }
  func.func @transform_3(%arg0: i32, %arg1: i32) -> (i32, i32, i32) {
    %c0_i32 = arith.constant 0 : i32
    %c0_i32_0 = arith.constant 0 : i32
    return %arg0, %arg1, %c0_i32 : i32, i32, i32
  }
}

module attributes {stable_mosaic.version = 11 : i64} {
  func.func @_bmm_kernel(%arg0: i32, %arg1: i32, %arg2: memref<1x32x64xbf16, #tpu.memory_space<vmem>>, %arg3: memref<1x64x64xbf16, #tpu.memory_space<vmem>>, %arg4: memref<1x1x64xf32, #tpu.memory_space<vmem>>, %arg5: memref<1x32x64xbf16, #tpu.memory_space<vmem>>) attributes {dimension_semantics = [#tpu.dimension_semantics<parallel>, #tpu.dimension_semantics<parallel>], iteration_bounds = array<i64: 2, 1>, scalar_prefetch = 0 : i64, scratch_operands = 0 : i64, tpu.core_type = #tpu.core_type<tc>, window_params = [{transform_indices = @transform_0, window_bounds = array<i64: 1, 32, 64>}, {transform_indices = @transform_1, window_bounds = array<i64: 1, 64, 64>}, {transform_indices = @transform_2, window_bounds = array<i64: 1, 1, 64>}, {transform_indices = @transform_3, window_bounds = array<i64: 1, 32, 64>}]} {
    %c0 = arith.constant 0 : index
    %c0_0 = arith.constant 0 : index
    %c0_1 = arith.constant 0 : index
    %0 = vector.load %arg2[%c0, %c0_0, %c0_1] : memref<1x32x64xbf16, #tpu.memory_space<vmem>>, vector<1x32x64xbf16>
    %1 = vector.shape_cast %0 : vector<1x32x64xbf16> to vector<32x64xbf16>
    %c0_2 = arith.constant 0 : index
    %c0_3 = arith.constant 0 : index
    %c0_4 = arith.constant 0 : index
    %2 = vector.load %arg3[%c0_2, %c0_3, %c0_4] : memref<1x64x64xbf16, #tpu.memory_space<vmem>>, vector<1x64x64xbf16>
    %3 = vector.shape_cast %2 : vector<1x64x64xbf16> to vector<64x64xbf16>
    %cst = arith.constant dense<0.000000e+00> : vector<32x64xf32>
    %4 = tpu.matmul %1, %3, %cst {dimension_numbers = #tpu.dot_dimension_numbers<[1], [0], [0], [1], [0, 0, 1, 1], [], []>} : vector<32x64xbf16>, vector<64x64xbf16>, vector<32x64xf32> -> vector<32x64xf32>
    %c0_5 = arith.constant 0 : index
    %c0_6 = arith.constant 0 : index
    %c0_7 = arith.constant 0 : index
    %5 = vector.load %arg4[%c0_5, %c0_6, %c0_7] : memref<1x1x64xf32, #tpu.memory_space<vmem>>, vector<1x1x64xf32>
    %6 = vector.shape_cast %5 : vector<1x1x64xf32> to vector<1x64xf32>
    %7 = vector.broadcast %6 : vector<1x64xf32> to vector<32x64xf32>
    %8 = arith.addf %4, %7 : vector<32x64xf32>
    %cst_8 = arith.constant 0.000000e+00 : f32
    %9 = vector.broadcast %cst_8 : f32 to vector<32x64xf32>
    %10 = arith.cmpf oge, %8, %9 : vector<32x64xf32>
    %cst_9 = arith.constant 2.000000e-01 : f32
    %11 = vector.broadcast %cst_9 : f32 to vector<32x64xf32>
    %12 = arith.mulf %11, %8 : vector<32x64xf32>
    %13 = arith.select %10, %8, %12 : vector<32x64xi1>, vector<32x64xf32>
    %14 = arith.truncf %13 : vector<32x64xf32> to vector<32x64xbf16>
    %c0_10 = arith.constant 0 : index
    %c0_11 = arith.constant 0 : index
    %c0_12 = arith.constant 0 : index
    %15 = vector.load %arg5[%c0_10, %c0_11, %c0_12] : memref<1x32x64xbf16, #tpu.memory_space<vmem>>, vector<1x32x64xbf16>
    %16 = vector.shape_cast %15 : vector<1x32x64xbf16> to vector<32x64xbf16>
    %17 = vector.shape_cast %14 : vector<32x64xbf16> to vector<1x32x64xbf16>
    tpu.vector_store %arg5[%c0_10, %c0_11, %c0_12], %17 {strides = array<i32>} : memref<1x32x64xbf16, #tpu.memory_space<vmem>>, vector<1x32x64xbf16>,
    return
  }
  func.func @transform_0(%arg0: i32, %arg1: i32) -> (i32, i32, i32) {
    %c0_i32 = arith.constant 0 : i32
    %c0_i32_0 = arith.constant 0 : i32
    return %arg0, %arg1, %c0_i32 : i32, i32, i32
  }
  func.func @transform_1(%arg0: i32, %arg1: i32) -> (i32, i32, i32) {
    %c0_i32 = arith.constant 0 : i32
    %c0_i32_0 = arith.constant 0 : i32
    %c0_i32_1 = arith.constant 0 : i32
    return %arg0, %c0_i32, %c0_i32_0 : i32, i32, i32
  }
  func.func @transform_2(%arg0: i32, %arg1: i32) -> (i32, i32, i32) {
    %c0_i32 = arith.constant 0 : i32
    %c0_i32_0 = arith.constant 0 : i32
    %c0_i32_1 = arith.constant 0 : i32
    return %arg0, %c0_i32, %c0_i32_0 : i32, i32, i32
  }
  func.func @transform_3(%arg0: i32, %arg1: i32) -> (i32, i32, i32) {
    %c0_i32 = arith.constant 0 : i32
    %c0_i32_0 = arith.constant 0 : i32
    return %arg0, %arg1, %c0_i32 : i32, i32, i32
  }
}

module attributes {stable_mosaic.version = 11 : i64} {
  func.func @_bmm_kernel(%arg0: i32, %arg1: i32, %arg2: memref<1x128x64xbf16, #tpu.memory_space<vmem>>, %arg3: memref<1x64x64xbf16, #tpu.memory_space<vmem>>, %arg4: memref<1x1x64xf32, #tpu.memory_space<vmem>>, %arg5: memref<1x128x64xbf16, #tpu.memory_space<vmem>>) attributes {dimension_semantics = [#tpu.dimension_semantics<parallel>, #tpu.dimension_semantics<parallel>], iteration_bounds = array<i64: 2, 1>, scalar_prefetch = 0 : i64, scratch_operands = 0 : i64, tpu.core_type = #tpu.core_type<tc>, window_params = [{transform_indices = @transform_0, window_bounds = array<i64: 1, 128, 64>}, {transform_indices = @transform_1, window_bounds = array<i64: 1, 64, 64>}, {transform_indices = @transform_2, window_bounds = array<i64: 1, 1, 64>}, {transform_indices = @transform_3, window_bounds = array<i64: 1, 128, 64>}]} {
    %c0 = arith.constant 0 : index
    %c0_0 = arith.constant 0 : index
    %c0_1 = arith.constant 0 : index
    %0 = vector.load %arg2[%c0, %c0_0, %c0_1] : memref<1x128x64xbf16, #tpu.memory_space<vmem>>, vector<1x128x64xbf16>
    %1 = vector.shape_cast %0 : vector<1x128x64xbf16> to vector<128x64xbf16>
    %c0_2 = arith.constant 0 : index
    %c0_3 = arith.constant 0 : index
    %c0_4 = arith.constant 0 : index
    %2 = vector.load %arg3[%c0_2, %c0_3, %c0_4] : memref<1x64x64xbf16, #tpu.memory_space<vmem>>, vector<1x64x64xbf16>
    %3 = vector.shape_cast %2 : vector<1x64x64xbf16> to vector<64x64xbf16>
    %cst = arith.constant dense<0.000000e+00> : vector<128x64xf32>
    %4 = tpu.matmul %1, %3, %cst {dimension_numbers = #tpu.dot_dimension_numbers<[1], [0], [0], [1], [0, 0, 1, 1], [], []>} : vector<128x64xbf16>, vector<64x64xbf16>, vector<128x64xf32> -> vector<128x64xf32>
    %c0_5 = arith.constant 0 : index
    %c0_6 = arith.constant 0 : index
    %c0_7 = arith.constant 0 : index
    %5 = vector.load %arg4[%c0_5, %c0_6, %c0_7] : memref<1x1x64xf32, #tpu.memory_space<vmem>>, vector<1x1x64xf32>
    %6 = vector.shape_cast %5 : vector<1x1x64xf32> to vector<1x64xf32>
    %7 = vector.broadcast %6 : vector<1x64xf32> to vector<128x64xf32>
    %8 = arith.addf %4, %7 : vector<128x64xf32>
    %cst_8 = arith.constant 0.000000e+00 : f32
    %9 = vector.broadcast %cst_8 : f32 to vector<128x64xf32>
    %10 = arith.cmpf oge, %8, %9 : vector<128x64xf32>
    %cst_9 = arith.constant 2.000000e-01 : f32
    %11 = vector.broadcast %cst_9 : f32 to vector<128x64xf32>
    %12 = arith.mulf %11, %8 : vector<128x64xf32>
    %13 = arith.select %10, %8, %12 : vector<128x64xi1>, vector<128x64xf32>
    %14 = arith.truncf %13 : vector<128x64xf32> to vector<128x64xbf16>
    %c0_10 = arith.constant 0 : index
    %c0_11 = arith.constant 0 : index
    %c0_12 = arith.constant 0 : index
    %15 = vector.load %arg5[%c0_10, %c0_11, %c0_12] : memref<1x128x64xbf16, #tpu.memory_space<vmem>>, vector<1x128x64xbf16>
    %16 = vector.shape_cast %15 : vector<1x128x64xbf16> to vector<128x64xbf16>
    %17 = vector.shape_cast %14 : vector<128x64xbf16> to vector<1x128x64xbf16>
    tpu.vector_store %arg5[%c0_10, %c0_11, %c0_12], %17 {strides = array<i32>} : memref<1x128x64xbf16, #tpu.memory_space<vmem>>, vector<1x128x64xbf16>,
    return
  }
  func.func @transform_0(%arg0: i32, %arg1: i32) -> (i32, i32, i32) {
    %c0_i32 = arith.constant 0 : i32
    %c0_i32_0 = arith.constant 0 : i32
    return %arg0, %arg1, %c0_i32 : i32, i32, i32
  }
  func.func @transform_1(%arg0: i32, %arg1: i32) -> (i32, i32, i32) {
    %c0_i32 = arith.constant 0 : i32
    %c0_i32_0 = arith.constant 0 : i32
    %c0_i32_1 = arith.constant 0 : i32
    return %arg0, %c0_i32, %c0_i32_0 : i32, i32, i32
  }
  func.func @transform_2(%arg0: i32, %arg1: i32) -> (i32, i32, i32) {
    %c0_i32 = arith.constant 0 : i32
    %c0_i32_0 = arith.constant 0 : i32
    %c0_i32_1 = arith.constant 0 : i32
    return %arg0, %c0_i32, %c0_i32_0 : i32, i32, i32
  }
  func.func @transform_3(%arg0: i32, %arg1: i32) -> (i32, i32, i32) {
    %c0_i32 = arith.constant 0 : i32
    %c0_i32_0 = arith.constant 0 : i32
    return %arg0, %arg1, %c0_i32 : i32, i32, i32
  }
}

module attributes {stable_mosaic.version = 11 : i64} {
  func.func @_bmm_kernel(%arg0: i32, %arg1: i32, %arg2: memref<1x512x16xbf16, #tpu.memory_space<vmem>>, %arg3: memref<1x16x2xbf16, #tpu.memory_space<vmem>>, %arg4: memref<1x1x2xf32, #tpu.memory_space<vmem>>, %arg5: memref<1x512x2xbf16, #tpu.memory_space<vmem>>) attributes {dimension_semantics = [#tpu.dimension_semantics<parallel>, #tpu.dimension_semantics<parallel>], iteration_bounds = array<i64: 2, 1>, scalar_prefetch = 0 : i64, scratch_operands = 0 : i64, tpu.core_type = #tpu.core_type<tc>, window_params = [{transform_indices = @transform_0, window_bounds = array<i64: 1, 512, 16>}, {transform_indices = @transform_1, window_bounds = array<i64: 1, 16, 2>}, {transform_indices = @transform_2, window_bounds = array<i64: 1, 1, 2>}, {transform_indices = @transform_3, window_bounds = array<i64: 1, 512, 2>}]} {
    %c0 = arith.constant 0 : index
    %c0_0 = arith.constant 0 : index
    %c0_1 = arith.constant 0 : index
    %0 = vector.load %arg2[%c0, %c0_0, %c0_1] : memref<1x512x16xbf16, #tpu.memory_space<vmem>>, vector<1x512x16xbf16>
    %1 = vector.shape_cast %0 : vector<1x512x16xbf16> to vector<512x16xbf16>
    %c0_2 = arith.constant 0 : index
    %c0_3 = arith.constant 0 : index
    %c0_4 = arith.constant 0 : index
    %2 = vector.load %arg3[%c0_2, %c0_3, %c0_4] : memref<1x16x2xbf16, #tpu.memory_space<vmem>>, vector<1x16x2xbf16>
    %3 = vector.shape_cast %2 : vector<1x16x2xbf16> to vector<16x2xbf16>
    %cst = arith.constant dense<0.000000e+00> : vector<512x2xf32>
    %4 = tpu.matmul %1, %3, %cst {dimension_numbers = #tpu.dot_dimension_numbers<[1], [0], [0], [1], [0, 0, 1, 1], [], []>} : vector<512x16xbf16>, vector<16x2xbf16>, vector<512x2xf32> -> vector<512x2xf32>
    %c0_5 = arith.constant 0 : index
    %c0_6 = arith.constant 0 : index
    %c0_7 = arith.constant 0 : index
    %5 = vector.load %arg4[%c0_5, %c0_6, %c0_7] : memref<1x1x2xf32, #tpu.memory_space<vmem>>, vector<1x1x2xf32>
    %6 = vector.shape_cast %5 : vector<1x1x2xf32> to vector<1x2xf32>
    %7 = vector.broadcast %6 : vector<1x2xf32> to vector<512x2xf32>
    %8 = arith.addf %4, %7 : vector<512x2xf32>
    %cst_8 = arith.constant 0.000000e+00 : f32
    %9 = vector.broadcast %cst_8 : f32 to vector<512x2xf32>
    %10 = arith.cmpf oge, %8, %9 : vector<512x2xf32>
    %cst_9 = arith.constant 2.000000e-01 : f32
    %11 = vector.broadcast %cst_9 : f32 to vector<512x2xf32>
    %12 = arith.mulf %11, %8 : vector<512x2xf32>
    %13 = arith.select %10, %8, %12 : vector<512x2xi1>, vector<512x2xf32>
    %14 = arith.truncf %13 : vector<512x2xf32> to vector<512x2xbf16>
    %c0_10 = arith.constant 0 : index
    %c0_11 = arith.constant 0 : index
    %c0_12 = arith.constant 0 : index
    %15 = vector.load %arg5[%c0_10, %c0_11, %c0_12] : memref<1x512x2xbf16, #tpu.memory_space<vmem>>, vector<1x512x2xbf16>
    %16 = vector.shape_cast %15 : vector<1x512x2xbf16> to vector<512x2xbf16>
    %17 = vector.shape_cast %14 : vector<512x2xbf16> to vector<1x512x2xbf16>
    tpu.vector_store %arg5[%c0_10, %c0_11, %c0_12], %17 {strides = array<i32>} : memref<1x512x2xbf16, #tpu.memory_space<vmem>>, vector<1x512x2xbf16>,
    return
  }
  func.func @transform_0(%arg0: i32, %arg1: i32) -> (i32, i32, i32) {
    %c0_i32 = arith.constant 0 : i32
    %c0_i32_0 = arith.constant 0 : i32
    return %arg0, %arg1, %c0_i32 : i32, i32, i32
  }
  func.func @transform_1(%arg0: i32, %arg1: i32) -> (i32, i32, i32) {
    %c0_i32 = arith.constant 0 : i32
    %c0_i32_0 = arith.constant 0 : i32
    %c0_i32_1 = arith.constant 0 : i32
    return %arg0, %c0_i32, %c0_i32_0 : i32, i32, i32
  }
  func.func @transform_2(%arg0: i32, %arg1: i32) -> (i32, i32, i32) {
    %c0_i32 = arith.constant 0 : i32
    %c0_i32_0 = arith.constant 0 : i32
    %c0_i32_1 = arith.constant 0 : i32
    return %arg0, %c0_i32, %c0_i32_0 : i32, i32, i32
  }
  func.func @transform_3(%arg0: i32, %arg1: i32) -> (i32, i32, i32) {
    %c0_i32 = arith.constant 0 : i32
    %c0_i32_0 = arith.constant 0 : i32
    return %arg0, %arg1, %c0_i32 : i32, i32, i32
  }
}

</mosaic_0001>

<llo_original>
// kernel: custom-call
$region0: #{custom-call}
  %s0 = inlined_call_operand.hbm [shape: bf16[2,2,2,2,16], index: 0, kind: output, shape index: {}]

// kernel: closed_call.76
$region0: #{closed_call.76}
  #allocation0 [shape = 'u32[]', space=smem, size = 0x4, offset = 0x4, fixed_abs, tag = 'smem constant byte address 0x4 - core index']
  #allocation1 [shape = 'u32[144,128]{1,0:T(1,128)}', space=vmem, size = 0x12000, scoped, tag = 'internal scratch']
  %s0 = inlined_call_operand.vmem [shape: bf16[2,512,2], index: 0, kind: input, shape index: {}]
  %s1 = inlined_call_operand.vmem [shape: bf16[2,2,16], index: 1, kind: input, shape index: {}]
  %s2 = inlined_call_operand.vmem [shape: f32[2,1,16], index: 2, kind: input, shape index: {}]
  %s3 = inlined_call_operand.vmem [shape: bf16[2,512,16], index: 3, kind: output, shape index: {}]
  %s4 = sld [smem:[#allocation0]]
  $region45: #{closed_call.76} parent=0
    _
  %s6 = ssub.s32 1, %s4
  %s7 = scalar_select 0, %s6, %s4
  loop: start=0, step=1, limit=4
  $region2: #{closed_call.76} parent=0 // loop_pre_header
    _
  $region3: #{closed_call.76} parent=0 // loop_header
    %s9 = sphi 0, %s13
    %p10 = scmp.ge.s32.totalorder %s9, 4
    %s16 = sphi 0, %s28
    %s17 = sphi 0, %s24
    %s18 = sphi 0, %s16
    %s19 = sphi 0, %s17
    %s20 = sphi 0, %s18
    %s21 = sphi 0, %s19
    %s33 = sphi 0, %s35
    %s36 = sphi 0, %s33
    %s37 = sphi 0, %s36
    %s53 = sphi 0, %s37
    %s59 = sphi 0, %s61
    %s62 = sphi 0, %s59
    %s63 = sphi 0, %s62
    %s79 = sphi 0, %s63
    %s85 = sphi 0, %s87
    %s88 = sphi 0, %s85
    %s89 = sphi 0, %s88
    %s105 = sphi 0, %s89
    %s113 = sphi 0, %s115
    %s116 = sphi 0, %s113
    %s117 = sphi 0, %s116
    %s133 = sphi 0, %s117
  $region4: #{closed_call.76} parent=0 // loop_header_branch
    %12 = sbr.rel (%p10) target = $region8
  $region5: #{closed_call.76} parent=0 // loop_body
    %s14 = ssub.s32 %s9, 1
    %s15 = ssub.s32 %s9, 2
    %s22 = sadd.s32 1, %s17
    %p23 = scmp.ge.s32.totalorder %s22, 1
    %s24 = scalar_select %p23, 0, %s22
    %s25 = sadd.s32 1, %s16
    %s26 = scalar_select %p23, %s25, %s16
    %p27 = scmp.ge.s32.totalorder %s26, 2
    %s28 = scalar_select %p27, 0, %s26
    %s29 = ssub.s32 %s16, %s28
    %s30 = ssub.s32 %s17, %s24
    %s31 = sor.u32 %s29, %s30
    %p32 = scmp.eq.s32.totalorder %s31, 0
    %s34 = sadd.s32 %s33, 1
    %s35 = scalar_select %p32, %s33, %s34
    %p38 = pneg %p32
    %p39 = scmp.eq.s32.totalorder %s9, 1
    %p40 = por %p38, %p39
    %p41 = scmp.ne.s32.totalorder %s33, %s36
    %p42 = scmp.eq.s32.totalorder %s9, 0
    %p43 = por %p41, %p42
    %p44 = scmp.ne.s32.totalorder %s33, %s36
    %p45 = scmp.eq.s32.totalorder %s14, 1
    %p46 = por %p44, %p45
    %p47 = scmp.ne.s32.totalorder %s36, %s37
    %p48 = scmp.eq.s32.totalorder %s14, 0
    %p49 = por %p47, %p48
    %p50 = scmp.ne.s32.totalorder %s36, %s37
    %p51 = scmp.eq.s32.totalorder %s15, 1
    %p52 = por %p50, %p51
    %p54 = scmp.ne.s32.totalorder %s37, %s53
    %p55 = scmp.eq.s32.totalorder %s15, 0
    %p56 = por %p54, %p55
    %s57 = ssub.s32 %s16, %s28
    %p58 = scmp.eq.s32.totalorder %s57, 0
    %s60 = sadd.s32 %s59, 1
    %s61 = scalar_select %p58, %s59, %s60
    %p64 = pneg %p58
    %p65 = scmp.eq.s32.totalorder %s9, 1
    %p66 = por %p64, %p65
    %p67 = scmp.ne.s32.totalorder %s59, %s62
    %p68 = scmp.eq.s32.totalorder %s9, 0
    %p69 = por %p67, %p68
    %p70 = scmp.ne.s32.totalorder %s59, %s62
    %p71 = scmp.eq.s32.totalorder %s14, 1
    %p72 = por %p70, %p71
    %p73 = scmp.ne.s32.totalorder %s62, %s63
    %p74 = scmp.eq.s32.totalorder %s14, 0
    %p75 = por %p73, %p74
    %p76 = scmp.ne.s32.totalorder %s62, %s63
    %p77 = scmp.eq.s32.totalorder %s15, 1
    %p78 = por %p76, %p77
    %p80 = scmp.ne.s32.totalorder %s63, %s79
    %p81 = scmp.eq.s32.totalorder %s15, 0
    %p82 = por %p80, %p81
    %s83 = ssub.s32 %s16, %s28
    %p84 = scmp.eq.s32.totalorder %s83, 0
    %s86 = sadd.s32 %s85, 1
    %s87 = scalar_select %p84, %s85, %s86
    %p90 = pneg %p84
    %p91 = scmp.eq.s32.totalorder %s9, 1
    %p92 = por %p90, %p91
    %p93 = scmp.ne.s32.totalorder %s85, %s88
    %p94 = scmp.eq.s32.totalorder %s9, 0
    %p95 = por %p93, %p94
    %p96 = scmp.ne.s32.totalorder %s85, %s88
    %p97 = scmp.eq.s32.totalorder %s14, 1
    %p98 = por %p96, %p97
    %p99 = scmp.ne.s32.totalorder %s88, %s89
    %p100 = scmp.eq.s32.totalorder %s14, 0
    %p101 = por %p99, %p100
    %p102 = scmp.ne.s32.totalorder %s88, %s89
    %p103 = scmp.eq.s32.totalorder %s15, 1
    %p104 = por %p102, %p103
    %p106 = scmp.ne.s32.totalorder %s89, %s105
    %p107 = scmp.eq.s32.totalorder %s15, 0
    %p108 = por %p106, %p107
    %s109 = ssub.s32 %s16, %s28
    %s110 = ssub.s32 %s17, %s24
    %s111 = sor.u32 %s109, %s110
    %p112 = scmp.eq.s32.totalorder %s111, 0
    %s114 = sadd.s32 %s113, 1
    %s115 = scalar_select %p112, %s113, %s114
    %p118 = pneg %p112
    %p119 = scmp.eq.s32.totalorder %s9, 1
    %p120 = por %p118, %p119
    %p121 = scmp.ne.s32.totalorder %s113, %s116
    %p122 = scmp.eq.s32.totalorder %s9, 0
    %p123 = por %p121, %p122
    %p124 = scmp.ne.s32.totalorder %s113, %s116
    %p125 = scmp.eq.s32.totalorder %s14, 1
    %p126 = por %p124, %p125
    %p127 = scmp.ne.s32.totalorder %s116, %s117
    %p128 = scmp.eq.s32.totalorder %s14, 0
    %p129 = por %p127, %p128
    %p130 = scmp.ne.s32.totalorder %s116, %s117
    %p131 = scmp.eq.s32.totalorder %s15, 1
    %p132 = por %p130, %p131
    %p134 = scmp.ne.s32.totalorder %s117, %s133
    %p135 = scmp.eq.s32.totalorder %s15, 0
    %p136 = por %p134, %p135
    %p137 = scmp.le.s32.totalorder 1, %s9
    %p138 = scmp.lt.s32.totalorder %s9, 3
    %p139 = pnand %p137, %p138
    %p140 = pneg %p139
    // Predicated region
    $region9: #{closed_call.76} parent=5 // pred_check
      _
    $region10: #{closed_call.76} parent=5 // pred_check_branch
      %142 = sbr.rel (%p139) target = $region12
    $region11: #{closed_call.76} parent=5 // pred_region
      %s143 = ssub.s32 %s9, 1
    $region12: #{closed_call.76} parent=5 // pred_fallthru
      _
    %p144 = scmp.lt.s32.totalorder %s9, 2
    // Predicated region
    $region13: #{closed_call.76} parent=5 // pred_check
      %p145 = pneg %p144
    $region14: #{closed_call.76} parent=5 // pred_check_branch
      %147 = sbr.rel (%p145) target = $region16
    $region15: #{closed_call.76} parent=5 // pred_region
      // Predicated region
      $region17: #{closed_call.76} parent=15 // pred_check
        %p148 = pneg %p43
      $region18: #{closed_call.76} parent=15 // pred_check_branch
        %150 = sbr.rel (%p148) target = $region20
      $region19: #{closed_call.76} parent=15 // pred_region
        %s151 = smul.u32 64, %s17
        %p152 = scmp.lt.s32.totalorder %s16, 1
        %s153 = scalar_select %p152, %s16, 1
        %p154 = scmp.lt.s32.totalorder %s151, 63
        %s155 = scalar_select %p154, %s151, 63
        %s156 = smul.addr %s153, 64
        %s157 = sadd.s32 %s155, %s156
        %s158 = smul.addr %s157, 4
        %s159 = scalar_lea.vmem %s0, %s158
        %s160 = smul.u32 64, %s17
      $region20: #{closed_call.76} parent=15 // pred_fallthru
        _
      // Predicated region
      $region21: #{closed_call.76} parent=15 // pred_check
        %p161 = pneg %p69
      $region22: #{closed_call.76} parent=15 // pred_check_branch
        %163 = sbr.rel (%p161) target = $region24
      $region23: #{closed_call.76} parent=15 // pred_region
        %p164 = scmp.lt.s32.totalorder %s16, 1
        %s165 = scalar_select %p164, %s16, 1
        %s166 = scalar_lea.vmem %s1, %s165
      $region24: #{closed_call.76} parent=15 // pred_fallthru
        _
      // Predicated region
      $region25: #{closed_call.76} parent=15 // pred_check
        %p167 = pneg %p95
      $region26: #{closed_call.76} parent=15 // pred_check_branch
        %169 = sbr.rel (%p167) target = $region28
      $region27: #{closed_call.76} parent=15 // pred_region
        %p170 = scmp.lt.s32.totalorder %s16, 1
        %s171 = scalar_select %p170, %s16, 1
        %s172 = scalar_lea.vmem %s2, %s171
      $region28: #{closed_call.76} parent=15 // pred_fallthru
        _
    $region16: #{closed_call.76} parent=5 // pred_fallthru
      _
    %p173 = scmp.le.s32.totalorder 1, %s9
    %p174 = scmp.lt.s32.totalorder %s9, 3
    %p175 = pnand %p173, %p174
    %p176 = pneg %p175
    // Predicated region
    $region29: #{closed_call.76} parent=5 // pred_check
      _
    $region30: #{closed_call.76} parent=5 // pred_check_branch
      %178 = sbr.rel (%p175) target = $region32
    $region31: #{closed_call.76} parent=5 // pred_region
      %s179 = ssub.s32 %s9, 1
      %s180 = smul.u32 64, %s19
      %p181 = scmp.lt.s32.totalorder %s18, 1
      %s182 = scalar_select %p181, %s18, 1
      %p183 = scmp.lt.s32.totalorder %s180, 63
      %s184 = scalar_select %p183, %s180, 63
      %s185 = smul.addr %s182, 64
      %s186 = sadd.s32 %s184, %s185
      %s187 = smul.addr %s186, 4
      %s188 = scalar_lea.vmem %s0, %s187
      %p189 = pneg %p49
      %p190 = pneg %p46
      %p191 = scmp.lt.s32.totalorder %s18, 1
      %s192 = scalar_select %p191, %s18, 1
      %s193 = scalar_lea.vmem %s1, %s192
      %p194 = pneg %p75
      %p195 = pneg %p72
      %p196 = scmp.lt.s32.totalorder %s18, 1
      %s197 = scalar_select %p196, %s18, 1
      %s198 = scalar_lea.vmem %s2, %s197
      %p199 = pneg %p101
      %p200 = pneg %p98
      %p201 = pneg %p129
      %p202 = pneg %p126
      %s203 = smul.u32 64, %s19
      %p204 = scmp.lt.s32.totalorder %s18, 1
      %s205 = scalar_select %p204, %s18, 1
      %p206 = scmp.lt.s32.totalorder %s203, 63
      %s207 = scalar_select %p206, %s203, 63
      %s208 = smul.addr %s205, 64
      %s209 = sadd.s32 %s207, %s208
      %s210 = smul.addr %s209, 4
      %s211 = scalar_lea.vmem %s3, %s210
      %s212 = smul.u32 64, %s19
      %p213 = scmp.lt.s32.totalorder %s18, 1
      %s214 = scalar_select %p213, %s18, 1
      %p215 = scmp.lt.s32.totalorder %s212, 63
      %s216 = scalar_select %p215, %s212, 63
      %s217 = smul.addr %s214, 64
      %s218 = sadd.s32 %s216, %s217
      %s219 = smul.addr %s218, 4
      %s220 = scalar_lea.vmem %s0, %s219
      %s221 = smul.u32 64, %s19
      %p222 = scmp.lt.s32.totalorder %s18, 1
      %s223 = scalar_select %p222, %s18, 1
      %s224 = scalar_lea.vmem %s1, %s223
      %p225 = scmp.lt.s32.totalorder %s18, 1
      %s226 = scalar_select %p225, %s18, 1
      %s227 = scalar_lea.vmem %s2, %s226
      %s228 = smul.u32 64, %s19
      %p229 = scmp.lt.s32.totalorder %s18, 1
      %s230 = scalar_select %p229, %s18, 1
      %p231 = scmp.lt.s32.totalorder %s228, 63
      %s232 = scalar_select %p231, %s228, 63
      %s233 = smul.addr %s230, 64
      %s234 = sadd.s32 %s232, %s233
      %s235 = smul.addr %s234, 4
      %s236 = scalar_lea.vmem %s3, %s235
      %s237 = smul.u32 64, %s19
      %v239 = vld [vmem:[%s220] sm:$0xf]
      %v240 = vld [vmem:[%s220 + $0x4] sm:$0xf]
      %v241 = vld [vmem:[%s220 + $0x8] sm:$0xf]
      %v242 = vld [vmem:[%s220 + $0xc] sm:$0xf]
      %v243 = vld [vmem:[%s220 + $0x10] sm:$0xf]
      %v244 = vld [vmem:[%s220 + $0x14] sm:$0xf]
      %v245 = vld [vmem:[%s220 + $0x18] sm:$0xf]
      %v246 = vld [vmem:[%s220 + $0x1c] sm:$0xf]
      %v247 = vld [vmem:[%s220 + $0x20] sm:$0xf]
      %v248 = vld [vmem:[%s220 + $0x24] sm:$0xf]
      %v249 = vld [vmem:[%s220 + $0x28] sm:$0xf]
      %v250 = vld [vmem:[%s220 + $0x2c] sm:$0xf]
      %v251 = vld [vmem:[%s220 + $0x30] sm:$0xf]
      %v252 = vld [vmem:[%s220 + $0x34] sm:$0xf]
      %v253 = vld [vmem:[%s220 + $0x38] sm:$0xf]
      %v254 = vld [vmem:[%s220 + $0x3c] sm:$0xf]
      %v255 = vld [vmem:[%s220 + $0x40] sm:$0xf]
      %v256 = vld [vmem:[%s220 + $0x44] sm:$0xf]
      %v257 = vld [vmem:[%s220 + $0x48] sm:$0xf]
      %v258 = vld [vmem:[%s220 + $0x4c] sm:$0xf]
      %v259 = vld [vmem:[%s220 + $0x50] sm:$0xf]
      %v260 = vld [vmem:[%s220 + $0x54] sm:$0xf]
      %v261 = vld [vmem:[%s220 + $0x58] sm:$0xf]
      %v262 = vld [vmem:[%s220 + $0x5c] sm:$0xf]
      %v263 = vld [vmem:[%s220 + $0x60] sm:$0xf]
      %v264 = vld [vmem:[%s220 + $0x64] sm:$0xf]
      %v265 = vld [vmem:[%s220 + $0x68] sm:$0xf]
      %v266 = vld [vmem:[%s220 + $0x6c] sm:$0xf]
      %v267 = vld [vmem:[%s220 + $0x70] sm:$0xf]
      %v268 = vld [vmem:[%s220 + $0x74] sm:$0xf]
      %v269 = vld [vmem:[%s220 + $0x78] sm:$0xf]
      %v270 = vld [vmem:[%s220 + $0x7c] sm:$0xf]
      %v271 = vld [vmem:[%s220 + $0x80] sm:$0xf]
      %v272 = vld [vmem:[%s220 + $0x84] sm:$0xf]
      %v273 = vld [vmem:[%s220 + $0x88] sm:$0xf]
      %v274 = vld [vmem:[%s220 + $0x8c] sm:$0xf]
      %v275 = vld [vmem:[%s220 + $0x90] sm:$0xf]
      %v276 = vld [vmem:[%s220 + $0x94] sm:$0xf]
      %v277 = vld [vmem:[%s220 + $0x98] sm:$0xf]
      %v278 = vld [vmem:[%s220 + $0x9c] sm:$0xf]
      %v279 = vld [vmem:[%s220 + $0xa0] sm:$0xf]
      %v280 = vld [vmem:[%s220 + $0xa4] sm:$0xf]
      %v281 = vld [vmem:[%s220 + $0xa8] sm:$0xf]
      %v282 = vld [vmem:[%s220 + $0xac] sm:$0xf]
      %v283 = vld [vmem:[%s220 + $0xb0] sm:$0xf]
      %v284 = vld [vmem:[%s220 + $0xb4] sm:$0xf]
      %v285 = vld [vmem:[%s220 + $0xb8] sm:$0xf]
      %v286 = vld [vmem:[%s220 + $0xbc] sm:$0xf]
      %v287 = vld [vmem:[%s220 + $0xc0] sm:$0xf]
      %v288 = vld [vmem:[%s220 + $0xc4] sm:$0xf]
      %v289 = vld [vmem:[%s220 + $0xc8] sm:$0xf]
      %v290 = vld [vmem:[%s220 + $0xcc] sm:$0xf]
      %v291 = vld [vmem:[%s220 + $0xd0] sm:$0xf]
      %v292 = vld [vmem:[%s220 + $0xd4] sm:$0xf]
      %v293 = vld [vmem:[%s220 + $0xd8] sm:$0xf]
      %v294 = vld [vmem:[%s220 + $0xdc] sm:$0xf]
      %v295 = vld [vmem:[%s220 + $0xe0] sm:$0xf]
      %v296 = vld [vmem:[%s220 + $0xe4] sm:$0xf]
      %v297 = vld [vmem:[%s220 + $0xe8] sm:$0xf]
      %v298 = vld [vmem:[%s220 + $0xec] sm:$0xf]
      %v299 = vld [vmem:[%s220 + $0xf0] sm:$0xf]
      %v300 = vld [vmem:[%s220 + $0xf4] sm:$0xf]
      %v301 = vld [vmem:[%s220 + $0xf8] sm:$0xf]
      %v302 = vld [vmem:[%s220 + $0xfc] sm:$0xf]
      %v303 = vld [vmem:[%s224] sm:$0x1]
      %v304 = vld [vmem:[%s227] sm:$0x1]
      %v306 = vlaneseq
      %v307 = vshrl.u32 %v306, 7
      %v308 = vsub.s32 0, %v307
      %v309 = vrot.slane %v304, %v308
      %v375 = vunpack.c.l.b16 %v239
      %v376 = vunpack.c.l.b16 %v240
      %v377 = vunpack.c.l.b16 %v241
      %v378 = vunpack.c.l.b16 %v242
      %v379 = vunpack.c.l.b16 %v243
      %v380 = vunpack.c.l.b16 %v244
      %v381 = vunpack.c.l.b16 %v245
      %v382 = vunpack.c.l.b16 %v246
      %v383 = vunpack.c.l.b16 %v247
      %v384 = vunpack.c.l.b16 %v248
      %v385 = vunpack.c.l.b16 %v249
      %v386 = vunpack.c.l.b16 %v250
      %v387 = vunpack.c.l.b16 %v251
      %v388 = vunpack.c.l.b16 %v252
      %v389 = vunpack.c.l.b16 %v253
      %v390 = vunpack.c.l.b16 %v254
      %v391 = vunpack.c.l.b16 %v255
      %v392 = vunpack.c.l.b16 %v256
      %v393 = vunpack.c.l.b16 %v257
      %v394 = vunpack.c.l.b16 %v258
      %v395 = vunpack.c.l.b16 %v259
      %v396 = vunpack.c.l.b16 %v260
      %v397 = vunpack.c.l.b16 %v261
      %v398 = vunpack.c.l.b16 %v262
      %v399 = vunpack.c.l.b16 %v263
      %v400 = vunpack.c.l.b16 %v264
      %v401 = vunpack.c.l.b16 %v265
      %v402 = vunpack.c.l.b16 %v266
      %v403 = vunpack.c.l.b16 %v267
      %v404 = vunpack.c.l.b16 %v268
      %v405 = vunpack.c.l.b16 %v269
      %v406 = vunpack.c.l.b16 %v270
      %v407 = vunpack.c.l.b16 %v271
      %v408 = vunpack.c.l.b16 %v272
      %v409 = vunpack.c.l.b16 %v273
      %v410 = vunpack.c.l.b16 %v274
      %v411 = vunpack.c.l.b16 %v275
      %v412 = vunpack.c.l.b16 %v276
      %v413 = vunpack.c.l.b16 %v277
      %v414 = vunpack.c.l.b16 %v278
      %v415 = vunpack.c.l.b16 %v279
      %v416 = vunpack.c.l.b16 %v280
      %v417 = vunpack.c.l.b16 %v281
      %v418 = vunpack.c.l.b16 %v282
      %v419 = vunpack.c.l.b16 %v283
      %v420 = vunpack.c.l.b16 %v284
      %v421 = vunpack.c.l.b16 %v285
      %v422 = vunpack.c.l.b16 %v286
      %v423 = vunpack.c.l.b16 %v287
      %v424 = vunpack.c.l.b16 %v288
      %v425 = vunpack.c.l.b16 %v289
      %v426 = vunpack.c.l.b16 %v290
      %v427 = vunpack.c.l.b16 %v291
      %v428 = vunpack.c.l.b16 %v292
      %v429 = vunpack.c.l.b16 %v293
      %v430 = vunpack.c.l.b16 %v294
      %v431 = vunpack.c.l.b16 %v295
      %v432 = vunpack.c.l.b16 %v296
      %v433 = vunpack.c.l.b16 %v297
      %v434 = vunpack.c.l.b16 %v298
      %v435 = vunpack.c.l.b16 %v299
      %v436 = vunpack.c.l.b16 %v300
      %v437 = vunpack.c.l.b16 %v301
      %v438 = vunpack.c.l.b16 %v302
      %v439 = vpack.c.b16 %v376, %v375
      %v440 = vpack.c.b16 %v378, %v377
      %v441 = vpack.c.b16 %v380, %v379
      %v442 = vpack.c.b16 %v382, %v381
      %v443 = vpack.c.b16 %v384, %v383
      %v444 = vpack.c.b16 %v386, %v385
      %v445 = vpack.c.b16 %v388, %v387
      %v446 = vpack.c.b16 %v390, %v389
      %v447 = vpack.c.b16 %v392, %v391
      %v448 = vpack.c.b16 %v394, %v393
      %v449 = vpack.c.b16 %v396, %v395
      %v450 = vpack.c.b16 %v398, %v397
      %v451 = vpack.c.b16 %v400, %v399
      %v452 = vpack.c.b16 %v402, %v401
      %v453 = vpack.c.b16 %v404, %v403
      %v454 = vpack.c.b16 %v406, %v405
      %v455 = vpack.c.b16 %v408, %v407
      %v456 = vpack.c.b16 %v410, %v409
      %v457 = vpack.c.b16 %v412, %v411
      %v458 = vpack.c.b16 %v414, %v413
      %v459 = vpack.c.b16 %v416, %v415
      %v460 = vpack.c.b16 %v418, %v417
      %v461 = vpack.c.b16 %v420, %v419
      %v462 = vpack.c.b16 %v422, %v421
      %v463 = vpack.c.b16 %v424, %v423
      %v464 = vpack.c.b16 %v426, %v425
      %v465 = vpack.c.b16 %v428, %v427
      %v466 = vpack.c.b16 %v430, %v429
      %v467 = vpack.c.b16 %v432, %v431
      %v468 = vpack.c.b16 %v434, %v433
      %v469 = vpack.c.b16 %v436, %v435
      %v470 = vpack.c.b16 %v438, %v437
      %vm471 = vcmask 15360
      %v473 = vsel %vm471, %v439, 0
      %v476 = vsel %vm471, %v440, 0
      %v479 = vsel %vm471, %v441, 0
      %v482 = vsel %vm471, %v442, 0
      %v485 = vsel %vm471, %v443, 0
      %v488 = vsel %vm471, %v444, 0
      %v491 = vsel %vm471, %v445, 0
      %v494 = vsel %vm471, %v446, 0
      %v497 = vsel %vm471, %v447, 0
      %v500 = vsel %vm471, %v448, 0
      %v503 = vsel %vm471, %v449, 0
      %v506 = vsel %vm471, %v450, 0
      %v509 = vsel %vm471, %v451, 0
      %v512 = vsel %vm471, %v452, 0
      %v515 = vsel %vm471, %v453, 0
      %v518 = vsel %vm471, %v454, 0
      %v521 = vsel %vm471, %v455, 0
      %v524 = vsel %vm471, %v456, 0
      %v527 = vsel %vm471, %v457, 0
      %v530 = vsel %vm471, %v458, 0
      %v533 = vsel %vm471, %v459, 0
      %v536 = vsel %vm471, %v460, 0
      %v539 = vsel %vm471, %v461, 0
      %v542 = vsel %vm471, %v462, 0
      %v545 = vsel %vm471, %v463, 0
      %v548 = vsel %vm471, %v464, 0
      %v551 = vsel %vm471, %v465, 0
      %v554 = vsel %vm471, %v466, 0
      %v557 = vsel %vm471, %v467, 0
      %v560 = vsel %vm471, %v468, 0
      %v563 = vsel %vm471, %v469, 0
      %v566 = vsel %vm471, %v470, 0
      %vm568 = vcmask 1040384
      %v570 = vsel %vm568, %v303, 0
      %572 = vmatprep.subr.bf16.mxu0 0
      %573 = vmatpush1.bf16.msra.mxu0 %v570
      %574 = vmatprep.subr.bf16.mxu0 0
      %575 = vmatpush1.bf16.msra.mxu0 0
      %576 = vmatprep.subr.bf16.mxu0 0
      %577 = vmatpush1.bf16.msra.mxu0 0
      %578 = vmatprep.subr.bf16.mxu0 0
      %579 = vmatpush1.bf16.msra.mxu0 0
      %580 = vmatprep.subr.bf16.mxu0 0
      %581 = vmatpush1.bf16.msra.mxu0 0
      %582 = vmatprep.subr.bf16.mxu0 0
      %583 = vmatpush1.bf16.msra.mxu0 0
      %584 = vmatprep.subr.bf16.mxu0 0
      %585 = vmatpush1.bf16.msra.mxu0 0
      %586 = vmatprep.subr.bf16.mxu0 0
      %587 = vmatpush1.bf16.msra.mxu0 0
      %588 = vmatprep.subr.bf16.mxu0 0
      %589 = vmatpush1.bf16.msra.mxu0 0
      %590 = vmatprep.subr.bf16.mxu0 0
      %591 = vmatpush1.bf16.msra.mxu0 0
      %592 = vmatprep.subr.bf16.mxu0 0
      %593 = vmatpush1.bf16.msra.mxu0 0
      %594 = vmatprep.subr.bf16.mxu0 0
      %595 = vmatpush1.bf16.msra.mxu0 0
      %596 = vmatprep.subr.bf16.mxu0 0
      %597 = vmatpush1.bf16.msra.mxu0 0
      %598 = vmatprep.subr.bf16.mxu0 0
      %599 = vmatpush1.bf16.msra.mxu0 0
      %600 = vmatprep.subr.bf16.mxu0 0
      %601 = vmatpush1.bf16.msra.mxu0 0
      %602 = vmatprep.subr.bf16.mxu0 0
      %603 = vmatpush1.bf16.msra.mxu0 0
      %604 = vmatprep.mubr.bf16.mxu0 0
      %605 = vmatmul.mubr.bf16.gmra.mrb[0].mxu0 %v473
      %v606 = vpop.f32.mrb[0].mxu0
      %v607 = vadd.f32 %v309, %v606
      %v608 = vpop.f32.mrb[0].mxu0
      %v609 = vpop.f32.mrb[0].mxu0
      %v610 = vadd.f32 %v309, %v609
      %v611 = vpop.f32.mrb[0].mxu0
      %612 = vmatprep.mubr.bf16.mxu0 0
      %613 = vmatmul.mubr.bf16.gmra.mrb[0].mxu0 %v476
      %v614 = vpop.f32.mrb[0].mxu0
      %v615 = vadd.f32 %v309, %v614
      %v616 = vpop.f32.mrb[0].mxu0
      %v617 = vpop.f32.mrb[0].mxu0
      %v618 = vadd.f32 %v309, %v617
      %v619 = vpop.f32.mrb[0].mxu0
      %620 = vmatprep.mubr.bf16.mxu0 0
      %621 = vmatmul.mubr.bf16.gmra.mrb[0].mxu0 %v479
      %v622 = vpop.f32.mrb[0].mxu0
      %v623 = vadd.f32 %v309, %v622
      %v624 = vpop.f32.mrb[0].mxu0
      %v625 = vpop.f32.mrb[0].mxu0
      %v626 = vadd.f32 %v309, %v625
      %v627 = vpop.f32.mrb[0].mxu0
      %628 = vmatprep.mubr.bf16.mxu0 0
      %629 = vmatmul.mubr.bf16.gmra.mrb[0].mxu0 %v482
      %v630 = vpop.f32.mrb[0].mxu0
      %v631 = vadd.f32 %v309, %v630
      %v632 = vpop.f32.mrb[0].mxu0
      %v633 = vpop.f32.mrb[0].mxu0
      %v634 = vadd.f32 %v309, %v633
      %v635 = vpop.f32.mrb[0].mxu0
      %636 = vmatprep.mubr.bf16.mxu0 0
      %637 = vmatmul.mubr.bf16.gmra.mrb[0].mxu0 %v485
      %v638 = vpop.f32.mrb[0].mxu0
      %v639 = vadd.f32 %v309, %v638
      %v640 = vpop.f32.mrb[0].mxu0
      %v641 = vpop.f32.mrb[0].mxu0
      %v642 = vadd.f32 %v309, %v641
      %v643 = vpop.f32.mrb[0].mxu0
      %644 = vmatprep.mubr.bf16.mxu0 0
      %645 = vmatmul.mubr.bf16.gmra.mrb[0].mxu0 %v488
      %v646 = vpop.f32.mrb[0].mxu0
      %v647 = vadd.f32 %v309, %v646
      %v648 = vpop.f32.mrb[0].mxu0
      %v649 = vpop.f32.mrb[0].mxu0
      %v650 = vadd.f32 %v309, %v649
      %v651 = vpop.f32.mrb[0].mxu0
      %652 = vmatprep.mubr.bf16.mxu0 0
      %653 = vmatmul.mubr.bf16.gmra.mrb[0].mxu0 %v491
      %v654 = vpop.f32.mrb[0].mxu0
      %v655 = vadd.f32 %v309, %v654
      %v656 = vpop.f32.mrb[0].mxu0
      %v657 = vpop.f32.mrb[0].mxu0
      %v658 = vadd.f32 %v309, %v657
      %v659 = vpop.f32.mrb[0].mxu0
      %660 = vmatprep.mubr.bf16.mxu0 0
      %661 = vmatmul.mubr.bf16.gmra.mrb[0].mxu0 %v494
      %v662 = vpop.f32.mrb[0].mxu0
      %v663 = vadd.f32 %v309, %v662
      %v664 = vpop.f32.mrb[0].mxu0
      %v665 = vpop.f32.mrb[0].mxu0
      %v666 = vadd.f32 %v309, %v665
      %v667 = vpop.f32.mrb[0].mxu0
      %668 = vmatprep.mubr.bf16.mxu0 0
      %669 = vmatmul.mubr.bf16.gmra.mrb[0].mxu0 %v497
      %v670 = vpop.f32.mrb[0].mxu0
      %v671 = vadd.f32 %v309, %v670
      %v672 = vpop.f32.mrb[0].mxu0
      %v673 = vpop.f32.mrb[0].mxu0
      %v674 = vadd.f32 %v309, %v673
      %v675 = vpop.f32.mrb[0].mxu0
      %676 = vmatprep.mubr.bf16.mxu0 0
      %677 = vmatmul.mubr.bf16.gmra.mrb[0].mxu0 %v500
      %v678 = vpop.f32.mrb[0].mxu0
      %v679 = vadd.f32 %v309, %v678
      %v680 = vpop.f32.mrb[0].mxu0
      %v681 = vpop.f32.mrb[0].mxu0
      %v682 = vadd.f32 %v309, %v681
      %v683 = vpop.f32.mrb[0].mxu0
      %684 = vmatprep.mubr.bf16.mxu0 0
      %685 = vmatmul.mubr.bf16.gmra.mrb[0].mxu0 %v503
      %v686 = vpop.f32.mrb[0].mxu0
      %v687 = vadd.f32 %v309, %v686
      %v688 = vpop.f32.mrb[0].mxu0
      %v689 = vpop.f32.mrb[0].mxu0
      %v690 = vadd.f32 %v309, %v689
      %v691 = vpop.f32.mrb[0].mxu0
      %692 = vmatprep.mubr.bf16.mxu0 0
      %693 = vmatmul.mubr.bf16.gmra.mrb[0].mxu0 %v506
      %v694 = vpop.f32.mrb[0].mxu0
      %v695 = vadd.f32 %v309, %v694
      %v696 = vpop.f32.mrb[0].mxu0
      %v697 = vpop.f32.mrb[0].mxu0
      %v698 = vadd.f32 %v309, %v697
      %v699 = vpop.f32.mrb[0].mxu0
      %700 = vmatprep.mubr.bf16.mxu0 0
      %701 = vmatmul.mubr.bf16.gmra.mrb[0].mxu0 %v509
      %v702 = vpop.f32.mrb[0].mxu0
      %v703 = vadd.f32 %v309, %v702
      %v704 = vpop.f32.mrb[0].mxu0
      %v705 = vpop.f32.mrb[0].mxu0
      %v706 = vadd.f32 %v309, %v705
      %v707 = vpop.f32.mrb[0].mxu0
      %708 = vmatprep.mubr.bf16.mxu0 0
      %709 = vmatmul.mubr.bf16.gmra.mrb[0].mxu0 %v512
      %v710 = vpop.f32.mrb[0].mxu0
      %v711 = vadd.f32 %v309, %v710
      %v712 = vpop.f32.mrb[0].mxu0
      %v713 = vpop.f32.mrb[0].mxu0
      %v714 = vadd.f32 %v309, %v713
      %v715 = vpop.f32.mrb[0].mxu0
      %716 = vmatprep.mubr.bf16.mxu0 0
      %717 = vmatmul.mubr.bf16.gmra.mrb[0].mxu0 %v515
      %v718 = vpop.f32.mrb[0].mxu0
      %v719 = vadd.f32 %v309, %v718
      %v720 = vpop.f32.mrb[0].mxu0
      %v721 = vpop.f32.mrb[0].mxu0
      %v722 = vadd.f32 %v309, %v721
      %v723 = vpop.f32.mrb[0].mxu0
      %724 = vmatprep.mubr.bf16.mxu0 0
      %725 = vmatmul.mubr.bf16.gmra.mrb[0].mxu0 %v518
      %v726 = vpop.f32.mrb[0].mxu0
      %v727 = vadd.f32 %v309, %v726
      %v728 = vpop.f32.mrb[0].mxu0
      %v729 = vpop.f32.mrb[0].mxu0
      %v730 = vadd.f32 %v309, %v729
      %v731 = vpop.f32.mrb[0].mxu0
      %732 = vmatprep.mubr.bf16.mxu0 0
      %733 = vmatmul.mubr.bf16.gmra.mrb[0].mxu0 %v521
      %v734 = vpop.f32.mrb[0].mxu0
      %v735 = vadd.f32 %v309, %v734
      %v736 = vpop.f32.mrb[0].mxu0
      %v737 = vpop.f32.mrb[0].mxu0
      %v738 = vadd.f32 %v309, %v737
      %v739 = vpop.f32.mrb[0].mxu0
      %740 = vmatprep.mubr.bf16.mxu0 0
      %741 = vmatmul.mubr.bf16.gmra.mrb[0].mxu0 %v524
      %v742 = vpop.f32.mrb[0].mxu0
      %v743 = vadd.f32 %v309, %v742
      %v744 = vpop.f32.mrb[0].mxu0
      %v745 = vpop.f32.mrb[0].mxu0
      %v746 = vadd.f32 %v309, %v745
      %v747 = vpop.f32.mrb[0].mxu0
      %748 = vmatprep.mubr.bf16.mxu0 0
      %749 = vmatmul.mubr.bf16.gmra.mrb[0].mxu0 %v527
      %v750 = vpop.f32.mrb[0].mxu0
      %v751 = vadd.f32 %v309, %v750
      %v752 = vpop.f32.mrb[0].mxu0
      %v753 = vpop.f32.mrb[0].mxu0
      %v754 = vadd.f32 %v309, %v753
      %v755 = vpop.f32.mrb[0].mxu0
      %756 = vmatprep.mubr.bf16.mxu0 0
      %757 = vmatmul.mubr.bf16.gmra.mrb[0].mxu0 %v530
      %v758 = vpop.f32.mrb[0].mxu0
      %v759 = vadd.f32 %v309, %v758
      %v760 = vpop.f32.mrb[0].mxu0
      %v761 = vpop.f32.mrb[0].mxu0
      %v762 = vadd.f32 %v309, %v761
      %v763 = vpop.f32.mrb[0].mxu0
      %764 = vmatprep.mubr.bf16.mxu0 0
      %765 = vmatmul.mubr.bf16.gmra.mrb[0].mxu0 %v533
      %v766 = vpop.f32.mrb[0].mxu0
      %v767 = vadd.f32 %v309, %v766
      %v768 = vpop.f32.mrb[0].mxu0
      %v769 = vpop.f32.mrb[0].mxu0
      %v770 = vadd.f32 %v309, %v769
      %v771 = vpop.f32.mrb[0].mxu0
      %772 = vmatprep.mubr.bf16.mxu0 0
      %773 = vmatmul.mubr.bf16.gmra.mrb[0].mxu0 %v536
      %v774 = vpop.f32.mrb[0].mxu0
      %v775 = vadd.f32 %v309, %v774
      %v776 = vpop.f32.mrb[0].mxu0
      %v777 = vpop.f32.mrb[0].mxu0
      %v778 = vadd.f32 %v309, %v777
      %v779 = vpop.f32.mrb[0].mxu0
      %780 = vmatprep.mubr.bf16.mxu0 0
      %781 = vmatmul.mubr.bf16.gmra.mrb[0].mxu0 %v539
      %v782 = vpop.f32.mrb[0].mxu0
      %v783 = vadd.f32 %v309, %v782
      %v784 = vpop.f32.mrb[0].mxu0
      %v785 = vpop.f32.mrb[0].mxu0
      %v786 = vadd.f32 %v309, %v785
      %v787 = vpop.f32.mrb[0].mxu0
      %788 = vmatprep.mubr.bf16.mxu0 0
      %789 = vmatmul.mubr.bf16.gmra.mrb[0].mxu0 %v542
      %v790 = vpop.f32.mrb[0].mxu0
      %v791 = vadd.f32 %v309, %v790
      %v792 = vpop.f32.mrb[0].mxu0
      %v793 = vpop.f32.mrb[0].mxu0
      %v794 = vadd.f32 %v309, %v793
      %v795 = vpop.f32.mrb[0].mxu0
      %796 = vmatprep.mubr.bf16.mxu0 0
      %797 = vmatmul.mubr.bf16.gmra.mrb[0].mxu0 %v545
      %v798 = vpop.f32.mrb[0].mxu0
      %v799 = vadd.f32 %v309, %v798
      %v800 = vpop.f32.mrb[0].mxu0
      %v801 = vpop.f32.mrb[0].mxu0
      %v802 = vadd.f32 %v309, %v801
      %v803 = vpop.f32.mrb[0].mxu0
      %804 = vmatprep.mubr.bf16.mxu0 0
      %805 = vmatmul.mubr.bf16.gmra.mrb[0].mxu0 %v548
      %v806 = vpop.f32.mrb[0].mxu0
      %v807 = vadd.f32 %v309, %v806
      %v808 = vpop.f32.mrb[0].mxu0
      %v809 = vpop.f32.mrb[0].mxu0
      %v810 = vadd.f32 %v309, %v809
      %v811 = vpop.f32.mrb[0].mxu0
      %812 = vmatprep.mubr.bf16.mxu0 0
      %813 = vmatmul.mubr.bf16.gmra.mrb[0].mxu0 %v551
      %v814 = vpop.f32.mrb[0].mxu0
      %v815 = vadd.f32 %v309, %v814
      %v816 = vpop.f32.mrb[0].mxu0
      %v817 = vpop.f32.mrb[0].mxu0
      %v818 = vadd.f32 %v309, %v817
      %v819 = vpop.f32.mrb[0].mxu0
      %820 = vmatprep.mubr.bf16.mxu0 0
      %821 = vmatmul.mubr.bf16.gmra.mrb[0].mxu0 %v554
      %v822 = vpop.f32.mrb[0].mxu0
      %v823 = vadd.f32 %v309, %v822
      %v824 = vpop.f32.mrb[0].mxu0
      %v825 = vpop.f32.mrb[0].mxu0
      %v826 = vadd.f32 %v309, %v825
      %v827 = vpop.f32.mrb[0].mxu0
      %828 = vmatprep.mubr.bf16.mxu0 0
      %829 = vmatmul.mubr.bf16.gmra.mrb[0].mxu0 %v557
      %v830 = vpop.f32.mrb[0].mxu0
      %v831 = vadd.f32 %v309, %v830
      %v832 = vpop.f32.mrb[0].mxu0
      %v833 = vpop.f32.mrb[0].mxu0
      %v834 = vadd.f32 %v309, %v833
      %v835 = vpop.f32.mrb[0].mxu0
      %836 = vmatprep.mubr.bf16.mxu0 0
      %837 = vmatmul.mubr.bf16.gmra.mrb[0].mxu0 %v560
      %v838 = vpop.f32.mrb[0].mxu0
      %v839 = vadd.f32 %v309, %v838
      %v840 = vpop.f32.mrb[0].mxu0
      %v841 = vpop.f32.mrb[0].mxu0
      %v842 = vadd.f32 %v309, %v841
      %v843 = vpop.f32.mrb[0].mxu0
      %844 = vmatprep.mubr.bf16.mxu0 0
      %845 = vmatmul.mubr.bf16.gmra.mrb[0].mxu0 %v563
      %v846 = vpop.f32.mrb[0].mxu0
      %v847 = vadd.f32 %v309, %v846
      %v848 = vpop.f32.mrb[0].mxu0
      %v849 = vpop.f32.mrb[0].mxu0
      %v850 = vadd.f32 %v309, %v849
      %v851 = vpop.f32.mrb[0].mxu0
      %852 = vmatprep.mubr.bf16.mxu0 0
      %853 = vmatmul.mubr.bf16.gmra.mrb[0].mxu0 %v566
      %v854 = vpop.f32.mrb[0].mxu0
      %v855 = vadd.f32 %v309, %v854
      %v856 = vpop.f32.mrb[0].mxu0
      %v857 = vpop.f32.mrb[0].mxu0
      %v858 = vadd.f32 %v309, %v857
      %v859 = vpop.f32.mrb[0].mxu0
      %860 = vdwg.mxu0
      %vm861 = vcmp.ge.f32.partialorder %v607, 0.0
      %vm862 = vcmp.ge.f32.partialorder %v610, 0.0
      %vm863 = vcmp.ge.f32.partialorder %v615, 0.0
      %vm864 = vcmp.ge.f32.partialorder %v618, 0.0
      %vm865 = vcmp.ge.f32.partialorder %v623, 0.0
      %vm866 = vcmp.ge.f32.partialorder %v626, 0.0
      %vm867 = vcmp.ge.f32.partialorder %v631, 0.0
      %vm868 = vcmp.ge.f32.partialorder %v634, 0.0
      %vm869 = vcmp.ge.f32.partialorder %v639, 0.0
      %vm870 = vcmp.ge.f32.partialorder %v642, 0.0
      %vm871 = vcmp.ge.f32.partialorder %v647, 0.0
      %vm872 = vcmp.ge.f32.partialorder %v650, 0.0
      %vm873 = vcmp.ge.f32.partialorder %v655, 0.0
      %vm874 = vcmp.ge.f32.partialorder %v658, 0.0
      %vm875 = vcmp.ge.f32.partialorder %v663, 0.0
      %vm876 = vcmp.ge.f32.partialorder %v666, 0.0
      %vm877 = vcmp.ge.f32.partialorder %v671, 0.0
      %vm878 = vcmp.ge.f32.partialorder %v674, 0.0
      %vm879 = vcmp.ge.f32.partialorder %v679, 0.0
      %vm880 = vcmp.ge.f32.partialorder %v682, 0.0
      %vm881 = vcmp.ge.f32.partialorder %v687, 0.0
      %vm882 = vcmp.ge.f32.partialorder %v690, 0.0
      %vm883 = vcmp.ge.f32.partialorder %v695, 0.0
      %vm884 = vcmp.ge.f32.partialorder %v698, 0.0
      %vm885 = vcmp.ge.f32.partialorder %v703, 0.0
      %vm886 = vcmp.ge.f32.partialorder %v706, 0.0
      %vm887 = vcmp.ge.f32.partialorder %v711, 0.0
      %vm888 = vcmp.ge.f32.partialorder %v714, 0.0
      %vm889 = vcmp.ge.f32.partialorder %v719, 0.0
      %vm890 = vcmp.ge.f32.partialorder %v722, 0.0
      %vm891 = vcmp.ge.f32.partialorder %v727, 0.0
      %vm892 = vcmp.ge.f32.partialorder %v730, 0.0
      %vm893 = vcmp.ge.f32.partialorder %v735, 0.0
      %vm894 = vcmp.ge.f32.partialorder %v738, 0.0
      %vm895 = vcmp.ge.f32.partialorder %v743, 0.0
      %vm896 = vcmp.ge.f32.partialorder %v746, 0.0
      %vm897 = vcmp.ge.f32.partialorder %v751, 0.0
      %vm898 = vcmp.ge.f32.partialorder %v754, 0.0
      %vm899 = vcmp.ge.f32.partialorder %v759, 0.0
      %vm900 = vcmp.ge.f32.partialorder %v762, 0.0
      %vm901 = vcmp.ge.f32.partialorder %v767, 0.0
      %vm902 = vcmp.ge.f32.partialorder %v770, 0.0
      %vm903 = vcmp.ge.f32.partialorder %v775, 0.0
      %vm904 = vcmp.ge.f32.partialorder %v778, 0.0
      %vm905 = vcmp.ge.f32.partialorder %v783, 0.0
      %vm906 = vcmp.ge.f32.partialorder %v786, 0.0
      %vm907 = vcmp.ge.f32.partialorder %v791, 0.0
      %vm908 = vcmp.ge.f32.partialorder %v794, 0.0
      %vm909 = vcmp.ge.f32.partialorder %v799, 0.0
      %vm910 = vcmp.ge.f32.partialorder %v802, 0.0
      %vm911 = vcmp.ge.f32.partialorder %v807, 0.0
      %vm912 = vcmp.ge.f32.partialorder %v810, 0.0
      %vm913 = vcmp.ge.f32.partialorder %v815, 0.0
      %vm914 = vcmp.ge.f32.partialorder %v818, 0.0
      %vm915 = vcmp.ge.f32.partialorder %v823, 0.0
      %vm916 = vcmp.ge.f32.partialorder %v826, 0.0
      %vm917 = vcmp.ge.f32.partialorder %v831, 0.0
      %vm918 = vcmp.ge.f32.partialorder %v834, 0.0
      %vm919 = vcmp.ge.f32.partialorder %v839, 0.0
      %vm920 = vcmp.ge.f32.partialorder %v842, 0.0
      %vm921 = vcmp.ge.f32.partialorder %v847, 0.0
      %vm922 = vcmp.ge.f32.partialorder %v850, 0.0
      %vm923 = vcmp.ge.f32.partialorder %v855, 0.0
      %vm924 = vcmp.ge.f32.partialorder %v858, 0.0
      %v925 = vmul.f32 %v607, 0.2
      %v926 = vmul.f32 %v610, 0.2
      %v927 = vmul.f32 %v615, 0.2
      %v928 = vmul.f32 %v618, 0.2
      %v929 = vmul.f32 %v623, 0.2
      %v930 = vmul.f32 %v626, 0.2
      %v931 = vmul.f32 %v631, 0.2
      %v932 = vmul.f32 %v634, 0.2
      %v933 = vmul.f32 %v639, 0.2
      %v934 = vmul.f32 %v642, 0.2
      %v935 = vmul.f32 %v647, 0.2
      %v936 = vmul.f32 %v650, 0.2
      %v937 = vmul.f32 %v655, 0.2
      %v938 = vmul.f32 %v658, 0.2
      %v939 = vmul.f32 %v663, 0.2
      %v940 = vmul.f32 %v666, 0.2
      %v941 = vmul.f32 %v671, 0.2
      %v942 = vmul.f32 %v674, 0.2
      %v943 = vmul.f32 %v679, 0.2
      %v944 = vmul.f32 %v682, 0.2
      %v945 = vmul.f32 %v687, 0.2
      %v946 = vmul.f32 %v690, 0.2
      %v947 = vmul.f32 %v695, 0.2
      %v948 = vmul.f32 %v698, 0.2
      %v949 = vmul.f32 %v703, 0.2
      %v950 = vmul.f32 %v706, 0.2
      %v951 = vmul.f32 %v711, 0.2
      %v952 = vmul.f32 %v714, 0.2
      %v953 = vmul.f32 %v719, 0.2
      %v954 = vmul.f32 %v722, 0.2
      %v955 = vmul.f32 %v727, 0.2
      %v956 = vmul.f32 %v730, 0.2
      %v957 = vmul.f32 %v735, 0.2
      %v958 = vmul.f32 %v738, 0.2
      %v959 = vmul.f32 %v743, 0.2
      %v960 = vmul.f32 %v746, 0.2
      %v961 = vmul.f32 %v751, 0.2
      %v962 = vmul.f32 %v754, 0.2
      %v963 = vmul.f32 %v759, 0.2
      %v964 = vmul.f32 %v762, 0.2
      %v965 = vmul.f32 %v767, 0.2
      %v966 = vmul.f32 %v770, 0.2
      %v967 = vmul.f32 %v775, 0.2
      %v968 = vmul.f32 %v778, 0.2
      %v969 = vmul.f32 %v783, 0.2
      %v970 = vmul.f32 %v786, 0.2
      %v971 = vmul.f32 %v791, 0.2
      %v972 = vmul.f32 %v794, 0.2
      %v973 = vmul.f32 %v799, 0.2
      %v974 = vmul.f32 %v802, 0.2
      %v975 = vmul.f32 %v807, 0.2
      %v976 = vmul.f32 %v810, 0.2
      %v977 = vmul.f32 %v815, 0.2
      %v978 = vmul.f32 %v818, 0.2
      %v979 = vmul.f32 %v823, 0.2
      %v980 = vmul.f32 %v826, 0.2
      %v981 = vmul.f32 %v831, 0.2
      %v982 = vmul.f32 %v834, 0.2
      %v983 = vmul.f32 %v839, 0.2
      %v984 = vmul.f32 %v842, 0.2
      %v985 = vmul.f32 %v847, 0.2
      %v986 = vmul.f32 %v850, 0.2
      %v987 = vmul.f32 %v855, 0.2
      %v988 = vmul.f32 %v858, 0.2
      %v989 = vsel %vm861, %v607, %v925
      %v990 = vsel %vm862, %v610, %v926
      %v991 = vsel %vm863, %v615, %v927
      %v992 = vsel %vm864, %v618, %v928
      %v993 = vsel %vm865, %v623, %v929
      %v994 = vsel %vm866, %v626, %v930
      %v995 = vsel %vm867, %v631, %v931
      %v996 = vsel %vm868, %v634, %v932
      %v997 = vsel %vm869, %v639, %v933
      %v998 = vsel %vm870, %v642, %v934
      %v999 = vsel %vm871, %v647, %v935
      %v1000 = vsel %vm872, %v650, %v936
      %v1001 = vsel %vm873, %v655, %v937
      %v1002 = vsel %vm874, %v658, %v938
      %v1003 = vsel %vm875, %v663, %v939
      %v1004 = vsel %vm876, %v666, %v940
      %v1005 = vsel %vm877, %v671, %v941
      %v1006 = vsel %vm878, %v674, %v942
      %v1007 = vsel %vm879, %v679, %v943
      %v1008 = vsel %vm880, %v682, %v944
      %v1009 = vsel %vm881, %v687, %v945
      %v1010 = vsel %vm882, %v690, %v946
      %v1011 = vsel %vm883, %v695, %v947
      %v1012 = vsel %vm884, %v698, %v948
      %v1013 = vsel %vm885, %v703, %v949
      %v1014 = vsel %vm886, %v706, %v950
      %v1015 = vsel %vm887, %v711, %v951
      %v1016 = vsel %vm888, %v714, %v952
      %v1017 = vsel %vm889, %v719, %v953
      %v1018 = vsel %vm890, %v722, %v954
      %v1019 = vsel %vm891, %v727, %v955
      %v1020 = vsel %vm892, %v730, %v956
      %v1021 = vsel %vm893, %v735, %v957
      %v1022 = vsel %vm894, %v738, %v958
      %v1023 = vsel %vm895, %v743, %v959
      %v1024 = vsel %vm896, %v746, %v960
      %v1025 = vsel %vm897, %v751, %v961
      %v1026 = vsel %vm898, %v754, %v962
      %v1027 = vsel %vm899, %v759, %v963
      %v1028 = vsel %vm900, %v762, %v964
      %v1029 = vsel %vm901, %v767, %v965
      %v1030 = vsel %vm902, %v770, %v966
      %v1031 = vsel %vm903, %v775, %v967
      %v1032 = vsel %vm904, %v778, %v968
      %v1033 = vsel %vm905, %v783, %v969
      %v1034 = vsel %vm906, %v786, %v970
      %v1035 = vsel %vm907, %v791, %v971
      %v1036 = vsel %vm908, %v794, %v972
      %v1037 = vsel %vm909, %v799, %v973
      %v1038 = vsel %vm910, %v802, %v974
      %v1039 = vsel %vm911, %v807, %v975
      %v1040 = vsel %vm912, %v810, %v976
      %v1041 = vsel %vm913, %v815, %v977
      %v1042 = vsel %vm914, %v818, %v978
      %v1043 = vsel %vm915, %v823, %v979
      %v1044 = vsel %vm916, %v826, %v980
      %v1045 = vsel %vm917, %v831, %v981
      %v1046 = vsel %vm918, %v834, %v982
      %v1047 = vsel %vm919, %v839, %v983
      %v1048 = vsel %vm920, %v842, %v984
      %v1049 = vsel %vm921, %v847, %v985
      %v1050 = vsel %vm922, %v850, %v986
      %v1051 = vsel %vm923, %v855, %v987
      %v1052 = vsel %vm924, %v858, %v988
      %v1053 = vpack.c.bf16 %v990, %v989
      %v1054 = vpack.c.bf16 %v992, %v991
      %v1055 = vpack.c.bf16 %v994, %v993
      %v1056 = vpack.c.bf16 %v996, %v995
      %v1057 = vpack.c.bf16 %v998, %v997
      %v1058 = vpack.c.bf16 %v1000, %v999
      %v1059 = vpack.c.bf16 %v1002, %v1001
      %v1060 = vpack.c.bf16 %v1004, %v1003
      %v1061 = vpack.c.bf16 %v1006, %v1005
      %v1062 = vpack.c.bf16 %v1008, %v1007
      %v1063 = vpack.c.bf16 %v1010, %v1009
      %v1064 = vpack.c.bf16 %v1012, %v1011
      %v1065 = vpack.c.bf16 %v1014, %v1013
      %v1066 = vpack.c.bf16 %v1016, %v1015
      %v1067 = vpack.c.bf16 %v1018, %v1017
      %v1068 = vpack.c.bf16 %v1020, %v1019
      %v1069 = vpack.c.bf16 %v1022, %v1021
      %v1070 = vpack.c.bf16 %v1024, %v1023
      %v1071 = vpack.c.bf16 %v1026, %v1025
      %v1072 = vpack.c.bf16 %v1028, %v1027
      %v1073 = vpack.c.bf16 %v1030, %v1029
      %v1074 = vpack.c.bf16 %v1032, %v1031
      %v1075 = vpack.c.bf16 %v1034, %v1033
      %v1076 = vpack.c.bf16 %v1036, %v1035
      %v1077 = vpack.c.bf16 %v1038, %v1037
      %v1078 = vpack.c.bf16 %v1040, %v1039
      %v1079 = vpack.c.bf16 %v1042, %v1041
      %v1080 = vpack.c.bf16 %v1044, %v1043
      %v1081 = vpack.c.bf16 %v1046, %v1045
      %v1082 = vpack.c.bf16 %v1048, %v1047
      %v1083 = vpack.c.bf16 %v1050, %v1049
      %v1084 = vpack.c.bf16 %v1052, %v1051
      %v1117 = vunpack.c.l.b16 %v1053
      %v1118 = vunpack.c.h.b16 %v1053
      %v1119 = vunpack.c.l.b16 %v1054
      %v1120 = vunpack.c.h.b16 %v1054
      %v1121 = vunpack.c.l.b16 %v1055
      %v1122 = vunpack.c.h.b16 %v1055
      %v1123 = vunpack.c.l.b16 %v1056
      %v1124 = vunpack.c.h.b16 %v1056
      %v1125 = vunpack.c.l.b16 %v1057
      %v1126 = vunpack.c.h.b16 %v1057
      %v1127 = vunpack.c.l.b16 %v1058
      %v1128 = vunpack.c.h.b16 %v1058
      %v1129 = vunpack.c.l.b16 %v1059
      %v1130 = vunpack.c.h.b16 %v1059
      %v1131 = vunpack.c.l.b16 %v1060
      %v1132 = vunpack.c.h.b16 %v1060
      %v1133 = vunpack.c.l.b16 %v1061
      %v1134 = vunpack.c.h.b16 %v1061
      %v1135 = vunpack.c.l.b16 %v1062
      %v1136 = vunpack.c.h.b16 %v1062
      %v1137 = vunpack.c.l.b16 %v1063
      %v1138 = vunpack.c.h.b16 %v1063
      %v1139 = vunpack.c.l.b16 %v1064
      %v1140 = vunpack.c.h.b16 %v1064
      %v1141 = vunpack.c.l.b16 %v1065
      %v1142 = vunpack.c.h.b16 %v1065
      %v1143 = vunpack.c.l.b16 %v1066
      %v1144 = vunpack.c.h.b16 %v1066
      %v1145 = vunpack.c.l.b16 %v1067
      %v1146 = vunpack.c.h.b16 %v1067
      %v1147 = vunpack.c.l.b16 %v1068
      %v1148 = vunpack.c.h.b16 %v1068
      %v1149 = vunpack.c.l.b16 %v1069
      %v1150 = vunpack.c.h.b16 %v1069
      %v1151 = vunpack.c.l.b16 %v1070
      %v1152 = vunpack.c.h.b16 %v1070
      %v1153 = vunpack.c.l.b16 %v1071
      %v1154 = vunpack.c.h.b16 %v1071
      %v1155 = vunpack.c.l.b16 %v1072
      %v1156 = vunpack.c.h.b16 %v1072
      %v1157 = vunpack.c.l.b16 %v1073
      %v1158 = vunpack.c.h.b16 %v1073
      %v1159 = vunpack.c.l.b16 %v1074
      %v1160 = vunpack.c.h.b16 %v1074
      %v1161 = vunpack.c.l.b16 %v1075
      %v1162 = vunpack.c.h.b16 %v1075
      %v1163 = vunpack.c.l.b16 %v1076
      %v1164 = vunpack.c.h.b16 %v1076
      %v1165 = vunpack.c.l.b16 %v1077
      %v1166 = vunpack.c.h.b16 %v1077
      %v1167 = vunpack.c.l.b16 %v1078
      %v1168 = vunpack.c.h.b16 %v1078
      %v1169 = vunpack.c.l.b16 %v1079
      %v1170 = vunpack.c.h.b16 %v1079
      %v1171 = vunpack.c.l.b16 %v1080
      %v1172 = vunpack.c.h.b16 %v1080
      %v1173 = vunpack.c.l.b16 %v1081
      %v1174 = vunpack.c.h.b16 %v1081
      %v1175 = vunpack.c.l.b16 %v1082
      %v1176 = vunpack.c.h.b16 %v1082
      %v1177 = vunpack.c.l.b16 %v1083
      %v1178 = vunpack.c.h.b16 %v1083
      %v1179 = vunpack.c.l.b16 %v1084
      %v1180 = vunpack.c.h.b16 %v1084
      %v1181 = vpack.c.b16 %v1117, %v1117
      %v1182 = vpack.c.b16 %v1118, %v1118
      %v1183 = vpack.c.b16 %v1119, %v1119
      %v1184 = vpack.c.b16 %v1120, %v1120
      %v1185 = vpack.c.b16 %v1121, %v1121
      %v1186 = vpack.c.b16 %v1122, %v1122
      %v1187 = vpack.c.b16 %v1123, %v1123
      %v1188 = vpack.c.b16 %v1124, %v1124
      %v1189 = vpack.c.b16 %v1125, %v1125
      %v1190 = vpack.c.b16 %v1126, %v1126
      %v1191 = vpack.c.b16 %v1127, %v1127
      %v1192 = vpack.c.b16 %v1128, %v1128
      %v1193 = vpack.c.b16 %v1129, %v1129
      %v1194 = vpack.c.b16 %v1130, %v1130
      %v1195 = vpack.c.b16 %v1131, %v1131
      %v1196 = vpack.c.b16 %v1132, %v1132
      %v1197 = vpack.c.b16 %v1133, %v1133
      %v1198 = vpack.c.b16 %v1134, %v1134
      %v1199 = vpack.c.b16 %v1135, %v1135
      %v1200 = vpack.c.b16 %v1136, %v1136
      %v1201 = vpack.c.b16 %v1137, %v1137
      %v1202 = vpack.c.b16 %v1138, %v1138
      %v1203 = vpack.c.b16 %v1139, %v1139
      %v1204 = vpack.c.b16 %v1140, %v1140
      %v1205 = vpack.c.b16 %v1141, %v1141
      %v1206 = vpack.c.b16 %v1142, %v1142
      %v1207 = vpack.c.b16 %v1143, %v1143
      %v1208 = vpack.c.b16 %v1144, %v1144
      %v1209 = vpack.c.b16 %v1145, %v1145
      %v1210 = vpack.c.b16 %v1146, %v1146
      %v1211 = vpack.c.b16 %v1147, %v1147
      %v1212 = vpack.c.b16 %v1148, %v1148
      %v1213 = vpack.c.b16 %v1149, %v1149
      %v1214 = vpack.c.b16 %v1150, %v1150
      %v1215 = vpack.c.b16 %v1151, %v1151
      %v1216 = vpack.c.b16 %v1152, %v1152
      %v1217 = vpack.c.b16 %v1153, %v1153
      %v1218 = vpack.c.b16 %v1154, %v1154
      %v1219 = vpack.c.b16 %v1155, %v1155
      %v1220 = vpack.c.b16 %v1156, %v1156
      %v1221 = vpack.c.b16 %v1157, %v1157
      %v1222 = vpack.c.b16 %v1158, %v1158
      %v1223 = vpack.c.b16 %v1159, %v1159
      %v1224 = vpack.c.b16 %v1160, %v1160
      %v1225 = vpack.c.b16 %v1161, %v1161
      %v1226 = vpack.c.b16 %v1162, %v1162
      %v1227 = vpack.c.b16 %v1163, %v1163
      %v1228 = vpack.c.b16 %v1164, %v1164
      %v1229 = vpack.c.b16 %v1165, %v1165
      %v1230 = vpack.c.b16 %v1166, %v1166
      %v1231 = vpack.c.b16 %v1167, %v1167
      %v1232 = vpack.c.b16 %v1168, %v1168
      %v1233 = vpack.c.b16 %v1169, %v1169
      %v1234 = vpack.c.b16 %v1170, %v1170
      %v1235 = vpack.c.b16 %v1171, %v1171
      %v1236 = vpack.c.b16 %v1172, %v1172
      %v1237 = vpack.c.b16 %v1173, %v1173
      %v1238 = vpack.c.b16 %v1174, %v1174
      %v1239 = vpack.c.b16 %v1175, %v1175
      %v1240 = vpack.c.b16 %v1176, %v1176
      %v1241 = vpack.c.b16 %v1177, %v1177
      %v1242 = vpack.c.b16 %v1178, %v1178
      %v1243 = vpack.c.b16 %v1179, %v1179
      %v1244 = vpack.c.b16 %v1180, %v1180
      %vm1309 = vcmask 125952
      %1310 = vst.msk [vmem:[%s236] sm:$0xf] %vm1309, %v1181
      %1311 = vst.msk [vmem:[%s236 + $0x4] sm:$0xf] %vm1309, %v1182
      %1312 = vst.msk [vmem:[%s236 + $0x8] sm:$0xf] %vm1309, %v1183
      %1313 = vst.msk [vmem:[%s236 + $0xc] sm:$0xf] %vm1309, %v1184
      %1314 = vst.msk [vmem:[%s236 + $0x10] sm:$0xf] %vm1309, %v1185
      %1315 = vst.msk [vmem:[%s236 + $0x14] sm:$0xf] %vm1309, %v1186
      %1316 = vst.msk [vmem:[%s236 + $0x18] sm:$0xf] %vm1309, %v1187
      %1317 = vst.msk [vmem:[%s236 + $0x1c] sm:$0xf] %vm1309, %v1188
      %1318 = vst.msk [vmem:[%s236 + $0x20] sm:$0xf] %vm1309, %v1189
      %1319 = vst.msk [vmem:[%s236 + $0x24] sm:$0xf] %vm1309, %v1190
      %1320 = vst.msk [vmem:[%s236 + $0x28] sm:$0xf] %vm1309, %v1191
      %1321 = vst.msk [vmem:[%s236 + $0x2c] sm:$0xf] %vm1309, %v1192
      %1322 = vst.msk [vmem:[%s236 + $0x30] sm:$0xf] %vm1309, %v1193
      %1323 = vst.msk [vmem:[%s236 + $0x34] sm:$0xf] %vm1309, %v1194
      %1324 = vst.msk [vmem:[%s236 + $0x38] sm:$0xf] %vm1309, %v1195
      %1325 = vst.msk [vmem:[%s236 + $0x3c] sm:$0xf] %vm1309, %v1196
      %1326 = vst.msk [vmem:[%s236 + $0x40] sm:$0xf] %vm1309, %v1197
      %1327 = vst.msk [vmem:[%s236 + $0x44] sm:$0xf] %vm1309, %v1198
      %1328 = vst.msk [vmem:[%s236 + $0x48] sm:$0xf] %vm1309, %v1199
      %1329 = vst.msk [vmem:[%s236 + $0x4c] sm:$0xf] %vm1309, %v1200
      %1330 = vst.msk [vmem:[%s236 + $0x50] sm:$0xf] %vm1309, %v1201
      %1331 = vst.msk [vmem:[%s236 + $0x54] sm:$0xf] %vm1309, %v1202
      %1332 = vst.msk [vmem:[%s236 + $0x58] sm:$0xf] %vm1309, %v1203
      %1333 = vst.msk [vmem:[%s236 + $0x5c] sm:$0xf] %vm1309, %v1204
      %1334 = vst.msk [vmem:[%s236 + $0x60] sm:$0xf] %vm1309, %v1205
      %1335 = vst.msk [vmem:[%s236 + $0x64] sm:$0xf] %vm1309, %v1206
      %1336 = vst.msk [vmem:[%s236 + $0x68] sm:$0xf] %vm1309, %v1207
      %1337 = vst.msk [vmem:[%s236 + $0x6c] sm:$0xf] %vm1309, %v1208
      %1338 = vst.msk [vmem:[%s236 + $0x70] sm:$0xf] %vm1309, %v1209
      %1339 = vst.msk [vmem:[%s236 + $0x74] sm:$0xf] %vm1309, %v1210
      %1340 = vst.msk [vmem:[%s236 + $0x78] sm:$0xf] %vm1309, %v1211
      %1341 = vst.msk [vmem:[%s236 + $0x7c] sm:$0xf] %vm1309, %v1212
      %1342 = vst.msk [vmem:[%s236 + $0x80] sm:$0xf] %vm1309, %v1213
      %1343 = vst.msk [vmem:[%s236 + $0x84] sm:$0xf] %vm1309, %v1214
      %1344 = vst.msk [vmem:[%s236 + $0x88] sm:$0xf] %vm1309, %v1215
      %1345 = vst.msk [vmem:[%s236 + $0x8c] sm:$0xf] %vm1309, %v1216
      %1346 = vst.msk [vmem:[%s236 + $0x90] sm:$0xf] %vm1309, %v1217
      %1347 = vst.msk [vmem:[%s236 + $0x94] sm:$0xf] %vm1309, %v1218
      %1348 = vst.msk [vmem:[%s236 + $0x98] sm:$0xf] %vm1309, %v1219
      %1349 = vst.msk [vmem:[%s236 + $0x9c] sm:$0xf] %vm1309, %v1220
      %1350 = vst.msk [vmem:[%s236 + $0xa0] sm:$0xf] %vm1309, %v1221
      %1351 = vst.msk [vmem:[%s236 + $0xa4] sm:$0xf] %vm1309, %v1222
      %1352 = vst.msk [vmem:[%s236 + $0xa8] sm:$0xf] %vm1309, %v1223
      %1353 = vst.msk [vmem:[%s236 + $0xac] sm:$0xf] %vm1309, %v1224
      %1354 = vst.msk [vmem:[%s236 + $0xb0] sm:$0xf] %vm1309, %v1225
      %1355 = vst.msk [vmem:[%s236 + $0xb4] sm:$0xf] %vm1309, %v1226
      %1356 = vst.msk [vmem:[%s236 + $0xb8] sm:$0xf] %vm1309, %v1227
      %1357 = vst.msk [vmem:[%s236 + $0xbc] sm:$0xf] %vm1309, %v1228
      %1358 = vst.msk [vmem:[%s236 + $0xc0] sm:$0xf] %vm1309, %v1229
      %1359 = vst.msk [vmem:[%s236 + $0xc4] sm:$0xf] %vm1309, %v1230
      %1360 = vst.msk [vmem:[%s236 + $0xc8] sm:$0xf] %vm1309, %v1231
      %1361 = vst.msk [vmem:[%s236 + $0xcc] sm:$0xf] %vm1309, %v1232
      %1362 = vst.msk [vmem:[%s236 + $0xd0] sm:$0xf] %vm1309, %v1233
      %1363 = vst.msk [vmem:[%s236 + $0xd4] sm:$0xf] %vm1309, %v1234
      %1364 = vst.msk [vmem:[%s236 + $0xd8] sm:$0xf] %vm1309, %v1235
      %1365 = vst.msk [vmem:[%s236 + $0xdc] sm:$0xf] %vm1309, %v1236
      %1366 = vst.msk [vmem:[%s236 + $0xe0] sm:$0xf] %vm1309, %v1237
      %1367 = vst.msk [vmem:[%s236 + $0xe4] sm:$0xf] %vm1309, %v1238
      %1368 = vst.msk [vmem:[%s236 + $0xe8] sm:$0xf] %vm1309, %v1239
      %1369 = vst.msk [vmem:[%s236 + $0xec] sm:$0xf] %vm1309, %v1240
      %1370 = vst.msk [vmem:[%s236 + $0xf0] sm:$0xf] %vm1309, %v1241
      %1371 = vst.msk [vmem:[%s236 + $0xf4] sm:$0xf] %vm1309, %v1242
      %1372 = vst.msk [vmem:[%s236 + $0xf8] sm:$0xf] %vm1309, %v1243
      %1373 = vst.msk [vmem:[%s236 + $0xfc] sm:$0xf] %vm1309, %v1244
      %s1374 = smul.u32 64, %s19
      %p1375 = scmp.lt.s32.totalorder %s18, 1
      %s1376 = scalar_select %p1375, %s18, 1
      %p1377 = scmp.lt.s32.totalorder %s1374, 63
      %s1378 = scalar_select %p1377, %s1374, 63
      %s1379 = smul.addr %s1376, 64
      %s1380 = sadd.s32 %s1378, %s1379
      %s1381 = smul.addr %s1380, 4
      %s1382 = scalar_lea.vmem %s3, %s1381
      // Predicated region
      $region33: #{closed_call.76} parent=31 // pred_check
        %p1383 = pneg %p126
      $region34: #{closed_call.76} parent=31 // pred_check_branch
        %1385 = sbr.rel (%p1383) target = $region36
      $region35: #{closed_call.76} parent=31 // pred_region
        %s1386 = smul.u32 64, %s19
      $region36: #{closed_call.76} parent=31 // pred_fallthru
        _
    $region32: #{closed_call.76} parent=5 // pred_fallthru
      _
    %p1387 = scmp.le.s32.totalorder 2, %s9
    // Predicated region
    $region37: #{closed_call.76} parent=5 // pred_check
      %p1388 = pneg %p1387
    $region38: #{closed_call.76} parent=5 // pred_check_branch
      %1390 = sbr.rel (%p1388) target = $region40
    $region39: #{closed_call.76} parent=5 // pred_region
      %s1391 = ssub.s32 %s9, 2
      // Predicated region
      $region41: #{closed_call.76} parent=39 // pred_check
        %p1392 = pneg %p132
      $region42: #{closed_call.76} parent=39 // pred_check_branch
        %1394 = sbr.rel (%p1392) target = $region44
      $region43: #{closed_call.76} parent=39 // pred_region
        %s1395 = smul.u32 64, %s21
        %p1396 = scmp.lt.s32.totalorder %s20, 1
        %s1397 = scalar_select %p1396, %s20, 1
        %p1398 = scmp.lt.s32.totalorder %s1395, 63
        %s1399 = scalar_select %p1398, %s1395, 63
        %s1400 = smul.addr %s1397, 64
        %s1401 = sadd.s32 %s1399, %s1400
        %s1402 = smul.addr %s1401, 4
        %s1403 = scalar_lea.vmem %s3, %s1402
      $region44: #{closed_call.76} parent=39 // pred_fallthru
        _
    $region40: #{closed_call.76} parent=5 // pred_fallthru
      _
  $region6: #{closed_call.76} parent=0 // loop_footer
    %s13 = sadd.s32 1, %s9
  $region7: #{closed_call.76} parent=0 // loop_footer_branch
    %8 = sbr.rel target = $region3
  $region8: #{closed_call.76} parent=0 // loop_exit
    _

// kernel: closed_call.77
$region0: #{closed_call.77}
  #allocation0 [shape = 'u32[]', space=smem, size = 0x4, offset = 0x4, fixed_abs, tag = 'smem constant byte address 0x4 - core index']
  #allocation1 [shape = 'u32[144,128]{1,0:T(1,128)}', space=vmem, size = 0x12000, scoped, tag = 'internal scratch']
  %s0 = inlined_call_operand.vmem [shape: bf16[2,128,144], index: 0, kind: input, shape index: {}]
  %s1 = inlined_call_operand.vmem [shape: bf16[2,144,16], index: 1, kind: input, shape index: {}]
  %s2 = inlined_call_operand.vmem [shape: f32[2,1,16], index: 2, kind: input, shape index: {}]
  %s3 = inlined_call_operand.vmem [shape: bf16[2,128,16], index: 3, kind: output, shape index: {}]
  %s4 = sld [smem:[#allocation0]]
  $region45: #{closed_call.77} parent=0
    _
  %s6 = ssub.s32 1, %s4
  %s7 = scalar_select 0, %s6, %s4
  loop: start=0, step=1, limit=4
  $region2: #{closed_call.77} parent=0 // loop_pre_header
    _
  $region3: #{closed_call.77} parent=0 // loop_header
    %s9 = sphi 0, %s13
    %p10 = scmp.ge.s32.totalorder %s9, 4
    %s16 = sphi 0, %s28
    %s17 = sphi 0, %s24
    %s18 = sphi 0, %s16
    %s19 = sphi 0, %s17
    %s20 = sphi 0, %s18
    %s21 = sphi 0, %s19
    %s33 = sphi 0, %s35
    %s36 = sphi 0, %s33
    %s37 = sphi 0, %s36
    %s53 = sphi 0, %s37
    %s59 = sphi 0, %s61
    %s62 = sphi 0, %s59
    %s63 = sphi 0, %s62
    %s79 = sphi 0, %s63
    %s85 = sphi 0, %s87
    %s88 = sphi 0, %s85
    %s89 = sphi 0, %s88
    %s105 = sphi 0, %s89
    %s113 = sphi 0, %s115
    %s116 = sphi 0, %s113
    %s117 = sphi 0, %s116
    %s133 = sphi 0, %s117
  $region4: #{closed_call.77} parent=0 // loop_header_branch
    %12 = sbr.rel (%p10) target = $region8
  $region5: #{closed_call.77} parent=0 // loop_body
    %s14 = ssub.s32 %s9, 1
    %s15 = ssub.s32 %s9, 2
    %s22 = sadd.s32 1, %s17
    %p23 = scmp.ge.s32.totalorder %s22, 1
    %s24 = scalar_select %p23, 0, %s22
    %s25 = sadd.s32 1, %s16
    %s26 = scalar_select %p23, %s25, %s16
    %p27 = scmp.ge.s32.totalorder %s26, 2
    %s28 = scalar_select %p27, 0, %s26
    %s29 = ssub.s32 %s16, %s28
    %s30 = ssub.s32 %s17, %s24
    %s31 = sor.u32 %s29, %s30
    %p32 = scmp.eq.s32.totalorder %s31, 0
    %s34 = sadd.s32 %s33, 1
    %s35 = scalar_select %p32, %s33, %s34
    %p38 = pneg %p32
    %p39 = scmp.eq.s32.totalorder %s9, 1
    %p40 = por %p38, %p39
    %p41 = scmp.ne.s32.totalorder %s33, %s36
    %p42 = scmp.eq.s32.totalorder %s9, 0
    %p43 = por %p41, %p42
    %p44 = scmp.ne.s32.totalorder %s33, %s36
    %p45 = scmp.eq.s32.totalorder %s14, 1
    %p46 = por %p44, %p45
    %p47 = scmp.ne.s32.totalorder %s36, %s37
    %p48 = scmp.eq.s32.totalorder %s14, 0
    %p49 = por %p47, %p48
    %p50 = scmp.ne.s32.totalorder %s36, %s37
    %p51 = scmp.eq.s32.totalorder %s15, 1
    %p52 = por %p50, %p51
    %p54 = scmp.ne.s32.totalorder %s37, %s53
    %p55 = scmp.eq.s32.totalorder %s15, 0
    %p56 = por %p54, %p55
    %s57 = ssub.s32 %s16, %s28
    %p58 = scmp.eq.s32.totalorder %s57, 0
    %s60 = sadd.s32 %s59, 1
    %s61 = scalar_select %p58, %s59, %s60
    %p64 = pneg %p58
    %p65 = scmp.eq.s32.totalorder %s9, 1
    %p66 = por %p64, %p65
    %p67 = scmp.ne.s32.totalorder %s59, %s62
    %p68 = scmp.eq.s32.totalorder %s9, 0
    %p69 = por %p67, %p68
    %p70 = scmp.ne.s32.totalorder %s59, %s62
    %p71 = scmp.eq.s32.totalorder %s14, 1
    %p72 = por %p70, %p71
    %p73 = scmp.ne.s32.totalorder %s62, %s63
    %p74 = scmp.eq.s32.totalorder %s14, 0
    %p75 = por %p73, %p74
    %p76 = scmp.ne.s32.totalorder %s62, %s63
    %p77 = scmp.eq.s32.totalorder %s15, 1
    %p78 = por %p76, %p77
    %p80 = scmp.ne.s32.totalorder %s63, %s79
    %p81 = scmp.eq.s32.totalorder %s15, 0
    %p82 = por %p80, %p81
    %s83 = ssub.s32 %s16, %s28
    %p84 = scmp.eq.s32.totalorder %s83, 0
    %s86 = sadd.s32 %s85, 1
    %s87 = scalar_select %p84, %s85, %s86
    %p90 = pneg %p84
    %p91 = scmp.eq.s32.totalorder %s9, 1
    %p92 = por %p90, %p91
    %p93 = scmp.ne.s32.totalorder %s85, %s88
    %p94 = scmp.eq.s32.totalorder %s9, 0
    %p95 = por %p93, %p94
    %p96 = scmp.ne.s32.totalorder %s85, %s88
    %p97 = scmp.eq.s32.totalorder %s14, 1
    %p98 = por %p96, %p97
    %p99 = scmp.ne.s32.totalorder %s88, %s89
    %p100 = scmp.eq.s32.totalorder %s14, 0
    %p101 = por %p99, %p100
    %p102 = scmp.ne.s32.totalorder %s88, %s89
    %p103 = scmp.eq.s32.totalorder %s15, 1
    %p104 = por %p102, %p103
    %p106 = scmp.ne.s32.totalorder %s89, %s105
    %p107 = scmp.eq.s32.totalorder %s15, 0
    %p108 = por %p106, %p107
    %s109 = ssub.s32 %s16, %s28
    %s110 = ssub.s32 %s17, %s24
    %s111 = sor.u32 %s109, %s110
    %p112 = scmp.eq.s32.totalorder %s111, 0
    %s114 = sadd.s32 %s113, 1
    %s115 = scalar_select %p112, %s113, %s114
    %p118 = pneg %p112
    %p119 = scmp.eq.s32.totalorder %s9, 1
    %p120 = por %p118, %p119
    %p121 = scmp.ne.s32.totalorder %s113, %s116
    %p122 = scmp.eq.s32.totalorder %s9, 0
    %p123 = por %p121, %p122
    %p124 = scmp.ne.s32.totalorder %s113, %s116
    %p125 = scmp.eq.s32.totalorder %s14, 1
    %p126 = por %p124, %p125
    %p127 = scmp.ne.s32.totalorder %s116, %s117
    %p128 = scmp.eq.s32.totalorder %s14, 0
    %p129 = por %p127, %p128
    %p130 = scmp.ne.s32.totalorder %s116, %s117
    %p131 = scmp.eq.s32.totalorder %s15, 1
    %p132 = por %p130, %p131
    %p134 = scmp.ne.s32.totalorder %s117, %s133
    %p135 = scmp.eq.s32.totalorder %s15, 0
    %p136 = por %p134, %p135
    %p137 = scmp.le.s32.totalorder 1, %s9
    %p138 = scmp.lt.s32.totalorder %s9, 3
    %p139 = pnand %p137, %p138
    %p140 = pneg %p139
    // Predicated region
    $region9: #{closed_call.77} parent=5 // pred_check
      _
    $region10: #{closed_call.77} parent=5 // pred_check_branch
      %142 = sbr.rel (%p139) target = $region12
    $region11: #{closed_call.77} parent=5 // pred_region
      %s143 = ssub.s32 %s9, 1
    $region12: #{closed_call.77} parent=5 // pred_fallthru
      _
    %p144 = scmp.lt.s32.totalorder %s9, 2
    // Predicated region
    $region13: #{closed_call.77} parent=5 // pred_check
      %p145 = pneg %p144
    $region14: #{closed_call.77} parent=5 // pred_check_branch
      %147 = sbr.rel (%p145) target = $region16
    $region15: #{closed_call.77} parent=5 // pred_region
      // Predicated region
      $region17: #{closed_call.77} parent=15 // pred_check
        %p148 = pneg %p43
      $region18: #{closed_call.77} parent=15 // pred_check_branch
        %150 = sbr.rel (%p148) target = $region20
      $region19: #{closed_call.77} parent=15 // pred_region
        %s151 = smul.u32 16, %s17
        %p152 = scmp.lt.s32.totalorder %s16, 1
        %s153 = scalar_select %p152, %s16, 1
        %p154 = scmp.lt.s32.totalorder %s151, 15
        %s155 = scalar_select %p154, %s151, 15
        %s156 = smul.addr %s155, 2
        %s157 = smul.addr %s153, 32
        %s158 = sadd.s32 %s156, %s157
        %s159 = smul.addr %s158, 4
        %s160 = scalar_lea.vmem %s0, %s159
        %s161 = smul.u32 16, %s17
      $region20: #{closed_call.77} parent=15 // pred_fallthru
        _
      // Predicated region
      $region21: #{closed_call.77} parent=15 // pred_check
        %p162 = pneg %p69
      $region22: #{closed_call.77} parent=15 // pred_check_branch
        %164 = sbr.rel (%p162) target = $region24
      $region23: #{closed_call.77} parent=15 // pred_region
        %p165 = scmp.lt.s32.totalorder %s16, 1
        %s166 = scalar_select %p165, %s16, 1
        %s167 = smul.addr %s166, 18
        %s168 = smul.addr %s167, 4
        %s169 = scalar_lea.vmem %s1, %s168
      $region24: #{closed_call.77} parent=15 // pred_fallthru
        _
      // Predicated region
      $region25: #{closed_call.77} parent=15 // pred_check
        %p170 = pneg %p95
      $region26: #{closed_call.77} parent=15 // pred_check_branch
        %172 = sbr.rel (%p170) target = $region28
      $region27: #{closed_call.77} parent=15 // pred_region
        %p173 = scmp.lt.s32.totalorder %s16, 1
        %s174 = scalar_select %p173, %s16, 1
        %s175 = scalar_lea.vmem %s2, %s174
      $region28: #{closed_call.77} parent=15 // pred_fallthru
        _
    $region16: #{closed_call.77} parent=5 // pred_fallthru
      _
    %p176 = scmp.le.s32.totalorder 1, %s9
    %p177 = scmp.lt.s32.totalorder %s9, 3
    %p178 = pnand %p176, %p177
    %p179 = pneg %p178
    // Predicated region
    $region29: #{closed_call.77} parent=5 // pred_check
      _
    $region30: #{closed_call.77} parent=5 // pred_check_branch
      %181 = sbr.rel (%p178) target = $region32
    $region31: #{closed_call.77} parent=5 // pred_region
      %s182 = ssub.s32 %s9, 1
      %s183 = smul.u32 16, %s19
      %p184 = scmp.lt.s32.totalorder %s18, 1
      %s185 = scalar_select %p184, %s18, 1
      %p186 = scmp.lt.s32.totalorder %s183, 15
      %s187 = scalar_select %p186, %s183, 15
      %s188 = smul.addr %s187, 2
      %s189 = smul.addr %s185, 32
      %s190 = sadd.s32 %s188, %s189
      %s191 = smul.addr %s190, 4
      %s192 = scalar_lea.vmem %s0, %s191
      %p193 = pneg %p49
      %p194 = pneg %p46
      %p195 = scmp.lt.s32.totalorder %s18, 1
      %s196 = scalar_select %p195, %s18, 1
      %s197 = smul.addr %s196, 18
      %s198 = smul.addr %s197, 4
      %s199 = scalar_lea.vmem %s1, %s198
      %p200 = pneg %p75
      %p201 = pneg %p72
      %p202 = scmp.lt.s32.totalorder %s18, 1
      %s203 = scalar_select %p202, %s18, 1
      %s204 = scalar_lea.vmem %s2, %s203
      %p205 = pneg %p101
      %p206 = pneg %p98
      %p207 = pneg %p129
      %p208 = pneg %p126
      %s209 = smul.u32 16, %s19
      %p210 = scmp.lt.s32.totalorder %s18, 1
      %s211 = scalar_select %p210, %s18, 1
      %p212 = scmp.lt.s32.totalorder %s209, 15
      %s213 = scalar_select %p212, %s209, 15
      %s214 = smul.addr %s211, 16
      %s215 = sadd.s32 %s213, %s214
      %s216 = smul.addr %s215, 4
      %s217 = scalar_lea.vmem %s3, %s216
      %s218 = smul.u32 16, %s19
      %p219 = scmp.lt.s32.totalorder %s18, 1
      %s220 = scalar_select %p219, %s18, 1
      %p221 = scmp.lt.s32.totalorder %s218, 15
      %s222 = scalar_select %p221, %s218, 15
      %s223 = smul.addr %s222, 2
      %s224 = smul.addr %s220, 32
      %s225 = sadd.s32 %s223, %s224
      %s226 = smul.addr %s225, 4
      %s227 = scalar_lea.vmem %s0, %s226
      %s228 = smul.u32 16, %s19
      %p229 = scmp.lt.s32.totalorder %s18, 1
      %s230 = scalar_select %p229, %s18, 1
      %s231 = smul.addr %s230, 18
      %s232 = smul.addr %s231, 4
      %s233 = scalar_lea.vmem %s1, %s232
      %p234 = scmp.lt.s32.totalorder %s18, 1
      %s235 = scalar_select %p234, %s18, 1
      %s236 = scalar_lea.vmem %s2, %s235
      %s237 = smul.u32 16, %s19
      %p238 = scmp.lt.s32.totalorder %s18, 1
      %s239 = scalar_select %p238, %s18, 1
      %p240 = scmp.lt.s32.totalorder %s237, 15
      %s241 = scalar_select %p240, %s237, 15
      %s242 = smul.addr %s239, 16
      %s243 = sadd.s32 %s241, %s242
      %s244 = smul.addr %s243, 4
      %s245 = scalar_lea.vmem %s3, %s244
      %s246 = smul.u32 16, %s19
      %v248 = vld [vmem:[%s227] sm:$0xff]
      %v249 = vld [vmem:[%s227 + $0x8] sm:$0xff]
      %v250 = vld [vmem:[%s227 + $0x10] sm:$0xff]
      %v251 = vld [vmem:[%s227 + $0x18] sm:$0xff]
      %v252 = vld [vmem:[%s227 + $0x20] sm:$0xff]
      %v253 = vld [vmem:[%s227 + $0x28] sm:$0xff]
      %v254 = vld [vmem:[%s227 + $0x30] sm:$0xff]
      %v255 = vld [vmem:[%s227 + $0x38] sm:$0xff]
      %v256 = vld [vmem:[%s227 + $0x40] sm:$0xff]
      %v257 = vld [vmem:[%s227 + $0x48] sm:$0xff]
      %v258 = vld [vmem:[%s227 + $0x50] sm:$0xff]
      %v259 = vld [vmem:[%s227 + $0x58] sm:$0xff]
      %v260 = vld [vmem:[%s227 + $0x60] sm:$0xff]
      %v261 = vld [vmem:[%s227 + $0x68] sm:$0xff]
      %v262 = vld [vmem:[%s227 + $0x70] sm:$0xff]
      %v263 = vld [vmem:[%s227 + $0x78] sm:$0xff]
      %v264 = vld [vmem:[%s233] sm:$0xf]
      %v265 = vld [vmem:[%s233 + $0x4] sm:$0xf]
      %v266 = vld [vmem:[%s233 + $0x8] sm:$0xf]
      %v267 = vld [vmem:[%s233 + $0xc] sm:$0xf]
      %v268 = vld [vmem:[%s233 + $0x10] sm:$0xf]
      %v269 = vld [vmem:[%s233 + $0x14] sm:$0xf]
      %v270 = vld [vmem:[%s233 + $0x18] sm:$0xf]
      %v271 = vld [vmem:[%s233 + $0x1c] sm:$0xf]
      %v272 = vld [vmem:[%s233 + $0x20] sm:$0xf]
      %v273 = vld [vmem:[%s233 + $0x24] sm:$0xf]
      %v274 = vld [vmem:[%s233 + $0x28] sm:$0xf]
      %v275 = vld [vmem:[%s233 + $0x2c] sm:$0xf]
      %v276 = vld [vmem:[%s233 + $0x30] sm:$0xf]
      %v277 = vld [vmem:[%s233 + $0x34] sm:$0xf]
      %v278 = vld [vmem:[%s233 + $0x38] sm:$0xf]
      %v279 = vld [vmem:[%s233 + $0x3c] sm:$0xf]
      %v280 = vld [vmem:[%s233 + $0x40] sm:$0xf]
      %v281 = vld [vmem:[%s233 + $0x44] sm:$0xf]
      %v282 = vld [vmem:[%s236] sm:$0x1]
      %v284 = vlaneseq
      %v285 = vshrl.u32 %v284, 7
      %v286 = vsub.s32 0, %v285
      %v287 = vrot.slane %v282, %v286
      %v305 = vunpack.c.l.b16 %v248
      %v306 = vunpack.c.h.b16 %v248
      %v307 = vunpack.c.l.b16 %v249
      %v308 = vunpack.c.h.b16 %v249
      %v309 = vunpack.c.l.b16 %v250
      %v310 = vunpack.c.h.b16 %v250
      %v311 = vunpack.c.l.b16 %v251
      %v312 = vunpack.c.h.b16 %v251
      %v313 = vunpack.c.l.b16 %v252
      %v314 = vunpack.c.h.b16 %v252
      %v315 = vunpack.c.l.b16 %v253
      %v316 = vunpack.c.h.b16 %v253
      %v317 = vunpack.c.l.b16 %v254
      %v318 = vunpack.c.h.b16 %v254
      %v319 = vunpack.c.l.b16 %v255
      %v320 = vunpack.c.h.b16 %v255
      %v321 = vunpack.c.l.b16 %v256
      %v322 = vunpack.c.h.b16 %v256
      %v323 = vunpack.c.l.b16 %v257
      %v324 = vunpack.c.h.b16 %v257
      %v325 = vunpack.c.l.b16 %v258
      %v326 = vunpack.c.h.b16 %v258
      %v327 = vunpack.c.l.b16 %v259
      %v328 = vunpack.c.h.b16 %v259
      %v329 = vunpack.c.l.b16 %v260
      %v330 = vunpack.c.h.b16 %v260
      %v331 = vunpack.c.l.b16 %v261
      %v332 = vunpack.c.h.b16 %v261
      %v333 = vunpack.c.l.b16 %v262
      %v334 = vunpack.c.h.b16 %v262
      %v335 = vunpack.c.l.b16 %v263
      %v336 = vunpack.c.h.b16 %v263
      %v337 = vpack.c.b16 %v307, %v305
      %v338 = vpack.c.b16 %v308, %v306
      %v339 = vpack.c.b16 %v311, %v309
      %v340 = vpack.c.b16 %v312, %v310
      %v341 = vpack.c.b16 %v315, %v313
      %v342 = vpack.c.b16 %v316, %v314
      %v343 = vpack.c.b16 %v319, %v317
      %v344 = vpack.c.b16 %v320, %v318
      %v345 = vpack.c.b16 %v323, %v321
      %v346 = vpack.c.b16 %v324, %v322
      %v347 = vpack.c.b16 %v327, %v325
      %v348 = vpack.c.b16 %v328, %v326
      %v349 = vpack.c.b16 %v331, %v329
      %v350 = vpack.c.b16 %v332, %v330
      %v351 = vpack.c.b16 %v335, %v333
      %v352 = vpack.c.b16 %v336, %v334
      %v379 = vunpack.c.l.b16 %v264
      %v380 = vunpack.c.l.b16 %v265
      %v381 = vunpack.c.l.b16 %v266
      %v382 = vunpack.c.l.b16 %v267
      %v383 = vunpack.c.l.b16 %v268
      %v384 = vunpack.c.l.b16 %v269
      %v385 = vunpack.c.l.b16 %v270
      %v386 = vunpack.c.l.b16 %v271
      %v387 = vunpack.c.l.b16 %v272
      %v388 = vunpack.c.l.b16 %v273
      %v389 = vunpack.c.l.b16 %v274
      %v390 = vunpack.c.l.b16 %v275
      %v391 = vunpack.c.l.b16 %v276
      %v392 = vunpack.c.l.b16 %v277
      %v393 = vunpack.c.l.b16 %v278
      %v394 = vunpack.c.l.b16 %v279
      %v395 = vunpack.c.l.b16 %v280
      %v396 = vunpack.c.l.b16 %v281
      %v397 = vpack.c.b16 %v380, %v379
      %v398 = vpack.c.b16 %v382, %v381
      %v399 = vpack.c.b16 %v384, %v383
      %v400 = vpack.c.b16 %v386, %v385
      %v401 = vpack.c.b16 %v388, %v387
      %v402 = vpack.c.b16 %v390, %v389
      %v403 = vpack.c.b16 %v392, %v391
      %v404 = vpack.c.b16 %v394, %v393
      %v405 = vpack.c.b16 %v396, %v395
      %vm415 = vcmask 130048
      %v417 = vsel %vm415, %v338, 0
      %v420 = vsel %vm415, %v340, 0
      %v423 = vsel %vm415, %v342, 0
      %v426 = vsel %vm415, %v344, 0
      %v429 = vsel %vm415, %v346, 0
      %v432 = vsel %vm415, %v348, 0
      %v435 = vsel %vm415, %v350, 0
      %v438 = vsel %vm415, %v352, 0
      %440 = vmatprep.subr.bf16.mxu0 0
      %441 = vmatpush1.bf16.msra.mxu0 %v397
      %442 = vmatprep.subr.bf16.mxu0 0
      %443 = vmatpush1.bf16.msra.mxu0 %v398
      %444 = vmatprep.subr.bf16.mxu0 0
      %445 = vmatpush1.bf16.msra.mxu0 %v399
      %446 = vmatprep.subr.bf16.mxu0 0
      %447 = vmatpush1.bf16.msra.mxu0 %v400
      %448 = vmatprep.subr.bf16.mxu0 0
      %449 = vmatpush1.bf16.msra.mxu0 %v401
      %450 = vmatprep.subr.bf16.mxu0 0
      %451 = vmatpush1.bf16.msra.mxu0 %v402
      %452 = vmatprep.subr.bf16.mxu0 0
      %453 = vmatpush1.bf16.msra.mxu0 %v403
      %454 = vmatprep.subr.bf16.mxu0 0
      %455 = vmatpush1.bf16.msra.mxu0 %v404
      %456 = vmatprep.subr.bf16.mxu0 0
      %457 = vmatpush1.bf16.msra.mxu0 %v405
      %458 = vmatprep.subr.bf16.mxu0 0
      %459 = vmatpush1.bf16.msra.mxu0 0
      %460 = vmatprep.subr.bf16.mxu0 0
      %461 = vmatpush1.bf16.msra.mxu0 0
      %462 = vmatprep.subr.bf16.mxu0 0
      %463 = vmatpush1.bf16.msra.mxu0 0
      %464 = vmatprep.subr.bf16.mxu0 0
      %465 = vmatpush1.bf16.msra.mxu0 0
      %466 = vmatprep.subr.bf16.mxu0 0
      %467 = vmatpush1.bf16.msra.mxu0 0
      %468 = vmatprep.subr.bf16.mxu0 0
      %469 = vmatpush1.bf16.msra.mxu0 0
      %470 = vmatprep.subr.bf16.mxu0 0
      %471 = vmatpush1.bf16.msra.mxu0 0
      %472 = vmatprep.mubr.bf16.mxu0 %v417
      %473 = vmatmul.mubr.bf16.gmra.mrb[0].mxu0 %v337
      %v474 = vpop.f32.mrb[0].mxu0
      %v475 = vadd.f32 %v287, %v474
      %v476 = vpop.f32.mrb[0].mxu0
      %v477 = vpop.f32.mrb[0].mxu0
      %v478 = vadd.f32 %v287, %v477
      %v479 = vpop.f32.mrb[0].mxu0
      %480 = vmatprep.mubr.bf16.mxu0 %v420
      %481 = vmatmul.mubr.bf16.gmra.mrb[0].mxu0 %v339
      %v482 = vpop.f32.mrb[0].mxu0
      %v483 = vadd.f32 %v287, %v482
      %v484 = vpop.f32.mrb[0].mxu0
      %v485 = vpop.f32.mrb[0].mxu0
      %v486 = vadd.f32 %v287, %v485
      %v487 = vpop.f32.mrb[0].mxu0
      %488 = vmatprep.mubr.bf16.mxu0 %v423
      %489 = vmatmul.mubr.bf16.gmra.mrb[0].mxu0 %v341
      %v490 = vpop.f32.mrb[0].mxu0
      %v491 = vadd.f32 %v287, %v490
      %v492 = vpop.f32.mrb[0].mxu0
      %v493 = vpop.f32.mrb[0].mxu0
      %v494 = vadd.f32 %v287, %v493
      %v495 = vpop.f32.mrb[0].mxu0
      %496 = vmatprep.mubr.bf16.mxu0 %v426
      %497 = vmatmul.mubr.bf16.gmra.mrb[0].mxu0 %v343
      %v498 = vpop.f32.mrb[0].mxu0
      %v499 = vadd.f32 %v287, %v498
      %v500 = vpop.f32.mrb[0].mxu0
      %v501 = vpop.f32.mrb[0].mxu0
      %v502 = vadd.f32 %v287, %v501
      %v503 = vpop.f32.mrb[0].mxu0
      %504 = vmatprep.mubr.bf16.mxu0 %v429
      %505 = vmatmul.mubr.bf16.gmra.mrb[0].mxu0 %v345
      %v506 = vpop.f32.mrb[0].mxu0
      %v507 = vadd.f32 %v287, %v506
      %v508 = vpop.f32.mrb[0].mxu0
      %v509 = vpop.f32.mrb[0].mxu0
      %v510 = vadd.f32 %v287, %v509
      %v511 = vpop.f32.mrb[0].mxu0
      %512 = vmatprep.mubr.bf16.mxu0 %v432
      %513 = vmatmul.mubr.bf16.gmra.mrb[0].mxu0 %v347
      %v514 = vpop.f32.mrb[0].mxu0
      %v515 = vadd.f32 %v287, %v514
      %v516 = vpop.f32.mrb[0].mxu0
      %v517 = vpop.f32.mrb[0].mxu0
      %v518 = vadd.f32 %v287, %v517
      %v519 = vpop.f32.mrb[0].mxu0
      %520 = vmatprep.mubr.bf16.mxu0 %v435
      %521 = vmatmul.mubr.bf16.gmra.mrb[0].mxu0 %v349
      %v522 = vpop.f32.mrb[0].mxu0
      %v523 = vadd.f32 %v287, %v522
      %v524 = vpop.f32.mrb[0].mxu0
      %v525 = vpop.f32.mrb[0].mxu0
      %v526 = vadd.f32 %v287, %v525
      %v527 = vpop.f32.mrb[0].mxu0
      %528 = vmatprep.mubr.bf16.mxu0 %v438
      %529 = vmatmul.mubr.bf16.gmra.mrb[0].mxu0 %v351
      %v530 = vpop.f32.mrb[0].mxu0
      %v531 = vadd.f32 %v287, %v530
      %v532 = vpop.f32.mrb[0].mxu0
      %v533 = vpop.f32.mrb[0].mxu0
      %v534 = vadd.f32 %v287, %v533
      %v535 = vpop.f32.mrb[0].mxu0
      %536 = vdwg.mxu0
      %vm537 = vcmp.ge.f32.partialorder %v475, 0.0
      %vm538 = vcmp.ge.f32.partialorder %v478, 0.0
      %vm539 = vcmp.ge.f32.partialorder %v483, 0.0
      %vm540 = vcmp.ge.f32.partialorder %v486, 0.0
      %vm541 = vcmp.ge.f32.partialorder %v491, 0.0
      %vm542 = vcmp.ge.f32.partialorder %v494, 0.0
      %vm543 = vcmp.ge.f32.partialorder %v499, 0.0
      %vm544 = vcmp.ge.f32.partialorder %v502, 0.0
      %vm545 = vcmp.ge.f32.partialorder %v507, 0.0
      %vm546 = vcmp.ge.f32.partialorder %v510, 0.0
      %vm547 = vcmp.ge.f32.partialorder %v515, 0.0
      %vm548 = vcmp.ge.f32.partialorder %v518, 0.0
      %vm549 = vcmp.ge.f32.partialorder %v523, 0.0
      %vm550 = vcmp.ge.f32.partialorder %v526, 0.0
      %vm551 = vcmp.ge.f32.partialorder %v531, 0.0
      %vm552 = vcmp.ge.f32.partialorder %v534, 0.0
      %v553 = vmul.f32 %v475, 0.2
      %v554 = vmul.f32 %v478, 0.2
      %v555 = vmul.f32 %v483, 0.2
      %v556 = vmul.f32 %v486, 0.2
      %v557 = vmul.f32 %v491, 0.2
      %v558 = vmul.f32 %v494, 0.2
      %v559 = vmul.f32 %v499, 0.2
      %v560 = vmul.f32 %v502, 0.2
      %v561 = vmul.f32 %v507, 0.2
      %v562 = vmul.f32 %v510, 0.2
      %v563 = vmul.f32 %v515, 0.2
      %v564 = vmul.f32 %v518, 0.2
      %v565 = vmul.f32 %v523, 0.2
      %v566 = vmul.f32 %v526, 0.2
      %v567 = vmul.f32 %v531, 0.2
      %v568 = vmul.f32 %v534, 0.2
      %v569 = vsel %vm537, %v475, %v553
      %v570 = vsel %vm538, %v478, %v554
      %v571 = vsel %vm539, %v483, %v555
      %v572 = vsel %vm540, %v486, %v556
      %v573 = vsel %vm541, %v491, %v557
      %v574 = vsel %vm542, %v494, %v558
      %v575 = vsel %vm543, %v499, %v559
      %v576 = vsel %vm544, %v502, %v560
      %v577 = vsel %vm545, %v507, %v561
      %v578 = vsel %vm546, %v510, %v562
      %v579 = vsel %vm547, %v515, %v563
      %v580 = vsel %vm548, %v518, %v564
      %v581 = vsel %vm549, %v523, %v565
      %v582 = vsel %vm550, %v526, %v566
      %v583 = vsel %vm551, %v531, %v567
      %v584 = vsel %vm552, %v534, %v568
      %v585 = vpack.c.bf16 %v570, %v569
      %v586 = vpack.c.bf16 %v572, %v571
      %v587 = vpack.c.bf16 %v574, %v573
      %v588 = vpack.c.bf16 %v576, %v575
      %v589 = vpack.c.bf16 %v578, %v577
      %v590 = vpack.c.bf16 %v580, %v579
      %v591 = vpack.c.bf16 %v582, %v581
      %v592 = vpack.c.bf16 %v584, %v583
      %v601 = vunpack.c.l.b16 %v585
      %v602 = vunpack.c.h.b16 %v585
      %v603 = vunpack.c.l.b16 %v586
      %v604 = vunpack.c.h.b16 %v586
      %v605 = vunpack.c.l.b16 %v587
      %v606 = vunpack.c.h.b16 %v587
      %v607 = vunpack.c.l.b16 %v588
      %v608 = vunpack.c.h.b16 %v588
      %v609 = vunpack.c.l.b16 %v589
      %v610 = vunpack.c.h.b16 %v589
      %v611 = vunpack.c.l.b16 %v590
      %v612 = vunpack.c.h.b16 %v590
      %v613 = vunpack.c.l.b16 %v591
      %v614 = vunpack.c.h.b16 %v591
      %v615 = vunpack.c.l.b16 %v592
      %v616 = vunpack.c.h.b16 %v592
      %v617 = vpack.c.b16 %v601, %v601
      %v618 = vpack.c.b16 %v602, %v602
      %v619 = vpack.c.b16 %v603, %v603
      %v620 = vpack.c.b16 %v604, %v604
      %v621 = vpack.c.b16 %v605, %v605
      %v622 = vpack.c.b16 %v606, %v606
      %v623 = vpack.c.b16 %v607, %v607
      %v624 = vpack.c.b16 %v608, %v608
      %v625 = vpack.c.b16 %v609, %v609
      %v626 = vpack.c.b16 %v610, %v610
      %v627 = vpack.c.b16 %v611, %v611
      %v628 = vpack.c.b16 %v612, %v612
      %v629 = vpack.c.b16 %v613, %v613
      %v630 = vpack.c.b16 %v614, %v614
      %v631 = vpack.c.b16 %v615, %v615
      %v632 = vpack.c.b16 %v616, %v616
      %vm649 = vcmask 125952
      %650 = vst.msk [vmem:[%s245] sm:$0xf] %vm649, %v617
      %651 = vst.msk [vmem:[%s245 + $0x4] sm:$0xf] %vm649, %v618
      %652 = vst.msk [vmem:[%s245 + $0x8] sm:$0xf] %vm649, %v619
      %653 = vst.msk [vmem:[%s245 + $0xc] sm:$0xf] %vm649, %v620
      %654 = vst.msk [vmem:[%s245 + $0x10] sm:$0xf] %vm649, %v621
      %655 = vst.msk [vmem:[%s245 + $0x14] sm:$0xf] %vm649, %v622
      %656 = vst.msk [vmem:[%s245 + $0x18] sm:$0xf] %vm649, %v623
      %657 = vst.msk [vmem:[%s245 + $0x1c] sm:$0xf] %vm649, %v624
      %658 = vst.msk [vmem:[%s245 + $0x20] sm:$0xf] %vm649, %v625
      %659 = vst.msk [vmem:[%s245 + $0x24] sm:$0xf] %vm649, %v626
      %660 = vst.msk [vmem:[%s245 + $0x28] sm:$0xf] %vm649, %v627
      %661 = vst.msk [vmem:[%s245 + $0x2c] sm:$0xf] %vm649, %v628
      %662 = vst.msk [vmem:[%s245 + $0x30] sm:$0xf] %vm649, %v629
      %663 = vst.msk [vmem:[%s245 + $0x34] sm:$0xf] %vm649, %v630
      %664 = vst.msk [vmem:[%s245 + $0x38] sm:$0xf] %vm649, %v631
      %665 = vst.msk [vmem:[%s245 + $0x3c] sm:$0xf] %vm649, %v632
      %s666 = smul.u32 16, %s19
      %p667 = scmp.lt.s32.totalorder %s18, 1
      %s668 = scalar_select %p667, %s18, 1
      %p669 = scmp.lt.s32.totalorder %s666, 15
      %s670 = scalar_select %p669, %s666, 15
      %s671 = smul.addr %s668, 16
      %s672 = sadd.s32 %s670, %s671
      %s673 = smul.addr %s672, 4
      %s674 = scalar_lea.vmem %s3, %s673
      // Predicated region
      $region33: #{closed_call.77} parent=31 // pred_check
        %p675 = pneg %p126
      $region34: #{closed_call.77} parent=31 // pred_check_branch
        %677 = sbr.rel (%p675) target = $region36
      $region35: #{closed_call.77} parent=31 // pred_region
        %s678 = smul.u32 16, %s19
      $region36: #{closed_call.77} parent=31 // pred_fallthru
        _
    $region32: #{closed_call.77} parent=5 // pred_fallthru
      _
    %p679 = scmp.le.s32.totalorder 2, %s9
    // Predicated region
    $region37: #{closed_call.77} parent=5 // pred_check
      %p680 = pneg %p679
    $region38: #{closed_call.77} parent=5 // pred_check_branch
      %682 = sbr.rel (%p680) target = $region40
    $region39: #{closed_call.77} parent=5 // pred_region
      %s683 = ssub.s32 %s9, 2
      // Predicated region
      $region41: #{closed_call.77} parent=39 // pred_check
        %p684 = pneg %p132
      $region42: #{closed_call.77} parent=39 // pred_check_branch
        %686 = sbr.rel (%p684) target = $region44
      $region43: #{closed_call.77} parent=39 // pred_region
        %s687 = smul.u32 16, %s21
        %p688 = scmp.lt.s32.totalorder %s20, 1
        %s689 = scalar_select %p688, %s20, 1
        %p690 = scmp.lt.s32.totalorder %s687, 15
        %s691 = scalar_select %p690, %s687, 15
        %s692 = smul.addr %s689, 16
        %s693 = sadd.s32 %s691, %s692
        %s694 = smul.addr %s693, 4
        %s695 = scalar_lea.vmem %s3, %s694
      $region44: #{closed_call.77} parent=39 // pred_fallthru
        _
    $region40: #{closed_call.77} parent=5 // pred_fallthru
      _
  $region6: #{closed_call.77} parent=0 // loop_footer
    %s13 = sadd.s32 1, %s9
  $region7: #{closed_call.77} parent=0 // loop_footer_branch
    %8 = sbr.rel target = $region3
  $region8: #{closed_call.77} parent=0 // loop_exit
    _

// kernel: closed_call.78
$region0: #{closed_call.78}
  #allocation0 [shape = 'u32[]', space=smem, size = 0x4, offset = 0x4, fixed_abs, tag = 'smem constant byte address 0x4 - core index']
  #allocation1 [shape = 'u32[144,128]{1,0:T(1,128)}', space=vmem, size = 0x12000, scoped, tag = 'internal scratch']
  %s0 = inlined_call_operand.vmem [shape: bf16[2,32,144], index: 0, kind: input, shape index: {}]
  %s1 = inlined_call_operand.vmem [shape: bf16[2,144,16], index: 1, kind: input, shape index: {}]
  %s2 = inlined_call_operand.vmem [shape: f32[2,1,16], index: 2, kind: input, shape index: {}]
  %s3 = inlined_call_operand.vmem [shape: bf16[2,32,16], index: 3, kind: output, shape index: {}]
  %s4 = sld [smem:[#allocation0]]
  $region45: #{closed_call.78} parent=0
    _
  %s6 = ssub.s32 1, %s4
  %s7 = scalar_select 0, %s6, %s4
  loop: start=0, step=1, limit=4
  $region2: #{closed_call.78} parent=0 // loop_pre_header
    _
  $region3: #{closed_call.78} parent=0 // loop_header
    %s9 = sphi 0, %s13
    %p10 = scmp.ge.s32.totalorder %s9, 4
    %s16 = sphi 0, %s28
    %s17 = sphi 0, %s24
    %s18 = sphi 0, %s16
    %s19 = sphi 0, %s17
    %s20 = sphi 0, %s18
    %s21 = sphi 0, %s19
    %s33 = sphi 0, %s35
    %s36 = sphi 0, %s33
    %s37 = sphi 0, %s36
    %s53 = sphi 0, %s37
    %s59 = sphi 0, %s61
    %s62 = sphi 0, %s59
    %s63 = sphi 0, %s62
    %s79 = sphi 0, %s63
    %s85 = sphi 0, %s87
    %s88 = sphi 0, %s85
    %s89 = sphi 0, %s88
    %s105 = sphi 0, %s89
    %s113 = sphi 0, %s115
    %s116 = sphi 0, %s113
    %s117 = sphi 0, %s116
    %s133 = sphi 0, %s117
  $region4: #{closed_call.78} parent=0 // loop_header_branch
    %12 = sbr.rel (%p10) target = $region8
  $region5: #{closed_call.78} parent=0 // loop_body
    %s14 = ssub.s32 %s9, 1
    %s15 = ssub.s32 %s9, 2
    %s22 = sadd.s32 1, %s17
    %p23 = scmp.ge.s32.totalorder %s22, 1
    %s24 = scalar_select %p23, 0, %s22
    %s25 = sadd.s32 1, %s16
    %s26 = scalar_select %p23, %s25, %s16
    %p27 = scmp.ge.s32.totalorder %s26, 2
    %s28 = scalar_select %p27, 0, %s26
    %s29 = ssub.s32 %s16, %s28
    %s30 = ssub.s32 %s17, %s24
    %s31 = sor.u32 %s29, %s30
    %p32 = scmp.eq.s32.totalorder %s31, 0
    %s34 = sadd.s32 %s33, 1
    %s35 = scalar_select %p32, %s33, %s34
    %p38 = pneg %p32
    %p39 = scmp.eq.s32.totalorder %s9, 1
    %p40 = por %p38, %p39
    %p41 = scmp.ne.s32.totalorder %s33, %s36
    %p42 = scmp.eq.s32.totalorder %s9, 0
    %p43 = por %p41, %p42
    %p44 = scmp.ne.s32.totalorder %s33, %s36
    %p45 = scmp.eq.s32.totalorder %s14, 1
    %p46 = por %p44, %p45
    %p47 = scmp.ne.s32.totalorder %s36, %s37
    %p48 = scmp.eq.s32.totalorder %s14, 0
    %p49 = por %p47, %p48
    %p50 = scmp.ne.s32.totalorder %s36, %s37
    %p51 = scmp.eq.s32.totalorder %s15, 1
    %p52 = por %p50, %p51
    %p54 = scmp.ne.s32.totalorder %s37, %s53
    %p55 = scmp.eq.s32.totalorder %s15, 0
    %p56 = por %p54, %p55
    %s57 = ssub.s32 %s16, %s28
    %p58 = scmp.eq.s32.totalorder %s57, 0
    %s60 = sadd.s32 %s59, 1
    %s61 = scalar_select %p58, %s59, %s60
    %p64 = pneg %p58
    %p65 = scmp.eq.s32.totalorder %s9, 1
    %p66 = por %p64, %p65
    %p67 = scmp.ne.s32.totalorder %s59, %s62
    %p68 = scmp.eq.s32.totalorder %s9, 0
    %p69 = por %p67, %p68
    %p70 = scmp.ne.s32.totalorder %s59, %s62
    %p71 = scmp.eq.s32.totalorder %s14, 1
    %p72 = por %p70, %p71
    %p73 = scmp.ne.s32.totalorder %s62, %s63
    %p74 = scmp.eq.s32.totalorder %s14, 0
    %p75 = por %p73, %p74
    %p76 = scmp.ne.s32.totalorder %s62, %s63
    %p77 = scmp.eq.s32.totalorder %s15, 1
    %p78 = por %p76, %p77
    %p80 = scmp.ne.s32.totalorder %s63, %s79
    %p81 = scmp.eq.s32.totalorder %s15, 0
    %p82 = por %p80, %p81
    %s83 = ssub.s32 %s16, %s28
    %p84 = scmp.eq.s32.totalorder %s83, 0
    %s86 = sadd.s32 %s85, 1
    %s87 = scalar_select %p84, %s85, %s86
    %p90 = pneg %p84
    %p91 = scmp.eq.s32.totalorder %s9, 1
    %p92 = por %p90, %p91
    %p93 = scmp.ne.s32.totalorder %s85, %s88
    %p94 = scmp.eq.s32.totalorder %s9, 0
    %p95 = por %p93, %p94
    %p96 = scmp.ne.s32.totalorder %s85, %s88
    %p97 = scmp.eq.s32.totalorder %s14, 1
    %p98 = por %p96, %p97
    %p99 = scmp.ne.s32.totalorder %s88, %s89
    %p100 = scmp.eq.s32.totalorder %s14, 0
    %p101 = por %p99, %p100
    %p102 = scmp.ne.s32.totalorder %s88, %s89
    %p103 = scmp.eq.s32.totalorder %s15, 1
    %p104 = por %p102, %p103
    %p106 = scmp.ne.s32.totalorder %s89, %s105
    %p107 = scmp.eq.s32.totalorder %s15, 0
    %p108 = por %p106, %p107
    %s109 = ssub.s32 %s16, %s28
    %s110 = ssub.s32 %s17, %s24
    %s111 = sor.u32 %s109, %s110
    %p112 = scmp.eq.s32.totalorder %s111, 0
    %s114 = sadd.s32 %s113, 1
    %s115 = scalar_select %p112, %s113, %s114
    %p118 = pneg %p112
    %p119 = scmp.eq.s32.totalorder %s9, 1
    %p120 = por %p118, %p119
    %p121 = scmp.ne.s32.totalorder %s113, %s116
    %p122 = scmp.eq.s32.totalorder %s9, 0
    %p123 = por %p121, %p122
    %p124 = scmp.ne.s32.totalorder %s113, %s116
    %p125 = scmp.eq.s32.totalorder %s14, 1
    %p126 = por %p124, %p125
    %p127 = scmp.ne.s32.totalorder %s116, %s117
    %p128 = scmp.eq.s32.totalorder %s14, 0
    %p129 = por %p127, %p128
    %p130 = scmp.ne.s32.totalorder %s116, %s117
    %p131 = scmp.eq.s32.totalorder %s15, 1
    %p132 = por %p130, %p131
    %p134 = scmp.ne.s32.totalorder %s117, %s133
    %p135 = scmp.eq.s32.totalorder %s15, 0
    %p136 = por %p134, %p135
    %p137 = scmp.le.s32.totalorder 1, %s9
    %p138 = scmp.lt.s32.totalorder %s9, 3
    %p139 = pnand %p137, %p138
    %p140 = pneg %p139
    // Predicated region
    $region9: #{closed_call.78} parent=5 // pred_check
      _
    $region10: #{closed_call.78} parent=5 // pred_check_branch
      %142 = sbr.rel (%p139) target = $region12
    $region11: #{closed_call.78} parent=5 // pred_region
      %s143 = ssub.s32 %s9, 1
    $region12: #{closed_call.78} parent=5 // pred_fallthru
      _
    %p144 = scmp.lt.s32.totalorder %s9, 2
    // Predicated region
    $region13: #{closed_call.78} parent=5 // pred_check
      %p145 = pneg %p144
    $region14: #{closed_call.78} parent=5 // pred_check_branch
      %147 = sbr.rel (%p145) target = $region16
    $region15: #{closed_call.78} parent=5 // pred_region
      // Predicated region
      $region17: #{closed_call.78} parent=15 // pred_check
        %p148 = pneg %p43
      $region18: #{closed_call.78} parent=15 // pred_check_branch
        %150 = sbr.rel (%p148) target = $region20
      $region19: #{closed_call.78} parent=15 // pred_region
        %s151 = smul.u32 4, %s17
        %p152 = scmp.lt.s32.totalorder %s16, 1
        %s153 = scalar_select %p152, %s16, 1
        %p154 = scmp.lt.s32.totalorder %s151, 3
        %s155 = scalar_select %p154, %s151, 3
        %s156 = smul.addr %s155, 2
        %s157 = smul.addr %s153, 8
        %s158 = sadd.s32 %s156, %s157
        %s159 = smul.addr %s158, 4
        %s160 = scalar_lea.vmem %s0, %s159
        %s161 = smul.u32 4, %s17
      $region20: #{closed_call.78} parent=15 // pred_fallthru
        _
      // Predicated region
      $region21: #{closed_call.78} parent=15 // pred_check
        %p162 = pneg %p69
      $region22: #{closed_call.78} parent=15 // pred_check_branch
        %164 = sbr.rel (%p162) target = $region24
      $region23: #{closed_call.78} parent=15 // pred_region
        %p165 = scmp.lt.s32.totalorder %s16, 1
        %s166 = scalar_select %p165, %s16, 1
        %s167 = smul.addr %s166, 18
        %s168 = smul.addr %s167, 4
        %s169 = scalar_lea.vmem %s1, %s168
      $region24: #{closed_call.78} parent=15 // pred_fallthru
        _
      // Predicated region
      $region25: #{closed_call.78} parent=15 // pred_check
        %p170 = pneg %p95
      $region26: #{closed_call.78} parent=15 // pred_check_branch
        %172 = sbr.rel (%p170) target = $region28
      $region27: #{closed_call.78} parent=15 // pred_region
        %p173 = scmp.lt.s32.totalorder %s16, 1
        %s174 = scalar_select %p173, %s16, 1
        %s175 = scalar_lea.vmem %s2, %s174
      $region28: #{closed_call.78} parent=15 // pred_fallthru
        _
    $region16: #{closed_call.78} parent=5 // pred_fallthru
      _
    %p176 = scmp.le.s32.totalorder 1, %s9
    %p177 = scmp.lt.s32.totalorder %s9, 3
    %p178 = pnand %p176, %p177
    %p179 = pneg %p178
    // Predicated region
    $region29: #{closed_call.78} parent=5 // pred_check
      _
    $region30: #{closed_call.78} parent=5 // pred_check_branch
      %181 = sbr.rel (%p178) target = $region32
    $region31: #{closed_call.78} parent=5 // pred_region
      %s182 = ssub.s32 %s9, 1
      %s183 = smul.u32 4, %s19
      %p184 = scmp.lt.s32.totalorder %s18, 1
      %s185 = scalar_select %p184, %s18, 1
      %p186 = scmp.lt.s32.totalorder %s183, 3
      %s187 = scalar_select %p186, %s183, 3
      %s188 = smul.addr %s187, 2
      %s189 = smul.addr %s185, 8
      %s190 = sadd.s32 %s188, %s189
      %s191 = smul.addr %s190, 4
      %s192 = scalar_lea.vmem %s0, %s191
      %p193 = pneg %p49
      %p194 = pneg %p46
      %p195 = scmp.lt.s32.totalorder %s18, 1
      %s196 = scalar_select %p195, %s18, 1
      %s197 = smul.addr %s196, 18
      %s198 = smul.addr %s197, 4
      %s199 = scalar_lea.vmem %s1, %s198
      %p200 = pneg %p75
      %p201 = pneg %p72
      %p202 = scmp.lt.s32.totalorder %s18, 1
      %s203 = scalar_select %p202, %s18, 1
      %s204 = scalar_lea.vmem %s2, %s203
      %p205 = pneg %p101
      %p206 = pneg %p98
      %p207 = pneg %p129
      %p208 = pneg %p126
      %s209 = smul.u32 4, %s19
      %p210 = scmp.lt.s32.totalorder %s18, 1
      %s211 = scalar_select %p210, %s18, 1
      %p212 = scmp.lt.s32.totalorder %s209, 3
      %s213 = scalar_select %p212, %s209, 3
      %s214 = smul.addr %s211, 4
      %s215 = sadd.s32 %s213, %s214
      %s216 = smul.addr %s215, 4
      %s217 = scalar_lea.vmem %s3, %s216
      %s218 = smul.u32 4, %s19
      %p219 = scmp.lt.s32.totalorder %s18, 1
      %s220 = scalar_select %p219, %s18, 1
      %p221 = scmp.lt.s32.totalorder %s218, 3
      %s222 = scalar_select %p221, %s218, 3
      %s223 = smul.addr %s222, 2
      %s224 = smul.addr %s220, 8
      %s225 = sadd.s32 %s223, %s224
      %s226 = smul.addr %s225, 4
      %s227 = scalar_lea.vmem %s0, %s226
      %s228 = smul.u32 4, %s19
      %p229 = scmp.lt.s32.totalorder %s18, 1
      %s230 = scalar_select %p229, %s18, 1
      %s231 = smul.addr %s230, 18
      %s232 = smul.addr %s231, 4
      %s233 = scalar_lea.vmem %s1, %s232
      %p234 = scmp.lt.s32.totalorder %s18, 1
      %s235 = scalar_select %p234, %s18, 1
      %s236 = scalar_lea.vmem %s2, %s235
      %s237 = smul.u32 4, %s19
      %p238 = scmp.lt.s32.totalorder %s18, 1
      %s239 = scalar_select %p238, %s18, 1
      %p240 = scmp.lt.s32.totalorder %s237, 3
      %s241 = scalar_select %p240, %s237, 3
      %s242 = smul.addr %s239, 4
      %s243 = sadd.s32 %s241, %s242
      %s244 = smul.addr %s243, 4
      %s245 = scalar_lea.vmem %s3, %s244
      %s246 = smul.u32 4, %s19
      %v248 = vld [vmem:[%s227] sm:$0xff]
      %v249 = vld [vmem:[%s227 + $0x8] sm:$0xff]
      %v250 = vld [vmem:[%s227 + $0x10] sm:$0xff]
      %v251 = vld [vmem:[%s227 + $0x18] sm:$0xff]
      %v252 = vld [vmem:[%s233] sm:$0xf]
      %v253 = vld [vmem:[%s233 + $0x4] sm:$0xf]
      %v254 = vld [vmem:[%s233 + $0x8] sm:$0xf]
      %v255 = vld [vmem:[%s233 + $0xc] sm:$0xf]
      %v256 = vld [vmem:[%s233 + $0x10] sm:$0xf]
      %v257 = vld [vmem:[%s233 + $0x14] sm:$0xf]
      %v258 = vld [vmem:[%s233 + $0x18] sm:$0xf]
      %v259 = vld [vmem:[%s233 + $0x1c] sm:$0xf]
      %v260 = vld [vmem:[%s233 + $0x20] sm:$0xf]
      %v261 = vld [vmem:[%s233 + $0x24] sm:$0xf]
      %v262 = vld [vmem:[%s233 + $0x28] sm:$0xf]
      %v263 = vld [vmem:[%s233 + $0x2c] sm:$0xf]
      %v264 = vld [vmem:[%s233 + $0x30] sm:$0xf]
      %v265 = vld [vmem:[%s233 + $0x34] sm:$0xf]
      %v266 = vld [vmem:[%s233 + $0x38] sm:$0xf]
      %v267 = vld [vmem:[%s233 + $0x3c] sm:$0xf]
      %v268 = vld [vmem:[%s233 + $0x40] sm:$0xf]
      %v269 = vld [vmem:[%s233 + $0x44] sm:$0xf]
      %v270 = vld [vmem:[%s236] sm:$0x1]
      %v272 = vlaneseq
      %v273 = vshrl.u32 %v272, 7
      %v274 = vsub.s32 0, %v273
      %v275 = vrot.slane %v270, %v274
      %v281 = vunpack.c.l.b16 %v248
      %v282 = vunpack.c.h.b16 %v248
      %v283 = vunpack.c.l.b16 %v249
      %v284 = vunpack.c.h.b16 %v249
      %v285 = vunpack.c.l.b16 %v250
      %v286 = vunpack.c.h.b16 %v250
      %v287 = vunpack.c.l.b16 %v251
      %v288 = vunpack.c.h.b16 %v251
      %v289 = vpack.c.b16 %v283, %v281
      %v290 = vpack.c.b16 %v284, %v282
      %v291 = vpack.c.b16 %v287, %v285
      %v292 = vpack.c.b16 %v288, %v286
      %v313 = vunpack.c.l.b16 %v252
      %v314 = vunpack.c.l.b16 %v253
      %v315 = vunpack.c.l.b16 %v254
      %v316 = vunpack.c.l.b16 %v255
      %v317 = vunpack.c.l.b16 %v256
      %v318 = vunpack.c.l.b16 %v257
      %v319 = vunpack.c.l.b16 %v258
      %v320 = vunpack.c.l.b16 %v259
      %v321 = vunpack.c.l.b16 %v260
      %v322 = vunpack.c.l.b16 %v261
      %v323 = vunpack.c.l.b16 %v262
      %v324 = vunpack.c.l.b16 %v263
      %v325 = vunpack.c.l.b16 %v264
      %v326 = vunpack.c.l.b16 %v265
      %v327 = vunpack.c.l.b16 %v266
      %v328 = vunpack.c.l.b16 %v267
      %v329 = vunpack.c.l.b16 %v268
      %v330 = vunpack.c.l.b16 %v269
      %v331 = vpack.c.b16 %v314, %v313
      %v332 = vpack.c.b16 %v316, %v315
      %v333 = vpack.c.b16 %v318, %v317
      %v334 = vpack.c.b16 %v320, %v319
      %v335 = vpack.c.b16 %v322, %v321
      %v336 = vpack.c.b16 %v324, %v323
      %v337 = vpack.c.b16 %v326, %v325
      %v338 = vpack.c.b16 %v328, %v327
      %v339 = vpack.c.b16 %v330, %v329
      %vm349 = vcmask 130048
      %v351 = vsel %vm349, %v290, 0
      %v354 = vsel %vm349, %v292, 0
      %356 = vmatprep.subr.bf16.mxu0 0
      %357 = vmatpush1.bf16.msra.mxu0 %v331
      %358 = vmatprep.subr.bf16.mxu0 0
      %359 = vmatpush1.bf16.msra.mxu0 %v332
      %360 = vmatprep.subr.bf16.mxu0 0
      %361 = vmatpush1.bf16.msra.mxu0 %v333
      %362 = vmatprep.subr.bf16.mxu0 0
      %363 = vmatpush1.bf16.msra.mxu0 %v334
      %364 = vmatprep.subr.bf16.mxu0 0
      %365 = vmatpush1.bf16.msra.mxu0 %v335
      %366 = vmatprep.subr.bf16.mxu0 0
      %367 = vmatpush1.bf16.msra.mxu0 %v336
      %368 = vmatprep.subr.bf16.mxu0 0
      %369 = vmatpush1.bf16.msra.mxu0 %v337
      %370 = vmatprep.subr.bf16.mxu0 0
      %371 = vmatpush1.bf16.msra.mxu0 %v338
      %372 = vmatprep.subr.bf16.mxu0 0
      %373 = vmatpush1.bf16.msra.mxu0 %v339
      %374 = vmatprep.subr.bf16.mxu0 0
      %375 = vmatpush1.bf16.msra.mxu0 0
      %376 = vmatprep.subr.bf16.mxu0 0
      %377 = vmatpush1.bf16.msra.mxu0 0
      %378 = vmatprep.subr.bf16.mxu0 0
      %379 = vmatpush1.bf16.msra.mxu0 0
      %380 = vmatprep.subr.bf16.mxu0 0
      %381 = vmatpush1.bf16.msra.mxu0 0
      %382 = vmatprep.subr.bf16.mxu0 0
      %383 = vmatpush1.bf16.msra.mxu0 0
      %384 = vmatprep.subr.bf16.mxu0 0
      %385 = vmatpush1.bf16.msra.mxu0 0
      %386 = vmatprep.subr.bf16.mxu0 0
      %387 = vmatpush1.bf16.msra.mxu0 0
      %388 = vmatprep.mubr.bf16.mxu0 %v351
      %389 = vmatmul.mubr.bf16.gmra.mrb[0].mxu0 %v289
      %v390 = vpop.f32.mrb[0].mxu0
      %v391 = vadd.f32 %v275, %v390
      %v392 = vpop.f32.mrb[0].mxu0
      %v393 = vpop.f32.mrb[0].mxu0
      %v394 = vadd.f32 %v275, %v393
      %v395 = vpop.f32.mrb[0].mxu0
      %396 = vmatprep.mubr.bf16.mxu0 %v354
      %397 = vmatmul.mubr.bf16.gmra.mrb[0].mxu0 %v291
      %v398 = vpop.f32.mrb[0].mxu0
      %v399 = vadd.f32 %v275, %v398
      %v400 = vpop.f32.mrb[0].mxu0
      %v401 = vpop.f32.mrb[0].mxu0
      %v402 = vadd.f32 %v275, %v401
      %v403 = vpop.f32.mrb[0].mxu0
      %404 = vdwg.mxu0
      %vm405 = vcmp.ge.f32.partialorder %v391, 0.0
      %vm406 = vcmp.ge.f32.partialorder %v394, 0.0
      %vm407 = vcmp.ge.f32.partialorder %v399, 0.0
      %vm408 = vcmp.ge.f32.partialorder %v402, 0.0
      %v409 = vmul.f32 %v391, 0.2
      %v410 = vmul.f32 %v394, 0.2
      %v411 = vmul.f32 %v399, 0.2
      %v412 = vmul.f32 %v402, 0.2
      %v413 = vsel %vm405, %v391, %v409
      %v414 = vsel %vm406, %v394, %v410
      %v415 = vsel %vm407, %v399, %v411
      %v416 = vsel %vm408, %v402, %v412
      %v417 = vpack.c.bf16 %v414, %v413
      %v418 = vpack.c.bf16 %v416, %v415
      %v421 = vunpack.c.l.b16 %v417
      %v422 = vunpack.c.h.b16 %v417
      %v423 = vunpack.c.l.b16 %v418
      %v424 = vunpack.c.h.b16 %v418
      %v425 = vpack.c.b16 %v421, %v421
      %v426 = vpack.c.b16 %v422, %v422
      %v427 = vpack.c.b16 %v423, %v423
      %v428 = vpack.c.b16 %v424, %v424
      %vm433 = vcmask 125952
      %434 = vst.msk [vmem:[%s245] sm:$0xf] %vm433, %v425
      %435 = vst.msk [vmem:[%s245 + $0x4] sm:$0xf] %vm433, %v426
      %436 = vst.msk [vmem:[%s245 + $0x8] sm:$0xf] %vm433, %v427
      %437 = vst.msk [vmem:[%s245 + $0xc] sm:$0xf] %vm433, %v428
      %s438 = smul.u32 4, %s19
      %p439 = scmp.lt.s32.totalorder %s18, 1
      %s440 = scalar_select %p439, %s18, 1
      %p441 = scmp.lt.s32.totalorder %s438, 3
      %s442 = scalar_select %p441, %s438, 3
      %s443 = smul.addr %s440, 4
      %s444 = sadd.s32 %s442, %s443
      %s445 = smul.addr %s444, 4
      %s446 = scalar_lea.vmem %s3, %s445
      // Predicated region
      $region33: #{closed_call.78} parent=31 // pred_check
        %p447 = pneg %p126
      $region34: #{closed_call.78} parent=31 // pred_check_branch
        %449 = sbr.rel (%p447) target = $region36
      $region35: #{closed_call.78} parent=31 // pred_region
        %s450 = smul.u32 4, %s19
      $region36: #{closed_call.78} parent=31 // pred_fallthru
        _
    $region32: #{closed_call.78} parent=5 // pred_fallthru
      _
    %p451 = scmp.le.s32.totalorder 2, %s9
    // Predicated region
    $region37: #{closed_call.78} parent=5 // pred_check
      %p452 = pneg %p451
    $region38: #{closed_call.78} parent=5 // pred_check_branch
      %454 = sbr.rel (%p452) target = $region40
    $region39: #{closed_call.78} parent=5 // pred_region
      %s455 = ssub.s32 %s9, 2
      // Predicated region
      $region41: #{closed_call.78} parent=39 // pred_check
        %p456 = pneg %p132
      $region42: #{closed_call.78} parent=39 // pred_check_branch
        %458 = sbr.rel (%p456) target = $region44
      $region43: #{closed_call.78} parent=39 // pred_region
        %s459 = smul.u32 4, %s21
        %p460 = scmp.lt.s32.totalorder %s20, 1
        %s461 = scalar_select %p460, %s20, 1
        %p462 = scmp.lt.s32.totalorder %s459, 3
        %s463 = scalar_select %p462, %s459, 3
        %s464 = smul.addr %s461, 4
        %s465 = sadd.s32 %s463, %s464
        %s466 = smul.addr %s465, 4
        %s467 = scalar_lea.vmem %s3, %s466
      $region44: #{closed_call.78} parent=39 // pred_fallthru
        _
    $region40: #{closed_call.78} parent=5 // pred_fallthru
      _
  $region6: #{closed_call.78} parent=0 // loop_footer
    %s13 = sadd.s32 1, %s9
  $region7: #{closed_call.78} parent=0 // loop_footer_branch
    %8 = sbr.rel target = $region3
  $region8: #{closed_call.78} parent=0 // loop_exit
    _

// kernel: closed_call.79
$region0: #{closed_call.79}
  #allocation0 [shape = 'u32[]', space=smem, size = 0x4, offset = 0x4, fixed_abs, tag = 'smem constant byte address 0x4 - core index']
  #allocation1 [shape = 'u32[144,128]{1,0:T(1,128)}', space=vmem, size = 0x12000, scoped, tag = 'internal scratch']
  %s0 = inlined_call_operand.vmem [shape: bf16[2,8,144], index: 0, kind: input, shape index: {}]
  %s1 = inlined_call_operand.vmem [shape: bf16[2,144,16], index: 1, kind: input, shape index: {}]
  %s2 = inlined_call_operand.vmem [shape: f32[2,1,16], index: 2, kind: input, shape index: {}]
  %s3 = inlined_call_operand.vmem [shape: bf16[2,8,16], index: 3, kind: output, shape index: {}]
  %s4 = sld [smem:[#allocation0]]
  $region45: #{closed_call.79} parent=0
    _
  %s6 = ssub.s32 1, %s4
  %s7 = scalar_select 0, %s6, %s4
  loop: start=0, step=1, limit=4
  $region2: #{closed_call.79} parent=0 // loop_pre_header
    _
  $region3: #{closed_call.79} parent=0 // loop_header
    %s9 = sphi 0, %s13
    %p10 = scmp.ge.s32.totalorder %s9, 4
    %s16 = sphi 0, %s28
    %s17 = sphi 0, %s24
    %s18 = sphi 0, %s16
    %s19 = sphi 0, %s17
    %s20 = sphi 0, %s18
    %s21 = sphi 0, %s19
    %s33 = sphi 0, %s35
    %s36 = sphi 0, %s33
    %s37 = sphi 0, %s36
    %s53 = sphi 0, %s37
    %s59 = sphi 0, %s61
    %s62 = sphi 0, %s59
    %s63 = sphi 0, %s62
    %s79 = sphi 0, %s63
    %s85 = sphi 0, %s87
    %s88 = sphi 0, %s85
    %s89 = sphi 0, %s88
    %s105 = sphi 0, %s89
    %s113 = sphi 0, %s115
    %s116 = sphi 0, %s113
    %s117 = sphi 0, %s116
    %s133 = sphi 0, %s117
  $region4: #{closed_call.79} parent=0 // loop_header_branch
    %12 = sbr.rel (%p10) target = $region8
  $region5: #{closed_call.79} parent=0 // loop_body
    %s14 = ssub.s32 %s9, 1
    %s15 = ssub.s32 %s9, 2
    %s22 = sadd.s32 1, %s17
    %p23 = scmp.ge.s32.totalorder %s22, 1
    %s24 = scalar_select %p23, 0, %s22
    %s25 = sadd.s32 1, %s16
    %s26 = scalar_select %p23, %s25, %s16
    %p27 = scmp.ge.s32.totalorder %s26, 2
    %s28 = scalar_select %p27, 0, %s26
    %s29 = ssub.s32 %s16, %s28
    %s30 = ssub.s32 %s17, %s24
    %s31 = sor.u32 %s29, %s30
    %p32 = scmp.eq.s32.totalorder %s31, 0
    %s34 = sadd.s32 %s33, 1
    %s35 = scalar_select %p32, %s33, %s34
    %p38 = pneg %p32
    %p39 = scmp.eq.s32.totalorder %s9, 1
    %p40 = por %p38, %p39
    %p41 = scmp.ne.s32.totalorder %s33, %s36
    %p42 = scmp.eq.s32.totalorder %s9, 0
    %p43 = por %p41, %p42
    %p44 = scmp.ne.s32.totalorder %s33, %s36
    %p45 = scmp.eq.s32.totalorder %s14, 1
    %p46 = por %p44, %p45
    %p47 = scmp.ne.s32.totalorder %s36, %s37
    %p48 = scmp.eq.s32.totalorder %s14, 0
    %p49 = por %p47, %p48
    %p50 = scmp.ne.s32.totalorder %s36, %s37
    %p51 = scmp.eq.s32.totalorder %s15, 1
    %p52 = por %p50, %p51
    %p54 = scmp.ne.s32.totalorder %s37, %s53
    %p55 = scmp.eq.s32.totalorder %s15, 0
    %p56 = por %p54, %p55
    %s57 = ssub.s32 %s16, %s28
    %p58 = scmp.eq.s32.totalorder %s57, 0
    %s60 = sadd.s32 %s59, 1
    %s61 = scalar_select %p58, %s59, %s60
    %p64 = pneg %p58
    %p65 = scmp.eq.s32.totalorder %s9, 1
    %p66 = por %p64, %p65
    %p67 = scmp.ne.s32.totalorder %s59, %s62
    %p68 = scmp.eq.s32.totalorder %s9, 0
    %p69 = por %p67, %p68
    %p70 = scmp.ne.s32.totalorder %s59, %s62
    %p71 = scmp.eq.s32.totalorder %s14, 1
    %p72 = por %p70, %p71
    %p73 = scmp.ne.s32.totalorder %s62, %s63
    %p74 = scmp.eq.s32.totalorder %s14, 0
    %p75 = por %p73, %p74
    %p76 = scmp.ne.s32.totalorder %s62, %s63
    %p77 = scmp.eq.s32.totalorder %s15, 1
    %p78 = por %p76, %p77
    %p80 = scmp.ne.s32.totalorder %s63, %s79
    %p81 = scmp.eq.s32.totalorder %s15, 0
    %p82 = por %p80, %p81
    %s83 = ssub.s32 %s16, %s28
    %p84 = scmp.eq.s32.totalorder %s83, 0
    %s86 = sadd.s32 %s85, 1
    %s87 = scalar_select %p84, %s85, %s86
    %p90 = pneg %p84
    %p91 = scmp.eq.s32.totalorder %s9, 1
    %p92 = por %p90, %p91
    %p93 = scmp.ne.s32.totalorder %s85, %s88
    %p94 = scmp.eq.s32.totalorder %s9, 0
    %p95 = por %p93, %p94
    %p96 = scmp.ne.s32.totalorder %s85, %s88
    %p97 = scmp.eq.s32.totalorder %s14, 1
    %p98 = por %p96, %p97
    %p99 = scmp.ne.s32.totalorder %s88, %s89
    %p100 = scmp.eq.s32.totalorder %s14, 0
    %p101 = por %p99, %p100
    %p102 = scmp.ne.s32.totalorder %s88, %s89
    %p103 = scmp.eq.s32.totalorder %s15, 1
    %p104 = por %p102, %p103
    %p106 = scmp.ne.s32.totalorder %s89, %s105
    %p107 = scmp.eq.s32.totalorder %s15, 0
    %p108 = por %p106, %p107
    %s109 = ssub.s32 %s16, %s28
    %s110 = ssub.s32 %s17, %s24
    %s111 = sor.u32 %s109, %s110
    %p112 = scmp.eq.s32.totalorder %s111, 0
    %s114 = sadd.s32 %s113, 1
    %s115 = scalar_select %p112, %s113, %s114
    %p118 = pneg %p112
    %p119 = scmp.eq.s32.totalorder %s9, 1
    %p120 = por %p118, %p119
    %p121 = scmp.ne.s32.totalorder %s113, %s116
    %p122 = scmp.eq.s32.totalorder %s9, 0
    %p123 = por %p121, %p122
    %p124 = scmp.ne.s32.totalorder %s113, %s116
    %p125 = scmp.eq.s32.totalorder %s14, 1
    %p126 = por %p124, %p125
    %p127 = scmp.ne.s32.totalorder %s116, %s117
    %p128 = scmp.eq.s32.totalorder %s14, 0
    %p129 = por %p127, %p128
    %p130 = scmp.ne.s32.totalorder %s116, %s117
    %p131 = scmp.eq.s32.totalorder %s15, 1
    %p132 = por %p130, %p131
    %p134 = scmp.ne.s32.totalorder %s117, %s133
    %p135 = scmp.eq.s32.totalorder %s15, 0
    %p136 = por %p134, %p135
    %p137 = scmp.le.s32.totalorder 1, %s9
    %p138 = scmp.lt.s32.totalorder %s9, 3
    %p139 = pnand %p137, %p138
    %p140 = pneg %p139
    // Predicated region
    $region9: #{closed_call.79} parent=5 // pred_check
      _
    $region10: #{closed_call.79} parent=5 // pred_check_branch
      %142 = sbr.rel (%p139) target = $region12
    $region11: #{closed_call.79} parent=5 // pred_region
      %s143 = ssub.s32 %s9, 1
    $region12: #{closed_call.79} parent=5 // pred_fallthru
      _
    %p144 = scmp.lt.s32.totalorder %s9, 2
    // Predicated region
    $region13: #{closed_call.79} parent=5 // pred_check
      %p145 = pneg %p144
    $region14: #{closed_call.79} parent=5 // pred_check_branch
      %147 = sbr.rel (%p145) target = $region16
    $region15: #{closed_call.79} parent=5 // pred_region
      // Predicated region
      $region17: #{closed_call.79} parent=15 // pred_check
        %p148 = pneg %p43
      $region18: #{closed_call.79} parent=15 // pred_check_branch
        %150 = sbr.rel (%p148) target = $region20
      $region19: #{closed_call.79} parent=15 // pred_region
        %p151 = scmp.lt.s32.totalorder %s16, 1
        %s152 = scalar_select %p151, %s16, 1
        %p153 = scmp.lt.s32.totalorder %s17, 0
        %s154 = scalar_select %p153, %s17, 0
        %s155 = smul.addr %s154, 2
        %s156 = smul.addr %s152, 2
        %s157 = sadd.s32 %s155, %s156
        %s158 = smul.addr %s157, 4
        %s159 = scalar_lea.vmem %s0, %s158
      $region20: #{closed_call.79} parent=15 // pred_fallthru
        _
      // Predicated region
      $region21: #{closed_call.79} parent=15 // pred_check
        %p160 = pneg %p69
      $region22: #{closed_call.79} parent=15 // pred_check_branch
        %162 = sbr.rel (%p160) target = $region24
      $region23: #{closed_call.79} parent=15 // pred_region
        %p163 = scmp.lt.s32.totalorder %s16, 1
        %s164 = scalar_select %p163, %s16, 1
        %s165 = smul.addr %s164, 18
        %s166 = smul.addr %s165, 4
        %s167 = scalar_lea.vmem %s1, %s166
      $region24: #{closed_call.79} parent=15 // pred_fallthru
        _
      // Predicated region
      $region25: #{closed_call.79} parent=15 // pred_check
        %p168 = pneg %p95
      $region26: #{closed_call.79} parent=15 // pred_check_branch
        %170 = sbr.rel (%p168) target = $region28
      $region27: #{closed_call.79} parent=15 // pred_region
        %p171 = scmp.lt.s32.totalorder %s16, 1
        %s172 = scalar_select %p171, %s16, 1
        %s173 = scalar_lea.vmem %s2, %s172
      $region28: #{closed_call.79} parent=15 // pred_fallthru
        _
    $region16: #{closed_call.79} parent=5 // pred_fallthru
      _
    %p174 = scmp.le.s32.totalorder 1, %s9
    %p175 = scmp.lt.s32.totalorder %s9, 3
    %p176 = pnand %p174, %p175
    %p177 = pneg %p176
    // Predicated region
    $region29: #{closed_call.79} parent=5 // pred_check
      _
    $region30: #{closed_call.79} parent=5 // pred_check_branch
      %179 = sbr.rel (%p176) target = $region32
    $region31: #{closed_call.79} parent=5 // pred_region
      %s180 = ssub.s32 %s9, 1
      %p181 = scmp.lt.s32.totalorder %s18, 1
      %s182 = scalar_select %p181, %s18, 1
      %p183 = scmp.lt.s32.totalorder %s19, 0
      %s184 = scalar_select %p183, %s19, 0
      %s185 = smul.addr %s184, 2
      %s186 = smul.addr %s182, 2
      %s187 = sadd.s32 %s185, %s186
      %s188 = smul.addr %s187, 4
      %s189 = scalar_lea.vmem %s0, %s188
      %p190 = pneg %p49
      %p191 = pneg %p46
      %p192 = scmp.lt.s32.totalorder %s18, 1
      %s193 = scalar_select %p192, %s18, 1
      %s194 = smul.addr %s193, 18
      %s195 = smul.addr %s194, 4
      %s196 = scalar_lea.vmem %s1, %s195
      %p197 = pneg %p75
      %p198 = pneg %p72
      %p199 = scmp.lt.s32.totalorder %s18, 1
      %s200 = scalar_select %p199, %s18, 1
      %s201 = scalar_lea.vmem %s2, %s200
      %p202 = pneg %p101
      %p203 = pneg %p98
      %p204 = pneg %p129
      %p205 = pneg %p126
      %p206 = scmp.lt.s32.totalorder %s18, 1
      %s207 = scalar_select %p206, %s18, 1
      %p208 = scmp.lt.s32.totalorder %s19, 0
      %s209 = scalar_select %p208, %s19, 0
      %s210 = sadd.s32 %s209, %s207
      %s211 = smul.addr %s210, 4
      %s212 = scalar_lea.vmem %s3, %s211
      %p213 = scmp.lt.s32.totalorder %s18, 1
      %s214 = scalar_select %p213, %s18, 1
      %p215 = scmp.lt.s32.totalorder %s19, 0
      %s216 = scalar_select %p215, %s19, 0
      %s217 = smul.addr %s216, 2
      %s218 = smul.addr %s214, 2
      %s219 = sadd.s32 %s217, %s218
      %s220 = smul.addr %s219, 4
      %s221 = scalar_lea.vmem %s0, %s220
      %p222 = scmp.lt.s32.totalorder %s18, 1
      %s223 = scalar_select %p222, %s18, 1
      %s224 = smul.addr %s223, 18
      %s225 = smul.addr %s224, 4
      %s226 = scalar_lea.vmem %s1, %s225
      %p227 = scmp.lt.s32.totalorder %s18, 1
      %s228 = scalar_select %p227, %s18, 1
      %s229 = scalar_lea.vmem %s2, %s228
      %p230 = scmp.lt.s32.totalorder %s18, 1
      %s231 = scalar_select %p230, %s18, 1
      %p232 = scmp.lt.s32.totalorder %s19, 0
      %s233 = scalar_select %p232, %s19, 0
      %s234 = sadd.s32 %s233, %s231
      %s235 = smul.addr %s234, 4
      %s236 = scalar_lea.vmem %s3, %s235
      %v238 = vld [vmem:[%s221] sm:$0xff]
      %v239 = vld [vmem:[%s226] sm:$0xf]
      %v240 = vld [vmem:[%s226 + $0x4] sm:$0xf]
      %v241 = vld [vmem:[%s226 + $0x8] sm:$0xf]
      %v242 = vld [vmem:[%s226 + $0xc] sm:$0xf]
      %v243 = vld [vmem:[%s226 + $0x10] sm:$0xf]
      %v244 = vld [vmem:[%s226 + $0x14] sm:$0xf]
      %v245 = vld [vmem:[%s226 + $0x18] sm:$0xf]
      %v246 = vld [vmem:[%s226 + $0x1c] sm:$0xf]
      %v247 = vld [vmem:[%s226 + $0x20] sm:$0xf]
      %v248 = vld [vmem:[%s226 + $0x24] sm:$0xf]
      %v249 = vld [vmem:[%s226 + $0x28] sm:$0xf]
      %v250 = vld [vmem:[%s226 + $0x2c] sm:$0xf]
      %v251 = vld [vmem:[%s226 + $0x30] sm:$0xf]
      %v252 = vld [vmem:[%s226 + $0x34] sm:$0xf]
      %v253 = vld [vmem:[%s226 + $0x38] sm:$0xf]
      %v254 = vld [vmem:[%s226 + $0x3c] sm:$0xf]
      %v255 = vld [vmem:[%s226 + $0x40] sm:$0xf]
      %v256 = vld [vmem:[%s226 + $0x44] sm:$0xf]
      %v257 = vld [vmem:[%s229] sm:$0x1]
      %v259 = vlaneseq
      %v260 = vshrl.u32 %v259, 7
      %v261 = vsub.s32 0, %v260
      %v262 = vrot.slane %v257, %v261
      %v265 = vunpack.c.l.b16 %v238
      %v266 = vunpack.c.h.b16 %v238
      %v267 = vpack.c.b16 %v265, %v265
      %v268 = vpack.c.b16 %v266, %v266
      %v288 = vunpack.c.l.b16 %v239
      %v289 = vunpack.c.l.b16 %v240
      %v290 = vunpack.c.l.b16 %v241
      %v291 = vunpack.c.l.b16 %v242
      %v292 = vunpack.c.l.b16 %v243
      %v293 = vunpack.c.l.b16 %v244
      %v294 = vunpack.c.l.b16 %v245
      %v295 = vunpack.c.l.b16 %v246
      %v296 = vunpack.c.l.b16 %v247
      %v297 = vunpack.c.l.b16 %v248
      %v298 = vunpack.c.l.b16 %v249
      %v299 = vunpack.c.l.b16 %v250
      %v300 = vunpack.c.l.b16 %v251
      %v301 = vunpack.c.l.b16 %v252
      %v302 = vunpack.c.l.b16 %v253
      %v303 = vunpack.c.l.b16 %v254
      %v304 = vunpack.c.l.b16 %v255
      %v305 = vunpack.c.l.b16 %v256
      %v306 = vpack.c.b16 %v289, %v288
      %v307 = vpack.c.b16 %v291, %v290
      %v308 = vpack.c.b16 %v293, %v292
      %v309 = vpack.c.b16 %v295, %v294
      %v310 = vpack.c.b16 %v297, %v296
      %v311 = vpack.c.b16 %v299, %v298
      %v312 = vpack.c.b16 %v301, %v300
      %v313 = vpack.c.b16 %v303, %v302
      %v314 = vpack.c.b16 %v305, %v304
      %vm324 = vcmask 130048
      %v326 = vsel %vm324, %v268, 0
      %328 = vmatprep.subr.bf16.mxu0 0
      %329 = vmatpush1.bf16.msra.mxu0 %v306
      %330 = vmatprep.subr.bf16.mxu0 0
      %331 = vmatpush1.bf16.msra.mxu0 %v307
      %332 = vmatprep.subr.bf16.mxu0 0
      %333 = vmatpush1.bf16.msra.mxu0 %v308
      %334 = vmatprep.subr.bf16.mxu0 0
      %335 = vmatpush1.bf16.msra.mxu0 %v309
      %336 = vmatprep.subr.bf16.mxu0 0
      %337 = vmatpush1.bf16.msra.mxu0 %v310
      %338 = vmatprep.subr.bf16.mxu0 0
      %339 = vmatpush1.bf16.msra.mxu0 %v311
      %340 = vmatprep.subr.bf16.mxu0 0
      %341 = vmatpush1.bf16.msra.mxu0 %v312
      %342 = vmatprep.subr.bf16.mxu0 0
      %343 = vmatpush1.bf16.msra.mxu0 %v313
      %344 = vmatprep.subr.bf16.mxu0 0
      %345 = vmatpush1.bf16.msra.mxu0 %v314
      %346 = vmatprep.subr.bf16.mxu0 0
      %347 = vmatpush1.bf16.msra.mxu0 0
      %348 = vmatprep.subr.bf16.mxu0 0
      %349 = vmatpush1.bf16.msra.mxu0 0
      %350 = vmatprep.subr.bf16.mxu0 0
      %351 = vmatpush1.bf16.msra.mxu0 0
      %352 = vmatprep.subr.bf16.mxu0 0
      %353 = vmatpush1.bf16.msra.mxu0 0
      %354 = vmatprep.subr.bf16.mxu0 0
      %355 = vmatpush1.bf16.msra.mxu0 0
      %356 = vmatprep.subr.bf16.mxu0 0
      %357 = vmatpush1.bf16.msra.mxu0 0
      %358 = vmatprep.subr.bf16.mxu0 0
      %359 = vmatpush1.bf16.msra.mxu0 0
      %360 = vmatprep.mubr.bf16.mxu0 %v326
      %361 = vmatmul.mubr.bf16.gmra.mrb[0].mxu0 %v267
      %v362 = vpop.f32.mrb[0].mxu0
      %v363 = vadd.f32 %v262, %v362
      %v364 = vpop.f32.mrb[0].mxu0
      %v365 = vpop.f32.mrb[0].mxu0
      %v366 = vpop.f32.mrb[0].mxu0
      %367 = vdwg.mxu0
      %vm368 = vcmp.ge.f32.partialorder %v363, 0.0
      %v369 = vmul.f32 %v363, 0.2
      %v370 = vsel %vm368, %v363, %v369
      %v371 = vpack.c.bf16 %v370, %v370
      %vm372 = vcmask 125952
      %373 = vst.msk [vmem:[%s236] sm:$0xf] %vm372, %v371
      %p374 = scmp.lt.s32.totalorder %s18, 1
      %s375 = scalar_select %p374, %s18, 1
      %p376 = scmp.lt.s32.totalorder %s19, 0
      %s377 = scalar_select %p376, %s19, 0
      %s378 = sadd.s32 %s377, %s375
      %s379 = smul.addr %s378, 4
      %s380 = scalar_lea.vmem %s3, %s379
      // Predicated region
      $region33: #{closed_call.79} parent=31 // pred_check
        %p381 = pneg %p126
      $region34: #{closed_call.79} parent=31 // pred_check_branch
        %383 = sbr.rel (%p381) target = $region36
      $region35: #{closed_call.79} parent=31 // pred_region
        _
      $region36: #{closed_call.79} parent=31 // pred_fallthru
        _
    $region32: #{closed_call.79} parent=5 // pred_fallthru
      _
    %p384 = scmp.le.s32.totalorder 2, %s9
    // Predicated region
    $region37: #{closed_call.79} parent=5 // pred_check
      %p385 = pneg %p384
    $region38: #{closed_call.79} parent=5 // pred_check_branch
      %387 = sbr.rel (%p385) target = $region40
    $region39: #{closed_call.79} parent=5 // pred_region
      %s388 = ssub.s32 %s9, 2
      // Predicated region
      $region41: #{closed_call.79} parent=39 // pred_check
        %p389 = pneg %p132
      $region42: #{closed_call.79} parent=39 // pred_check_branch
        %391 = sbr.rel (%p389) target = $region44
      $region43: #{closed_call.79} parent=39 // pred_region
        %p392 = scmp.lt.s32.totalorder %s20, 1
        %s393 = scalar_select %p392, %s20, 1
        %p394 = scmp.lt.s32.totalorder %s21, 0
        %s395 = scalar_select %p394, %s21, 0
        %s396 = sadd.s32 %s395, %s393
        %s397 = smul.addr %s396, 4
        %s398 = scalar_lea.vmem %s3, %s397
      $region44: #{closed_call.79} parent=39 // pred_fallthru
        _
    $region40: #{closed_call.79} parent=5 // pred_fallthru
      _
  $region6: #{closed_call.79} parent=0 // loop_footer
    %s13 = sadd.s32 1, %s9
  $region7: #{closed_call.79} parent=0 // loop_footer_branch
    %8 = sbr.rel target = $region3
  $region8: #{closed_call.79} parent=0 // loop_exit
    _

// kernel: closed_call.80
$region0: #{closed_call.80}
  #allocation0 [shape = 'u32[]', space=smem, size = 0x4, offset = 0x4, fixed_abs, tag = 'smem constant byte address 0x4 - core index']
  #allocation1 [shape = 'u32[144,128]{1,0:T(1,128)}', space=vmem, size = 0x12000, scoped, tag = 'internal scratch']
  %s0 = inlined_call_operand.vmem [shape: bf16[1,8,32], index: 0, kind: input, shape index: {}]
  %s1 = inlined_call_operand.vmem [shape: bf16[2,32,16], index: 1, kind: input, shape index: {}]
  %s2 = inlined_call_operand.vmem [shape: f32[2,1,16], index: 2, kind: input, shape index: {}]
  %s3 = inlined_call_operand.vmem [shape: bf16[2,8,16], index: 3, kind: output, shape index: {}]
  %s4 = sld [smem:[#allocation0]]
  $region45: #{closed_call.80} parent=0
    _
  %s6 = ssub.s32 1, %s4
  %s7 = scalar_select 0, %s6, %s4
  loop: start=0, step=1, limit=4
  $region2: #{closed_call.80} parent=0 // loop_pre_header
    _
  $region3: #{closed_call.80} parent=0 // loop_header
    %s9 = sphi 0, %s13
    %p10 = scmp.ge.s32.totalorder %s9, 4
    %s16 = sphi 0, %s28
    %s17 = sphi 0, %s24
    %s18 = sphi 0, %s16
    %s19 = sphi 0, %s17
    %s20 = sphi 0, %s18
    %s21 = sphi 0, %s19
    %s31 = sphi 0, %s33
    %s34 = sphi 0, %s31
    %s35 = sphi 0, %s34
    %s51 = sphi 0, %s35
    %s57 = sphi 0, %s59
    %s60 = sphi 0, %s57
    %s61 = sphi 0, %s60
    %s77 = sphi 0, %s61
    %s83 = sphi 0, %s85
    %s86 = sphi 0, %s83
    %s87 = sphi 0, %s86
    %s103 = sphi 0, %s87
    %s111 = sphi 0, %s113
    %s114 = sphi 0, %s111
    %s115 = sphi 0, %s114
    %s131 = sphi 0, %s115
  $region4: #{closed_call.80} parent=0 // loop_header_branch
    %12 = sbr.rel (%p10) target = $region8
  $region5: #{closed_call.80} parent=0 // loop_body
    %s14 = ssub.s32 %s9, 1
    %s15 = ssub.s32 %s9, 2
    %s22 = sadd.s32 1, %s17
    %p23 = scmp.ge.s32.totalorder %s22, 1
    %s24 = scalar_select %p23, 0, %s22
    %s25 = sadd.s32 1, %s16
    %s26 = scalar_select %p23, %s25, %s16
    %p27 = scmp.ge.s32.totalorder %s26, 2
    %s28 = scalar_select %p27, 0, %s26
    %s29 = ssub.s32 %s17, %s24
    %p30 = scmp.eq.s32.totalorder %s29, 0
    %s32 = sadd.s32 %s31, 1
    %s33 = scalar_select %p30, %s31, %s32
    %p36 = pneg %p30
    %p37 = scmp.eq.s32.totalorder %s9, 1
    %p38 = por %p36, %p37
    %p39 = scmp.ne.s32.totalorder %s31, %s34
    %p40 = scmp.eq.s32.totalorder %s9, 0
    %p41 = por %p39, %p40
    %p42 = scmp.ne.s32.totalorder %s31, %s34
    %p43 = scmp.eq.s32.totalorder %s14, 1
    %p44 = por %p42, %p43
    %p45 = scmp.ne.s32.totalorder %s34, %s35
    %p46 = scmp.eq.s32.totalorder %s14, 0
    %p47 = por %p45, %p46
    %p48 = scmp.ne.s32.totalorder %s34, %s35
    %p49 = scmp.eq.s32.totalorder %s15, 1
    %p50 = por %p48, %p49
    %p52 = scmp.ne.s32.totalorder %s35, %s51
    %p53 = scmp.eq.s32.totalorder %s15, 0
    %p54 = por %p52, %p53
    %s55 = ssub.s32 %s16, %s28
    %p56 = scmp.eq.s32.totalorder %s55, 0
    %s58 = sadd.s32 %s57, 1
    %s59 = scalar_select %p56, %s57, %s58
    %p62 = pneg %p56
    %p63 = scmp.eq.s32.totalorder %s9, 1
    %p64 = por %p62, %p63
    %p65 = scmp.ne.s32.totalorder %s57, %s60
    %p66 = scmp.eq.s32.totalorder %s9, 0
    %p67 = por %p65, %p66
    %p68 = scmp.ne.s32.totalorder %s57, %s60
    %p69 = scmp.eq.s32.totalorder %s14, 1
    %p70 = por %p68, %p69
    %p71 = scmp.ne.s32.totalorder %s60, %s61
    %p72 = scmp.eq.s32.totalorder %s14, 0
    %p73 = por %p71, %p72
    %p74 = scmp.ne.s32.totalorder %s60, %s61
    %p75 = scmp.eq.s32.totalorder %s15, 1
    %p76 = por %p74, %p75
    %p78 = scmp.ne.s32.totalorder %s61, %s77
    %p79 = scmp.eq.s32.totalorder %s15, 0
    %p80 = por %p78, %p79
    %s81 = ssub.s32 %s16, %s28
    %p82 = scmp.eq.s32.totalorder %s81, 0
    %s84 = sadd.s32 %s83, 1
    %s85 = scalar_select %p82, %s83, %s84
    %p88 = pneg %p82
    %p89 = scmp.eq.s32.totalorder %s9, 1
    %p90 = por %p88, %p89
    %p91 = scmp.ne.s32.totalorder %s83, %s86
    %p92 = scmp.eq.s32.totalorder %s9, 0
    %p93 = por %p91, %p92
    %p94 = scmp.ne.s32.totalorder %s83, %s86
    %p95 = scmp.eq.s32.totalorder %s14, 1
    %p96 = por %p94, %p95
    %p97 = scmp.ne.s32.totalorder %s86, %s87
    %p98 = scmp.eq.s32.totalorder %s14, 0
    %p99 = por %p97, %p98
    %p100 = scmp.ne.s32.totalorder %s86, %s87
    %p101 = scmp.eq.s32.totalorder %s15, 1
    %p102 = por %p100, %p101
    %p104 = scmp.ne.s32.totalorder %s87, %s103
    %p105 = scmp.eq.s32.totalorder %s15, 0
    %p106 = por %p104, %p105
    %s107 = ssub.s32 %s16, %s28
    %s108 = ssub.s32 %s17, %s24
    %s109 = sor.u32 %s107, %s108
    %p110 = scmp.eq.s32.totalorder %s109, 0
    %s112 = sadd.s32 %s111, 1
    %s113 = scalar_select %p110, %s111, %s112
    %p116 = pneg %p110
    %p117 = scmp.eq.s32.totalorder %s9, 1
    %p118 = por %p116, %p117
    %p119 = scmp.ne.s32.totalorder %s111, %s114
    %p120 = scmp.eq.s32.totalorder %s9, 0
    %p121 = por %p119, %p120
    %p122 = scmp.ne.s32.totalorder %s111, %s114
    %p123 = scmp.eq.s32.totalorder %s14, 1
    %p124 = por %p122, %p123
    %p125 = scmp.ne.s32.totalorder %s114, %s115
    %p126 = scmp.eq.s32.totalorder %s14, 0
    %p127 = por %p125, %p126
    %p128 = scmp.ne.s32.totalorder %s114, %s115
    %p129 = scmp.eq.s32.totalorder %s15, 1
    %p130 = por %p128, %p129
    %p132 = scmp.ne.s32.totalorder %s115, %s131
    %p133 = scmp.eq.s32.totalorder %s15, 0
    %p134 = por %p132, %p133
    %p135 = scmp.le.s32.totalorder 1, %s9
    %p136 = scmp.lt.s32.totalorder %s9, 3
    %p137 = pnand %p135, %p136
    %p138 = pneg %p137
    // Predicated region
    $region9: #{closed_call.80} parent=5 // pred_check
      _
    $region10: #{closed_call.80} parent=5 // pred_check_branch
      %140 = sbr.rel (%p137) target = $region12
    $region11: #{closed_call.80} parent=5 // pred_region
      %s141 = ssub.s32 %s9, 1
      // Predicated region
      $region13: #{closed_call.80} parent=11 // pred_check
        %p142 = pneg %p47
      $region14: #{closed_call.80} parent=11 // pred_check_branch
        %144 = sbr.rel (%p142) target = $region16
      $region15: #{closed_call.80} parent=11 // pred_region
        %p145 = scmp.lt.s32.totalorder %s19, 0
        %s146 = scalar_select %p145, %s19, 0
        %s147 = smul.addr %s146, 4
        %s148 = scalar_lea.vmem %s0, %s147
      $region16: #{closed_call.80} parent=11 // pred_fallthru
        _
    $region12: #{closed_call.80} parent=5 // pred_fallthru
      _
    %p149 = scmp.lt.s32.totalorder %s9, 2
    // Predicated region
    $region17: #{closed_call.80} parent=5 // pred_check
      %p150 = pneg %p149
    $region18: #{closed_call.80} parent=5 // pred_check_branch
      %152 = sbr.rel (%p150) target = $region20
    $region19: #{closed_call.80} parent=5 // pred_region
      // Predicated region
      $region21: #{closed_call.80} parent=19 // pred_check
        %p153 = pneg %p67
      $region22: #{closed_call.80} parent=19 // pred_check_branch
        %155 = sbr.rel (%p153) target = $region24
      $region23: #{closed_call.80} parent=19 // pred_region
        %p156 = scmp.lt.s32.totalorder %s16, 1
        %s157 = scalar_select %p156, %s16, 1
        %s158 = smul.addr %s157, 4
        %s159 = smul.addr %s158, 4
        %s160 = scalar_lea.vmem %s1, %s159
      $region24: #{closed_call.80} parent=19 // pred_fallthru
        _
      // Predicated region
      $region25: #{closed_call.80} parent=19 // pred_check
        %p161 = pneg %p93
      $region26: #{closed_call.80} parent=19 // pred_check_branch
        %163 = sbr.rel (%p161) target = $region28
      $region27: #{closed_call.80} parent=19 // pred_region
        %p164 = scmp.lt.s32.totalorder %s16, 1
        %s165 = scalar_select %p164, %s16, 1
        %s166 = scalar_lea.vmem %s2, %s165
      $region28: #{closed_call.80} parent=19 // pred_fallthru
        _
    $region20: #{closed_call.80} parent=5 // pred_fallthru
      _
    %p167 = scmp.le.s32.totalorder 1, %s9
    %p168 = scmp.lt.s32.totalorder %s9, 3
    %p169 = pnand %p167, %p168
    %p170 = pneg %p169
    // Predicated region
    $region29: #{closed_call.80} parent=5 // pred_check
      _
    $region30: #{closed_call.80} parent=5 // pred_check_branch
      %172 = sbr.rel (%p169) target = $region32
    $region31: #{closed_call.80} parent=5 // pred_region
      %s173 = ssub.s32 %s9, 1
      %p174 = scmp.lt.s32.totalorder %s19, 0
      %s175 = scalar_select %p174, %s19, 0
      %s176 = smul.addr %s175, 4
      %s177 = scalar_lea.vmem %s0, %s176
      %p178 = pneg %p47
      %p179 = pneg %p44
      %p180 = scmp.lt.s32.totalorder %s18, 1
      %s181 = scalar_select %p180, %s18, 1
      %s182 = smul.addr %s181, 4
      %s183 = smul.addr %s182, 4
      %s184 = scalar_lea.vmem %s1, %s183
      %p185 = pneg %p73
      %p186 = pneg %p70
      %p187 = scmp.lt.s32.totalorder %s18, 1
      %s188 = scalar_select %p187, %s18, 1
      %s189 = scalar_lea.vmem %s2, %s188
      %p190 = pneg %p99
      %p191 = pneg %p96
      %p192 = pneg %p127
      %p193 = pneg %p124
      %p194 = scmp.lt.s32.totalorder %s18, 1
      %s195 = scalar_select %p194, %s18, 1
      %p196 = scmp.lt.s32.totalorder %s19, 0
      %s197 = scalar_select %p196, %s19, 0
      %s198 = sadd.s32 %s197, %s195
      %s199 = smul.addr %s198, 4
      %s200 = scalar_lea.vmem %s3, %s199
      %p201 = scmp.lt.s32.totalorder %s19, 0
      %s202 = scalar_select %p201, %s19, 0
      %s203 = smul.addr %s202, 4
      %s204 = scalar_lea.vmem %s0, %s203
      %p205 = scmp.lt.s32.totalorder %s18, 1
      %s206 = scalar_select %p205, %s18, 1
      %s207 = smul.addr %s206, 4
      %s208 = smul.addr %s207, 4
      %s209 = scalar_lea.vmem %s1, %s208
      %p210 = scmp.lt.s32.totalorder %s18, 1
      %s211 = scalar_select %p210, %s18, 1
      %s212 = scalar_lea.vmem %s2, %s211
      %p213 = scmp.lt.s32.totalorder %s18, 1
      %s214 = scalar_select %p213, %s18, 1
      %p215 = scmp.lt.s32.totalorder %s19, 0
      %s216 = scalar_select %p215, %s19, 0
      %s217 = sadd.s32 %s216, %s214
      %s218 = smul.addr %s217, 4
      %s219 = scalar_lea.vmem %s3, %s218
      %v221 = vld [vmem:[%s204] sm:$0xf]
      %v222 = vld [vmem:[%s209] sm:$0xf]
      %v223 = vld [vmem:[%s209 + $0x4] sm:$0xf]
      %v224 = vld [vmem:[%s209 + $0x8] sm:$0xf]
      %v225 = vld [vmem:[%s209 + $0xc] sm:$0xf]
      %v226 = vld [vmem:[%s212] sm:$0x1]
      %v228 = vlaneseq
      %v229 = vshrl.u32 %v228, 7
      %v230 = vsub.s32 0, %v229
      %v231 = vrot.slane %v226, %v230
      %v237 = vunpack.c.l.b16 %v222
      %v238 = vunpack.c.l.b16 %v223
      %v239 = vunpack.c.l.b16 %v224
      %v240 = vunpack.c.l.b16 %v225
      %v241 = vpack.c.b16 %v238, %v237
      %v242 = vpack.c.b16 %v240, %v239
      %vm245 = vcmask 261120
      %v247 = vsel %vm245, %v221, 0
      %249 = vmatprep.subr.bf16.mxu0 0
      %250 = vmatpush1.bf16.msra.mxu0 %v241
      %251 = vmatprep.subr.bf16.mxu0 0
      %252 = vmatpush1.bf16.msra.mxu0 %v242
      %253 = vmatprep.subr.bf16.mxu0 0
      %254 = vmatpush1.bf16.msra.mxu0 0
      %255 = vmatprep.subr.bf16.mxu0 0
      %256 = vmatpush1.bf16.msra.mxu0 0
      %257 = vmatprep.subr.bf16.mxu0 0
      %258 = vmatpush1.bf16.msra.mxu0 0
      %259 = vmatprep.subr.bf16.mxu0 0
      %260 = vmatpush1.bf16.msra.mxu0 0
      %261 = vmatprep.subr.bf16.mxu0 0
      %262 = vmatpush1.bf16.msra.mxu0 0
      %263 = vmatprep.subr.bf16.mxu0 0
      %264 = vmatpush1.bf16.msra.mxu0 0
      %265 = vmatprep.subr.bf16.mxu0 0
      %266 = vmatpush1.bf16.msra.mxu0 0
      %267 = vmatprep.subr.bf16.mxu0 0
      %268 = vmatpush1.bf16.msra.mxu0 0
      %269 = vmatprep.subr.bf16.mxu0 0
      %270 = vmatpush1.bf16.msra.mxu0 0
      %271 = vmatprep.subr.bf16.mxu0 0
      %272 = vmatpush1.bf16.msra.mxu0 0
      %273 = vmatprep.subr.bf16.mxu0 0
      %274 = vmatpush1.bf16.msra.mxu0 0
      %275 = vmatprep.subr.bf16.mxu0 0
      %276 = vmatpush1.bf16.msra.mxu0 0
      %277 = vmatprep.subr.bf16.mxu0 0
      %278 = vmatpush1.bf16.msra.mxu0 0
      %279 = vmatprep.subr.bf16.mxu0 0
      %280 = vmatpush1.bf16.msra.mxu0 0
      %281 = vmatprep.mubr.bf16.mxu0 0
      %282 = vmatmul.mubr.bf16.gmra.mrb[0].mxu0 %v247
      %v283 = vpop.f32.mrb[0].mxu0
      %v284 = vadd.f32 %v231, %v283
      %v285 = vpop.f32.mrb[0].mxu0
      %v286 = vpop.f32.mrb[0].mxu0
      %v287 = vpop.f32.mrb[0].mxu0
      %288 = vdwg.mxu0
      %vm289 = vcmp.ge.f32.partialorder %v284, 0.0
      %v290 = vmul.f32 %v284, 0.2
      %v291 = vsel %vm289, %v284, %v290
      %v292 = vpack.c.bf16 %v291, %v291
      %vm293 = vcmask 125952
      %294 = vst.msk [vmem:[%s219] sm:$0xf] %vm293, %v292
      %p295 = scmp.lt.s32.totalorder %s18, 1
      %s296 = scalar_select %p295, %s18, 1
      %p297 = scmp.lt.s32.totalorder %s19, 0
      %s298 = scalar_select %p297, %s19, 0
      %s299 = sadd.s32 %s298, %s296
      %s300 = smul.addr %s299, 4
      %s301 = scalar_lea.vmem %s3, %s300
      // Predicated region
      $region33: #{closed_call.80} parent=31 // pred_check
        %p302 = pneg %p124
      $region34: #{closed_call.80} parent=31 // pred_check_branch
        %304 = sbr.rel (%p302) target = $region36
      $region35: #{closed_call.80} parent=31 // pred_region
        _
      $region36: #{closed_call.80} parent=31 // pred_fallthru
        _
    $region32: #{closed_call.80} parent=5 // pred_fallthru
      _
    %p305 = scmp.le.s32.totalorder 2, %s9
    // Predicated region
    $region37: #{closed_call.80} parent=5 // pred_check
      %p306 = pneg %p305
    $region38: #{closed_call.80} parent=5 // pred_check_branch
      %308 = sbr.rel (%p306) target = $region40
    $region39: #{closed_call.80} parent=5 // pred_region
      %s309 = ssub.s32 %s9, 2
      // Predicated region
      $region41: #{closed_call.80} parent=39 // pred_check
        %p310 = pneg %p130
      $region42: #{closed_call.80} parent=39 // pred_check_branch
        %312 = sbr.rel (%p310) target = $region44
      $region43: #{closed_call.80} parent=39 // pred_region
        %p313 = scmp.lt.s32.totalorder %s20, 1
        %s314 = scalar_select %p313, %s20, 1
        %p315 = scmp.lt.s32.totalorder %s21, 0
        %s316 = scalar_select %p315, %s21, 0
        %s317 = sadd.s32 %s316, %s314
        %s318 = smul.addr %s317, 4
        %s319 = scalar_lea.vmem %s3, %s318
      $region44: #{closed_call.80} parent=39 // pred_fallthru
        _
    $region40: #{closed_call.80} parent=5 // pred_fallthru
      _
  $region6: #{closed_call.80} parent=0 // loop_footer
    %s13 = sadd.s32 1, %s9
  $region7: #{closed_call.80} parent=0 // loop_footer_branch
    %8 = sbr.rel target = $region3
  $region8: #{closed_call.80} parent=0 // loop_exit
    _

// kernel: closed_call.81
$region0: #{closed_call.81}
  #allocation0 [shape = 'u32[]', space=smem, size = 0x4, offset = 0x4, fixed_abs, tag = 'smem constant byte address 0x4 - core index']
  #allocation1 [shape = 'u32[144,128]{1,0:T(1,128)}', space=vmem, size = 0x12000, scoped, tag = 'internal scratch']
  %s0 = inlined_call_operand.vmem [shape: bf16[2,8,144], index: 0, kind: input, shape index: {}]
  %s1 = inlined_call_operand.vmem [shape: bf16[2,144,64], index: 1, kind: input, shape index: {}]
  %s2 = inlined_call_operand.vmem [shape: f32[2,1,64], index: 2, kind: input, shape index: {}]
  %s3 = inlined_call_operand.vmem [shape: bf16[2,8,64], index: 3, kind: output, shape index: {}]
  %s4 = sld [smem:[#allocation0]]
  $region45: #{closed_call.81} parent=0
    _
  %s6 = ssub.s32 1, %s4
  %s7 = scalar_select 0, %s6, %s4
  loop: start=0, step=1, limit=4
  $region2: #{closed_call.81} parent=0 // loop_pre_header
    _
  $region3: #{closed_call.81} parent=0 // loop_header
    %s9 = sphi 0, %s13
    %p10 = scmp.ge.s32.totalorder %s9, 4
    %s16 = sphi 0, %s28
    %s17 = sphi 0, %s24
    %s18 = sphi 0, %s16
    %s19 = sphi 0, %s17
    %s20 = sphi 0, %s18
    %s21 = sphi 0, %s19
    %s33 = sphi 0, %s35
    %s36 = sphi 0, %s33
    %s37 = sphi 0, %s36
    %s53 = sphi 0, %s37
    %s59 = sphi 0, %s61
    %s62 = sphi 0, %s59
    %s63 = sphi 0, %s62
    %s79 = sphi 0, %s63
    %s85 = sphi 0, %s87
    %s88 = sphi 0, %s85
    %s89 = sphi 0, %s88
    %s105 = sphi 0, %s89
    %s113 = sphi 0, %s115
    %s116 = sphi 0, %s113
    %s117 = sphi 0, %s116
    %s133 = sphi 0, %s117
  $region4: #{closed_call.81} parent=0 // loop_header_branch
    %12 = sbr.rel (%p10) target = $region8
  $region5: #{closed_call.81} parent=0 // loop_body
    %s14 = ssub.s32 %s9, 1
    %s15 = ssub.s32 %s9, 2
    %s22 = sadd.s32 1, %s17
    %p23 = scmp.ge.s32.totalorder %s22, 1
    %s24 = scalar_select %p23, 0, %s22
    %s25 = sadd.s32 1, %s16
    %s26 = scalar_select %p23, %s25, %s16
    %p27 = scmp.ge.s32.totalorder %s26, 2
    %s28 = scalar_select %p27, 0, %s26
    %s29 = ssub.s32 %s16, %s28
    %s30 = ssub.s32 %s17, %s24
    %s31 = sor.u32 %s29, %s30
    %p32 = scmp.eq.s32.totalorder %s31, 0
    %s34 = sadd.s32 %s33, 1
    %s35 = scalar_select %p32, %s33, %s34
    %p38 = pneg %p32
    %p39 = scmp.eq.s32.totalorder %s9, 1
    %p40 = por %p38, %p39
    %p41 = scmp.ne.s32.totalorder %s33, %s36
    %p42 = scmp.eq.s32.totalorder %s9, 0
    %p43 = por %p41, %p42
    %p44 = scmp.ne.s32.totalorder %s33, %s36
    %p45 = scmp.eq.s32.totalorder %s14, 1
    %p46 = por %p44, %p45
    %p47 = scmp.ne.s32.totalorder %s36, %s37
    %p48 = scmp.eq.s32.totalorder %s14, 0
    %p49 = por %p47, %p48
    %p50 = scmp.ne.s32.totalorder %s36, %s37
    %p51 = scmp.eq.s32.totalorder %s15, 1
    %p52 = por %p50, %p51
    %p54 = scmp.ne.s32.totalorder %s37, %s53
    %p55 = scmp.eq.s32.totalorder %s15, 0
    %p56 = por %p54, %p55
    %s57 = ssub.s32 %s16, %s28
    %p58 = scmp.eq.s32.totalorder %s57, 0
    %s60 = sadd.s32 %s59, 1
    %s61 = scalar_select %p58, %s59, %s60
    %p64 = pneg %p58
    %p65 = scmp.eq.s32.totalorder %s9, 1
    %p66 = por %p64, %p65
    %p67 = scmp.ne.s32.totalorder %s59, %s62
    %p68 = scmp.eq.s32.totalorder %s9, 0
    %p69 = por %p67, %p68
    %p70 = scmp.ne.s32.totalorder %s59, %s62
    %p71 = scmp.eq.s32.totalorder %s14, 1
    %p72 = por %p70, %p71
    %p73 = scmp.ne.s32.totalorder %s62, %s63
    %p74 = scmp.eq.s32.totalorder %s14, 0
    %p75 = por %p73, %p74
    %p76 = scmp.ne.s32.totalorder %s62, %s63
    %p77 = scmp.eq.s32.totalorder %s15, 1
    %p78 = por %p76, %p77
    %p80 = scmp.ne.s32.totalorder %s63, %s79
    %p81 = scmp.eq.s32.totalorder %s15, 0
    %p82 = por %p80, %p81
    %s83 = ssub.s32 %s16, %s28
    %p84 = scmp.eq.s32.totalorder %s83, 0
    %s86 = sadd.s32 %s85, 1
    %s87 = scalar_select %p84, %s85, %s86
    %p90 = pneg %p84
    %p91 = scmp.eq.s32.totalorder %s9, 1
    %p92 = por %p90, %p91
    %p93 = scmp.ne.s32.totalorder %s85, %s88
    %p94 = scmp.eq.s32.totalorder %s9, 0
    %p95 = por %p93, %p94
    %p96 = scmp.ne.s32.totalorder %s85, %s88
    %p97 = scmp.eq.s32.totalorder %s14, 1
    %p98 = por %p96, %p97
    %p99 = scmp.ne.s32.totalorder %s88, %s89
    %p100 = scmp.eq.s32.totalorder %s14, 0
    %p101 = por %p99, %p100
    %p102 = scmp.ne.s32.totalorder %s88, %s89
    %p103 = scmp.eq.s32.totalorder %s15, 1
    %p104 = por %p102, %p103
    %p106 = scmp.ne.s32.totalorder %s89, %s105
    %p107 = scmp.eq.s32.totalorder %s15, 0
    %p108 = por %p106, %p107
    %s109 = ssub.s32 %s16, %s28
    %s110 = ssub.s32 %s17, %s24
    %s111 = sor.u32 %s109, %s110
    %p112 = scmp.eq.s32.totalorder %s111, 0
    %s114 = sadd.s32 %s113, 1
    %s115 = scalar_select %p112, %s113, %s114
    %p118 = pneg %p112
    %p119 = scmp.eq.s32.totalorder %s9, 1
    %p120 = por %p118, %p119
    %p121 = scmp.ne.s32.totalorder %s113, %s116
    %p122 = scmp.eq.s32.totalorder %s9, 0
    %p123 = por %p121, %p122
    %p124 = scmp.ne.s32.totalorder %s113, %s116
    %p125 = scmp.eq.s32.totalorder %s14, 1
    %p126 = por %p124, %p125
    %p127 = scmp.ne.s32.totalorder %s116, %s117
    %p128 = scmp.eq.s32.totalorder %s14, 0
    %p129 = por %p127, %p128
    %p130 = scmp.ne.s32.totalorder %s116, %s117
    %p131 = scmp.eq.s32.totalorder %s15, 1
    %p132 = por %p130, %p131
    %p134 = scmp.ne.s32.totalorder %s117, %s133
    %p135 = scmp.eq.s32.totalorder %s15, 0
    %p136 = por %p134, %p135
    %p137 = scmp.le.s32.totalorder 1, %s9
    %p138 = scmp.lt.s32.totalorder %s9, 3
    %p139 = pnand %p137, %p138
    %p140 = pneg %p139
    // Predicated region
    $region9: #{closed_call.81} parent=5 // pred_check
      _
    $region10: #{closed_call.81} parent=5 // pred_check_branch
      %142 = sbr.rel (%p139) target = $region12
    $region11: #{closed_call.81} parent=5 // pred_region
      %s143 = ssub.s32 %s9, 1
    $region12: #{closed_call.81} parent=5 // pred_fallthru
      _
    %p144 = scmp.lt.s32.totalorder %s9, 2
    // Predicated region
    $region13: #{closed_call.81} parent=5 // pred_check
      %p145 = pneg %p144
    $region14: #{closed_call.81} parent=5 // pred_check_branch
      %147 = sbr.rel (%p145) target = $region16
    $region15: #{closed_call.81} parent=5 // pred_region
      // Predicated region
      $region17: #{closed_call.81} parent=15 // pred_check
        %p148 = pneg %p43
      $region18: #{closed_call.81} parent=15 // pred_check_branch
        %150 = sbr.rel (%p148) target = $region20
      $region19: #{closed_call.81} parent=15 // pred_region
        %p151 = scmp.lt.s32.totalorder %s16, 1
        %s152 = scalar_select %p151, %s16, 1
        %p153 = scmp.lt.s32.totalorder %s17, 0
        %s154 = scalar_select %p153, %s17, 0
        %s155 = smul.addr %s154, 2
        %s156 = smul.addr %s152, 2
        %s157 = sadd.s32 %s155, %s156
        %s158 = smul.addr %s157, 4
        %s159 = scalar_lea.vmem %s0, %s158
      $region20: #{closed_call.81} parent=15 // pred_fallthru
        _
      // Predicated region
      $region21: #{closed_call.81} parent=15 // pred_check
        %p160 = pneg %p69
      $region22: #{closed_call.81} parent=15 // pred_check_branch
        %162 = sbr.rel (%p160) target = $region24
      $region23: #{closed_call.81} parent=15 // pred_region
        %p163 = scmp.lt.s32.totalorder %s16, 1
        %s164 = scalar_select %p163, %s16, 1
        %s165 = smul.addr %s164, 18
        %s166 = smul.addr %s165, 4
        %s167 = scalar_lea.vmem %s1, %s166
      $region24: #{closed_call.81} parent=15 // pred_fallthru
        _
      // Predicated region
      $region25: #{closed_call.81} parent=15 // pred_check
        %p168 = pneg %p95
      $region26: #{closed_call.81} parent=15 // pred_check_branch
        %170 = sbr.rel (%p168) target = $region28
      $region27: #{closed_call.81} parent=15 // pred_region
        %p171 = scmp.lt.s32.totalorder %s16, 1
        %s172 = scalar_select %p171, %s16, 1
        %s173 = scalar_lea.vmem %s2, %s172
      $region28: #{closed_call.81} parent=15 // pred_fallthru
        _
    $region16: #{closed_call.81} parent=5 // pred_fallthru
      _
    %p174 = scmp.le.s32.totalorder 1, %s9
    %p175 = scmp.lt.s32.totalorder %s9, 3
    %p176 = pnand %p174, %p175
    %p177 = pneg %p176
    // Predicated region
    $region29: #{closed_call.81} parent=5 // pred_check
      _
    $region30: #{closed_call.81} parent=5 // pred_check_branch
      %179 = sbr.rel (%p176) target = $region32
    $region31: #{closed_call.81} parent=5 // pred_region
      %s180 = ssub.s32 %s9, 1
      %p181 = scmp.lt.s32.totalorder %s18, 1
      %s182 = scalar_select %p181, %s18, 1
      %p183 = scmp.lt.s32.totalorder %s19, 0
      %s184 = scalar_select %p183, %s19, 0
      %s185 = smul.addr %s184, 2
      %s186 = smul.addr %s182, 2
      %s187 = sadd.s32 %s185, %s186
      %s188 = smul.addr %s187, 4
      %s189 = scalar_lea.vmem %s0, %s188
      %p190 = pneg %p49
      %p191 = pneg %p46
      %p192 = scmp.lt.s32.totalorder %s18, 1
      %s193 = scalar_select %p192, %s18, 1
      %s194 = smul.addr %s193, 18
      %s195 = smul.addr %s194, 4
      %s196 = scalar_lea.vmem %s1, %s195
      %p197 = pneg %p75
      %p198 = pneg %p72
      %p199 = scmp.lt.s32.totalorder %s18, 1
      %s200 = scalar_select %p199, %s18, 1
      %s201 = scalar_lea.vmem %s2, %s200
      %p202 = pneg %p101
      %p203 = pneg %p98
      %p204 = pneg %p129
      %p205 = pneg %p126
      %p206 = scmp.lt.s32.totalorder %s18, 1
      %s207 = scalar_select %p206, %s18, 1
      %p208 = scmp.lt.s32.totalorder %s19, 0
      %s209 = scalar_select %p208, %s19, 0
      %s210 = sadd.s32 %s209, %s207
      %s211 = smul.addr %s210, 4
      %s212 = scalar_lea.vmem %s3, %s211
      %p213 = scmp.lt.s32.totalorder %s18, 1
      %s214 = scalar_select %p213, %s18, 1
      %p215 = scmp.lt.s32.totalorder %s19, 0
      %s216 = scalar_select %p215, %s19, 0
      %s217 = smul.addr %s216, 2
      %s218 = smul.addr %s214, 2
      %s219 = sadd.s32 %s217, %s218
      %s220 = smul.addr %s219, 4
      %s221 = scalar_lea.vmem %s0, %s220
      %p222 = scmp.lt.s32.totalorder %s18, 1
      %s223 = scalar_select %p222, %s18, 1
      %s224 = smul.addr %s223, 18
      %s225 = smul.addr %s224, 4
      %s226 = scalar_lea.vmem %s1, %s225
      %p227 = scmp.lt.s32.totalorder %s18, 1
      %s228 = scalar_select %p227, %s18, 1
      %s229 = scalar_lea.vmem %s2, %s228
      %p230 = scmp.lt.s32.totalorder %s18, 1
      %s231 = scalar_select %p230, %s18, 1
      %p232 = scmp.lt.s32.totalorder %s19, 0
      %s233 = scalar_select %p232, %s19, 0
      %s234 = sadd.s32 %s233, %s231
      %s235 = smul.addr %s234, 4
      %s236 = scalar_lea.vmem %s3, %s235
      %v238 = vld [vmem:[%s221] sm:$0xff]
      %v239 = vld [vmem:[%s226] sm:$0xf]
      %v240 = vld [vmem:[%s226 + $0x4] sm:$0xf]
      %v241 = vld [vmem:[%s226 + $0x8] sm:$0xf]
      %v242 = vld [vmem:[%s226 + $0xc] sm:$0xf]
      %v243 = vld [vmem:[%s226 + $0x10] sm:$0xf]
      %v244 = vld [vmem:[%s226 + $0x14] sm:$0xf]
      %v245 = vld [vmem:[%s226 + $0x18] sm:$0xf]
      %v246 = vld [vmem:[%s226 + $0x1c] sm:$0xf]
      %v247 = vld [vmem:[%s226 + $0x20] sm:$0xf]
      %v248 = vld [vmem:[%s226 + $0x24] sm:$0xf]
      %v249 = vld [vmem:[%s226 + $0x28] sm:$0xf]
      %v250 = vld [vmem:[%s226 + $0x2c] sm:$0xf]
      %v251 = vld [vmem:[%s226 + $0x30] sm:$0xf]
      %v252 = vld [vmem:[%s226 + $0x34] sm:$0xf]
      %v253 = vld [vmem:[%s226 + $0x38] sm:$0xf]
      %v254 = vld [vmem:[%s226 + $0x3c] sm:$0xf]
      %v255 = vld [vmem:[%s226 + $0x40] sm:$0xf]
      %v256 = vld [vmem:[%s226 + $0x44] sm:$0xf]
      %v257 = vld [vmem:[%s229] sm:$0x1]
      %v259 = vlaneseq
      %v260 = vshrl.u32 %v259, 7
      %v261 = vsub.s32 0, %v260
      %v262 = vrot.slane %v257, %v261
      %v265 = vunpack.c.l.b16 %v238
      %v266 = vunpack.c.h.b16 %v238
      %v267 = vpack.c.b16 %v265, %v265
      %v268 = vpack.c.b16 %v266, %v266
      %v288 = vunpack.c.l.b16 %v239
      %v289 = vunpack.c.l.b16 %v240
      %v290 = vunpack.c.l.b16 %v241
      %v291 = vunpack.c.l.b16 %v242
      %v292 = vunpack.c.l.b16 %v243
      %v293 = vunpack.c.l.b16 %v244
      %v294 = vunpack.c.l.b16 %v245
      %v295 = vunpack.c.l.b16 %v246
      %v296 = vunpack.c.l.b16 %v247
      %v297 = vunpack.c.l.b16 %v248
      %v298 = vunpack.c.l.b16 %v249
      %v299 = vunpack.c.l.b16 %v250
      %v300 = vunpack.c.l.b16 %v251
      %v301 = vunpack.c.l.b16 %v252
      %v302 = vunpack.c.l.b16 %v253
      %v303 = vunpack.c.l.b16 %v254
      %v304 = vunpack.c.l.b16 %v255
      %v305 = vunpack.c.l.b16 %v256
      %v306 = vpack.c.b16 %v289, %v288
      %v307 = vpack.c.b16 %v291, %v290
      %v308 = vpack.c.b16 %v293, %v292
      %v309 = vpack.c.b16 %v295, %v294
      %v310 = vpack.c.b16 %v297, %v296
      %v311 = vpack.c.b16 %v299, %v298
      %v312 = vpack.c.b16 %v301, %v300
      %v313 = vpack.c.b16 %v303, %v302
      %v314 = vpack.c.b16 %v305, %v304
      %vm324 = vcmask 130048
      %v326 = vsel %vm324, %v268, 0
      %328 = vmatprep.subr.bf16.mxu0 0
      %329 = vmatpush1.bf16.msra.mxu0 %v306
      %330 = vmatprep.subr.bf16.mxu0 0
      %331 = vmatpush1.bf16.msra.mxu0 %v307
      %332 = vmatprep.subr.bf16.mxu0 0
      %333 = vmatpush1.bf16.msra.mxu0 %v308
      %334 = vmatprep.subr.bf16.mxu0 0
      %335 = vmatpush1.bf16.msra.mxu0 %v309
      %336 = vmatprep.subr.bf16.mxu0 0
      %337 = vmatpush1.bf16.msra.mxu0 %v310
      %338 = vmatprep.subr.bf16.mxu0 0
      %339 = vmatpush1.bf16.msra.mxu0 %v311
      %340 = vmatprep.subr.bf16.mxu0 0
      %341 = vmatpush1.bf16.msra.mxu0 %v312
      %342 = vmatprep.subr.bf16.mxu0 0
      %343 = vmatpush1.bf16.msra.mxu0 %v313
      %344 = vmatprep.subr.bf16.mxu0 0
      %345 = vmatpush1.bf16.msra.mxu0 %v314
      %346 = vmatprep.subr.bf16.mxu0 0
      %347 = vmatpush1.bf16.msra.mxu0 0
      %348 = vmatprep.subr.bf16.mxu0 0
      %349 = vmatpush1.bf16.msra.mxu0 0
      %350 = vmatprep.subr.bf16.mxu0 0
      %351 = vmatpush1.bf16.msra.mxu0 0
      %352 = vmatprep.subr.bf16.mxu0 0
      %353 = vmatpush1.bf16.msra.mxu0 0
      %354 = vmatprep.subr.bf16.mxu0 0
      %355 = vmatpush1.bf16.msra.mxu0 0
      %356 = vmatprep.subr.bf16.mxu0 0
      %357 = vmatpush1.bf16.msra.mxu0 0
      %358 = vmatprep.subr.bf16.mxu0 0
      %359 = vmatpush1.bf16.msra.mxu0 0
      %360 = vmatprep.mubr.bf16.mxu0 %v326
      %361 = vmatmul.mubr.bf16.gmra.mrb[0].mxu0 %v267
      %v362 = vpop.f32.mrb[0].mxu0
      %v363 = vadd.f32 %v262, %v362
      %v364 = vpop.f32.mrb[0].mxu0
      %v365 = vpop.f32.mrb[0].mxu0
      %v366 = vpop.f32.mrb[0].mxu0
      %367 = vdwg.mxu0
      %v368 = vpack.c.bf16 %v363, %v363
      %vm369 = vcmask 519168
      %370 = vst.msk [vmem:[%s236] sm:$0xf] %vm369, %v368
      %p371 = scmp.lt.s32.totalorder %s18, 1
      %s372 = scalar_select %p371, %s18, 1
      %p373 = scmp.lt.s32.totalorder %s19, 0
      %s374 = scalar_select %p373, %s19, 0
      %s375 = sadd.s32 %s374, %s372
      %s376 = smul.addr %s375, 4
      %s377 = scalar_lea.vmem %s3, %s376
      // Predicated region
      $region33: #{closed_call.81} parent=31 // pred_check
        %p378 = pneg %p126
      $region34: #{closed_call.81} parent=31 // pred_check_branch
        %380 = sbr.rel (%p378) target = $region36
      $region35: #{closed_call.81} parent=31 // pred_region
        _
      $region36: #{closed_call.81} parent=31 // pred_fallthru
        _
    $region32: #{closed_call.81} parent=5 // pred_fallthru
      _
    %p381 = scmp.le.s32.totalorder 2, %s9
    // Predicated region
    $region37: #{closed_call.81} parent=5 // pred_check
      %p382 = pneg %p381
    $region38: #{closed_call.81} parent=5 // pred_check_branch
      %384 = sbr.rel (%p382) target = $region40
    $region39: #{closed_call.81} parent=5 // pred_region
      %s385 = ssub.s32 %s9, 2
      // Predicated region
      $region41: #{closed_call.81} parent=39 // pred_check
        %p386 = pneg %p132
      $region42: #{closed_call.81} parent=39 // pred_check_branch
        %388 = sbr.rel (%p386) target = $region44
      $region43: #{closed_call.81} parent=39 // pred_region
        %p389 = scmp.lt.s32.totalorder %s20, 1
        %s390 = scalar_select %p389, %s20, 1
        %p391 = scmp.lt.s32.totalorder %s21, 0
        %s392 = scalar_select %p391, %s21, 0
        %s393 = sadd.s32 %s392, %s390
        %s394 = smul.addr %s393, 4
        %s395 = scalar_lea.vmem %s3, %s394
      $region44: #{closed_call.81} parent=39 // pred_fallthru
        _
    $region40: #{closed_call.81} parent=5 // pred_fallthru
      _
  $region6: #{closed_call.81} parent=0 // loop_footer
    %s13 = sadd.s32 1, %s9
  $region7: #{closed_call.81} parent=0 // loop_footer_branch
    %8 = sbr.rel target = $region3
  $region8: #{closed_call.81} parent=0 // loop_exit
    _

// kernel: closed_call.82
$region0: #{closed_call.82}
  #allocation0 [shape = 'u32[]', space=smem, size = 0x4, offset = 0x4, fixed_abs, tag = 'smem constant byte address 0x4 - core index']
  #allocation1 [shape = 'u32[144,128]{1,0:T(1,128)}', space=vmem, size = 0x12000, scoped, tag = 'internal scratch']
  %s0 = inlined_call_operand.vmem [shape: bf16[2,8,144], index: 0, kind: input, shape index: {}]
  %s1 = inlined_call_operand.vmem [shape: bf16[2,144,16], index: 1, kind: input, shape index: {}]
  %s2 = inlined_call_operand.vmem [shape: f32[2,1,16], index: 2, kind: input, shape index: {}]
  %s3 = inlined_call_operand.vmem [shape: bf16[2,8,64], index: 3, kind: input, shape index: {}]
  %s4 = inlined_call_operand.vmem [shape: bf16[2,4,8,16], index: 4, kind: input, shape index: {}]
  %s5 = inlined_call_operand.vmem [shape: bf16[2,4,8,16], index: 5, kind: input, shape index: {}]
  %s6 = inlined_call_operand.vmem [shape: bf16[2,8,16], index: 6, kind: input, shape index: {}]
  %s7 = inlined_call_operand.vmem [shape: f32[8,2], index: 7, kind: input, shape index: {}]
  %s8 = inlined_call_operand.vmem [shape: f32[2,8], index: 8, kind: input, shape index: {}]
  %s9 = inlined_call_operand.vmem [shape: bf16[2,8,16], index: 9, kind: output, shape index: {}]
  %s10 = sld [smem:[#allocation0]]
  $region69: #{closed_call.82} parent=0
    _
  %s12 = ssub.s32 1, %s10
  %s13 = scalar_select 0, %s12, %s10
  loop: start=0, step=1, limit=4
  $region2: #{closed_call.82} parent=0 // loop_pre_header
    _
  $region3: #{closed_call.82} parent=0 // loop_header
    %s15 = sphi 0, %s19
    %p16 = scmp.ge.s32.totalorder %s15, 4
    %s25 = sphi 0, %s27
    %s28 = sphi 0, %s25
    %s29 = sphi 0, %s28
    %s45 = sphi 0, %s29
    %s51 = sphi 0, %s53
    %s54 = sphi 0, %s51
    %s55 = sphi 0, %s54
    %s71 = sphi 0, %s55
    %s77 = sphi 0, %s79
    %s80 = sphi 0, %s77
    %s81 = sphi 0, %s80
    %s97 = sphi 0, %s81
    %s103 = sphi 0, %s105
    %s106 = sphi 0, %s103
    %s107 = sphi 0, %s106
    %s123 = sphi 0, %s107
    %s129 = sphi 0, %s131
    %s132 = sphi 0, %s129
    %s133 = sphi 0, %s132
    %s149 = sphi 0, %s133
    %s155 = sphi 0, %s157
    %s158 = sphi 0, %s155
    %s159 = sphi 0, %s158
    %s175 = sphi 0, %s159
    %s181 = sphi 0, %s183
    %s184 = sphi 0, %s181
    %s185 = sphi 0, %s184
    %s201 = sphi 0, %s185
    %s205 = sphi 0, %s205
    %s207 = sphi 0, %s205
    %s208 = sphi 0, %s207
    %s222 = sphi 0, %s208
    %s226 = sphi 0, %s226
    %s228 = sphi 0, %s226
    %s229 = sphi 0, %s228
    %s243 = sphi 0, %s229
    %s249 = sphi 0, %s251
    %s252 = sphi 0, %s249
    %s253 = sphi 0, %s252
    %s269 = sphi 0, %s253
  $region4: #{closed_call.82} parent=0 // loop_header_branch
    %18 = sbr.rel (%p16) target = $region8
  $region5: #{closed_call.82} parent=0 // loop_body
    %s20 = ssub.s32 %s15, 1
    %s21 = ssub.s32 %s15, 2
    %s22 = sadd.s32 %s15, 1
    %s23 = ssub.s32 %s15, %s22
    %p24 = scmp.eq.s32.totalorder %s23, 0
    %s26 = sadd.s32 %s25, 1
    %s27 = scalar_select %p24, %s25, %s26
    %p30 = pneg %p24
    %p31 = scmp.eq.s32.totalorder %s15, 1
    %p32 = por %p30, %p31
    %p33 = scmp.ne.s32.totalorder %s25, %s28
    %p34 = scmp.eq.s32.totalorder %s15, 0
    %p35 = por %p33, %p34
    %p36 = scmp.ne.s32.totalorder %s25, %s28
    %p37 = scmp.eq.s32.totalorder %s20, 1
    %p38 = por %p36, %p37
    %p39 = scmp.ne.s32.totalorder %s28, %s29
    %p40 = scmp.eq.s32.totalorder %s20, 0
    %p41 = por %p39, %p40
    %p42 = scmp.ne.s32.totalorder %s28, %s29
    %p43 = scmp.eq.s32.totalorder %s21, 1
    %p44 = por %p42, %p43
    %p46 = scmp.ne.s32.totalorder %s29, %s45
    %p47 = scmp.eq.s32.totalorder %s21, 0
    %p48 = por %p46, %p47
    %s49 = ssub.s32 %s15, %s22
    %p50 = scmp.eq.s32.totalorder %s49, 0
    %s52 = sadd.s32 %s51, 1
    %s53 = scalar_select %p50, %s51, %s52
    %p56 = pneg %p50
    %p57 = scmp.eq.s32.totalorder %s15, 1
    %p58 = por %p56, %p57
    %p59 = scmp.ne.s32.totalorder %s51, %s54
    %p60 = scmp.eq.s32.totalorder %s15, 0
    %p61 = por %p59, %p60
    %p62 = scmp.ne.s32.totalorder %s51, %s54
    %p63 = scmp.eq.s32.totalorder %s20, 1
    %p64 = por %p62, %p63
    %p65 = scmp.ne.s32.totalorder %s54, %s55
    %p66 = scmp.eq.s32.totalorder %s20, 0
    %p67 = por %p65, %p66
    %p68 = scmp.ne.s32.totalorder %s54, %s55
    %p69 = scmp.eq.s32.totalorder %s21, 1
    %p70 = por %p68, %p69
    %p72 = scmp.ne.s32.totalorder %s55, %s71
    %p73 = scmp.eq.s32.totalorder %s21, 0
    %p74 = por %p72, %p73
    %s75 = ssub.s32 %s15, %s22
    %p76 = scmp.eq.s32.totalorder %s75, 0
    %s78 = sadd.s32 %s77, 1
    %s79 = scalar_select %p76, %s77, %s78
    %p82 = pneg %p76
    %p83 = scmp.eq.s32.totalorder %s15, 1
    %p84 = por %p82, %p83
    %p85 = scmp.ne.s32.totalorder %s77, %s80
    %p86 = scmp.eq.s32.totalorder %s15, 0
    %p87 = por %p85, %p86
    %p88 = scmp.ne.s32.totalorder %s77, %s80
    %p89 = scmp.eq.s32.totalorder %s20, 1
    %p90 = por %p88, %p89
    %p91 = scmp.ne.s32.totalorder %s80, %s81
    %p92 = scmp.eq.s32.totalorder %s20, 0
    %p93 = por %p91, %p92
    %p94 = scmp.ne.s32.totalorder %s80, %s81
    %p95 = scmp.eq.s32.totalorder %s21, 1
    %p96 = por %p94, %p95
    %p98 = scmp.ne.s32.totalorder %s81, %s97
    %p99 = scmp.eq.s32.totalorder %s21, 0
    %p100 = por %p98, %p99
    %s101 = ssub.s32 %s15, %s22
    %p102 = scmp.eq.s32.totalorder %s101, 0
    %s104 = sadd.s32 %s103, 1
    %s105 = scalar_select %p102, %s103, %s104
    %p108 = pneg %p102
    %p109 = scmp.eq.s32.totalorder %s15, 1
    %p110 = por %p108, %p109
    %p111 = scmp.ne.s32.totalorder %s103, %s106
    %p112 = scmp.eq.s32.totalorder %s15, 0
    %p113 = por %p111, %p112
    %p114 = scmp.ne.s32.totalorder %s103, %s106
    %p115 = scmp.eq.s32.totalorder %s20, 1
    %p116 = por %p114, %p115
    %p117 = scmp.ne.s32.totalorder %s106, %s107
    %p118 = scmp.eq.s32.totalorder %s20, 0
    %p119 = por %p117, %p118
    %p120 = scmp.ne.s32.totalorder %s106, %s107
    %p121 = scmp.eq.s32.totalorder %s21, 1
    %p122 = por %p120, %p121
    %p124 = scmp.ne.s32.totalorder %s107, %s123
    %p125 = scmp.eq.s32.totalorder %s21, 0
    %p126 = por %p124, %p125
    %s127 = ssub.s32 %s15, %s22
    %p128 = scmp.eq.s32.totalorder %s127, 0
    %s130 = sadd.s32 %s129, 1
    %s131 = scalar_select %p128, %s129, %s130
    %p134 = pneg %p128
    %p135 = scmp.eq.s32.totalorder %s15, 1
    %p136 = por %p134, %p135
    %p137 = scmp.ne.s32.totalorder %s129, %s132
    %p138 = scmp.eq.s32.totalorder %s15, 0
    %p139 = por %p137, %p138
    %p140 = scmp.ne.s32.totalorder %s129, %s132
    %p141 = scmp.eq.s32.totalorder %s20, 1
    %p142 = por %p140, %p141
    %p143 = scmp.ne.s32.totalorder %s132, %s133
    %p144 = scmp.eq.s32.totalorder %s20, 0
    %p145 = por %p143, %p144
    %p146 = scmp.ne.s32.totalorder %s132, %s133
    %p147 = scmp.eq.s32.totalorder %s21, 1
    %p148 = por %p146, %p147
    %p150 = scmp.ne.s32.totalorder %s133, %s149
    %p151 = scmp.eq.s32.totalorder %s21, 0
    %p152 = por %p150, %p151
    %s153 = ssub.s32 %s15, %s22
    %p154 = scmp.eq.s32.totalorder %s153, 0
    %s156 = sadd.s32 %s155, 1
    %s157 = scalar_select %p154, %s155, %s156
    %p160 = pneg %p154
    %p161 = scmp.eq.s32.totalorder %s15, 1
    %p162 = por %p160, %p161
    %p163 = scmp.ne.s32.totalorder %s155, %s158
    %p164 = scmp.eq.s32.totalorder %s15, 0
    %p165 = por %p163, %p164
    %p166 = scmp.ne.s32.totalorder %s155, %s158
    %p167 = scmp.eq.s32.totalorder %s20, 1
    %p168 = por %p166, %p167
    %p169 = scmp.ne.s32.totalorder %s158, %s159
    %p170 = scmp.eq.s32.totalorder %s20, 0
    %p171 = por %p169, %p170
    %p172 = scmp.ne.s32.totalorder %s158, %s159
    %p173 = scmp.eq.s32.totalorder %s21, 1
    %p174 = por %p172, %p173
    %p176 = scmp.ne.s32.totalorder %s159, %s175
    %p177 = scmp.eq.s32.totalorder %s21, 0
    %p178 = por %p176, %p177
    %s179 = ssub.s32 %s15, %s22
    %p180 = scmp.eq.s32.totalorder %s179, 0
    %s182 = sadd.s32 %s181, 1
    %s183 = scalar_select %p180, %s181, %s182
    %p186 = pneg %p180
    %p187 = scmp.eq.s32.totalorder %s15, 1
    %p188 = por %p186, %p187
    %p189 = scmp.ne.s32.totalorder %s181, %s184
    %p190 = scmp.eq.s32.totalorder %s15, 0
    %p191 = por %p189, %p190
    %p192 = scmp.ne.s32.totalorder %s181, %s184
    %p193 = scmp.eq.s32.totalorder %s20, 1
    %p194 = por %p192, %p193
    %p195 = scmp.ne.s32.totalorder %s184, %s185
    %p196 = scmp.eq.s32.totalorder %s20, 0
    %p197 = por %p195, %p196
    %p198 = scmp.ne.s32.totalorder %s184, %s185
    %p199 = scmp.eq.s32.totalorder %s21, 1
    %p200 = por %p198, %p199
    %p202 = scmp.ne.s32.totalorder %s185, %s201
    %p203 = scmp.eq.s32.totalorder %s21, 0
    %p204 = por %p202, %p203
    %s206 = sadd.s32 %s205, 1
    %p209 = scmp.eq.s32.totalorder %s15, 1
    %p210 = scmp.ne.s32.totalorder %s205, %s207
    %p211 = scmp.eq.s32.totalorder %s15, 0
    %p212 = por %p210, %p211
    %p213 = scmp.ne.s32.totalorder %s205, %s207
    %p214 = scmp.eq.s32.totalorder %s20, 1
    %p215 = por %p213, %p214
    %p216 = scmp.ne.s32.totalorder %s207, %s208
    %p217 = scmp.eq.s32.totalorder %s20, 0
    %p218 = por %p216, %p217
    %p219 = scmp.ne.s32.totalorder %s207, %s208
    %p220 = scmp.eq.s32.totalorder %s21, 1
    %p221 = por %p219, %p220
    %p223 = scmp.ne.s32.totalorder %s208, %s222
    %p224 = scmp.eq.s32.totalorder %s21, 0
    %p225 = por %p223, %p224
    %s227 = sadd.s32 %s226, 1
    %p230 = scmp.eq.s32.totalorder %s15, 1
    %p231 = scmp.ne.s32.totalorder %s226, %s228
    %p232 = scmp.eq.s32.totalorder %s15, 0
    %p233 = por %p231, %p232
    %p234 = scmp.ne.s32.totalorder %s226, %s228
    %p235 = scmp.eq.s32.totalorder %s20, 1
    %p236 = por %p234, %p235
    %p237 = scmp.ne.s32.totalorder %s228, %s229
    %p238 = scmp.eq.s32.totalorder %s20, 0
    %p239 = por %p237, %p238
    %p240 = scmp.ne.s32.totalorder %s228, %s229
    %p241 = scmp.eq.s32.totalorder %s21, 1
    %p242 = por %p240, %p241
    %p244 = scmp.ne.s32.totalorder %s229, %s243
    %p245 = scmp.eq.s32.totalorder %s21, 0
    %p246 = por %p244, %p245
    %s247 = ssub.s32 %s15, %s22
    %p248 = scmp.eq.s32.totalorder %s247, 0
    %s250 = sadd.s32 %s249, 1
    %s251 = scalar_select %p248, %s249, %s250
    %p254 = pneg %p248
    %p255 = scmp.eq.s32.totalorder %s15, 1
    %p256 = por %p254, %p255
    %p257 = scmp.ne.s32.totalorder %s249, %s252
    %p258 = scmp.eq.s32.totalorder %s15, 0
    %p259 = por %p257, %p258
    %p260 = scmp.ne.s32.totalorder %s249, %s252
    %p261 = scmp.eq.s32.totalorder %s20, 1
    %p262 = por %p260, %p261
    %p263 = scmp.ne.s32.totalorder %s252, %s253
    %p264 = scmp.eq.s32.totalorder %s20, 0
    %p265 = por %p263, %p264
    %p266 = scmp.ne.s32.totalorder %s252, %s253
    %p267 = scmp.eq.s32.totalorder %s21, 1
    %p268 = por %p266, %p267
    %p270 = scmp.ne.s32.totalorder %s253, %s269
    %p271 = scmp.eq.s32.totalorder %s21, 0
    %p272 = por %p270, %p271
    %p273 = scmp.le.s32.totalorder 1, %s15
    %p274 = scmp.lt.s32.totalorder %s15, 3
    %p275 = pnand %p273, %p274
    %p276 = pneg %p275
    // Predicated region
    $region9: #{closed_call.82} parent=5 // pred_check
      _
    $region10: #{closed_call.82} parent=5 // pred_check_branch
      %278 = sbr.rel (%p275) target = $region12
    $region11: #{closed_call.82} parent=5 // pred_region
      %s279 = ssub.s32 %s15, 1
      // Predicated region
      $region13: #{closed_call.82} parent=11 // pred_check
        %p280 = pneg %p218
      $region14: #{closed_call.82} parent=11 // pred_check_branch
        %282 = sbr.rel (%p280) target = $region16
      $region15: #{closed_call.82} parent=11 // pred_region
        _
      $region16: #{closed_call.82} parent=11 // pred_fallthru
        _
      // Predicated region
      $region17: #{closed_call.82} parent=11 // pred_check
        %p283 = pneg %p239
      $region18: #{closed_call.82} parent=11 // pred_check_branch
        %285 = sbr.rel (%p283) target = $region20
      $region19: #{closed_call.82} parent=11 // pred_region
        _
      $region20: #{closed_call.82} parent=11 // pred_fallthru
        _
    $region12: #{closed_call.82} parent=5 // pred_fallthru
      _
    %p286 = scmp.lt.s32.totalorder %s15, 2
    // Predicated region
    $region21: #{closed_call.82} parent=5 // pred_check
      %p287 = pneg %p286
    $region22: #{closed_call.82} parent=5 // pred_check_branch
      %289 = sbr.rel (%p287) target = $region24
    $region23: #{closed_call.82} parent=5 // pred_region
      // Predicated region
      $region25: #{closed_call.82} parent=23 // pred_check
        %p290 = pneg %p35
      $region26: #{closed_call.82} parent=23 // pred_check_branch
        %292 = sbr.rel (%p290) target = $region28
      $region27: #{closed_call.82} parent=23 // pred_region
        %p293 = scmp.lt.s32.totalorder %s15, 1
        %s294 = scalar_select %p293, %s15, 1
        %s295 = smul.addr %s294, 2
        %s296 = smul.addr %s295, 4
        %s297 = scalar_lea.vmem %s0, %s296
      $region28: #{closed_call.82} parent=23 // pred_fallthru
        _
      // Predicated region
      $region29: #{closed_call.82} parent=23 // pred_check
        %p298 = pneg %p61
      $region30: #{closed_call.82} parent=23 // pred_check_branch
        %300 = sbr.rel (%p298) target = $region32
      $region31: #{closed_call.82} parent=23 // pred_region
        %p301 = scmp.lt.s32.totalorder %s15, 1
        %s302 = scalar_select %p301, %s15, 1
        %s303 = smul.addr %s302, 18
        %s304 = smul.addr %s303, 4
        %s305 = scalar_lea.vmem %s1, %s304
      $region32: #{closed_call.82} parent=23 // pred_fallthru
        _
      // Predicated region
      $region33: #{closed_call.82} parent=23 // pred_check
        %p306 = pneg %p87
      $region34: #{closed_call.82} parent=23 // pred_check_branch
        %308 = sbr.rel (%p306) target = $region36
      $region35: #{closed_call.82} parent=23 // pred_region
        %p309 = scmp.lt.s32.totalorder %s15, 1
        %s310 = scalar_select %p309, %s15, 1
        %s311 = scalar_lea.vmem %s2, %s310
      $region36: #{closed_call.82} parent=23 // pred_fallthru
        _
      // Predicated region
      $region37: #{closed_call.82} parent=23 // pred_check
        %p312 = pneg %p113
      $region38: #{closed_call.82} parent=23 // pred_check_branch
        %314 = sbr.rel (%p312) target = $region40
      $region39: #{closed_call.82} parent=23 // pred_region
        %p315 = scmp.lt.s32.totalorder %s15, 1
        %s316 = scalar_select %p315, %s15, 1
        %s317 = smul.addr %s316, 4
        %s318 = scalar_lea.vmem %s3, %s317
      $region40: #{closed_call.82} parent=23 // pred_fallthru
        _
      // Predicated region
      $region41: #{closed_call.82} parent=23 // pred_check
        %p319 = pneg %p139
      $region42: #{closed_call.82} parent=23 // pred_check_branch
        %321 = sbr.rel (%p319) target = $region44
      $region43: #{closed_call.82} parent=23 // pred_region
        %p322 = scmp.lt.s32.totalorder %s15, 1
        %s323 = scalar_select %p322, %s15, 1
        %s324 = smul.addr %s323, 4
        %s325 = smul.addr %s324, 4
        %s326 = scalar_lea.vmem %s4, %s325
      $region44: #{closed_call.82} parent=23 // pred_fallthru
        _
      // Predicated region
      $region45: #{closed_call.82} parent=23 // pred_check
        %p327 = pneg %p165
      $region46: #{closed_call.82} parent=23 // pred_check_branch
        %329 = sbr.rel (%p327) target = $region48
      $region47: #{closed_call.82} parent=23 // pred_region
        %p330 = scmp.lt.s32.totalorder %s15, 1
        %s331 = scalar_select %p330, %s15, 1
        %s332 = smul.addr %s331, 4
        %s333 = smul.addr %s332, 4
        %s334 = scalar_lea.vmem %s5, %s333
      $region48: #{closed_call.82} parent=23 // pred_fallthru
        _
      // Predicated region
      $region49: #{closed_call.82} parent=23 // pred_check
        %p335 = pneg %p191
      $region50: #{closed_call.82} parent=23 // pred_check_branch
        %337 = sbr.rel (%p335) target = $region52
      $region51: #{closed_call.82} parent=23 // pred_region
        %p338 = scmp.lt.s32.totalorder %s15, 1
        %s339 = scalar_select %p338, %s15, 1
        %s340 = smul.addr %s339, 4
        %s341 = scalar_lea.vmem %s6, %s340
      $region52: #{closed_call.82} parent=23 // pred_fallthru
        _
    $region24: #{closed_call.82} parent=5 // pred_fallthru
      _
    %p342 = scmp.le.s32.totalorder 1, %s15
    %p343 = scmp.lt.s32.totalorder %s15, 3
    %p344 = pnand %p342, %p343
    %p345 = pneg %p344
    // Predicated region
    $region53: #{closed_call.82} parent=5 // pred_check
      _
    $region54: #{closed_call.82} parent=5 // pred_check_branch
      %347 = sbr.rel (%p344) target = $region56
    $region55: #{closed_call.82} parent=5 // pred_region
      %s348 = ssub.s32 %s15, 1
      %p349 = scmp.lt.s32.totalorder %s20, 1
      %s350 = scalar_select %p349, %s20, 1
      %s351 = smul.addr %s350, 2
      %s352 = smul.addr %s351, 4
      %s353 = scalar_lea.vmem %s0, %s352
      %p354 = pneg %p41
      %p355 = pneg %p38
      %p356 = scmp.lt.s32.totalorder %s20, 1
      %s357 = scalar_select %p356, %s20, 1
      %s358 = smul.addr %s357, 18
      %s359 = smul.addr %s358, 4
      %s360 = scalar_lea.vmem %s1, %s359
      %p361 = pneg %p67
      %p362 = pneg %p64
      %p363 = scmp.lt.s32.totalorder %s20, 1
      %s364 = scalar_select %p363, %s20, 1
      %s365 = scalar_lea.vmem %s2, %s364
      %p366 = pneg %p93
      %p367 = pneg %p90
      %p368 = scmp.lt.s32.totalorder %s20, 1
      %s369 = scalar_select %p368, %s20, 1
      %s370 = smul.addr %s369, 4
      %s371 = scalar_lea.vmem %s3, %s370
      %p372 = pneg %p119
      %p373 = pneg %p116
      %p374 = scmp.lt.s32.totalorder %s20, 1
      %s375 = scalar_select %p374, %s20, 1
      %s376 = smul.addr %s375, 4
      %s377 = smul.addr %s376, 4
      %s378 = scalar_lea.vmem %s4, %s377
      %p379 = pneg %p145
      %p380 = pneg %p142
      %p381 = scmp.lt.s32.totalorder %s20, 1
      %s382 = scalar_select %p381, %s20, 1
      %s383 = smul.addr %s382, 4
      %s384 = smul.addr %s383, 4
      %s385 = scalar_lea.vmem %s5, %s384
      %p386 = pneg %p171
      %p387 = pneg %p168
      %p388 = scmp.lt.s32.totalorder %s20, 1
      %s389 = scalar_select %p388, %s20, 1
      %s390 = smul.addr %s389, 4
      %s391 = scalar_lea.vmem %s6, %s390
      %p392 = pneg %p197
      %p393 = pneg %p194
      %p394 = pneg %p218
      %p395 = pneg %p215
      %p396 = pneg %p239
      %p397 = pneg %p236
      %p398 = pneg %p265
      %p399 = pneg %p262
      %p400 = scmp.lt.s32.totalorder %s20, 1
      %s401 = scalar_select %p400, %s20, 1
      %s402 = smul.addr %s401, 4
      %s403 = scalar_lea.vmem %s9, %s402
      %p404 = scmp.lt.s32.totalorder %s20, 1
      %s405 = scalar_select %p404, %s20, 1
      %s406 = smul.addr %s405, 2
      %s407 = smul.addr %s406, 4
      %s408 = scalar_lea.vmem %s0, %s407
      %p409 = scmp.lt.s32.totalorder %s20, 1
      %s410 = scalar_select %p409, %s20, 1
      %s411 = smul.addr %s410, 18
      %s412 = smul.addr %s411, 4
      %s413 = scalar_lea.vmem %s1, %s412
      %p414 = scmp.lt.s32.totalorder %s20, 1
      %s415 = scalar_select %p414, %s20, 1
      %s416 = scalar_lea.vmem %s2, %s415
      %p417 = scmp.lt.s32.totalorder %s20, 1
      %s418 = scalar_select %p417, %s20, 1
      %s419 = smul.addr %s418, 4
      %s420 = scalar_lea.vmem %s3, %s419
      %p421 = scmp.lt.s32.totalorder %s20, 1
      %s422 = scalar_select %p421, %s20, 1
      %s423 = smul.addr %s422, 4
      %s424 = smul.addr %s423, 4
      %s425 = scalar_lea.vmem %s4, %s424
      %p426 = scmp.lt.s32.totalorder %s20, 1
      %s427 = scalar_select %p426, %s20, 1
      %s428 = smul.addr %s427, 4
      %s429 = smul.addr %s428, 4
      %s430 = scalar_lea.vmem %s5, %s429
      %p431 = scmp.lt.s32.totalorder %s20, 1
      %s432 = scalar_select %p431, %s20, 1
      %s433 = smul.addr %s432, 4
      %s434 = scalar_lea.vmem %s6, %s433
      %p435 = scmp.lt.s32.totalorder %s20, 1
      %s436 = scalar_select %p435, %s20, 1
      %s437 = smul.addr %s436, 4
      %s438 = scalar_lea.vmem %s9, %s437
      %v440 = vld [vmem:[%s408] sm:$0xff]
      %v441 = vld [vmem:[%s413] sm:$0xf]
      %v442 = vld [vmem:[%s413 + $0x4] sm:$0xf]
      %v443 = vld [vmem:[%s413 + $0x8] sm:$0xf]
      %v444 = vld [vmem:[%s413 + $0xc] sm:$0xf]
      %v445 = vld [vmem:[%s413 + $0x10] sm:$0xf]
      %v446 = vld [vmem:[%s413 + $0x14] sm:$0xf]
      %v447 = vld [vmem:[%s413 + $0x18] sm:$0xf]
      %v448 = vld [vmem:[%s413 + $0x1c] sm:$0xf]
      %v449 = vld [vmem:[%s413 + $0x20] sm:$0xf]
      %v450 = vld [vmem:[%s413 + $0x24] sm:$0xf]
      %v451 = vld [vmem:[%s413 + $0x28] sm:$0xf]
      %v452 = vld [vmem:[%s413 + $0x2c] sm:$0xf]
      %v453 = vld [vmem:[%s413 + $0x30] sm:$0xf]
      %v454 = vld [vmem:[%s413 + $0x34] sm:$0xf]
      %v455 = vld [vmem:[%s413 + $0x38] sm:$0xf]
      %v456 = vld [vmem:[%s413 + $0x3c] sm:$0xf]
      %v457 = vld [vmem:[%s413 + $0x40] sm:$0xf]
      %v458 = vld [vmem:[%s413 + $0x44] sm:$0xf]
      %v459 = vld [vmem:[%s416] sm:$0x1]
      %v461 = vlaneseq
      %v462 = vshrl.u32 %v461, 7
      %v463 = vsub.s32 0, %v462
      %v464 = vrot.slane %v459, %v463
      %v467 = vunpack.c.l.b16 %v440
      %v468 = vunpack.c.h.b16 %v440
      %v469 = vpack.c.b16 %v467, %v467
      %v470 = vpack.c.b16 %v468, %v468
      %v490 = vunpack.c.l.b16 %v441
      %v491 = vunpack.c.l.b16 %v442
      %v492 = vunpack.c.l.b16 %v443
      %v493 = vunpack.c.l.b16 %v444
      %v494 = vunpack.c.l.b16 %v445
      %v495 = vunpack.c.l.b16 %v446
      %v496 = vunpack.c.l.b16 %v447
      %v497 = vunpack.c.l.b16 %v448
      %v498 = vunpack.c.l.b16 %v449
      %v499 = vunpack.c.l.b16 %v450
      %v500 = vunpack.c.l.b16 %v451
      %v501 = vunpack.c.l.b16 %v452
      %v502 = vunpack.c.l.b16 %v453
      %v503 = vunpack.c.l.b16 %v454
      %v504 = vunpack.c.l.b16 %v455
      %v505 = vunpack.c.l.b16 %v456
      %v506 = vunpack.c.l.b16 %v457
      %v507 = vunpack.c.l.b16 %v458
      %v508 = vpack.c.b16 %v491, %v490
      %v509 = vpack.c.b16 %v493, %v492
      %v510 = vpack.c.b16 %v495, %v494
      %v511 = vpack.c.b16 %v497, %v496
      %v512 = vpack.c.b16 %v499, %v498
      %v513 = vpack.c.b16 %v501, %v500
      %v514 = vpack.c.b16 %v503, %v502
      %v515 = vpack.c.b16 %v505, %v504
      %v516 = vpack.c.b16 %v507, %v506
      %vm526 = vcmask 130048
      %v528 = vsel %vm526, %v470, 0
      %530 = vmatprep.subr.bf16.mxu0 0
      %531 = vmatpush1.bf16.msra.mxu0 %v508
      %532 = vmatprep.subr.bf16.mxu0 0
      %533 = vmatpush1.bf16.msra.mxu0 %v509
      %534 = vmatprep.subr.bf16.mxu0 0
      %535 = vmatpush1.bf16.msra.mxu0 %v510
      %536 = vmatprep.subr.bf16.mxu0 0
      %537 = vmatpush1.bf16.msra.mxu0 %v511
      %538 = vmatprep.subr.bf16.mxu0 0
      %539 = vmatpush1.bf16.msra.mxu0 %v512
      %540 = vmatprep.subr.bf16.mxu0 0
      %541 = vmatpush1.bf16.msra.mxu0 %v513
      %542 = vmatprep.subr.bf16.mxu0 0
      %543 = vmatpush1.bf16.msra.mxu0 %v514
      %544 = vmatprep.subr.bf16.mxu0 0
      %545 = vmatpush1.bf16.msra.mxu0 %v515
      %546 = vmatprep.subr.bf16.mxu0 0
      %547 = vmatpush1.bf16.msra.mxu0 %v516
      %548 = vmatprep.subr.bf16.mxu0 0
      %549 = vmatpush1.bf16.msra.mxu0 0
      %550 = vmatprep.subr.bf16.mxu0 0
      %551 = vmatpush1.bf16.msra.mxu0 0
      %552 = vmatprep.subr.bf16.mxu0 0
      %553 = vmatpush1.bf16.msra.mxu0 0
      %554 = vmatprep.subr.bf16.mxu0 0
      %555 = vmatpush1.bf16.msra.mxu0 0
      %556 = vmatprep.subr.bf16.mxu0 0
      %557 = vmatpush1.bf16.msra.mxu0 0
      %558 = vmatprep.subr.bf16.mxu0 0
      %559 = vmatpush1.bf16.msra.mxu0 0
      %560 = vmatprep.subr.bf16.mxu0 0
      %561 = vmatpush1.bf16.msra.mxu0 0
      %562 = vmatprep.mubr.bf16.mxu0 %v528
      %563 = vmatmul.mubr.bf16.gmra.mrb[0].mxu0 %v469
      %v564 = vpop.f32.mrb[0].mxu0
      %v565 = vadd.f32 %v464, %v564
      %v566 = vpop.f32.mrb[0].mxu0
      %v567 = vpop.f32.mrb[0].mxu0
      %v568 = vpop.f32.mrb[0].mxu0
      %569 = vdwg.mxu0
      %v570 = vld [vmem:[%s420] sm:$0xf]
      %v571 = vunpack.c.l.bf16 %v570
      %v572 = vld [vmem:[%s425] sm:$0xf]
      %v573 = vld [vmem:[%s425 + $0x4] sm:$0xf]
      %v574 = vld [vmem:[%s425 + $0x8] sm:$0xf]
      %v575 = vld [vmem:[%s425 + $0xc] sm:$0xf]
      %v576 = vunpack.c.l.bf16 %v572
      %v577 = vunpack.c.l.bf16 %v573
      %v578 = vunpack.c.l.bf16 %v574
      %v579 = vunpack.c.l.bf16 %v575
      %v580 = vld [vmem:[%s430] sm:$0xf]
      %v581 = vld [vmem:[%s430 + $0x4] sm:$0xf]
      %v582 = vld [vmem:[%s430 + $0x8] sm:$0xf]
      %v583 = vld [vmem:[%s430 + $0xc] sm:$0xf]
      %v584 = vunpack.c.l.bf16 %v580
      %v585 = vunpack.c.l.bf16 %v581
      %v586 = vunpack.c.l.bf16 %v582
      %v587 = vunpack.c.l.bf16 %v583
      %v588 = vld [vmem:[%s7] sm:$0xff]
      %v589 = vld [vmem:[%s8] sm:$0x3]
      %591 = vrot.lane.b32.xlu0 %v571, 80
      %v592 = vpop.permute.xlu0 %591
      %v594 = vmul.f32 %v576, %v592
      %v595 = vmul.f32 %v577, %v592
      %v596 = vmul.f32 %v578, %v592
      %v597 = vmul.f32 %v579, %v592
      %v598 = vsel %vm526, %v594, 0.0
      %599 = vadd.xlane.f32.xlu0 %v598
      %v600 = vpop.xlane.xlu0 %599
      %v601 = vsel %vm526, %v595, 0.0
      %602 = vadd.xlane.f32.xlu0 %v601
      %v603 = vpop.xlane.xlu0 %602
      %v604 = vsel %vm526, %v596, 0.0
      %605 = vadd.xlane.f32.xlu0 %v604
      %v606 = vpop.xlane.xlu0 %605
      %v607 = vsel %vm526, %v597, 0.0
      %608 = vadd.xlane.f32.xlu0 %v607
      %v609 = vpop.xlane.xlu0 %608
      %v610 = vmul.f32 %v600, %v588
      %v611 = vmul.f32 %v603, %v588
      %v612 = vmul.f32 %v606, %v588
      %v613 = vmul.f32 %v609, %v588
      %vm614 = vcmask 15360
      %v615 = vsel %vm614, %v610, 0.0
      %v616 = vrot.slane %v615, 4
      %v617 = vadd.f32 %v615, %v616
      %v618 = vrot.slane %v617, 2
      %v619 = vadd.f32 %v617, %v618
      %v620 = vrot.slane %v619, 1
      %v621 = vadd.f32 %v619, %v620
      %v622 = vsel %vm614, %v611, 0.0
      %v623 = vrot.slane %v622, 4
      %v624 = vadd.f32 %v622, %v623
      %v625 = vrot.slane %v624, 2
      %v626 = vadd.f32 %v624, %v625
      %v627 = vrot.slane %v626, 1
      %v628 = vadd.f32 %v626, %v627
      %v629 = vsel %vm614, %v612, 0.0
      %v630 = vrot.slane %v629, 4
      %v631 = vadd.f32 %v629, %v630
      %v632 = vrot.slane %v631, 2
      %v633 = vadd.f32 %v631, %v632
      %v634 = vrot.slane %v633, 1
      %v635 = vadd.f32 %v633, %v634
      %v636 = vsel %vm614, %v613, 0.0
      %v637 = vrot.slane %v636, 4
      %v638 = vadd.f32 %v636, %v637
      %v639 = vrot.slane %v638, 2
      %v640 = vadd.f32 %v638, %v639
      %v641 = vrot.slane %v640, 1
      %v642 = vadd.f32 %v640, %v641
      %v643 = vmul.f32 %v621, 0.125
      %v644 = vmul.f32 %v628, 0.125
      %v645 = vmul.f32 %v635, 0.125
      %v646 = vmul.f32 %v642, 0.125
      %v647 = vsel %vm614, %v643, -inf
      %v648 = vsel %vm614, %v644, -inf
      %v649 = vsel %vm614, %v645, -inf
      %v650 = vsel %vm614, %v646, -inf
      %v651 = vmax.f32 %v647, %v648
      %v652 = vmax.f32 %v649, %v650
      %v653 = vmax.f32 %v651, %v652
      %v654 = vsub.f32 %v643, %v653
      %v655 = vsub.f32 %v644, %v653
      %v656 = vsub.f32 %v645, %v653
      %v657 = vsub.f32 %v646, %v653
      %v658 = vmul.f32 %v654, 1.442695
      %v659 = vpow.pop %v658
      %v660 = vmul.f32 %v655, 1.442695
      %v661 = vpow.pop %v660
      %v662 = vmul.f32 %v656, 1.442695
      %v663 = vpow.pop %v662
      %v664 = vmul.f32 %v657, 1.442695
      %v665 = vpow.pop %v664
      %v670 = vrot.slane %v661, 7
      %vm671 = vcmask 1041409
      %v672 = vsel %vm671, %v670, %v659
      %v673 = vrot.slane %v663, 6
      %vm674 = vcmask 1042434
      %v675 = vsel %vm674, %v673, %v672
      %v676 = vrot.slane %v665, 5
      %vm677 = vcmask 1043459
      %v678 = vsel %vm677, %v676, %v675
      %vm680 = vcmask 11264
      %v681 = vsel %vm680, %v678, 0.0
      %v682 = vrot.slane %v681, 4
      %v683 = vadd.f32 %v681, %v682
      %v684 = vrot.slane %v683, 2
      %v685 = vadd.f32 %v683, %v684
      %v686 = vrot.slane %v685, 1
      %v687 = vadd.f32 %v685, %v686
      %v688 = vlaneseq
      %v689 = vshrl.u32 %v688, 7
      %v690 = vsub.s32 0, %v689
      %v691 = vrot.slane %v687, %v690
      %v692 = vrcp.pop %v691
      %v693 = vmul.f32 %v659, %v692
      %v694 = vmul.f32 %v661, %v692
      %v695 = vmul.f32 %v663, %v692
      %v696 = vmul.f32 %v665, %v692
      %v697 = vlaneseq
      %v698 = vshrl.u32 %v697, 7
      %v699 = vsub.s32 0, %v698
      %v700 = vrot.slane %v693, %v699
      %702 = vbcast.lane.b32.xlu0 %v700, 256
      %v703 = vpop.permute.xlu0 %702
      %v704 = vlaneseq
      %v705 = vshrl.u32 %v704, 7
      %v706 = vsub.s32 0, %v705
      %v707 = vrot.slane %v694, %v706
      %709 = vbcast.lane.b32.xlu0 %v707, 256
      %v710 = vpop.permute.xlu0 %709
      %v711 = vlaneseq
      %v712 = vshrl.u32 %v711, 7
      %v713 = vsub.s32 0, %v712
      %v714 = vrot.slane %v695, %v713
      %716 = vbcast.lane.b32.xlu0 %v714, 256
      %v717 = vpop.permute.xlu0 %716
      %v718 = vlaneseq
      %v719 = vshrl.u32 %v718, 7
      %v720 = vsub.s32 0, %v719
      %v721 = vrot.slane %v696, %v720
      %723 = vbcast.lane.b32.xlu0 %v721, 256
      %v724 = vpop.permute.xlu0 %723
      %v725 = vmul.f32 %v703, %v589
      %v726 = vmul.f32 %v710, %v589
      %v727 = vmul.f32 %v717, %v589
      %v728 = vmul.f32 %v724, %v589
      %vm729 = vcmask 58368
      %v730 = vsel %vm729, %v725, 0.0
      %v731 = vrot.slane %v730, 4
      %v732 = vadd.f32 %v730, %v731
      %v733 = vrot.slane %v732, 2
      %v734 = vadd.f32 %v732, %v733
      %v735 = vrot.slane %v734, 1
      %v736 = vadd.f32 %v734, %v735
      %v737 = vsel %vm729, %v726, 0.0
      %v738 = vrot.slane %v737, 4
      %v739 = vadd.f32 %v737, %v738
      %v740 = vrot.slane %v739, 2
      %v741 = vadd.f32 %v739, %v740
      %v742 = vrot.slane %v741, 1
      %v743 = vadd.f32 %v741, %v742
      %v744 = vsel %vm729, %v727, 0.0
      %v745 = vrot.slane %v744, 4
      %v746 = vadd.f32 %v744, %v745
      %v747 = vrot.slane %v746, 2
      %v748 = vadd.f32 %v746, %v747
      %v749 = vrot.slane %v748, 1
      %v750 = vadd.f32 %v748, %v749
      %v751 = vsel %vm729, %v728, 0.0
      %v752 = vrot.slane %v751, 4
      %v753 = vadd.f32 %v751, %v752
      %v754 = vrot.slane %v753, 2
      %v755 = vadd.f32 %v753, %v754
      %v756 = vrot.slane %v755, 1
      %v757 = vadd.f32 %v755, %v756
      %759 = vbcast.lane.b32.xlu0 %v736, 256
      %v760 = vpop.permute.xlu0 %759
      %762 = vbcast.lane.b32.xlu0 %v743, 256
      %v763 = vpop.permute.xlu0 %762
      %765 = vbcast.lane.b32.xlu0 %v750, 256
      %v766 = vpop.permute.xlu0 %765
      %768 = vbcast.lane.b32.xlu0 %v757, 256
      %v769 = vpop.permute.xlu0 %768
      %v770 = vmul.f32 %v584, %v760
      %v771 = vmul.f32 %v585, %v763
      %v772 = vmul.f32 %v586, %v766
      %v773 = vmul.f32 %v587, %v769
      %v774 = vsel %vm526, %v770, 0.0
      %v775 = vsel %vm526, %v771, 0.0
      %v776 = vadd.f32 %v774, %v775
      %v777 = vsel %vm526, %v772, 0.0
      %v778 = vadd.f32 %v776, %v777
      %v779 = vsel %vm526, %v773, 0.0
      %v780 = vadd.f32 %v778, %v779
      %v781 = vxor.u32 %v565, 2147483648
      %v782 = vmul.f32 %v781, 1.442695
      %v783 = vpow.pop %v782
      %v784 = vadd.f32 %v783, 1.0
      %v785 = vrcp.pop %v784
      %v786 = vmul.f32 1.0, %v785
      %v787 = vld [vmem:[%s434] sm:$0xf]
      %v788 = vunpack.c.l.bf16 %v787
      %v789 = vmul.f32 %v788, %v786
      %v790 = vsub.f32 1.0, %v786
      %v791 = vmul.f32 %v790, %v780
      %v792 = vadd.f32 %v789, %v791
      %v793 = vpack.c.bf16 %v792, %v792
      %vm794 = vcmask 125952
      %795 = vst.msk [vmem:[%s438] sm:$0xf] %vm794, %v793
      %p796 = scmp.lt.s32.totalorder %s20, 1
      %s797 = scalar_select %p796, %s20, 1
      %s798 = smul.addr %s797, 4
      %s799 = scalar_lea.vmem %s9, %s798
      // Predicated region
      $region57: #{closed_call.82} parent=55 // pred_check
        %p800 = pneg %p262
      $region58: #{closed_call.82} parent=55 // pred_check_branch
        %802 = sbr.rel (%p800) target = $region60
      $region59: #{closed_call.82} parent=55 // pred_region
        _
      $region60: #{closed_call.82} parent=55 // pred_fallthru
        _
    $region56: #{closed_call.82} parent=5 // pred_fallthru
      _
    %p803 = scmp.le.s32.totalorder 2, %s15
    // Predicated region
    $region61: #{closed_call.82} parent=5 // pred_check
      %p804 = pneg %p803
    $region62: #{closed_call.82} parent=5 // pred_check_branch
      %806 = sbr.rel (%p804) target = $region64
    $region63: #{closed_call.82} parent=5 // pred_region
      %s807 = ssub.s32 %s15, 2
      // Predicated region
      $region65: #{closed_call.82} parent=63 // pred_check
        %p808 = pneg %p268
      $region66: #{closed_call.82} parent=63 // pred_check_branch
        %810 = sbr.rel (%p808) target = $region68
      $region67: #{closed_call.82} parent=63 // pred_region
        %p811 = scmp.lt.s32.totalorder %s21, 1
        %s812 = scalar_select %p811, %s21, 1
        %s813 = smul.addr %s812, 4
        %s814 = scalar_lea.vmem %s9, %s813
      $region68: #{closed_call.82} parent=63 // pred_fallthru
        _
    $region64: #{closed_call.82} parent=5 // pred_fallthru
      _
  $region6: #{closed_call.82} parent=0 // loop_footer
    %s19 = sadd.s32 1, %s15
  $region7: #{closed_call.82} parent=0 // loop_footer_branch
    %14 = sbr.rel target = $region3
  $region8: #{closed_call.82} parent=0 // loop_exit
    _

// kernel: closed_call.83
$region0: #{closed_call.83}
  #allocation0 [shape = 'u32[]', space=smem, size = 0x4, offset = 0x4, fixed_abs, tag = 'smem constant byte address 0x4 - core index']
  #allocation1 [shape = 'u32[144,128]{1,0:T(1,128)}', space=vmem, size = 0x12000, scoped, tag = 'internal scratch']
  %s0 = inlined_call_operand.vmem [shape: bf16[2,8,144], index: 0, kind: input, shape index: {}]
  %s1 = inlined_call_operand.vmem [shape: bf16[2,144,48], index: 1, kind: input, shape index: {}]
  %s2 = inlined_call_operand.vmem [shape: f32[2,1,48], index: 2, kind: input, shape index: {}]
  %s3 = inlined_call_operand.vmem [shape: bf16[2,8,64], index: 3, kind: input, shape index: {}]
  %s4 = inlined_call_operand.vmem [shape: bf16[2,8,16], index: 4, kind: input, shape index: {}]
  %s5 = inlined_call_operand.vmem [shape: bf16[2,8,16], index: 5, kind: output, shape index: {0}]
  %s6 = inlined_call_operand.vmem [shape: bf16[2,8,16], index: 6, kind: output, shape index: {1}]
  %7 = xla_tuple %s5, %s6
  %s8 = sld [smem:[#allocation0]]
  $region61: #{closed_call.83} parent=0
    _
  %s10 = ssub.s32 1, %s8
  %s11 = scalar_select 0, %s10, %s8
  loop: start=0, step=1, limit=4
  $region2: #{closed_call.83} parent=0 // loop_pre_header
    _
  $region3: #{closed_call.83} parent=0 // loop_header
    %s13 = sphi 0, %s17
    %p14 = scmp.ge.s32.totalorder %s13, 4
    %s20 = sphi 0, %s32
    %s21 = sphi 0, %s28
    %s22 = sphi 0, %s20
    %s23 = sphi 0, %s21
    %s24 = sphi 0, %s22
    %s25 = sphi 0, %s23
    %s37 = sphi 0, %s39
    %s40 = sphi 0, %s37
    %s41 = sphi 0, %s40
    %s57 = sphi 0, %s41
    %s63 = sphi 0, %s65
    %s66 = sphi 0, %s63
    %s67 = sphi 0, %s66
    %s83 = sphi 0, %s67
    %s89 = sphi 0, %s91
    %s92 = sphi 0, %s89
    %s93 = sphi 0, %s92
    %s109 = sphi 0, %s93
    %s117 = sphi 0, %s119
    %s120 = sphi 0, %s117
    %s121 = sphi 0, %s120
    %s137 = sphi 0, %s121
    %s145 = sphi 0, %s147
    %s148 = sphi 0, %s145
    %s149 = sphi 0, %s148
    %s165 = sphi 0, %s149
    %s173 = sphi 0, %s175
    %s176 = sphi 0, %s173
    %s177 = sphi 0, %s176
    %s193 = sphi 0, %s177
    %s201 = sphi 0, %s203
    %s204 = sphi 0, %s201
    %s205 = sphi 0, %s204
    %s221 = sphi 0, %s205
  $region4: #{closed_call.83} parent=0 // loop_header_branch
    %16 = sbr.rel (%p14) target = $region8
  $region5: #{closed_call.83} parent=0 // loop_body
    %s18 = ssub.s32 %s13, 1
    %s19 = ssub.s32 %s13, 2
    %s26 = sadd.s32 1, %s21
    %p27 = scmp.ge.s32.totalorder %s26, 1
    %s28 = scalar_select %p27, 0, %s26
    %s29 = sadd.s32 1, %s20
    %s30 = scalar_select %p27, %s29, %s20
    %p31 = scmp.ge.s32.totalorder %s30, 2
    %s32 = scalar_select %p31, 0, %s30
    %s33 = ssub.s32 %s20, %s32
    %s34 = ssub.s32 %s21, %s28
    %s35 = sor.u32 %s33, %s34
    %p36 = scmp.eq.s32.totalorder %s35, 0
    %s38 = sadd.s32 %s37, 1
    %s39 = scalar_select %p36, %s37, %s38
    %p42 = pneg %p36
    %p43 = scmp.eq.s32.totalorder %s13, 1
    %p44 = por %p42, %p43
    %p45 = scmp.ne.s32.totalorder %s37, %s40
    %p46 = scmp.eq.s32.totalorder %s13, 0
    %p47 = por %p45, %p46
    %p48 = scmp.ne.s32.totalorder %s37, %s40
    %p49 = scmp.eq.s32.totalorder %s18, 1
    %p50 = por %p48, %p49
    %p51 = scmp.ne.s32.totalorder %s40, %s41
    %p52 = scmp.eq.s32.totalorder %s18, 0
    %p53 = por %p51, %p52
    %p54 = scmp.ne.s32.totalorder %s40, %s41
    %p55 = scmp.eq.s32.totalorder %s19, 1
    %p56 = por %p54, %p55
    %p58 = scmp.ne.s32.totalorder %s41, %s57
    %p59 = scmp.eq.s32.totalorder %s19, 0
    %p60 = por %p58, %p59
    %s61 = ssub.s32 %s20, %s32
    %p62 = scmp.eq.s32.totalorder %s61, 0
    %s64 = sadd.s32 %s63, 1
    %s65 = scalar_select %p62, %s63, %s64
    %p68 = pneg %p62
    %p69 = scmp.eq.s32.totalorder %s13, 1
    %p70 = por %p68, %p69
    %p71 = scmp.ne.s32.totalorder %s63, %s66
    %p72 = scmp.eq.s32.totalorder %s13, 0
    %p73 = por %p71, %p72
    %p74 = scmp.ne.s32.totalorder %s63, %s66
    %p75 = scmp.eq.s32.totalorder %s18, 1
    %p76 = por %p74, %p75
    %p77 = scmp.ne.s32.totalorder %s66, %s67
    %p78 = scmp.eq.s32.totalorder %s18, 0
    %p79 = por %p77, %p78
    %p80 = scmp.ne.s32.totalorder %s66, %s67
    %p81 = scmp.eq.s32.totalorder %s19, 1
    %p82 = por %p80, %p81
    %p84 = scmp.ne.s32.totalorder %s67, %s83
    %p85 = scmp.eq.s32.totalorder %s19, 0
    %p86 = por %p84, %p85
    %s87 = ssub.s32 %s20, %s32
    %p88 = scmp.eq.s32.totalorder %s87, 0
    %s90 = sadd.s32 %s89, 1
    %s91 = scalar_select %p88, %s89, %s90
    %p94 = pneg %p88
    %p95 = scmp.eq.s32.totalorder %s13, 1
    %p96 = por %p94, %p95
    %p97 = scmp.ne.s32.totalorder %s89, %s92
    %p98 = scmp.eq.s32.totalorder %s13, 0
    %p99 = por %p97, %p98
    %p100 = scmp.ne.s32.totalorder %s89, %s92
    %p101 = scmp.eq.s32.totalorder %s18, 1
    %p102 = por %p100, %p101
    %p103 = scmp.ne.s32.totalorder %s92, %s93
    %p104 = scmp.eq.s32.totalorder %s18, 0
    %p105 = por %p103, %p104
    %p106 = scmp.ne.s32.totalorder %s92, %s93
    %p107 = scmp.eq.s32.totalorder %s19, 1
    %p108 = por %p106, %p107
    %p110 = scmp.ne.s32.totalorder %s93, %s109
    %p111 = scmp.eq.s32.totalorder %s19, 0
    %p112 = por %p110, %p111
    %s113 = ssub.s32 %s20, %s32
    %s114 = ssub.s32 %s21, %s28
    %s115 = sor.u32 %s113, %s114
    %p116 = scmp.eq.s32.totalorder %s115, 0
    %s118 = sadd.s32 %s117, 1
    %s119 = scalar_select %p116, %s117, %s118
    %p122 = pneg %p116
    %p123 = scmp.eq.s32.totalorder %s13, 1
    %p124 = por %p122, %p123
    %p125 = scmp.ne.s32.totalorder %s117, %s120
    %p126 = scmp.eq.s32.totalorder %s13, 0
    %p127 = por %p125, %p126
    %p128 = scmp.ne.s32.totalorder %s117, %s120
    %p129 = scmp.eq.s32.totalorder %s18, 1
    %p130 = por %p128, %p129
    %p131 = scmp.ne.s32.totalorder %s120, %s121
    %p132 = scmp.eq.s32.totalorder %s18, 0
    %p133 = por %p131, %p132
    %p134 = scmp.ne.s32.totalorder %s120, %s121
    %p135 = scmp.eq.s32.totalorder %s19, 1
    %p136 = por %p134, %p135
    %p138 = scmp.ne.s32.totalorder %s121, %s137
    %p139 = scmp.eq.s32.totalorder %s19, 0
    %p140 = por %p138, %p139
    %s141 = ssub.s32 %s20, %s32
    %s142 = ssub.s32 %s21, %s28
    %s143 = sor.u32 %s141, %s142
    %p144 = scmp.eq.s32.totalorder %s143, 0
    %s146 = sadd.s32 %s145, 1
    %s147 = scalar_select %p144, %s145, %s146
    %p150 = pneg %p144
    %p151 = scmp.eq.s32.totalorder %s13, 1
    %p152 = por %p150, %p151
    %p153 = scmp.ne.s32.totalorder %s145, %s148
    %p154 = scmp.eq.s32.totalorder %s13, 0
    %p155 = por %p153, %p154
    %p156 = scmp.ne.s32.totalorder %s145, %s148
    %p157 = scmp.eq.s32.totalorder %s18, 1
    %p158 = por %p156, %p157
    %p159 = scmp.ne.s32.totalorder %s148, %s149
    %p160 = scmp.eq.s32.totalorder %s18, 0
    %p161 = por %p159, %p160
    %p162 = scmp.ne.s32.totalorder %s148, %s149
    %p163 = scmp.eq.s32.totalorder %s19, 1
    %p164 = por %p162, %p163
    %p166 = scmp.ne.s32.totalorder %s149, %s165
    %p167 = scmp.eq.s32.totalorder %s19, 0
    %p168 = por %p166, %p167
    %s169 = ssub.s32 %s20, %s32
    %s170 = ssub.s32 %s21, %s28
    %s171 = sor.u32 %s169, %s170
    %p172 = scmp.eq.s32.totalorder %s171, 0
    %s174 = sadd.s32 %s173, 1
    %s175 = scalar_select %p172, %s173, %s174
    %p178 = pneg %p172
    %p179 = scmp.eq.s32.totalorder %s13, 1
    %p180 = por %p178, %p179
    %p181 = scmp.ne.s32.totalorder %s173, %s176
    %p182 = scmp.eq.s32.totalorder %s13, 0
    %p183 = por %p181, %p182
    %p184 = scmp.ne.s32.totalorder %s173, %s176
    %p185 = scmp.eq.s32.totalorder %s18, 1
    %p186 = por %p184, %p185
    %p187 = scmp.ne.s32.totalorder %s176, %s177
    %p188 = scmp.eq.s32.totalorder %s18, 0
    %p189 = por %p187, %p188
    %p190 = scmp.ne.s32.totalorder %s176, %s177
    %p191 = scmp.eq.s32.totalorder %s19, 1
    %p192 = por %p190, %p191
    %p194 = scmp.ne.s32.totalorder %s177, %s193
    %p195 = scmp.eq.s32.totalorder %s19, 0
    %p196 = por %p194, %p195
    %s197 = ssub.s32 %s20, %s32
    %s198 = ssub.s32 %s21, %s28
    %s199 = sor.u32 %s197, %s198
    %p200 = scmp.eq.s32.totalorder %s199, 0
    %s202 = sadd.s32 %s201, 1
    %s203 = scalar_select %p200, %s201, %s202
    %p206 = pneg %p200
    %p207 = scmp.eq.s32.totalorder %s13, 1
    %p208 = por %p206, %p207
    %p209 = scmp.ne.s32.totalorder %s201, %s204
    %p210 = scmp.eq.s32.totalorder %s13, 0
    %p211 = por %p209, %p210
    %p212 = scmp.ne.s32.totalorder %s201, %s204
    %p213 = scmp.eq.s32.totalorder %s18, 1
    %p214 = por %p212, %p213
    %p215 = scmp.ne.s32.totalorder %s204, %s205
    %p216 = scmp.eq.s32.totalorder %s18, 0
    %p217 = por %p215, %p216
    %p218 = scmp.ne.s32.totalorder %s204, %s205
    %p219 = scmp.eq.s32.totalorder %s19, 1
    %p220 = por %p218, %p219
    %p222 = scmp.ne.s32.totalorder %s205, %s221
    %p223 = scmp.eq.s32.totalorder %s19, 0
    %p224 = por %p222, %p223
    %p225 = scmp.le.s32.totalorder 1, %s13
    %p226 = scmp.lt.s32.totalorder %s13, 3
    %p227 = pnand %p225, %p226
    %p228 = pneg %p227
    // Predicated region
    $region9: #{closed_call.83} parent=5 // pred_check
      _
    $region10: #{closed_call.83} parent=5 // pred_check_branch
      %230 = sbr.rel (%p227) target = $region12
    $region11: #{closed_call.83} parent=5 // pred_region
      %s231 = ssub.s32 %s13, 1
    $region12: #{closed_call.83} parent=5 // pred_fallthru
      _
    %p232 = scmp.lt.s32.totalorder %s13, 2
    // Predicated region
    $region13: #{closed_call.83} parent=5 // pred_check
      %p233 = pneg %p232
    $region14: #{closed_call.83} parent=5 // pred_check_branch
      %235 = sbr.rel (%p233) target = $region16
    $region15: #{closed_call.83} parent=5 // pred_region
      // Predicated region
      $region17: #{closed_call.83} parent=15 // pred_check
        %p236 = pneg %p47
      $region18: #{closed_call.83} parent=15 // pred_check_branch
        %238 = sbr.rel (%p236) target = $region20
      $region19: #{closed_call.83} parent=15 // pred_region
        %p239 = scmp.lt.s32.totalorder %s20, 1
        %s240 = scalar_select %p239, %s20, 1
        %p241 = scmp.lt.s32.totalorder %s21, 0
        %s242 = scalar_select %p241, %s21, 0
        %s243 = smul.addr %s242, 2
        %s244 = smul.addr %s240, 2
        %s245 = sadd.s32 %s243, %s244
        %s246 = smul.addr %s245, 4
        %s247 = scalar_lea.vmem %s0, %s246
      $region20: #{closed_call.83} parent=15 // pred_fallthru
        _
      // Predicated region
      $region21: #{closed_call.83} parent=15 // pred_check
        %p248 = pneg %p73
      $region22: #{closed_call.83} parent=15 // pred_check_branch
        %250 = sbr.rel (%p248) target = $region24
      $region23: #{closed_call.83} parent=15 // pred_region
        %p251 = scmp.lt.s32.totalorder %s20, 1
        %s252 = scalar_select %p251, %s20, 1
        %s253 = smul.addr %s252, 18
        %s254 = smul.addr %s253, 4
        %s255 = scalar_lea.vmem %s1, %s254
      $region24: #{closed_call.83} parent=15 // pred_fallthru
        _
      // Predicated region
      $region25: #{closed_call.83} parent=15 // pred_check
        %p256 = pneg %p99
      $region26: #{closed_call.83} parent=15 // pred_check_branch
        %258 = sbr.rel (%p256) target = $region28
      $region27: #{closed_call.83} parent=15 // pred_region
        %p259 = scmp.lt.s32.totalorder %s20, 1
        %s260 = scalar_select %p259, %s20, 1
        %s261 = scalar_lea.vmem %s2, %s260
      $region28: #{closed_call.83} parent=15 // pred_fallthru
        _
      // Predicated region
      $region29: #{closed_call.83} parent=15 // pred_check
        %p262 = pneg %p127
      $region30: #{closed_call.83} parent=15 // pred_check_branch
        %264 = sbr.rel (%p262) target = $region32
      $region31: #{closed_call.83} parent=15 // pred_region
        %p265 = scmp.lt.s32.totalorder %s20, 1
        %s266 = scalar_select %p265, %s20, 1
        %p267 = scmp.lt.s32.totalorder %s21, 0
        %s268 = scalar_select %p267, %s21, 0
        %s269 = sadd.s32 %s268, %s266
        %s270 = smul.addr %s269, 4
        %s271 = scalar_lea.vmem %s3, %s270
      $region32: #{closed_call.83} parent=15 // pred_fallthru
        _
      // Predicated region
      $region33: #{closed_call.83} parent=15 // pred_check
        %p272 = pneg %p155
      $region34: #{closed_call.83} parent=15 // pred_check_branch
        %274 = sbr.rel (%p272) target = $region36
      $region35: #{closed_call.83} parent=15 // pred_region
        %p275 = scmp.lt.s32.totalorder %s20, 1
        %s276 = scalar_select %p275, %s20, 1
        %p277 = scmp.lt.s32.totalorder %s21, 0
        %s278 = scalar_select %p277, %s21, 0
        %s279 = sadd.s32 %s278, %s276
        %s280 = smul.addr %s279, 4
        %s281 = scalar_lea.vmem %s4, %s280
      $region36: #{closed_call.83} parent=15 // pred_fallthru
        _
    $region16: #{closed_call.83} parent=5 // pred_fallthru
      _
    %p282 = scmp.le.s32.totalorder 1, %s13
    %p283 = scmp.lt.s32.totalorder %s13, 3
    %p284 = pnand %p282, %p283
    %p285 = pneg %p284
    // Predicated region
    $region37: #{closed_call.83} parent=5 // pred_check
      _
    $region38: #{closed_call.83} parent=5 // pred_check_branch
      %287 = sbr.rel (%p284) target = $region40
    $region39: #{closed_call.83} parent=5 // pred_region
      %s288 = ssub.s32 %s13, 1
      %p289 = scmp.lt.s32.totalorder %s22, 1
      %s290 = scalar_select %p289, %s22, 1
      %p291 = scmp.lt.s32.totalorder %s23, 0
      %s292 = scalar_select %p291, %s23, 0
      %s293 = smul.addr %s292, 2
      %s294 = smul.addr %s290, 2
      %s295 = sadd.s32 %s293, %s294
      %s296 = smul.addr %s295, 4
      %s297 = scalar_lea.vmem %s0, %s296
      %p298 = pneg %p53
      %p299 = pneg %p50
      %p300 = scmp.lt.s32.totalorder %s22, 1
      %s301 = scalar_select %p300, %s22, 1
      %s302 = smul.addr %s301, 18
      %s303 = smul.addr %s302, 4
      %s304 = scalar_lea.vmem %s1, %s303
      %p305 = pneg %p79
      %p306 = pneg %p76
      %p307 = scmp.lt.s32.totalorder %s22, 1
      %s308 = scalar_select %p307, %s22, 1
      %s309 = scalar_lea.vmem %s2, %s308
      %p310 = pneg %p105
      %p311 = pneg %p102
      %p312 = scmp.lt.s32.totalorder %s22, 1
      %s313 = scalar_select %p312, %s22, 1
      %p314 = scmp.lt.s32.totalorder %s23, 0
      %s315 = scalar_select %p314, %s23, 0
      %s316 = sadd.s32 %s315, %s313
      %s317 = smul.addr %s316, 4
      %s318 = scalar_lea.vmem %s3, %s317
      %p319 = pneg %p133
      %p320 = pneg %p130
      %p321 = scmp.lt.s32.totalorder %s22, 1
      %s322 = scalar_select %p321, %s22, 1
      %p323 = scmp.lt.s32.totalorder %s23, 0
      %s324 = scalar_select %p323, %s23, 0
      %s325 = sadd.s32 %s324, %s322
      %s326 = smul.addr %s325, 4
      %s327 = scalar_lea.vmem %s4, %s326
      %p328 = pneg %p161
      %p329 = pneg %p158
      %p330 = pneg %p189
      %p331 = pneg %p186
      %p332 = scmp.lt.s32.totalorder %s22, 1
      %s333 = scalar_select %p332, %s22, 1
      %p334 = scmp.lt.s32.totalorder %s23, 0
      %s335 = scalar_select %p334, %s23, 0
      %s336 = sadd.s32 %s335, %s333
      %s337 = smul.addr %s336, 4
      %s338 = scalar_lea.vmem %s5, %s337
      %p339 = pneg %p217
      %p340 = pneg %p214
      %p341 = scmp.lt.s32.totalorder %s22, 1
      %s342 = scalar_select %p341, %s22, 1
      %p343 = scmp.lt.s32.totalorder %s23, 0
      %s344 = scalar_select %p343, %s23, 0
      %s345 = sadd.s32 %s344, %s342
      %s346 = smul.addr %s345, 4
      %s347 = scalar_lea.vmem %s6, %s346
      %p348 = scmp.lt.s32.totalorder %s22, 1
      %s349 = scalar_select %p348, %s22, 1
      %p350 = scmp.lt.s32.totalorder %s23, 0
      %s351 = scalar_select %p350, %s23, 0
      %s352 = smul.addr %s351, 2
      %s353 = smul.addr %s349, 2
      %s354 = sadd.s32 %s352, %s353
      %s355 = smul.addr %s354, 4
      %s356 = scalar_lea.vmem %s0, %s355
      %p357 = scmp.lt.s32.totalorder %s22, 1
      %s358 = scalar_select %p357, %s22, 1
      %s359 = smul.addr %s358, 18
      %s360 = smul.addr %s359, 4
      %s361 = scalar_lea.vmem %s1, %s360
      %p362 = scmp.lt.s32.totalorder %s22, 1
      %s363 = scalar_select %p362, %s22, 1
      %s364 = scalar_lea.vmem %s2, %s363
      %p365 = scmp.lt.s32.totalorder %s22, 1
      %s366 = scalar_select %p365, %s22, 1
      %p367 = scmp.lt.s32.totalorder %s23, 0
      %s368 = scalar_select %p367, %s23, 0
      %s369 = sadd.s32 %s368, %s366
      %s370 = smul.addr %s369, 4
      %s371 = scalar_lea.vmem %s3, %s370
      %p372 = scmp.lt.s32.totalorder %s22, 1
      %s373 = scalar_select %p372, %s22, 1
      %p374 = scmp.lt.s32.totalorder %s23, 0
      %s375 = scalar_select %p374, %s23, 0
      %s376 = sadd.s32 %s375, %s373
      %s377 = smul.addr %s376, 4
      %s378 = scalar_lea.vmem %s4, %s377
      %p379 = scmp.lt.s32.totalorder %s22, 1
      %s380 = scalar_select %p379, %s22, 1
      %p381 = scmp.lt.s32.totalorder %s23, 0
      %s382 = scalar_select %p381, %s23, 0
      %s383 = sadd.s32 %s382, %s380
      %s384 = smul.addr %s383, 4
      %s385 = scalar_lea.vmem %s5, %s384
      %p386 = scmp.lt.s32.totalorder %s22, 1
      %s387 = scalar_select %p386, %s22, 1
      %p388 = scmp.lt.s32.totalorder %s23, 0
      %s389 = scalar_select %p388, %s23, 0
      %s390 = sadd.s32 %s389, %s387
      %s391 = smul.addr %s390, 4
      %s392 = scalar_lea.vmem %s6, %s391
      %v394 = vld [vmem:[%s356] sm:$0xff]
      %v395 = vld [vmem:[%s361] sm:$0xf]
      %v396 = vld [vmem:[%s361 + $0x4] sm:$0xf]
      %v397 = vld [vmem:[%s361 + $0x8] sm:$0xf]
      %v398 = vld [vmem:[%s361 + $0xc] sm:$0xf]
      %v399 = vld [vmem:[%s361 + $0x10] sm:$0xf]
      %v400 = vld [vmem:[%s361 + $0x14] sm:$0xf]
      %v401 = vld [vmem:[%s361 + $0x18] sm:$0xf]
      %v402 = vld [vmem:[%s361 + $0x1c] sm:$0xf]
      %v403 = vld [vmem:[%s361 + $0x20] sm:$0xf]
      %v404 = vld [vmem:[%s361 + $0x24] sm:$0xf]
      %v405 = vld [vmem:[%s361 + $0x28] sm:$0xf]
      %v406 = vld [vmem:[%s361 + $0x2c] sm:$0xf]
      %v407 = vld [vmem:[%s361 + $0x30] sm:$0xf]
      %v408 = vld [vmem:[%s361 + $0x34] sm:$0xf]
      %v409 = vld [vmem:[%s361 + $0x38] sm:$0xf]
      %v410 = vld [vmem:[%s361 + $0x3c] sm:$0xf]
      %v411 = vld [vmem:[%s361 + $0x40] sm:$0xf]
      %v412 = vld [vmem:[%s361 + $0x44] sm:$0xf]
      %v413 = vld [vmem:[%s364] sm:$0x1]
      %v415 = vlaneseq
      %v416 = vshrl.u32 %v415, 7
      %v417 = vsub.s32 0, %v416
      %v418 = vrot.slane %v413, %v417
      %v421 = vunpack.c.l.b16 %v394
      %v422 = vunpack.c.h.b16 %v394
      %v423 = vpack.c.b16 %v421, %v421
      %v424 = vpack.c.b16 %v422, %v422
      %v444 = vunpack.c.l.b16 %v395
      %v445 = vunpack.c.l.b16 %v396
      %v446 = vunpack.c.l.b16 %v397
      %v447 = vunpack.c.l.b16 %v398
      %v448 = vunpack.c.l.b16 %v399
      %v449 = vunpack.c.l.b16 %v400
      %v450 = vunpack.c.l.b16 %v401
      %v451 = vunpack.c.l.b16 %v402
      %v452 = vunpack.c.l.b16 %v403
      %v453 = vunpack.c.l.b16 %v404
      %v454 = vunpack.c.l.b16 %v405
      %v455 = vunpack.c.l.b16 %v406
      %v456 = vunpack.c.l.b16 %v407
      %v457 = vunpack.c.l.b16 %v408
      %v458 = vunpack.c.l.b16 %v409
      %v459 = vunpack.c.l.b16 %v410
      %v460 = vunpack.c.l.b16 %v411
      %v461 = vunpack.c.l.b16 %v412
      %v462 = vpack.c.b16 %v445, %v444
      %v463 = vpack.c.b16 %v447, %v446
      %v464 = vpack.c.b16 %v449, %v448
      %v465 = vpack.c.b16 %v451, %v450
      %v466 = vpack.c.b16 %v453, %v452
      %v467 = vpack.c.b16 %v455, %v454
      %v468 = vpack.c.b16 %v457, %v456
      %v469 = vpack.c.b16 %v459, %v458
      %v470 = vpack.c.b16 %v461, %v460
      %vm480 = vcmask 130048
      %v482 = vsel %vm480, %v424, 0
      %484 = vmatprep.subr.bf16.mxu0 0
      %485 = vmatpush1.bf16.msra.mxu0 %v462
      %486 = vmatprep.subr.bf16.mxu0 0
      %487 = vmatpush1.bf16.msra.mxu0 %v463
      %488 = vmatprep.subr.bf16.mxu0 0
      %489 = vmatpush1.bf16.msra.mxu0 %v464
      %490 = vmatprep.subr.bf16.mxu0 0
      %491 = vmatpush1.bf16.msra.mxu0 %v465
      %492 = vmatprep.subr.bf16.mxu0 0
      %493 = vmatpush1.bf16.msra.mxu0 %v466
      %494 = vmatprep.subr.bf16.mxu0 0
      %495 = vmatpush1.bf16.msra.mxu0 %v467
      %496 = vmatprep.subr.bf16.mxu0 0
      %497 = vmatpush1.bf16.msra.mxu0 %v468
      %498 = vmatprep.subr.bf16.mxu0 0
      %499 = vmatpush1.bf16.msra.mxu0 %v469
      %500 = vmatprep.subr.bf16.mxu0 0
      %501 = vmatpush1.bf16.msra.mxu0 %v470
      %502 = vmatprep.subr.bf16.mxu0 0
      %503 = vmatpush1.bf16.msra.mxu0 0
      %504 = vmatprep.subr.bf16.mxu0 0
      %505 = vmatpush1.bf16.msra.mxu0 0
      %506 = vmatprep.subr.bf16.mxu0 0
      %507 = vmatpush1.bf16.msra.mxu0 0
      %508 = vmatprep.subr.bf16.mxu0 0
      %509 = vmatpush1.bf16.msra.mxu0 0
      %510 = vmatprep.subr.bf16.mxu0 0
      %511 = vmatpush1.bf16.msra.mxu0 0
      %512 = vmatprep.subr.bf16.mxu0 0
      %513 = vmatpush1.bf16.msra.mxu0 0
      %514 = vmatprep.subr.bf16.mxu0 0
      %515 = vmatpush1.bf16.msra.mxu0 0
      %516 = vmatprep.mubr.bf16.mxu0 %v482
      %517 = vmatmul.mubr.bf16.gmra.mrb[0].mxu0 %v423
      %v518 = vpop.f32.mrb[0].mxu0
      %v519 = vadd.f32 %v418, %v518
      %v520 = vpop.f32.mrb[0].mxu0
      %v521 = vpop.f32.mrb[0].mxu0
      %v522 = vpop.f32.mrb[0].mxu0
      %523 = vdwg.mxu0
      %v524 = vld [vmem:[%s371] sm:$0xf]
      %v525 = vunpack.c.l.bf16 %v524
      %v526 = vxor.u32 %v519, 2147483648
      %v527 = vmul.f32 %v526, 1.442695
      %v528 = vpow.pop %v527
      %v529 = vadd.f32 %v528, 1.0
      %v530 = vrcp.pop %v529
      %v531 = vmul.f32 1.0, %v530
      %v532 = vxor.u32 %v525, 2147483648
      %v533 = vmul.f32 %v532, 1.442695
      %v534 = vpow.pop %v533
      %v535 = vadd.f32 %v534, 1.0
      %v536 = vrcp.pop %v535
      %v537 = vmul.f32 1.0, %v536
      %539 = vrot.lane.b32.xlu0 %v519, 112
      %v540 = vpop.permute.xlu0 %539
      %v542 = vmul.f32 %v531, %v540
      %v543 = vsub.f32 1.0, %v531
      %545 = vrot.lane.b32.xlu0 %v525, 112
      %v546 = vpop.permute.xlu0 %545
      %v548 = vmul.f32 %v543, %v546
      %v549 = vadd.f32 %v542, %v548
      %v550 = vpack.c.bf16 %v549, %v549
      %vm551 = vcmask 125952
      %552 = vst.msk [vmem:[%s385] sm:$0xf] %vm551, %v550
      %553 = vrot.lane.b32.xlu0 %v525, 96
      %v554 = vpop.permute.xlu0 %553
      %v556 = vmul.f32 %v537, %v554
      %v557 = vsub.f32 1.0, %v537
      %558 = vrot.lane.b32.xlu0 %v519, 96
      %v559 = vpop.permute.xlu0 %558
      %v561 = vmul.f32 %v557, %v559
      %v562 = vadd.f32 %v556, %v561
      %v563 = vld [vmem:[%s378] sm:$0xf]
      %v564 = vunpack.c.l.bf16 %v563
      %v565 = vadd.f32 %v562, %v564
      %v566 = vpack.c.bf16 %v565, %v565
      %567 = vst.msk [vmem:[%s392] sm:$0xf] %vm551, %v566
      %p568 = scmp.lt.s32.totalorder %s22, 1
      %s569 = scalar_select %p568, %s22, 1
      %p570 = scmp.lt.s32.totalorder %s23, 0
      %s571 = scalar_select %p570, %s23, 0
      %s572 = sadd.s32 %s571, %s569
      %s573 = smul.addr %s572, 4
      %s574 = scalar_lea.vmem %s5, %s573
      %p575 = scmp.lt.s32.totalorder %s22, 1
      %s576 = scalar_select %p575, %s22, 1
      %p577 = scmp.lt.s32.totalorder %s23, 0
      %s578 = scalar_select %p577, %s23, 0
      %s579 = sadd.s32 %s578, %s576
      %s580 = smul.addr %s579, 4
      %s581 = scalar_lea.vmem %s6, %s580
      // Predicated region
      $region41: #{closed_call.83} parent=39 // pred_check
        %p582 = pneg %p186
      $region42: #{closed_call.83} parent=39 // pred_check_branch
        %584 = sbr.rel (%p582) target = $region44
      $region43: #{closed_call.83} parent=39 // pred_region
        _
      $region44: #{closed_call.83} parent=39 // pred_fallthru
        _
      // Predicated region
      $region45: #{closed_call.83} parent=39 // pred_check
        %p585 = pneg %p214
      $region46: #{closed_call.83} parent=39 // pred_check_branch
        %587 = sbr.rel (%p585) target = $region48
      $region47: #{closed_call.83} parent=39 // pred_region
        _
      $region48: #{closed_call.83} parent=39 // pred_fallthru
        _
    $region40: #{closed_call.83} parent=5 // pred_fallthru
      _
    %p588 = scmp.le.s32.totalorder 2, %s13
    // Predicated region
    $region49: #{closed_call.83} parent=5 // pred_check
      %p589 = pneg %p588
    $region50: #{closed_call.83} parent=5 // pred_check_branch
      %591 = sbr.rel (%p589) target = $region52
    $region51: #{closed_call.83} parent=5 // pred_region
      %s592 = ssub.s32 %s13, 2
      // Predicated region
      $region53: #{closed_call.83} parent=51 // pred_check
        %p593 = pneg %p192
      $region54: #{closed_call.83} parent=51 // pred_check_branch
        %595 = sbr.rel (%p593) target = $region56
      $region55: #{closed_call.83} parent=51 // pred_region
        %p596 = scmp.lt.s32.totalorder %s24, 1
        %s597 = scalar_select %p596, %s24, 1
        %p598 = scmp.lt.s32.totalorder %s25, 0
        %s599 = scalar_select %p598, %s25, 0
        %s600 = sadd.s32 %s599, %s597
        %s601 = smul.addr %s600, 4
        %s602 = scalar_lea.vmem %s5, %s601
      $region56: #{closed_call.83} parent=51 // pred_fallthru
        _
      // Predicated region
      $region57: #{closed_call.83} parent=51 // pred_check
        %p603 = pneg %p220
      $region58: #{closed_call.83} parent=51 // pred_check_branch
        %605 = sbr.rel (%p603) target = $region60
      $region59: #{closed_call.83} parent=51 // pred_region
        %p606 = scmp.lt.s32.totalorder %s24, 1
        %s607 = scalar_select %p606, %s24, 1
        %p608 = scmp.lt.s32.totalorder %s25, 0
        %s609 = scalar_select %p608, %s25, 0
        %s610 = sadd.s32 %s609, %s607
        %s611 = smul.addr %s610, 4
        %s612 = scalar_lea.vmem %s6, %s611
      $region60: #{closed_call.83} parent=51 // pred_fallthru
        _
    $region52: #{closed_call.83} parent=5 // pred_fallthru
      _
  $region6: #{closed_call.83} parent=0 // loop_footer
    %s17 = sadd.s32 1, %s13
  $region7: #{closed_call.83} parent=0 // loop_footer_branch
    %12 = sbr.rel target = $region3
  $region8: #{closed_call.83} parent=0 // loop_exit
    _

// kernel: mstau_pred_forward.4
$region0: #{mstau_pred_forward.4}
  #allocation0 [shape = 'u32[]', space=smem, size = 0x4, offset = 0x4, fixed_abs, tag = 'smem constant byte address 0x4 - core index']
  #allocation1 [shape = 'u32[144,128]{1,0:T(1,128)}', space=vmem, size = 0x12000, scoped, tag = 'internal scratch']
  %s0 = inlined_call_operand.vmem [shape: bf16[2,8,64], index: 0, kind: input, shape index: {}]
  %s1 = inlined_call_operand.vmem [shape: bf16[2,64,64], index: 1, kind: input, shape index: {}]
  %s2 = inlined_call_operand.vmem [shape: f32[2,1,64], index: 2, kind: input, shape index: {}]
  %s3 = inlined_call_operand.vmem [shape: bf16[2,8,64], index: 3, kind: output, shape index: {}]
  %s4 = sld [smem:[#allocation0]]
  $region45: #{mstau_pred_forward.4} parent=0
    _
  %s6 = ssub.s32 1, %s4
  %s7 = scalar_select 0, %s6, %s4
  loop: start=0, step=1, limit=4
  $region2: #{mstau_pred_forward.4} parent=0 // loop_pre_header
    _
  $region3: #{mstau_pred_forward.4} parent=0 // loop_header
    %s9 = sphi 0, %s13
    %p10 = scmp.ge.s32.totalorder %s9, 4
    %s16 = sphi 0, %s28
    %s17 = sphi 0, %s24
    %s18 = sphi 0, %s16
    %s19 = sphi 0, %s17
    %s20 = sphi 0, %s18
    %s21 = sphi 0, %s19
    %s33 = sphi 0, %s35
    %s36 = sphi 0, %s33
    %s37 = sphi 0, %s36
    %s53 = sphi 0, %s37
    %s59 = sphi 0, %s61
    %s62 = sphi 0, %s59
    %s63 = sphi 0, %s62
    %s79 = sphi 0, %s63
    %s85 = sphi 0, %s87
    %s88 = sphi 0, %s85
    %s89 = sphi 0, %s88
    %s105 = sphi 0, %s89
    %s113 = sphi 0, %s115
    %s116 = sphi 0, %s113
    %s117 = sphi 0, %s116
    %s133 = sphi 0, %s117
  $region4: #{mstau_pred_forward.4} parent=0 // loop_header_branch
    %12 = sbr.rel (%p10) target = $region8
  $region5: #{mstau_pred_forward.4} parent=0 // loop_body
    %s14 = ssub.s32 %s9, 1
    %s15 = ssub.s32 %s9, 2
    %s22 = sadd.s32 1, %s17
    %p23 = scmp.ge.s32.totalorder %s22, 1
    %s24 = scalar_select %p23, 0, %s22
    %s25 = sadd.s32 1, %s16
    %s26 = scalar_select %p23, %s25, %s16
    %p27 = scmp.ge.s32.totalorder %s26, 2
    %s28 = scalar_select %p27, 0, %s26
    %s29 = ssub.s32 %s16, %s28
    %s30 = ssub.s32 %s17, %s24
    %s31 = sor.u32 %s29, %s30
    %p32 = scmp.eq.s32.totalorder %s31, 0
    %s34 = sadd.s32 %s33, 1
    %s35 = scalar_select %p32, %s33, %s34
    %p38 = pneg %p32
    %p39 = scmp.eq.s32.totalorder %s9, 1
    %p40 = por %p38, %p39
    %p41 = scmp.ne.s32.totalorder %s33, %s36
    %p42 = scmp.eq.s32.totalorder %s9, 0
    %p43 = por %p41, %p42
    %p44 = scmp.ne.s32.totalorder %s33, %s36
    %p45 = scmp.eq.s32.totalorder %s14, 1
    %p46 = por %p44, %p45
    %p47 = scmp.ne.s32.totalorder %s36, %s37
    %p48 = scmp.eq.s32.totalorder %s14, 0
    %p49 = por %p47, %p48
    %p50 = scmp.ne.s32.totalorder %s36, %s37
    %p51 = scmp.eq.s32.totalorder %s15, 1
    %p52 = por %p50, %p51
    %p54 = scmp.ne.s32.totalorder %s37, %s53
    %p55 = scmp.eq.s32.totalorder %s15, 0
    %p56 = por %p54, %p55
    %s57 = ssub.s32 %s16, %s28
    %p58 = scmp.eq.s32.totalorder %s57, 0
    %s60 = sadd.s32 %s59, 1
    %s61 = scalar_select %p58, %s59, %s60
    %p64 = pneg %p58
    %p65 = scmp.eq.s32.totalorder %s9, 1
    %p66 = por %p64, %p65
    %p67 = scmp.ne.s32.totalorder %s59, %s62
    %p68 = scmp.eq.s32.totalorder %s9, 0
    %p69 = por %p67, %p68
    %p70 = scmp.ne.s32.totalorder %s59, %s62
    %p71 = scmp.eq.s32.totalorder %s14, 1
    %p72 = por %p70, %p71
    %p73 = scmp.ne.s32.totalorder %s62, %s63
    %p74 = scmp.eq.s32.totalorder %s14, 0
    %p75 = por %p73, %p74
    %p76 = scmp.ne.s32.totalorder %s62, %s63
    %p77 = scmp.eq.s32.totalorder %s15, 1
    %p78 = por %p76, %p77
    %p80 = scmp.ne.s32.totalorder %s63, %s79
    %p81 = scmp.eq.s32.totalorder %s15, 0
    %p82 = por %p80, %p81
    %s83 = ssub.s32 %s16, %s28
    %p84 = scmp.eq.s32.totalorder %s83, 0
    %s86 = sadd.s32 %s85, 1
    %s87 = scalar_select %p84, %s85, %s86
    %p90 = pneg %p84
    %p91 = scmp.eq.s32.totalorder %s9, 1
    %p92 = por %p90, %p91
    %p93 = scmp.ne.s32.totalorder %s85, %s88
    %p94 = scmp.eq.s32.totalorder %s9, 0
    %p95 = por %p93, %p94
    %p96 = scmp.ne.s32.totalorder %s85, %s88
    %p97 = scmp.eq.s32.totalorder %s14, 1
    %p98 = por %p96, %p97
    %p99 = scmp.ne.s32.totalorder %s88, %s89
    %p100 = scmp.eq.s32.totalorder %s14, 0
    %p101 = por %p99, %p100
    %p102 = scmp.ne.s32.totalorder %s88, %s89
    %p103 = scmp.eq.s32.totalorder %s15, 1
    %p104 = por %p102, %p103
    %p106 = scmp.ne.s32.totalorder %s89, %s105
    %p107 = scmp.eq.s32.totalorder %s15, 0
    %p108 = por %p106, %p107
    %s109 = ssub.s32 %s16, %s28
    %s110 = ssub.s32 %s17, %s24
    %s111 = sor.u32 %s109, %s110
    %p112 = scmp.eq.s32.totalorder %s111, 0
    %s114 = sadd.s32 %s113, 1
    %s115 = scalar_select %p112, %s113, %s114
    %p118 = pneg %p112
    %p119 = scmp.eq.s32.totalorder %s9, 1
    %p120 = por %p118, %p119
    %p121 = scmp.ne.s32.totalorder %s113, %s116
    %p122 = scmp.eq.s32.totalorder %s9, 0
    %p123 = por %p121, %p122
    %p124 = scmp.ne.s32.totalorder %s113, %s116
    %p125 = scmp.eq.s32.totalorder %s14, 1
    %p126 = por %p124, %p125
    %p127 = scmp.ne.s32.totalorder %s116, %s117
    %p128 = scmp.eq.s32.totalorder %s14, 0
    %p129 = por %p127, %p128
    %p130 = scmp.ne.s32.totalorder %s116, %s117
    %p131 = scmp.eq.s32.totalorder %s15, 1
    %p132 = por %p130, %p131
    %p134 = scmp.ne.s32.totalorder %s117, %s133
    %p135 = scmp.eq.s32.totalorder %s15, 0
    %p136 = por %p134, %p135
    %p137 = scmp.le.s32.totalorder 1, %s9
    %p138 = scmp.lt.s32.totalorder %s9, 3
    %p139 = pnand %p137, %p138
    %p140 = pneg %p139
    // Predicated region
    $region9: #{mstau_pred_forward.4} parent=5 // pred_check
      _
    $region10: #{mstau_pred_forward.4} parent=5 // pred_check_branch
      %142 = sbr.rel (%p139) target = $region12
    $region11: #{mstau_pred_forward.4} parent=5 // pred_region
      %s143 = ssub.s32 %s9, 1
    $region12: #{mstau_pred_forward.4} parent=5 // pred_fallthru
      _
    %p144 = scmp.lt.s32.totalorder %s9, 2
    // Predicated region
    $region13: #{mstau_pred_forward.4} parent=5 // pred_check
      %p145 = pneg %p144
    $region14: #{mstau_pred_forward.4} parent=5 // pred_check_branch
      %147 = sbr.rel (%p145) target = $region16
    $region15: #{mstau_pred_forward.4} parent=5 // pred_region
      // Predicated region
      $region17: #{mstau_pred_forward.4} parent=15 // pred_check
        %p148 = pneg %p43
      $region18: #{mstau_pred_forward.4} parent=15 // pred_check_branch
        %150 = sbr.rel (%p148) target = $region20
      $region19: #{mstau_pred_forward.4} parent=15 // pred_region
        %p151 = scmp.lt.s32.totalorder %s16, 1
        %s152 = scalar_select %p151, %s16, 1
        %p153 = scmp.lt.s32.totalorder %s17, 0
        %s154 = scalar_select %p153, %s17, 0
        %s155 = sadd.s32 %s154, %s152
        %s156 = smul.addr %s155, 4
        %s157 = scalar_lea.vmem %s0, %s156
      $region20: #{mstau_pred_forward.4} parent=15 // pred_fallthru
        _
      // Predicated region
      $region21: #{mstau_pred_forward.4} parent=15 // pred_check
        %p158 = pneg %p69
      $region22: #{mstau_pred_forward.4} parent=15 // pred_check_branch
        %160 = sbr.rel (%p158) target = $region24
      $region23: #{mstau_pred_forward.4} parent=15 // pred_region
        %p161 = scmp.lt.s32.totalorder %s16, 1
        %s162 = scalar_select %p161, %s16, 1
        %s163 = smul.addr %s162, 8
        %s164 = smul.addr %s163, 4
        %s165 = scalar_lea.vmem %s1, %s164
      $region24: #{mstau_pred_forward.4} parent=15 // pred_fallthru
        _
      // Predicated region
      $region25: #{mstau_pred_forward.4} parent=15 // pred_check
        %p166 = pneg %p95
      $region26: #{mstau_pred_forward.4} parent=15 // pred_check_branch
        %168 = sbr.rel (%p166) target = $region28
      $region27: #{mstau_pred_forward.4} parent=15 // pred_region
        %p169 = scmp.lt.s32.totalorder %s16, 1
        %s170 = scalar_select %p169, %s16, 1
        %s171 = scalar_lea.vmem %s2, %s170
      $region28: #{mstau_pred_forward.4} parent=15 // pred_fallthru
        _
    $region16: #{mstau_pred_forward.4} parent=5 // pred_fallthru
      _
    %p172 = scmp.le.s32.totalorder 1, %s9
    %p173 = scmp.lt.s32.totalorder %s9, 3
    %p174 = pnand %p172, %p173
    %p175 = pneg %p174
    // Predicated region
    $region29: #{mstau_pred_forward.4} parent=5 // pred_check
      _
    $region30: #{mstau_pred_forward.4} parent=5 // pred_check_branch
      %177 = sbr.rel (%p174) target = $region32
    $region31: #{mstau_pred_forward.4} parent=5 // pred_region
      %s178 = ssub.s32 %s9, 1
      %p179 = scmp.lt.s32.totalorder %s18, 1
      %s180 = scalar_select %p179, %s18, 1
      %p181 = scmp.lt.s32.totalorder %s19, 0
      %s182 = scalar_select %p181, %s19, 0
      %s183 = sadd.s32 %s182, %s180
      %s184 = smul.addr %s183, 4
      %s185 = scalar_lea.vmem %s0, %s184
      %p186 = pneg %p49
      %p187 = pneg %p46
      %p188 = scmp.lt.s32.totalorder %s18, 1
      %s189 = scalar_select %p188, %s18, 1
      %s190 = smul.addr %s189, 8
      %s191 = smul.addr %s190, 4
      %s192 = scalar_lea.vmem %s1, %s191
      %p193 = pneg %p75
      %p194 = pneg %p72
      %p195 = scmp.lt.s32.totalorder %s18, 1
      %s196 = scalar_select %p195, %s18, 1
      %s197 = scalar_lea.vmem %s2, %s196
      %p198 = pneg %p101
      %p199 = pneg %p98
      %p200 = pneg %p129
      %p201 = pneg %p126
      %p202 = scmp.lt.s32.totalorder %s18, 1
      %s203 = scalar_select %p202, %s18, 1
      %p204 = scmp.lt.s32.totalorder %s19, 0
      %s205 = scalar_select %p204, %s19, 0
      %s206 = sadd.s32 %s205, %s203
      %s207 = smul.addr %s206, 4
      %s208 = scalar_lea.vmem %s3, %s207
      %p209 = scmp.lt.s32.totalorder %s18, 1
      %s210 = scalar_select %p209, %s18, 1
      %p211 = scmp.lt.s32.totalorder %s19, 0
      %s212 = scalar_select %p211, %s19, 0
      %s213 = sadd.s32 %s212, %s210
      %s214 = smul.addr %s213, 4
      %s215 = scalar_lea.vmem %s0, %s214
      %p216 = scmp.lt.s32.totalorder %s18, 1
      %s217 = scalar_select %p216, %s18, 1
      %s218 = smul.addr %s217, 8
      %s219 = smul.addr %s218, 4
      %s220 = scalar_lea.vmem %s1, %s219
      %p221 = scmp.lt.s32.totalorder %s18, 1
      %s222 = scalar_select %p221, %s18, 1
      %s223 = scalar_lea.vmem %s2, %s222
      %p224 = scmp.lt.s32.totalorder %s18, 1
      %s225 = scalar_select %p224, %s18, 1
      %p226 = scmp.lt.s32.totalorder %s19, 0
      %s227 = scalar_select %p226, %s19, 0
      %s228 = sadd.s32 %s227, %s225
      %s229 = smul.addr %s228, 4
      %s230 = scalar_lea.vmem %s3, %s229
      %v232 = vld [vmem:[%s215] sm:$0xf]
      %v233 = vld [vmem:[%s220] sm:$0xf]
      %v234 = vld [vmem:[%s220 + $0x4] sm:$0xf]
      %v235 = vld [vmem:[%s220 + $0x8] sm:$0xf]
      %v236 = vld [vmem:[%s220 + $0xc] sm:$0xf]
      %v237 = vld [vmem:[%s220 + $0x10] sm:$0xf]
      %v238 = vld [vmem:[%s220 + $0x14] sm:$0xf]
      %v239 = vld [vmem:[%s220 + $0x18] sm:$0xf]
      %v240 = vld [vmem:[%s220 + $0x1c] sm:$0xf]
      %v241 = vld [vmem:[%s223] sm:$0x1]
      %v243 = vlaneseq
      %v244 = vshrl.u32 %v243, 7
      %v245 = vsub.s32 0, %v244
      %v246 = vrot.slane %v241, %v245
      %v256 = vunpack.c.l.b16 %v233
      %v257 = vunpack.c.l.b16 %v234
      %v258 = vunpack.c.l.b16 %v235
      %v259 = vunpack.c.l.b16 %v236
      %v260 = vunpack.c.l.b16 %v237
      %v261 = vunpack.c.l.b16 %v238
      %v262 = vunpack.c.l.b16 %v239
      %v263 = vunpack.c.l.b16 %v240
      %v264 = vpack.c.b16 %v257, %v256
      %v265 = vpack.c.b16 %v259, %v258
      %v266 = vpack.c.b16 %v261, %v260
      %v267 = vpack.c.b16 %v263, %v262
      %vm272 = vcmask 523264
      %v274 = vsel %vm272, %v232, 0
      %276 = vmatprep.subr.bf16.mxu0 0
      %277 = vmatpush1.bf16.msra.mxu0 %v264
      %278 = vmatprep.subr.bf16.mxu0 0
      %279 = vmatpush1.bf16.msra.mxu0 %v265
      %280 = vmatprep.subr.bf16.mxu0 0
      %281 = vmatpush1.bf16.msra.mxu0 %v266
      %282 = vmatprep.subr.bf16.mxu0 0
      %283 = vmatpush1.bf16.msra.mxu0 %v267
      %284 = vmatprep.subr.bf16.mxu0 0
      %285 = vmatpush1.bf16.msra.mxu0 0
      %286 = vmatprep.subr.bf16.mxu0 0
      %287 = vmatpush1.bf16.msra.mxu0 0
      %288 = vmatprep.subr.bf16.mxu0 0
      %289 = vmatpush1.bf16.msra.mxu0 0
      %290 = vmatprep.subr.bf16.mxu0 0
      %291 = vmatpush1.bf16.msra.mxu0 0
      %292 = vmatprep.subr.bf16.mxu0 0
      %293 = vmatpush1.bf16.msra.mxu0 0
      %294 = vmatprep.subr.bf16.mxu0 0
      %295 = vmatpush1.bf16.msra.mxu0 0
      %296 = vmatprep.subr.bf16.mxu0 0
      %297 = vmatpush1.bf16.msra.mxu0 0
      %298 = vmatprep.subr.bf16.mxu0 0
      %299 = vmatpush1.bf16.msra.mxu0 0
      %300 = vmatprep.subr.bf16.mxu0 0
      %301 = vmatpush1.bf16.msra.mxu0 0
      %302 = vmatprep.subr.bf16.mxu0 0
      %303 = vmatpush1.bf16.msra.mxu0 0
      %304 = vmatprep.subr.bf16.mxu0 0
      %305 = vmatpush1.bf16.msra.mxu0 0
      %306 = vmatprep.subr.bf16.mxu0 0
      %307 = vmatpush1.bf16.msra.mxu0 0
      %308 = vmatprep.mubr.bf16.mxu0 0
      %309 = vmatmul.mubr.bf16.gmra.mrb[0].mxu0 %v274
      %v310 = vpop.f32.mrb[0].mxu0
      %v311 = vadd.f32 %v246, %v310
      %v312 = vpop.f32.mrb[0].mxu0
      %v313 = vpop.f32.mrb[0].mxu0
      %v314 = vpop.f32.mrb[0].mxu0
      %315 = vdwg.mxu0
      %vm316 = vcmp.ge.f32.partialorder %v311, 0.0
      %v317 = vmul.f32 %v311, 0.2
      %v318 = vsel %vm316, %v311, %v317
      %v319 = vpack.c.bf16 %v318, %v318
      %vm320 = vcmask 519168
      %321 = vst.msk [vmem:[%s230] sm:$0xf] %vm320, %v319
      %p322 = scmp.lt.s32.totalorder %s18, 1
      %s323 = scalar_select %p322, %s18, 1
      %p324 = scmp.lt.s32.totalorder %s19, 0
      %s325 = scalar_select %p324, %s19, 0
      %s326 = sadd.s32 %s325, %s323
      %s327 = smul.addr %s326, 4
      %s328 = scalar_lea.vmem %s3, %s327
      // Predicated region
      $region33: #{mstau_pred_forward.4} parent=31 // pred_check
        %p329 = pneg %p126
      $region34: #{mstau_pred_forward.4} parent=31 // pred_check_branch
        %331 = sbr.rel (%p329) target = $region36
      $region35: #{mstau_pred_forward.4} parent=31 // pred_region
        _
      $region36: #{mstau_pred_forward.4} parent=31 // pred_fallthru
        _
    $region32: #{mstau_pred_forward.4} parent=5 // pred_fallthru
      _
    %p332 = scmp.le.s32.totalorder 2, %s9
    // Predicated region
    $region37: #{mstau_pred_forward.4} parent=5 // pred_check
      %p333 = pneg %p332
    $region38: #{mstau_pred_forward.4} parent=5 // pred_check_branch
      %335 = sbr.rel (%p333) target = $region40
    $region39: #{mstau_pred_forward.4} parent=5 // pred_region
      %s336 = ssub.s32 %s9, 2
      // Predicated region
      $region41: #{mstau_pred_forward.4} parent=39 // pred_check
        %p337 = pneg %p132
      $region42: #{mstau_pred_forward.4} parent=39 // pred_check_branch
        %339 = sbr.rel (%p337) target = $region44
      $region43: #{mstau_pred_forward.4} parent=39 // pred_region
        %p340 = scmp.lt.s32.totalorder %s20, 1
        %s341 = scalar_select %p340, %s20, 1
        %p342 = scmp.lt.s32.totalorder %s21, 0
        %s343 = scalar_select %p342, %s21, 0
        %s344 = sadd.s32 %s343, %s341
        %s345 = smul.addr %s344, 4
        %s346 = scalar_lea.vmem %s3, %s345
      $region44: #{mstau_pred_forward.4} parent=39 // pred_fallthru
        _
    $region40: #{mstau_pred_forward.4} parent=5 // pred_fallthru
      _
  $region6: #{mstau_pred_forward.4} parent=0 // loop_footer
    %s13 = sadd.s32 1, %s9
  $region7: #{mstau_pred_forward.4} parent=0 // loop_footer_branch
    %8 = sbr.rel target = $region3
  $region8: #{mstau_pred_forward.4} parent=0 // loop_exit
    _

// kernel: mstau_pred_forward.5
$region0: #{mstau_pred_forward.5}
  #allocation0 [shape = 'u32[]', space=smem, size = 0x4, offset = 0x4, fixed_abs, tag = 'smem constant byte address 0x4 - core index']
  #allocation1 [shape = 'u32[144,128]{1,0:T(1,128)}', space=vmem, size = 0x12000, scoped, tag = 'internal scratch']
  %s0 = inlined_call_operand.vmem [shape: bf16[2,32,64], index: 0, kind: input, shape index: {}]
  %s1 = inlined_call_operand.vmem [shape: bf16[2,64,64], index: 1, kind: input, shape index: {}]
  %s2 = inlined_call_operand.vmem [shape: f32[2,1,64], index: 2, kind: input, shape index: {}]
  %s3 = inlined_call_operand.vmem [shape: bf16[2,32,64], index: 3, kind: output, shape index: {}]
  %s4 = sld [smem:[#allocation0]]
  $region45: #{mstau_pred_forward.5} parent=0
    _
  %s6 = ssub.s32 1, %s4
  %s7 = scalar_select 0, %s6, %s4
  loop: start=0, step=1, limit=4
  $region2: #{mstau_pred_forward.5} parent=0 // loop_pre_header
    _
  $region3: #{mstau_pred_forward.5} parent=0 // loop_header
    %s9 = sphi 0, %s13
    %p10 = scmp.ge.s32.totalorder %s9, 4
    %s16 = sphi 0, %s28
    %s17 = sphi 0, %s24
    %s18 = sphi 0, %s16
    %s19 = sphi 0, %s17
    %s20 = sphi 0, %s18
    %s21 = sphi 0, %s19
    %s33 = sphi 0, %s35
    %s36 = sphi 0, %s33
    %s37 = sphi 0, %s36
    %s53 = sphi 0, %s37
    %s59 = sphi 0, %s61
    %s62 = sphi 0, %s59
    %s63 = sphi 0, %s62
    %s79 = sphi 0, %s63
    %s85 = sphi 0, %s87
    %s88 = sphi 0, %s85
    %s89 = sphi 0, %s88
    %s105 = sphi 0, %s89
    %s113 = sphi 0, %s115
    %s116 = sphi 0, %s113
    %s117 = sphi 0, %s116
    %s133 = sphi 0, %s117
  $region4: #{mstau_pred_forward.5} parent=0 // loop_header_branch
    %12 = sbr.rel (%p10) target = $region8
  $region5: #{mstau_pred_forward.5} parent=0 // loop_body
    %s14 = ssub.s32 %s9, 1
    %s15 = ssub.s32 %s9, 2
    %s22 = sadd.s32 1, %s17
    %p23 = scmp.ge.s32.totalorder %s22, 1
    %s24 = scalar_select %p23, 0, %s22
    %s25 = sadd.s32 1, %s16
    %s26 = scalar_select %p23, %s25, %s16
    %p27 = scmp.ge.s32.totalorder %s26, 2
    %s28 = scalar_select %p27, 0, %s26
    %s29 = ssub.s32 %s16, %s28
    %s30 = ssub.s32 %s17, %s24
    %s31 = sor.u32 %s29, %s30
    %p32 = scmp.eq.s32.totalorder %s31, 0
    %s34 = sadd.s32 %s33, 1
    %s35 = scalar_select %p32, %s33, %s34
    %p38 = pneg %p32
    %p39 = scmp.eq.s32.totalorder %s9, 1
    %p40 = por %p38, %p39
    %p41 = scmp.ne.s32.totalorder %s33, %s36
    %p42 = scmp.eq.s32.totalorder %s9, 0
    %p43 = por %p41, %p42
    %p44 = scmp.ne.s32.totalorder %s33, %s36
    %p45 = scmp.eq.s32.totalorder %s14, 1
    %p46 = por %p44, %p45
    %p47 = scmp.ne.s32.totalorder %s36, %s37
    %p48 = scmp.eq.s32.totalorder %s14, 0
    %p49 = por %p47, %p48
    %p50 = scmp.ne.s32.totalorder %s36, %s37
    %p51 = scmp.eq.s32.totalorder %s15, 1
    %p52 = por %p50, %p51
    %p54 = scmp.ne.s32.totalorder %s37, %s53
    %p55 = scmp.eq.s32.totalorder %s15, 0
    %p56 = por %p54, %p55
    %s57 = ssub.s32 %s16, %s28
    %p58 = scmp.eq.s32.totalorder %s57, 0
    %s60 = sadd.s32 %s59, 1
    %s61 = scalar_select %p58, %s59, %s60
    %p64 = pneg %p58
    %p65 = scmp.eq.s32.totalorder %s9, 1
    %p66 = por %p64, %p65
    %p67 = scmp.ne.s32.totalorder %s59, %s62
    %p68 = scmp.eq.s32.totalorder %s9, 0
    %p69 = por %p67, %p68
    %p70 = scmp.ne.s32.totalorder %s59, %s62
    %p71 = scmp.eq.s32.totalorder %s14, 1
    %p72 = por %p70, %p71
    %p73 = scmp.ne.s32.totalorder %s62, %s63
    %p74 = scmp.eq.s32.totalorder %s14, 0
    %p75 = por %p73, %p74
    %p76 = scmp.ne.s32.totalorder %s62, %s63
    %p77 = scmp.eq.s32.totalorder %s15, 1
    %p78 = por %p76, %p77
    %p80 = scmp.ne.s32.totalorder %s63, %s79
    %p81 = scmp.eq.s32.totalorder %s15, 0
    %p82 = por %p80, %p81
    %s83 = ssub.s32 %s16, %s28
    %p84 = scmp.eq.s32.totalorder %s83, 0
    %s86 = sadd.s32 %s85, 1
    %s87 = scalar_select %p84, %s85, %s86
    %p90 = pneg %p84
    %p91 = scmp.eq.s32.totalorder %s9, 1
    %p92 = por %p90, %p91
    %p93 = scmp.ne.s32.totalorder %s85, %s88
    %p94 = scmp.eq.s32.totalorder %s9, 0
    %p95 = por %p93, %p94
    %p96 = scmp.ne.s32.totalorder %s85, %s88
    %p97 = scmp.eq.s32.totalorder %s14, 1
    %p98 = por %p96, %p97
    %p99 = scmp.ne.s32.totalorder %s88, %s89
    %p100 = scmp.eq.s32.totalorder %s14, 0
    %p101 = por %p99, %p100
    %p102 = scmp.ne.s32.totalorder %s88, %s89
    %p103 = scmp.eq.s32.totalorder %s15, 1
    %p104 = por %p102, %p103
    %p106 = scmp.ne.s32.totalorder %s89, %s105
    %p107 = scmp.eq.s32.totalorder %s15, 0
    %p108 = por %p106, %p107
    %s109 = ssub.s32 %s16, %s28
    %s110 = ssub.s32 %s17, %s24
    %s111 = sor.u32 %s109, %s110
    %p112 = scmp.eq.s32.totalorder %s111, 0
    %s114 = sadd.s32 %s113, 1
    %s115 = scalar_select %p112, %s113, %s114
    %p118 = pneg %p112
    %p119 = scmp.eq.s32.totalorder %s9, 1
    %p120 = por %p118, %p119
    %p121 = scmp.ne.s32.totalorder %s113, %s116
    %p122 = scmp.eq.s32.totalorder %s9, 0
    %p123 = por %p121, %p122
    %p124 = scmp.ne.s32.totalorder %s113, %s116
    %p125 = scmp.eq.s32.totalorder %s14, 1
    %p126 = por %p124, %p125
    %p127 = scmp.ne.s32.totalorder %s116, %s117
    %p128 = scmp.eq.s32.totalorder %s14, 0
    %p129 = por %p127, %p128
    %p130 = scmp.ne.s32.totalorder %s116, %s117
    %p131 = scmp.eq.s32.totalorder %s15, 1
    %p132 = por %p130, %p131
    %p134 = scmp.ne.s32.totalorder %s117, %s133
    %p135 = scmp.eq.s32.totalorder %s15, 0
    %p136 = por %p134, %p135
    %p137 = scmp.le.s32.totalorder 1, %s9
    %p138 = scmp.lt.s32.totalorder %s9, 3
    %p139 = pnand %p137, %p138
    %p140 = pneg %p139
    // Predicated region
    $region9: #{mstau_pred_forward.5} parent=5 // pred_check
      _
    $region10: #{mstau_pred_forward.5} parent=5 // pred_check_branch
      %142 = sbr.rel (%p139) target = $region12
    $region11: #{mstau_pred_forward.5} parent=5 // pred_region
      %s143 = ssub.s32 %s9, 1
    $region12: #{mstau_pred_forward.5} parent=5 // pred_fallthru
      _
    %p144 = scmp.lt.s32.totalorder %s9, 2
    // Predicated region
    $region13: #{mstau_pred_forward.5} parent=5 // pred_check
      %p145 = pneg %p144
    $region14: #{mstau_pred_forward.5} parent=5 // pred_check_branch
      %147 = sbr.rel (%p145) target = $region16
    $region15: #{mstau_pred_forward.5} parent=5 // pred_region
      // Predicated region
      $region17: #{mstau_pred_forward.5} parent=15 // pred_check
        %p148 = pneg %p43
      $region18: #{mstau_pred_forward.5} parent=15 // pred_check_branch
        %150 = sbr.rel (%p148) target = $region20
      $region19: #{mstau_pred_forward.5} parent=15 // pred_region
        %s151 = smul.u32 4, %s17
        %p152 = scmp.lt.s32.totalorder %s16, 1
        %s153 = scalar_select %p152, %s16, 1
        %p154 = scmp.lt.s32.totalorder %s151, 3
        %s155 = scalar_select %p154, %s151, 3
        %s156 = smul.addr %s153, 4
        %s157 = sadd.s32 %s155, %s156
        %s158 = smul.addr %s157, 4
        %s159 = scalar_lea.vmem %s0, %s158
        %s160 = smul.u32 4, %s17
      $region20: #{mstau_pred_forward.5} parent=15 // pred_fallthru
        _
      // Predicated region
      $region21: #{mstau_pred_forward.5} parent=15 // pred_check
        %p161 = pneg %p69
      $region22: #{mstau_pred_forward.5} parent=15 // pred_check_branch
        %163 = sbr.rel (%p161) target = $region24
      $region23: #{mstau_pred_forward.5} parent=15 // pred_region
        %p164 = scmp.lt.s32.totalorder %s16, 1
        %s165 = scalar_select %p164, %s16, 1
        %s166 = smul.addr %s165, 8
        %s167 = smul.addr %s166, 4
        %s168 = scalar_lea.vmem %s1, %s167
      $region24: #{mstau_pred_forward.5} parent=15 // pred_fallthru
        _
      // Predicated region
      $region25: #{mstau_pred_forward.5} parent=15 // pred_check
        %p169 = pneg %p95
      $region26: #{mstau_pred_forward.5} parent=15 // pred_check_branch
        %171 = sbr.rel (%p169) target = $region28
      $region27: #{mstau_pred_forward.5} parent=15 // pred_region
        %p172 = scmp.lt.s32.totalorder %s16, 1
        %s173 = scalar_select %p172, %s16, 1
        %s174 = scalar_lea.vmem %s2, %s173
      $region28: #{mstau_pred_forward.5} parent=15 // pred_fallthru
        _
    $region16: #{mstau_pred_forward.5} parent=5 // pred_fallthru
      _
    %p175 = scmp.le.s32.totalorder 1, %s9
    %p176 = scmp.lt.s32.totalorder %s9, 3
    %p177 = pnand %p175, %p176
    %p178 = pneg %p177
    // Predicated region
    $region29: #{mstau_pred_forward.5} parent=5 // pred_check
      _
    $region30: #{mstau_pred_forward.5} parent=5 // pred_check_branch
      %180 = sbr.rel (%p177) target = $region32
    $region31: #{mstau_pred_forward.5} parent=5 // pred_region
      %s181 = ssub.s32 %s9, 1
      %s182 = smul.u32 4, %s19
      %p183 = scmp.lt.s32.totalorder %s18, 1
      %s184 = scalar_select %p183, %s18, 1
      %p185 = scmp.lt.s32.totalorder %s182, 3
      %s186 = scalar_select %p185, %s182, 3
      %s187 = smul.addr %s184, 4
      %s188 = sadd.s32 %s186, %s187
      %s189 = smul.addr %s188, 4
      %s190 = scalar_lea.vmem %s0, %s189
      %p191 = pneg %p49
      %p192 = pneg %p46
      %p193 = scmp.lt.s32.totalorder %s18, 1
      %s194 = scalar_select %p193, %s18, 1
      %s195 = smul.addr %s194, 8
      %s196 = smul.addr %s195, 4
      %s197 = scalar_lea.vmem %s1, %s196
      %p198 = pneg %p75
      %p199 = pneg %p72
      %p200 = scmp.lt.s32.totalorder %s18, 1
      %s201 = scalar_select %p200, %s18, 1
      %s202 = scalar_lea.vmem %s2, %s201
      %p203 = pneg %p101
      %p204 = pneg %p98
      %p205 = pneg %p129
      %p206 = pneg %p126
      %s207 = smul.u32 4, %s19
      %p208 = scmp.lt.s32.totalorder %s18, 1
      %s209 = scalar_select %p208, %s18, 1
      %p210 = scmp.lt.s32.totalorder %s207, 3
      %s211 = scalar_select %p210, %s207, 3
      %s212 = smul.addr %s209, 4
      %s213 = sadd.s32 %s211, %s212
      %s214 = smul.addr %s213, 4
      %s215 = scalar_lea.vmem %s3, %s214
      %s216 = smul.u32 4, %s19
      %p217 = scmp.lt.s32.totalorder %s18, 1
      %s218 = scalar_select %p217, %s18, 1
      %p219 = scmp.lt.s32.totalorder %s216, 3
      %s220 = scalar_select %p219, %s216, 3
      %s221 = smul.addr %s218, 4
      %s222 = sadd.s32 %s220, %s221
      %s223 = smul.addr %s222, 4
      %s224 = scalar_lea.vmem %s0, %s223
      %s225 = smul.u32 4, %s19
      %p226 = scmp.lt.s32.totalorder %s18, 1
      %s227 = scalar_select %p226, %s18, 1
      %s228 = smul.addr %s227, 8
      %s229 = smul.addr %s228, 4
      %s230 = scalar_lea.vmem %s1, %s229
      %p231 = scmp.lt.s32.totalorder %s18, 1
      %s232 = scalar_select %p231, %s18, 1
      %s233 = scalar_lea.vmem %s2, %s232
      %s234 = smul.u32 4, %s19
      %p235 = scmp.lt.s32.totalorder %s18, 1
      %s236 = scalar_select %p235, %s18, 1
      %p237 = scmp.lt.s32.totalorder %s234, 3
      %s238 = scalar_select %p237, %s234, 3
      %s239 = smul.addr %s236, 4
      %s240 = sadd.s32 %s238, %s239
      %s241 = smul.addr %s240, 4
      %s242 = scalar_lea.vmem %s3, %s241
      %s243 = smul.u32 4, %s19
      %v245 = vld [vmem:[%s224] sm:$0xf]
      %v246 = vld [vmem:[%s224 + $0x4] sm:$0xf]
      %v247 = vld [vmem:[%s224 + $0x8] sm:$0xf]
      %v248 = vld [vmem:[%s224 + $0xc] sm:$0xf]
      %v249 = vld [vmem:[%s230] sm:$0xf]
      %v250 = vld [vmem:[%s230 + $0x4] sm:$0xf]
      %v251 = vld [vmem:[%s230 + $0x8] sm:$0xf]
      %v252 = vld [vmem:[%s230 + $0xc] sm:$0xf]
      %v253 = vld [vmem:[%s230 + $0x10] sm:$0xf]
      %v254 = vld [vmem:[%s230 + $0x14] sm:$0xf]
      %v255 = vld [vmem:[%s230 + $0x18] sm:$0xf]
      %v256 = vld [vmem:[%s230 + $0x1c] sm:$0xf]
      %v257 = vld [vmem:[%s233] sm:$0x1]
      %v259 = vlaneseq
      %v260 = vshrl.u32 %v259, 7
      %v261 = vsub.s32 0, %v260
      %v262 = vrot.slane %v257, %v261
      %v268 = vunpack.c.l.b16 %v245
      %v269 = vunpack.c.l.b16 %v246
      %v270 = vunpack.c.l.b16 %v247
      %v271 = vunpack.c.l.b16 %v248
      %v272 = vpack.c.b16 %v269, %v268
      %v273 = vpack.c.b16 %v271, %v270
      %v282 = vunpack.c.l.b16 %v249
      %v283 = vunpack.c.l.b16 %v250
      %v284 = vunpack.c.l.b16 %v251
      %v285 = vunpack.c.l.b16 %v252
      %v286 = vunpack.c.l.b16 %v253
      %v287 = vunpack.c.l.b16 %v254
      %v288 = vunpack.c.l.b16 %v255
      %v289 = vunpack.c.l.b16 %v256
      %v290 = vpack.c.b16 %v283, %v282
      %v291 = vpack.c.b16 %v285, %v284
      %v292 = vpack.c.b16 %v287, %v286
      %v293 = vpack.c.b16 %v289, %v288
      %vm298 = vcmask 523264
      %v300 = vsel %vm298, %v272, 0
      %v303 = vsel %vm298, %v273, 0
      %305 = vmatprep.subr.bf16.mxu0 0
      %306 = vmatpush1.bf16.msra.mxu0 %v290
      %307 = vmatprep.subr.bf16.mxu0 0
      %308 = vmatpush1.bf16.msra.mxu0 %v291
      %309 = vmatprep.subr.bf16.mxu0 0
      %310 = vmatpush1.bf16.msra.mxu0 %v292
      %311 = vmatprep.subr.bf16.mxu0 0
      %312 = vmatpush1.bf16.msra.mxu0 %v293
      %313 = vmatprep.subr.bf16.mxu0 0
      %314 = vmatpush1.bf16.msra.mxu0 0
      %315 = vmatprep.subr.bf16.mxu0 0
      %316 = vmatpush1.bf16.msra.mxu0 0
      %317 = vmatprep.subr.bf16.mxu0 0
      %318 = vmatpush1.bf16.msra.mxu0 0
      %319 = vmatprep.subr.bf16.mxu0 0
      %320 = vmatpush1.bf16.msra.mxu0 0
      %321 = vmatprep.subr.bf16.mxu0 0
      %322 = vmatpush1.bf16.msra.mxu0 0
      %323 = vmatprep.subr.bf16.mxu0 0
      %324 = vmatpush1.bf16.msra.mxu0 0
      %325 = vmatprep.subr.bf16.mxu0 0
      %326 = vmatpush1.bf16.msra.mxu0 0
      %327 = vmatprep.subr.bf16.mxu0 0
      %328 = vmatpush1.bf16.msra.mxu0 0
      %329 = vmatprep.subr.bf16.mxu0 0
      %330 = vmatpush1.bf16.msra.mxu0 0
      %331 = vmatprep.subr.bf16.mxu0 0
      %332 = vmatpush1.bf16.msra.mxu0 0
      %333 = vmatprep.subr.bf16.mxu0 0
      %334 = vmatpush1.bf16.msra.mxu0 0
      %335 = vmatprep.subr.bf16.mxu0 0
      %336 = vmatpush1.bf16.msra.mxu0 0
      %337 = vmatprep.mubr.bf16.mxu0 0
      %338 = vmatmul.mubr.bf16.gmra.mrb[0].mxu0 %v300
      %v339 = vpop.f32.mrb[0].mxu0
      %v340 = vadd.f32 %v262, %v339
      %v341 = vpop.f32.mrb[0].mxu0
      %v342 = vpop.f32.mrb[0].mxu0
      %v343 = vadd.f32 %v262, %v342
      %v344 = vpop.f32.mrb[0].mxu0
      %345 = vmatprep.mubr.bf16.mxu0 0
      %346 = vmatmul.mubr.bf16.gmra.mrb[0].mxu0 %v303
      %v347 = vpop.f32.mrb[0].mxu0
      %v348 = vadd.f32 %v262, %v347
      %v349 = vpop.f32.mrb[0].mxu0
      %v350 = vpop.f32.mrb[0].mxu0
      %v351 = vadd.f32 %v262, %v350
      %v352 = vpop.f32.mrb[0].mxu0
      %353 = vdwg.mxu0
      %vm354 = vcmp.ge.f32.partialorder %v340, 0.0
      %vm355 = vcmp.ge.f32.partialorder %v343, 0.0
      %vm356 = vcmp.ge.f32.partialorder %v348, 0.0
      %vm357 = vcmp.ge.f32.partialorder %v351, 0.0
      %v358 = vmul.f32 %v340, 0.2
      %v359 = vmul.f32 %v343, 0.2
      %v360 = vmul.f32 %v348, 0.2
      %v361 = vmul.f32 %v351, 0.2
      %v362 = vsel %vm354, %v340, %v358
      %v363 = vsel %vm355, %v343, %v359
      %v364 = vsel %vm356, %v348, %v360
      %v365 = vsel %vm357, %v351, %v361
      %v366 = vpack.c.bf16 %v363, %v362
      %v367 = vpack.c.bf16 %v365, %v364
      %v370 = vunpack.c.l.b16 %v366
      %v371 = vunpack.c.h.b16 %v366
      %v372 = vunpack.c.l.b16 %v367
      %v373 = vunpack.c.h.b16 %v367
      %v374 = vpack.c.b16 %v370, %v370
      %v375 = vpack.c.b16 %v371, %v371
      %v376 = vpack.c.b16 %v372, %v372
      %v377 = vpack.c.b16 %v373, %v373
      %vm382 = vcmask 519168
      %383 = vst.msk [vmem:[%s242] sm:$0xf] %vm382, %v374
      %384 = vst.msk [vmem:[%s242 + $0x4] sm:$0xf] %vm382, %v375
      %385 = vst.msk [vmem:[%s242 + $0x8] sm:$0xf] %vm382, %v376
      %386 = vst.msk [vmem:[%s242 + $0xc] sm:$0xf] %vm382, %v377
      %s387 = smul.u32 4, %s19
      %p388 = scmp.lt.s32.totalorder %s18, 1
      %s389 = scalar_select %p388, %s18, 1
      %p390 = scmp.lt.s32.totalorder %s387, 3
      %s391 = scalar_select %p390, %s387, 3
      %s392 = smul.addr %s389, 4
      %s393 = sadd.s32 %s391, %s392
      %s394 = smul.addr %s393, 4
      %s395 = scalar_lea.vmem %s3, %s394
      // Predicated region
      $region33: #{mstau_pred_forward.5} parent=31 // pred_check
        %p396 = pneg %p126
      $region34: #{mstau_pred_forward.5} parent=31 // pred_check_branch
        %398 = sbr.rel (%p396) target = $region36
      $region35: #{mstau_pred_forward.5} parent=31 // pred_region
        %s399 = smul.u32 4, %s19
      $region36: #{mstau_pred_forward.5} parent=31 // pred_fallthru
        _
    $region32: #{mstau_pred_forward.5} parent=5 // pred_fallthru
      _
    %p400 = scmp.le.s32.totalorder 2, %s9
    // Predicated region
    $region37: #{mstau_pred_forward.5} parent=5 // pred_check
      %p401 = pneg %p400
    $region38: #{mstau_pred_forward.5} parent=5 // pred_check_branch
      %403 = sbr.rel (%p401) target = $region40
    $region39: #{mstau_pred_forward.5} parent=5 // pred_region
      %s404 = ssub.s32 %s9, 2
      // Predicated region
      $region41: #{mstau_pred_forward.5} parent=39 // pred_check
        %p405 = pneg %p132
      $region42: #{mstau_pred_forward.5} parent=39 // pred_check_branch
        %407 = sbr.rel (%p405) target = $region44
      $region43: #{mstau_pred_forward.5} parent=39 // pred_region
        %s408 = smul.u32 4, %s21
        %p409 = scmp.lt.s32.totalorder %s20, 1
        %s410 = scalar_select %p409, %s20, 1
        %p411 = scmp.lt.s32.totalorder %s408, 3
        %s412 = scalar_select %p411, %s408, 3
        %s413 = smul.addr %s410, 4
        %s414 = sadd.s32 %s412, %s413
        %s415 = smul.addr %s414, 4
        %s416 = scalar_lea.vmem %s3, %s415
      $region44: #{mstau_pred_forward.5} parent=39 // pred_fallthru
        _
    $region40: #{mstau_pred_forward.5} parent=5 // pred_fallthru
      _
  $region6: #{mstau_pred_forward.5} parent=0 // loop_footer
    %s13 = sadd.s32 1, %s9
  $region7: #{mstau_pred_forward.5} parent=0 // loop_footer_branch
    %8 = sbr.rel target = $region3
  $region8: #{mstau_pred_forward.5} parent=0 // loop_exit
    _

// kernel: mstau_pred_forward.6
$region0: #{mstau_pred_forward.6}
  #allocation0 [shape = 'u32[]', space=smem, size = 0x4, offset = 0x4, fixed_abs, tag = 'smem constant byte address 0x4 - core index']
  #allocation1 [shape = 'u32[144,128]{1,0:T(1,128)}', space=vmem, size = 0x12000, scoped, tag = 'internal scratch']
  %s0 = inlined_call_operand.vmem [shape: bf16[2,128,64], index: 0, kind: input, shape index: {}]
  %s1 = inlined_call_operand.vmem [shape: bf16[2,64,64], index: 1, kind: input, shape index: {}]
  %s2 = inlined_call_operand.vmem [shape: f32[2,1,64], index: 2, kind: input, shape index: {}]
  %s3 = inlined_call_operand.vmem [shape: bf16[2,128,64], index: 3, kind: output, shape index: {}]
  %s4 = sld [smem:[#allocation0]]
  $region45: #{mstau_pred_forward.6} parent=0
    _
  %s6 = ssub.s32 1, %s4
  %s7 = scalar_select 0, %s6, %s4
  loop: start=0, step=1, limit=4
  $region2: #{mstau_pred_forward.6} parent=0 // loop_pre_header
    _
  $region3: #{mstau_pred_forward.6} parent=0 // loop_header
    %s9 = sphi 0, %s13
    %p10 = scmp.ge.s32.totalorder %s9, 4
    %s16 = sphi 0, %s28
    %s17 = sphi 0, %s24
    %s18 = sphi 0, %s16
    %s19 = sphi 0, %s17
    %s20 = sphi 0, %s18
    %s21 = sphi 0, %s19
    %s33 = sphi 0, %s35
    %s36 = sphi 0, %s33
    %s37 = sphi 0, %s36
    %s53 = sphi 0, %s37
    %s59 = sphi 0, %s61
    %s62 = sphi 0, %s59
    %s63 = sphi 0, %s62
    %s79 = sphi 0, %s63
    %s85 = sphi 0, %s87
    %s88 = sphi 0, %s85
    %s89 = sphi 0, %s88
    %s105 = sphi 0, %s89
    %s113 = sphi 0, %s115
    %s116 = sphi 0, %s113
    %s117 = sphi 0, %s116
    %s133 = sphi 0, %s117
  $region4: #{mstau_pred_forward.6} parent=0 // loop_header_branch
    %12 = sbr.rel (%p10) target = $region8
  $region5: #{mstau_pred_forward.6} parent=0 // loop_body
    %s14 = ssub.s32 %s9, 1
    %s15 = ssub.s32 %s9, 2
    %s22 = sadd.s32 1, %s17
    %p23 = scmp.ge.s32.totalorder %s22, 1
    %s24 = scalar_select %p23, 0, %s22
    %s25 = sadd.s32 1, %s16
    %s26 = scalar_select %p23, %s25, %s16
    %p27 = scmp.ge.s32.totalorder %s26, 2
    %s28 = scalar_select %p27, 0, %s26
    %s29 = ssub.s32 %s16, %s28
    %s30 = ssub.s32 %s17, %s24
    %s31 = sor.u32 %s29, %s30
    %p32 = scmp.eq.s32.totalorder %s31, 0
    %s34 = sadd.s32 %s33, 1
    %s35 = scalar_select %p32, %s33, %s34
    %p38 = pneg %p32
    %p39 = scmp.eq.s32.totalorder %s9, 1
    %p40 = por %p38, %p39
    %p41 = scmp.ne.s32.totalorder %s33, %s36
    %p42 = scmp.eq.s32.totalorder %s9, 0
    %p43 = por %p41, %p42
    %p44 = scmp.ne.s32.totalorder %s33, %s36
    %p45 = scmp.eq.s32.totalorder %s14, 1
    %p46 = por %p44, %p45
    %p47 = scmp.ne.s32.totalorder %s36, %s37
    %p48 = scmp.eq.s32.totalorder %s14, 0
    %p49 = por %p47, %p48
    %p50 = scmp.ne.s32.totalorder %s36, %s37
    %p51 = scmp.eq.s32.totalorder %s15, 1
    %p52 = por %p50, %p51
    %p54 = scmp.ne.s32.totalorder %s37, %s53
    %p55 = scmp.eq.s32.totalorder %s15, 0
    %p56 = por %p54, %p55
    %s57 = ssub.s32 %s16, %s28
    %p58 = scmp.eq.s32.totalorder %s57, 0
    %s60 = sadd.s32 %s59, 1
    %s61 = scalar_select %p58, %s59, %s60
    %p64 = pneg %p58
    %p65 = scmp.eq.s32.totalorder %s9, 1
    %p66 = por %p64, %p65
    %p67 = scmp.ne.s32.totalorder %s59, %s62
    %p68 = scmp.eq.s32.totalorder %s9, 0
    %p69 = por %p67, %p68
    %p70 = scmp.ne.s32.totalorder %s59, %s62
    %p71 = scmp.eq.s32.totalorder %s14, 1
    %p72 = por %p70, %p71
    %p73 = scmp.ne.s32.totalorder %s62, %s63
    %p74 = scmp.eq.s32.totalorder %s14, 0
    %p75 = por %p73, %p74
    %p76 = scmp.ne.s32.totalorder %s62, %s63
    %p77 = scmp.eq.s32.totalorder %s15, 1
    %p78 = por %p76, %p77
    %p80 = scmp.ne.s32.totalorder %s63, %s79
    %p81 = scmp.eq.s32.totalorder %s15, 0
    %p82 = por %p80, %p81
    %s83 = ssub.s32 %s16, %s28
    %p84 = scmp.eq.s32.totalorder %s83, 0
    %s86 = sadd.s32 %s85, 1
    %s87 = scalar_select %p84, %s85, %s86
    %p90 = pneg %p84
    %p91 = scmp.eq.s32.totalorder %s9, 1
    %p92 = por %p90, %p91
    %p93 = scmp.ne.s32.totalorder %s85, %s88
    %p94 = scmp.eq.s32.totalorder %s9, 0
    %p95 = por %p93, %p94
    %p96 = scmp.ne.s32.totalorder %s85, %s88
    %p97 = scmp.eq.s32.totalorder %s14, 1
    %p98 = por %p96, %p97
    %p99 = scmp.ne.s32.totalorder %s88, %s89
    %p100 = scmp.eq.s32.totalorder %s14, 0
    %p101 = por %p99, %p100
    %p102 = scmp.ne.s32.totalorder %s88, %s89
    %p103 = scmp.eq.s32.totalorder %s15, 1
    %p104 = por %p102, %p103
    %p106 = scmp.ne.s32.totalorder %s89, %s105
    %p107 = scmp.eq.s32.totalorder %s15, 0
    %p108 = por %p106, %p107
    %s109 = ssub.s32 %s16, %s28
    %s110 = ssub.s32 %s17, %s24
    %s111 = sor.u32 %s109, %s110
    %p112 = scmp.eq.s32.totalorder %s111, 0
    %s114 = sadd.s32 %s113, 1
    %s115 = scalar_select %p112, %s113, %s114
    %p118 = pneg %p112
    %p119 = scmp.eq.s32.totalorder %s9, 1
    %p120 = por %p118, %p119
    %p121 = scmp.ne.s32.totalorder %s113, %s116
    %p122 = scmp.eq.s32.totalorder %s9, 0
    %p123 = por %p121, %p122
    %p124 = scmp.ne.s32.totalorder %s113, %s116
    %p125 = scmp.eq.s32.totalorder %s14, 1
    %p126 = por %p124, %p125
    %p127 = scmp.ne.s32.totalorder %s116, %s117
    %p128 = scmp.eq.s32.totalorder %s14, 0
    %p129 = por %p127, %p128
    %p130 = scmp.ne.s32.totalorder %s116, %s117
    %p131 = scmp.eq.s32.totalorder %s15, 1
    %p132 = por %p130, %p131
    %p134 = scmp.ne.s32.totalorder %s117, %s133
    %p135 = scmp.eq.s32.totalorder %s15, 0
    %p136 = por %p134, %p135
    %p137 = scmp.le.s32.totalorder 1, %s9
    %p138 = scmp.lt.s32.totalorder %s9, 3
    %p139 = pnand %p137, %p138
    %p140 = pneg %p139
    // Predicated region
    $region9: #{mstau_pred_forward.6} parent=5 // pred_check
      _
    $region10: #{mstau_pred_forward.6} parent=5 // pred_check_branch
      %142 = sbr.rel (%p139) target = $region12
    $region11: #{mstau_pred_forward.6} parent=5 // pred_region
      %s143 = ssub.s32 %s9, 1
    $region12: #{mstau_pred_forward.6} parent=5 // pred_fallthru
      _
    %p144 = scmp.lt.s32.totalorder %s9, 2
    // Predicated region
    $region13: #{mstau_pred_forward.6} parent=5 // pred_check
      %p145 = pneg %p144
    $region14: #{mstau_pred_forward.6} parent=5 // pred_check_branch
      %147 = sbr.rel (%p145) target = $region16
    $region15: #{mstau_pred_forward.6} parent=5 // pred_region
      // Predicated region
      $region17: #{mstau_pred_forward.6} parent=15 // pred_check
        %p148 = pneg %p43
      $region18: #{mstau_pred_forward.6} parent=15 // pred_check_branch
        %150 = sbr.rel (%p148) target = $region20
      $region19: #{mstau_pred_forward.6} parent=15 // pred_region
        %s151 = smul.u32 16, %s17
        %p152 = scmp.lt.s32.totalorder %s16, 1
        %s153 = scalar_select %p152, %s16, 1
        %p154 = scmp.lt.s32.totalorder %s151, 15
        %s155 = scalar_select %p154, %s151, 15
        %s156 = smul.addr %s153, 16
        %s157 = sadd.s32 %s155, %s156
        %s158 = smul.addr %s157, 4
        %s159 = scalar_lea.vmem %s0, %s158
        %s160 = smul.u32 16, %s17
      $region20: #{mstau_pred_forward.6} parent=15 // pred_fallthru
        _
      // Predicated region
      $region21: #{mstau_pred_forward.6} parent=15 // pred_check
        %p161 = pneg %p69
      $region22: #{mstau_pred_forward.6} parent=15 // pred_check_branch
        %163 = sbr.rel (%p161) target = $region24
      $region23: #{mstau_pred_forward.6} parent=15 // pred_region
        %p164 = scmp.lt.s32.totalorder %s16, 1
        %s165 = scalar_select %p164, %s16, 1
        %s166 = smul.addr %s165, 8
        %s167 = smul.addr %s166, 4
        %s168 = scalar_lea.vmem %s1, %s167
      $region24: #{mstau_pred_forward.6} parent=15 // pred_fallthru
        _
      // Predicated region
      $region25: #{mstau_pred_forward.6} parent=15 // pred_check
        %p169 = pneg %p95
      $region26: #{mstau_pred_forward.6} parent=15 // pred_check_branch
        %171 = sbr.rel (%p169) target = $region28
      $region27: #{mstau_pred_forward.6} parent=15 // pred_region
        %p172 = scmp.lt.s32.totalorder %s16, 1
        %s173 = scalar_select %p172, %s16, 1
        %s174 = scalar_lea.vmem %s2, %s173
      $region28: #{mstau_pred_forward.6} parent=15 // pred_fallthru
        _
    $region16: #{mstau_pred_forward.6} parent=5 // pred_fallthru
      _
    %p175 = scmp.le.s32.totalorder 1, %s9
    %p176 = scmp.lt.s32.totalorder %s9, 3
    %p177 = pnand %p175, %p176
    %p178 = pneg %p177
    // Predicated region
    $region29: #{mstau_pred_forward.6} parent=5 // pred_check
      _
    $region30: #{mstau_pred_forward.6} parent=5 // pred_check_branch
      %180 = sbr.rel (%p177) target = $region32
    $region31: #{mstau_pred_forward.6} parent=5 // pred_region
      %s181 = ssub.s32 %s9, 1
      %s182 = smul.u32 16, %s19
      %p183 = scmp.lt.s32.totalorder %s18, 1
      %s184 = scalar_select %p183, %s18, 1
      %p185 = scmp.lt.s32.totalorder %s182, 15
      %s186 = scalar_select %p185, %s182, 15
      %s187 = smul.addr %s184, 16
      %s188 = sadd.s32 %s186, %s187
      %s189 = smul.addr %s188, 4
      %s190 = scalar_lea.vmem %s0, %s189
      %p191 = pneg %p49
      %p192 = pneg %p46
      %p193 = scmp.lt.s32.totalorder %s18, 1
      %s194 = scalar_select %p193, %s18, 1
      %s195 = smul.addr %s194, 8
      %s196 = smul.addr %s195, 4
      %s197 = scalar_lea.vmem %s1, %s196
      %p198 = pneg %p75
      %p199 = pneg %p72
      %p200 = scmp.lt.s32.totalorder %s18, 1
      %s201 = scalar_select %p200, %s18, 1
      %s202 = scalar_lea.vmem %s2, %s201
      %p203 = pneg %p101
      %p204 = pneg %p98
      %p205 = pneg %p129
      %p206 = pneg %p126
      %s207 = smul.u32 16, %s19
      %p208 = scmp.lt.s32.totalorder %s18, 1
      %s209 = scalar_select %p208, %s18, 1
      %p210 = scmp.lt.s32.totalorder %s207, 15
      %s211 = scalar_select %p210, %s207, 15
      %s212 = smul.addr %s209, 16
      %s213 = sadd.s32 %s211, %s212
      %s214 = smul.addr %s213, 4
      %s215 = scalar_lea.vmem %s3, %s214
      %s216 = smul.u32 16, %s19
      %p217 = scmp.lt.s32.totalorder %s18, 1
      %s218 = scalar_select %p217, %s18, 1
      %p219 = scmp.lt.s32.totalorder %s216, 15
      %s220 = scalar_select %p219, %s216, 15
      %s221 = smul.addr %s218, 16
      %s222 = sadd.s32 %s220, %s221
      %s223 = smul.addr %s222, 4
      %s224 = scalar_lea.vmem %s0, %s223
      %s225 = smul.u32 16, %s19
      %p226 = scmp.lt.s32.totalorder %s18, 1
      %s227 = scalar_select %p226, %s18, 1
      %s228 = smul.addr %s227, 8
      %s229 = smul.addr %s228, 4
      %s230 = scalar_lea.vmem %s1, %s229
      %p231 = scmp.lt.s32.totalorder %s18, 1
      %s232 = scalar_select %p231, %s18, 1
      %s233 = scalar_lea.vmem %s2, %s232
      %s234 = smul.u32 16, %s19
      %p235 = scmp.lt.s32.totalorder %s18, 1
      %s236 = scalar_select %p235, %s18, 1
      %p237 = scmp.lt.s32.totalorder %s234, 15
      %s238 = scalar_select %p237, %s234, 15
      %s239 = smul.addr %s236, 16
      %s240 = sadd.s32 %s238, %s239
      %s241 = smul.addr %s240, 4
      %s242 = scalar_lea.vmem %s3, %s241
      %s243 = smul.u32 16, %s19
      %v245 = vld [vmem:[%s224] sm:$0xf]
      %v246 = vld [vmem:[%s224 + $0x4] sm:$0xf]
      %v247 = vld [vmem:[%s224 + $0x8] sm:$0xf]
      %v248 = vld [vmem:[%s224 + $0xc] sm:$0xf]
      %v249 = vld [vmem:[%s224 + $0x10] sm:$0xf]
      %v250 = vld [vmem:[%s224 + $0x14] sm:$0xf]
      %v251 = vld [vmem:[%s224 + $0x18] sm:$0xf]
      %v252 = vld [vmem:[%s224 + $0x1c] sm:$0xf]
      %v253 = vld [vmem:[%s224 + $0x20] sm:$0xf]
      %v254 = vld [vmem:[%s224 + $0x24] sm:$0xf]
      %v255 = vld [vmem:[%s224 + $0x28] sm:$0xf]
      %v256 = vld [vmem:[%s224 + $0x2c] sm:$0xf]
      %v257 = vld [vmem:[%s224 + $0x30] sm:$0xf]
      %v258 = vld [vmem:[%s224 + $0x34] sm:$0xf]
      %v259 = vld [vmem:[%s224 + $0x38] sm:$0xf]
      %v260 = vld [vmem:[%s224 + $0x3c] sm:$0xf]
      %v261 = vld [vmem:[%s230] sm:$0xf]
      %v262 = vld [vmem:[%s230 + $0x4] sm:$0xf]
      %v263 = vld [vmem:[%s230 + $0x8] sm:$0xf]
      %v264 = vld [vmem:[%s230 + $0xc] sm:$0xf]
      %v265 = vld [vmem:[%s230 + $0x10] sm:$0xf]
      %v266 = vld [vmem:[%s230 + $0x14] sm:$0xf]
      %v267 = vld [vmem:[%s230 + $0x18] sm:$0xf]
      %v268 = vld [vmem:[%s230 + $0x1c] sm:$0xf]
      %v269 = vld [vmem:[%s233] sm:$0x1]
      %v271 = vlaneseq
      %v272 = vshrl.u32 %v271, 7
      %v273 = vsub.s32 0, %v272
      %v274 = vrot.slane %v269, %v273
      %v292 = vunpack.c.l.b16 %v245
      %v293 = vunpack.c.l.b16 %v246
      %v294 = vunpack.c.l.b16 %v247
      %v295 = vunpack.c.l.b16 %v248
      %v296 = vunpack.c.l.b16 %v249
      %v297 = vunpack.c.l.b16 %v250
      %v298 = vunpack.c.l.b16 %v251
      %v299 = vunpack.c.l.b16 %v252
      %v300 = vunpack.c.l.b16 %v253
      %v301 = vunpack.c.l.b16 %v254
      %v302 = vunpack.c.l.b16 %v255
      %v303 = vunpack.c.l.b16 %v256
      %v304 = vunpack.c.l.b16 %v257
      %v305 = vunpack.c.l.b16 %v258
      %v306 = vunpack.c.l.b16 %v259
      %v307 = vunpack.c.l.b16 %v260
      %v308 = vpack.c.b16 %v293, %v292
      %v309 = vpack.c.b16 %v295, %v294
      %v310 = vpack.c.b16 %v297, %v296
      %v311 = vpack.c.b16 %v299, %v298
      %v312 = vpack.c.b16 %v301, %v300
      %v313 = vpack.c.b16 %v303, %v302
      %v314 = vpack.c.b16 %v305, %v304
      %v315 = vpack.c.b16 %v307, %v306
      %v324 = vunpack.c.l.b16 %v261
      %v325 = vunpack.c.l.b16 %v262
      %v326 = vunpack.c.l.b16 %v263
      %v327 = vunpack.c.l.b16 %v264
      %v328 = vunpack.c.l.b16 %v265
      %v329 = vunpack.c.l.b16 %v266
      %v330 = vunpack.c.l.b16 %v267
      %v331 = vunpack.c.l.b16 %v268
      %v332 = vpack.c.b16 %v325, %v324
      %v333 = vpack.c.b16 %v327, %v326
      %v334 = vpack.c.b16 %v329, %v328
      %v335 = vpack.c.b16 %v331, %v330
      %vm340 = vcmask 523264
      %v342 = vsel %vm340, %v308, 0
      %v345 = vsel %vm340, %v309, 0
      %v348 = vsel %vm340, %v310, 0
      %v351 = vsel %vm340, %v311, 0
      %v354 = vsel %vm340, %v312, 0
      %v357 = vsel %vm340, %v313, 0
      %v360 = vsel %vm340, %v314, 0
      %v363 = vsel %vm340, %v315, 0
      %365 = vmatprep.subr.bf16.mxu0 0
      %366 = vmatpush1.bf16.msra.mxu0 %v332
      %367 = vmatprep.subr.bf16.mxu0 0
      %368 = vmatpush1.bf16.msra.mxu0 %v333
      %369 = vmatprep.subr.bf16.mxu0 0
      %370 = vmatpush1.bf16.msra.mxu0 %v334
      %371 = vmatprep.subr.bf16.mxu0 0
      %372 = vmatpush1.bf16.msra.mxu0 %v335
      %373 = vmatprep.subr.bf16.mxu0 0
      %374 = vmatpush1.bf16.msra.mxu0 0
      %375 = vmatprep.subr.bf16.mxu0 0
      %376 = vmatpush1.bf16.msra.mxu0 0
      %377 = vmatprep.subr.bf16.mxu0 0
      %378 = vmatpush1.bf16.msra.mxu0 0
      %379 = vmatprep.subr.bf16.mxu0 0
      %380 = vmatpush1.bf16.msra.mxu0 0
      %381 = vmatprep.subr.bf16.mxu0 0
      %382 = vmatpush1.bf16.msra.mxu0 0
      %383 = vmatprep.subr.bf16.mxu0 0
      %384 = vmatpush1.bf16.msra.mxu0 0
      %385 = vmatprep.subr.bf16.mxu0 0
      %386 = vmatpush1.bf16.msra.mxu0 0
      %387 = vmatprep.subr.bf16.mxu0 0
      %388 = vmatpush1.bf16.msra.mxu0 0
      %389 = vmatprep.subr.bf16.mxu0 0
      %390 = vmatpush1.bf16.msra.mxu0 0
      %391 = vmatprep.subr.bf16.mxu0 0
      %392 = vmatpush1.bf16.msra.mxu0 0
      %393 = vmatprep.subr.bf16.mxu0 0
      %394 = vmatpush1.bf16.msra.mxu0 0
      %395 = vmatprep.subr.bf16.mxu0 0
      %396 = vmatpush1.bf16.msra.mxu0 0
      %397 = vmatprep.mubr.bf16.mxu0 0
      %398 = vmatmul.mubr.bf16.gmra.mrb[0].mxu0 %v342
      %v399 = vpop.f32.mrb[0].mxu0
      %v400 = vadd.f32 %v274, %v399
      %v401 = vpop.f32.mrb[0].mxu0
      %v402 = vpop.f32.mrb[0].mxu0
      %v403 = vadd.f32 %v274, %v402
      %v404 = vpop.f32.mrb[0].mxu0
      %405 = vmatprep.mubr.bf16.mxu0 0
      %406 = vmatmul.mubr.bf16.gmra.mrb[0].mxu0 %v345
      %v407 = vpop.f32.mrb[0].mxu0
      %v408 = vadd.f32 %v274, %v407
      %v409 = vpop.f32.mrb[0].mxu0
      %v410 = vpop.f32.mrb[0].mxu0
      %v411 = vadd.f32 %v274, %v410
      %v412 = vpop.f32.mrb[0].mxu0
      %413 = vmatprep.mubr.bf16.mxu0 0
      %414 = vmatmul.mubr.bf16.gmra.mrb[0].mxu0 %v348
      %v415 = vpop.f32.mrb[0].mxu0
      %v416 = vadd.f32 %v274, %v415
      %v417 = vpop.f32.mrb[0].mxu0
      %v418 = vpop.f32.mrb[0].mxu0
      %v419 = vadd.f32 %v274, %v418
      %v420 = vpop.f32.mrb[0].mxu0
      %421 = vmatprep.mubr.bf16.mxu0 0
      %422 = vmatmul.mubr.bf16.gmra.mrb[0].mxu0 %v351
      %v423 = vpop.f32.mrb[0].mxu0
      %v424 = vadd.f32 %v274, %v423
      %v425 = vpop.f32.mrb[0].mxu0
      %v426 = vpop.f32.mrb[0].mxu0
      %v427 = vadd.f32 %v274, %v426
      %v428 = vpop.f32.mrb[0].mxu0
      %429 = vmatprep.mubr.bf16.mxu0 0
      %430 = vmatmul.mubr.bf16.gmra.mrb[0].mxu0 %v354
      %v431 = vpop.f32.mrb[0].mxu0
      %v432 = vadd.f32 %v274, %v431
      %v433 = vpop.f32.mrb[0].mxu0
      %v434 = vpop.f32.mrb[0].mxu0
      %v435 = vadd.f32 %v274, %v434
      %v436 = vpop.f32.mrb[0].mxu0
      %437 = vmatprep.mubr.bf16.mxu0 0
      %438 = vmatmul.mubr.bf16.gmra.mrb[0].mxu0 %v357
      %v439 = vpop.f32.mrb[0].mxu0
      %v440 = vadd.f32 %v274, %v439
      %v441 = vpop.f32.mrb[0].mxu0
      %v442 = vpop.f32.mrb[0].mxu0
      %v443 = vadd.f32 %v274, %v442
      %v444 = vpop.f32.mrb[0].mxu0
      %445 = vmatprep.mubr.bf16.mxu0 0
      %446 = vmatmul.mubr.bf16.gmra.mrb[0].mxu0 %v360
      %v447 = vpop.f32.mrb[0].mxu0
      %v448 = vadd.f32 %v274, %v447
      %v449 = vpop.f32.mrb[0].mxu0
      %v450 = vpop.f32.mrb[0].mxu0
      %v451 = vadd.f32 %v274, %v450
      %v452 = vpop.f32.mrb[0].mxu0
      %453 = vmatprep.mubr.bf16.mxu0 0
      %454 = vmatmul.mubr.bf16.gmra.mrb[0].mxu0 %v363
      %v455 = vpop.f32.mrb[0].mxu0
      %v456 = vadd.f32 %v274, %v455
      %v457 = vpop.f32.mrb[0].mxu0
      %v458 = vpop.f32.mrb[0].mxu0
      %v459 = vadd.f32 %v274, %v458
      %v460 = vpop.f32.mrb[0].mxu0
      %461 = vdwg.mxu0
      %vm462 = vcmp.ge.f32.partialorder %v400, 0.0
      %vm463 = vcmp.ge.f32.partialorder %v403, 0.0
      %vm464 = vcmp.ge.f32.partialorder %v408, 0.0
      %vm465 = vcmp.ge.f32.partialorder %v411, 0.0
      %vm466 = vcmp.ge.f32.partialorder %v416, 0.0
      %vm467 = vcmp.ge.f32.partialorder %v419, 0.0
      %vm468 = vcmp.ge.f32.partialorder %v424, 0.0
      %vm469 = vcmp.ge.f32.partialorder %v427, 0.0
      %vm470 = vcmp.ge.f32.partialorder %v432, 0.0
      %vm471 = vcmp.ge.f32.partialorder %v435, 0.0
      %vm472 = vcmp.ge.f32.partialorder %v440, 0.0
      %vm473 = vcmp.ge.f32.partialorder %v443, 0.0
      %vm474 = vcmp.ge.f32.partialorder %v448, 0.0
      %vm475 = vcmp.ge.f32.partialorder %v451, 0.0
      %vm476 = vcmp.ge.f32.partialorder %v456, 0.0
      %vm477 = vcmp.ge.f32.partialorder %v459, 0.0
      %v478 = vmul.f32 %v400, 0.2
      %v479 = vmul.f32 %v403, 0.2
      %v480 = vmul.f32 %v408, 0.2
      %v481 = vmul.f32 %v411, 0.2
      %v482 = vmul.f32 %v416, 0.2
      %v483 = vmul.f32 %v419, 0.2
      %v484 = vmul.f32 %v424, 0.2
      %v485 = vmul.f32 %v427, 0.2
      %v486 = vmul.f32 %v432, 0.2
      %v487 = vmul.f32 %v435, 0.2
      %v488 = vmul.f32 %v440, 0.2
      %v489 = vmul.f32 %v443, 0.2
      %v490 = vmul.f32 %v448, 0.2
      %v491 = vmul.f32 %v451, 0.2
      %v492 = vmul.f32 %v456, 0.2
      %v493 = vmul.f32 %v459, 0.2
      %v494 = vsel %vm462, %v400, %v478
      %v495 = vsel %vm463, %v403, %v479
      %v496 = vsel %vm464, %v408, %v480
      %v497 = vsel %vm465, %v411, %v481
      %v498 = vsel %vm466, %v416, %v482
      %v499 = vsel %vm467, %v419, %v483
      %v500 = vsel %vm468, %v424, %v484
      %v501 = vsel %vm469, %v427, %v485
      %v502 = vsel %vm470, %v432, %v486
      %v503 = vsel %vm471, %v435, %v487
      %v504 = vsel %vm472, %v440, %v488
      %v505 = vsel %vm473, %v443, %v489
      %v506 = vsel %vm474, %v448, %v490
      %v507 = vsel %vm475, %v451, %v491
      %v508 = vsel %vm476, %v456, %v492
      %v509 = vsel %vm477, %v459, %v493
      %v510 = vpack.c.bf16 %v495, %v494
      %v511 = vpack.c.bf16 %v497, %v496
      %v512 = vpack.c.bf16 %v499, %v498
      %v513 = vpack.c.bf16 %v501, %v500
      %v514 = vpack.c.bf16 %v503, %v502
      %v515 = vpack.c.bf16 %v505, %v504
      %v516 = vpack.c.bf16 %v507, %v506
      %v517 = vpack.c.bf16 %v509, %v508
      %v526 = vunpack.c.l.b16 %v510
      %v527 = vunpack.c.h.b16 %v510
      %v528 = vunpack.c.l.b16 %v511
      %v529 = vunpack.c.h.b16 %v511
      %v530 = vunpack.c.l.b16 %v512
      %v531 = vunpack.c.h.b16 %v512
      %v532 = vunpack.c.l.b16 %v513
      %v533 = vunpack.c.h.b16 %v513
      %v534 = vunpack.c.l.b16 %v514
      %v535 = vunpack.c.h.b16 %v514
      %v536 = vunpack.c.l.b16 %v515
      %v537 = vunpack.c.h.b16 %v515
      %v538 = vunpack.c.l.b16 %v516
      %v539 = vunpack.c.h.b16 %v516
      %v540 = vunpack.c.l.b16 %v517
      %v541 = vunpack.c.h.b16 %v517
      %v542 = vpack.c.b16 %v526, %v526
      %v543 = vpack.c.b16 %v527, %v527
      %v544 = vpack.c.b16 %v528, %v528
      %v545 = vpack.c.b16 %v529, %v529
      %v546 = vpack.c.b16 %v530, %v530
      %v547 = vpack.c.b16 %v531, %v531
      %v548 = vpack.c.b16 %v532, %v532
      %v549 = vpack.c.b16 %v533, %v533
      %v550 = vpack.c.b16 %v534, %v534
      %v551 = vpack.c.b16 %v535, %v535
      %v552 = vpack.c.b16 %v536, %v536
      %v553 = vpack.c.b16 %v537, %v537
      %v554 = vpack.c.b16 %v538, %v538
      %v555 = vpack.c.b16 %v539, %v539
      %v556 = vpack.c.b16 %v540, %v540
      %v557 = vpack.c.b16 %v541, %v541
      %vm574 = vcmask 519168
      %575 = vst.msk [vmem:[%s242] sm:$0xf] %vm574, %v542
      %576 = vst.msk [vmem:[%s242 + $0x4] sm:$0xf] %vm574, %v543
      %577 = vst.msk [vmem:[%s242 + $0x8] sm:$0xf] %vm574, %v544
      %578 = vst.msk [vmem:[%s242 + $0xc] sm:$0xf] %vm574, %v545
      %579 = vst.msk [vmem:[%s242 + $0x10] sm:$0xf] %vm574, %v546
      %580 = vst.msk [vmem:[%s242 + $0x14] sm:$0xf] %vm574, %v547
      %581 = vst.msk [vmem:[%s242 + $0x18] sm:$0xf] %vm574, %v548
      %582 = vst.msk [vmem:[%s242 + $0x1c] sm:$0xf] %vm574, %v549
      %583 = vst.msk [vmem:[%s242 + $0x20] sm:$0xf] %vm574, %v550
      %584 = vst.msk [vmem:[%s242 + $0x24] sm:$0xf] %vm574, %v551
      %585 = vst.msk [vmem:[%s242 + $0x28] sm:$0xf] %vm574, %v552
      %586 = vst.msk [vmem:[%s242 + $0x2c] sm:$0xf] %vm574, %v553
      %587 = vst.msk [vmem:[%s242 + $0x30] sm:$0xf] %vm574, %v554
      %588 = vst.msk [vmem:[%s242 + $0x34] sm:$0xf] %vm574, %v555
      %589 = vst.msk [vmem:[%s242 + $0x38] sm:$0xf] %vm574, %v556
      %590 = vst.msk [vmem:[%s242 + $0x3c] sm:$0xf] %vm574, %v557
      %s591 = smul.u32 16, %s19
      %p592 = scmp.lt.s32.totalorder %s18, 1
      %s593 = scalar_select %p592, %s18, 1
      %p594 = scmp.lt.s32.totalorder %s591, 15
      %s595 = scalar_select %p594, %s591, 15
      %s596 = smul.addr %s593, 16
      %s597 = sadd.s32 %s595, %s596
      %s598 = smul.addr %s597, 4
      %s599 = scalar_lea.vmem %s3, %s598
      // Predicated region
      $region33: #{mstau_pred_forward.6} parent=31 // pred_check
        %p600 = pneg %p126
      $region34: #{mstau_pred_forward.6} parent=31 // pred_check_branch
        %602 = sbr.rel (%p600) target = $region36
      $region35: #{mstau_pred_forward.6} parent=31 // pred_region
        %s603 = smul.u32 16, %s19
      $region36: #{mstau_pred_forward.6} parent=31 // pred_fallthru
        _
    $region32: #{mstau_pred_forward.6} parent=5 // pred_fallthru
      _
    %p604 = scmp.le.s32.totalorder 2, %s9
    // Predicated region
    $region37: #{mstau_pred_forward.6} parent=5 // pred_check
      %p605 = pneg %p604
    $region38: #{mstau_pred_forward.6} parent=5 // pred_check_branch
      %607 = sbr.rel (%p605) target = $region40
    $region39: #{mstau_pred_forward.6} parent=5 // pred_region
      %s608 = ssub.s32 %s9, 2
      // Predicated region
      $region41: #{mstau_pred_forward.6} parent=39 // pred_check
        %p609 = pneg %p132
      $region42: #{mstau_pred_forward.6} parent=39 // pred_check_branch
        %611 = sbr.rel (%p609) target = $region44
      $region43: #{mstau_pred_forward.6} parent=39 // pred_region
        %s612 = smul.u32 16, %s21
        %p613 = scmp.lt.s32.totalorder %s20, 1
        %s614 = scalar_select %p613, %s20, 1
        %p615 = scmp.lt.s32.totalorder %s612, 15
        %s616 = scalar_select %p615, %s612, 15
        %s617 = smul.addr %s614, 16
        %s618 = sadd.s32 %s616, %s617
        %s619 = smul.addr %s618, 4
        %s620 = scalar_lea.vmem %s3, %s619
      $region44: #{mstau_pred_forward.6} parent=39 // pred_fallthru
        _
    $region40: #{mstau_pred_forward.6} parent=5 // pred_fallthru
      _
  $region6: #{mstau_pred_forward.6} parent=0 // loop_footer
    %s13 = sadd.s32 1, %s9
  $region7: #{mstau_pred_forward.6} parent=0 // loop_footer_branch
    %8 = sbr.rel target = $region3
  $region8: #{mstau_pred_forward.6} parent=0 // loop_exit
    _

// kernel: mstau_pred_forward.7
$region0: #{mstau_pred_forward.7}
  #allocation0 [shape = 'u32[]', space=smem, size = 0x4, offset = 0x4, fixed_abs, tag = 'smem constant byte address 0x4 - core index']
  #allocation1 [shape = 'u32[144,128]{1,0:T(1,128)}', space=vmem, size = 0x12000, scoped, tag = 'internal scratch']
  %s0 = inlined_call_operand.vmem [shape: bf16[2,512,16], index: 0, kind: input, shape index: {}]
  %s1 = inlined_call_operand.vmem [shape: bf16[2,16,2], index: 1, kind: input, shape index: {}]
  %s2 = inlined_call_operand.vmem [shape: f32[2,1,2], index: 2, kind: input, shape index: {}]
  %s3 = inlined_call_operand.vmem [shape: bf16[2,512,2], index: 3, kind: output, shape index: {}]
  %s4 = sld [smem:[#allocation0]]
  $region45: #{mstau_pred_forward.7} parent=0
    _
  %s6 = ssub.s32 1, %s4
  %s7 = scalar_select 0, %s6, %s4
  loop: start=0, step=1, limit=4
  $region2: #{mstau_pred_forward.7} parent=0 // loop_pre_header
    _
  $region3: #{mstau_pred_forward.7} parent=0 // loop_header
    %s9 = sphi 0, %s13
    %p10 = scmp.ge.s32.totalorder %s9, 4
    %s16 = sphi 0, %s28
    %s17 = sphi 0, %s24
    %s18 = sphi 0, %s16
    %s19 = sphi 0, %s17
    %s20 = sphi 0, %s18
    %s21 = sphi 0, %s19
    %s33 = sphi 0, %s35
    %s36 = sphi 0, %s33
    %s37 = sphi 0, %s36
    %s53 = sphi 0, %s37
    %s59 = sphi 0, %s61
    %s62 = sphi 0, %s59
    %s63 = sphi 0, %s62
    %s79 = sphi 0, %s63
    %s85 = sphi 0, %s87
    %s88 = sphi 0, %s85
    %s89 = sphi 0, %s88
    %s105 = sphi 0, %s89
    %s113 = sphi 0, %s115
    %s116 = sphi 0, %s113
    %s117 = sphi 0, %s116
    %s133 = sphi 0, %s117
  $region4: #{mstau_pred_forward.7} parent=0 // loop_header_branch
    %12 = sbr.rel (%p10) target = $region8
  $region5: #{mstau_pred_forward.7} parent=0 // loop_body
    %s14 = ssub.s32 %s9, 1
    %s15 = ssub.s32 %s9, 2
    %s22 = sadd.s32 1, %s17
    %p23 = scmp.ge.s32.totalorder %s22, 1
    %s24 = scalar_select %p23, 0, %s22
    %s25 = sadd.s32 1, %s16
    %s26 = scalar_select %p23, %s25, %s16
    %p27 = scmp.ge.s32.totalorder %s26, 2
    %s28 = scalar_select %p27, 0, %s26
    %s29 = ssub.s32 %s16, %s28
    %s30 = ssub.s32 %s17, %s24
    %s31 = sor.u32 %s29, %s30
    %p32 = scmp.eq.s32.totalorder %s31, 0
    %s34 = sadd.s32 %s33, 1
    %s35 = scalar_select %p32, %s33, %s34
    %p38 = pneg %p32
    %p39 = scmp.eq.s32.totalorder %s9, 1
    %p40 = por %p38, %p39
    %p41 = scmp.ne.s32.totalorder %s33, %s36
    %p42 = scmp.eq.s32.totalorder %s9, 0
    %p43 = por %p41, %p42
    %p44 = scmp.ne.s32.totalorder %s33, %s36
    %p45 = scmp.eq.s32.totalorder %s14, 1
    %p46 = por %p44, %p45
    %p47 = scmp.ne.s32.totalorder %s36, %s37
    %p48 = scmp.eq.s32.totalorder %s14, 0
    %p49 = por %p47, %p48
    %p50 = scmp.ne.s32.totalorder %s36, %s37
    %p51 = scmp.eq.s32.totalorder %s15, 1
    %p52 = por %p50, %p51
    %p54 = scmp.ne.s32.totalorder %s37, %s53
    %p55 = scmp.eq.s32.totalorder %s15, 0
    %p56 = por %p54, %p55
    %s57 = ssub.s32 %s16, %s28
    %p58 = scmp.eq.s32.totalorder %s57, 0
    %s60 = sadd.s32 %s59, 1
    %s61 = scalar_select %p58, %s59, %s60
    %p64 = pneg %p58
    %p65 = scmp.eq.s32.totalorder %s9, 1
    %p66 = por %p64, %p65
    %p67 = scmp.ne.s32.totalorder %s59, %s62
    %p68 = scmp.eq.s32.totalorder %s9, 0
    %p69 = por %p67, %p68
    %p70 = scmp.ne.s32.totalorder %s59, %s62
    %p71 = scmp.eq.s32.totalorder %s14, 1
    %p72 = por %p70, %p71
    %p73 = scmp.ne.s32.totalorder %s62, %s63
    %p74 = scmp.eq.s32.totalorder %s14, 0
    %p75 = por %p73, %p74
    %p76 = scmp.ne.s32.totalorder %s62, %s63
    %p77 = scmp.eq.s32.totalorder %s15, 1
    %p78 = por %p76, %p77
    %p80 = scmp.ne.s32.totalorder %s63, %s79
    %p81 = scmp.eq.s32.totalorder %s15, 0
    %p82 = por %p80, %p81
    %s83 = ssub.s32 %s16, %s28
    %p84 = scmp.eq.s32.totalorder %s83, 0
    %s86 = sadd.s32 %s85, 1
    %s87 = scalar_select %p84, %s85, %s86
    %p90 = pneg %p84
    %p91 = scmp.eq.s32.totalorder %s9, 1
    %p92 = por %p90, %p91
    %p93 = scmp.ne.s32.totalorder %s85, %s88
    %p94 = scmp.eq.s32.totalorder %s9, 0
    %p95 = por %p93, %p94
    %p96 = scmp.ne.s32.totalorder %s85, %s88
    %p97 = scmp.eq.s32.totalorder %s14, 1
    %p98 = por %p96, %p97
    %p99 = scmp.ne.s32.totalorder %s88, %s89
    %p100 = scmp.eq.s32.totalorder %s14, 0
    %p101 = por %p99, %p100
    %p102 = scmp.ne.s32.totalorder %s88, %s89
    %p103 = scmp.eq.s32.totalorder %s15, 1
    %p104 = por %p102, %p103
    %p106 = scmp.ne.s32.totalorder %s89, %s105
    %p107 = scmp.eq.s32.totalorder %s15, 0
    %p108 = por %p106, %p107
    %s109 = ssub.s32 %s16, %s28
    %s110 = ssub.s32 %s17, %s24
    %s111 = sor.u32 %s109, %s110
    %p112 = scmp.eq.s32.totalorder %s111, 0
    %s114 = sadd.s32 %s113, 1
    %s115 = scalar_select %p112, %s113, %s114
    %p118 = pneg %p112
    %p119 = scmp.eq.s32.totalorder %s9, 1
    %p120 = por %p118, %p119
    %p121 = scmp.ne.s32.totalorder %s113, %s116
    %p122 = scmp.eq.s32.totalorder %s9, 0
    %p123 = por %p121, %p122
    %p124 = scmp.ne.s32.totalorder %s113, %s116
    %p125 = scmp.eq.s32.totalorder %s14, 1
    %p126 = por %p124, %p125
    %p127 = scmp.ne.s32.totalorder %s116, %s117
    %p128 = scmp.eq.s32.totalorder %s14, 0
    %p129 = por %p127, %p128
    %p130 = scmp.ne.s32.totalorder %s116, %s117
    %p131 = scmp.eq.s32.totalorder %s15, 1
    %p132 = por %p130, %p131
    %p134 = scmp.ne.s32.totalorder %s117, %s133
    %p135 = scmp.eq.s32.totalorder %s15, 0
    %p136 = por %p134, %p135
    %p137 = scmp.le.s32.totalorder 1, %s9
    %p138 = scmp.lt.s32.totalorder %s9, 3
    %p139 = pnand %p137, %p138
    %p140 = pneg %p139
    // Predicated region
    $region9: #{mstau_pred_forward.7} parent=5 // pred_check
      _
    $region10: #{mstau_pred_forward.7} parent=5 // pred_check_branch
      %142 = sbr.rel (%p139) target = $region12
    $region11: #{mstau_pred_forward.7} parent=5 // pred_region
      %s143 = ssub.s32 %s9, 1
    $region12: #{mstau_pred_forward.7} parent=5 // pred_fallthru
      _
    %p144 = scmp.lt.s32.totalorder %s9, 2
    // Predicated region
    $region13: #{mstau_pred_forward.7} parent=5 // pred_check
      %p145 = pneg %p144
    $region14: #{mstau_pred_forward.7} parent=5 // pred_check_branch
      %147 = sbr.rel (%p145) target = $region16
    $region15: #{mstau_pred_forward.7} parent=5 // pred_region
      // Predicated region
      $region17: #{mstau_pred_forward.7} parent=15 // pred_check
        %p148 = pneg %p43
      $region18: #{mstau_pred_forward.7} parent=15 // pred_check_branch
        %150 = sbr.rel (%p148) target = $region20
      $region19: #{mstau_pred_forward.7} parent=15 // pred_region
        %s151 = smul.u32 64, %s17
        %p152 = scmp.lt.s32.totalorder %s16, 1
        %s153 = scalar_select %p152, %s16, 1
        %p154 = scmp.lt.s32.totalorder %s151, 63
        %s155 = scalar_select %p154, %s151, 63
        %s156 = smul.addr %s153, 64
        %s157 = sadd.s32 %s155, %s156
        %s158 = smul.addr %s157, 4
        %s159 = scalar_lea.vmem %s0, %s158
        %s160 = smul.u32 64, %s17
      $region20: #{mstau_pred_forward.7} parent=15 // pred_fallthru
        _
      // Predicated region
      $region21: #{mstau_pred_forward.7} parent=15 // pred_check
        %p161 = pneg %p69
      $region22: #{mstau_pred_forward.7} parent=15 // pred_check_branch
        %163 = sbr.rel (%p161) target = $region24
      $region23: #{mstau_pred_forward.7} parent=15 // pred_region
        %p164 = scmp.lt.s32.totalorder %s16, 1
        %s165 = scalar_select %p164, %s16, 1
        %s166 = smul.addr %s165, 2
        %s167 = smul.addr %s166, 4
        %s168 = scalar_lea.vmem %s1, %s167
      $region24: #{mstau_pred_forward.7} parent=15 // pred_fallthru
        _
      // Predicated region
      $region25: #{mstau_pred_forward.7} parent=15 // pred_check
        %p169 = pneg %p95
      $region26: #{mstau_pred_forward.7} parent=15 // pred_check_branch
        %171 = sbr.rel (%p169) target = $region28
      $region27: #{mstau_pred_forward.7} parent=15 // pred_region
        %p172 = scmp.lt.s32.totalorder %s16, 1
        %s173 = scalar_select %p172, %s16, 1
        %s174 = scalar_lea.vmem %s2, %s173
      $region28: #{mstau_pred_forward.7} parent=15 // pred_fallthru
        _
    $region16: #{mstau_pred_forward.7} parent=5 // pred_fallthru
      _
    %p175 = scmp.le.s32.totalorder 1, %s9
    %p176 = scmp.lt.s32.totalorder %s9, 3
    %p177 = pnand %p175, %p176
    %p178 = pneg %p177
    // Predicated region
    $region29: #{mstau_pred_forward.7} parent=5 // pred_check
      _
    $region30: #{mstau_pred_forward.7} parent=5 // pred_check_branch
      %180 = sbr.rel (%p177) target = $region32
    $region31: #{mstau_pred_forward.7} parent=5 // pred_region
      %s181 = ssub.s32 %s9, 1
      %s182 = smul.u32 64, %s19
      %p183 = scmp.lt.s32.totalorder %s18, 1
      %s184 = scalar_select %p183, %s18, 1
      %p185 = scmp.lt.s32.totalorder %s182, 63
      %s186 = scalar_select %p185, %s182, 63
      %s187 = smul.addr %s184, 64
      %s188 = sadd.s32 %s186, %s187
      %s189 = smul.addr %s188, 4
      %s190 = scalar_lea.vmem %s0, %s189
      %p191 = pneg %p49
      %p192 = pneg %p46
      %p193 = scmp.lt.s32.totalorder %s18, 1
      %s194 = scalar_select %p193, %s18, 1
      %s195 = smul.addr %s194, 2
      %s196 = smul.addr %s195, 4
      %s197 = scalar_lea.vmem %s1, %s196
      %p198 = pneg %p75
      %p199 = pneg %p72
      %p200 = scmp.lt.s32.totalorder %s18, 1
      %s201 = scalar_select %p200, %s18, 1
      %s202 = scalar_lea.vmem %s2, %s201
      %p203 = pneg %p101
      %p204 = pneg %p98
      %p205 = pneg %p129
      %p206 = pneg %p126
      %s207 = smul.u32 64, %s19
      %p208 = scmp.lt.s32.totalorder %s18, 1
      %s209 = scalar_select %p208, %s18, 1
      %p210 = scmp.lt.s32.totalorder %s207, 63
      %s211 = scalar_select %p210, %s207, 63
      %s212 = smul.addr %s209, 64
      %s213 = sadd.s32 %s211, %s212
      %s214 = smul.addr %s213, 4
      %s215 = scalar_lea.vmem %s3, %s214
      %s216 = smul.u32 64, %s19
      %p217 = scmp.lt.s32.totalorder %s18, 1
      %s218 = scalar_select %p217, %s18, 1
      %p219 = scmp.lt.s32.totalorder %s216, 63
      %s220 = scalar_select %p219, %s216, 63
      %s221 = smul.addr %s218, 64
      %s222 = sadd.s32 %s220, %s221
      %s223 = smul.addr %s222, 4
      %s224 = scalar_lea.vmem %s0, %s223
      %s225 = smul.u32 64, %s19
      %p226 = scmp.lt.s32.totalorder %s18, 1
      %s227 = scalar_select %p226, %s18, 1
      %s228 = smul.addr %s227, 2
      %s229 = smul.addr %s228, 4
      %s230 = scalar_lea.vmem %s1, %s229
      %p231 = scmp.lt.s32.totalorder %s18, 1
      %s232 = scalar_select %p231, %s18, 1
      %s233 = scalar_lea.vmem %s2, %s232
      %s234 = smul.u32 64, %s19
      %p235 = scmp.lt.s32.totalorder %s18, 1
      %s236 = scalar_select %p235, %s18, 1
      %p237 = scmp.lt.s32.totalorder %s234, 63
      %s238 = scalar_select %p237, %s234, 63
      %s239 = smul.addr %s236, 64
      %s240 = sadd.s32 %s238, %s239
      %s241 = smul.addr %s240, 4
      %s242 = scalar_lea.vmem %s3, %s241
      %s243 = smul.u32 64, %s19
      %v245 = vld [vmem:[%s224] sm:$0xf]
      %v246 = vld [vmem:[%s224 + $0x4] sm:$0xf]
      %v247 = vld [vmem:[%s224 + $0x8] sm:$0xf]
      %v248 = vld [vmem:[%s224 + $0xc] sm:$0xf]
      %v249 = vld [vmem:[%s224 + $0x10] sm:$0xf]
      %v250 = vld [vmem:[%s224 + $0x14] sm:$0xf]
      %v251 = vld [vmem:[%s224 + $0x18] sm:$0xf]
      %v252 = vld [vmem:[%s224 + $0x1c] sm:$0xf]
      %v253 = vld [vmem:[%s224 + $0x20] sm:$0xf]
      %v254 = vld [vmem:[%s224 + $0x24] sm:$0xf]
      %v255 = vld [vmem:[%s224 + $0x28] sm:$0xf]
      %v256 = vld [vmem:[%s224 + $0x2c] sm:$0xf]
      %v257 = vld [vmem:[%s224 + $0x30] sm:$0xf]
      %v258 = vld [vmem:[%s224 + $0x34] sm:$0xf]
      %v259 = vld [vmem:[%s224 + $0x38] sm:$0xf]
      %v260 = vld [vmem:[%s224 + $0x3c] sm:$0xf]
      %v261 = vld [vmem:[%s224 + $0x40] sm:$0xf]
      %v262 = vld [vmem:[%s224 + $0x44] sm:$0xf]
      %v263 = vld [vmem:[%s224 + $0x48] sm:$0xf]
      %v264 = vld [vmem:[%s224 + $0x4c] sm:$0xf]
      %v265 = vld [vmem:[%s224 + $0x50] sm:$0xf]
      %v266 = vld [vmem:[%s224 + $0x54] sm:$0xf]
      %v267 = vld [vmem:[%s224 + $0x58] sm:$0xf]
      %v268 = vld [vmem:[%s224 + $0x5c] sm:$0xf]
      %v269 = vld [vmem:[%s224 + $0x60] sm:$0xf]
      %v270 = vld [vmem:[%s224 + $0x64] sm:$0xf]
      %v271 = vld [vmem:[%s224 + $0x68] sm:$0xf]
      %v272 = vld [vmem:[%s224 + $0x6c] sm:$0xf]
      %v273 = vld [vmem:[%s224 + $0x70] sm:$0xf]
      %v274 = vld [vmem:[%s224 + $0x74] sm:$0xf]
      %v275 = vld [vmem:[%s224 + $0x78] sm:$0xf]
      %v276 = vld [vmem:[%s224 + $0x7c] sm:$0xf]
      %v277 = vld [vmem:[%s224 + $0x80] sm:$0xf]
      %v278 = vld [vmem:[%s224 + $0x84] sm:$0xf]
      %v279 = vld [vmem:[%s224 + $0x88] sm:$0xf]
      %v280 = vld [vmem:[%s224 + $0x8c] sm:$0xf]
      %v281 = vld [vmem:[%s224 + $0x90] sm:$0xf]
      %v282 = vld [vmem:[%s224 + $0x94] sm:$0xf]
      %v283 = vld [vmem:[%s224 + $0x98] sm:$0xf]
      %v284 = vld [vmem:[%s224 + $0x9c] sm:$0xf]
      %v285 = vld [vmem:[%s224 + $0xa0] sm:$0xf]
      %v286 = vld [vmem:[%s224 + $0xa4] sm:$0xf]
      %v287 = vld [vmem:[%s224 + $0xa8] sm:$0xf]
      %v288 = vld [vmem:[%s224 + $0xac] sm:$0xf]
      %v289 = vld [vmem:[%s224 + $0xb0] sm:$0xf]
      %v290 = vld [vmem:[%s224 + $0xb4] sm:$0xf]
      %v291 = vld [vmem:[%s224 + $0xb8] sm:$0xf]
      %v292 = vld [vmem:[%s224 + $0xbc] sm:$0xf]
      %v293 = vld [vmem:[%s224 + $0xc0] sm:$0xf]
      %v294 = vld [vmem:[%s224 + $0xc4] sm:$0xf]
      %v295 = vld [vmem:[%s224 + $0xc8] sm:$0xf]
      %v296 = vld [vmem:[%s224 + $0xcc] sm:$0xf]
      %v297 = vld [vmem:[%s224 + $0xd0] sm:$0xf]
      %v298 = vld [vmem:[%s224 + $0xd4] sm:$0xf]
      %v299 = vld [vmem:[%s224 + $0xd8] sm:$0xf]
      %v300 = vld [vmem:[%s224 + $0xdc] sm:$0xf]
      %v301 = vld [vmem:[%s224 + $0xe0] sm:$0xf]
      %v302 = vld [vmem:[%s224 + $0xe4] sm:$0xf]
      %v303 = vld [vmem:[%s224 + $0xe8] sm:$0xf]
      %v304 = vld [vmem:[%s224 + $0xec] sm:$0xf]
      %v305 = vld [vmem:[%s224 + $0xf0] sm:$0xf]
      %v306 = vld [vmem:[%s224 + $0xf4] sm:$0xf]
      %v307 = vld [vmem:[%s224 + $0xf8] sm:$0xf]
      %v308 = vld [vmem:[%s224 + $0xfc] sm:$0xf]
      %v309 = vld [vmem:[%s230] sm:$0xf]
      %v310 = vld [vmem:[%s230 + $0x4] sm:$0xf]
      %v311 = vld [vmem:[%s233] sm:$0x1]
      %v313 = vlaneseq
      %v314 = vshrl.u32 %v313, 7
      %v315 = vsub.s32 0, %v314
      %v316 = vrot.slane %v311, %v315
      %v382 = vunpack.c.l.b16 %v245
      %v383 = vunpack.c.l.b16 %v246
      %v384 = vunpack.c.l.b16 %v247
      %v385 = vunpack.c.l.b16 %v248
      %v386 = vunpack.c.l.b16 %v249
      %v387 = vunpack.c.l.b16 %v250
      %v388 = vunpack.c.l.b16 %v251
      %v389 = vunpack.c.l.b16 %v252
      %v390 = vunpack.c.l.b16 %v253
      %v391 = vunpack.c.l.b16 %v254
      %v392 = vunpack.c.l.b16 %v255
      %v393 = vunpack.c.l.b16 %v256
      %v394 = vunpack.c.l.b16 %v257
      %v395 = vunpack.c.l.b16 %v258
      %v396 = vunpack.c.l.b16 %v259
      %v397 = vunpack.c.l.b16 %v260
      %v398 = vunpack.c.l.b16 %v261
      %v399 = vunpack.c.l.b16 %v262
      %v400 = vunpack.c.l.b16 %v263
      %v401 = vunpack.c.l.b16 %v264
      %v402 = vunpack.c.l.b16 %v265
      %v403 = vunpack.c.l.b16 %v266
      %v404 = vunpack.c.l.b16 %v267
      %v405 = vunpack.c.l.b16 %v268
      %v406 = vunpack.c.l.b16 %v269
      %v407 = vunpack.c.l.b16 %v270
      %v408 = vunpack.c.l.b16 %v271
      %v409 = vunpack.c.l.b16 %v272
      %v410 = vunpack.c.l.b16 %v273
      %v411 = vunpack.c.l.b16 %v274
      %v412 = vunpack.c.l.b16 %v275
      %v413 = vunpack.c.l.b16 %v276
      %v414 = vunpack.c.l.b16 %v277
      %v415 = vunpack.c.l.b16 %v278
      %v416 = vunpack.c.l.b16 %v279
      %v417 = vunpack.c.l.b16 %v280
      %v418 = vunpack.c.l.b16 %v281
      %v419 = vunpack.c.l.b16 %v282
      %v420 = vunpack.c.l.b16 %v283
      %v421 = vunpack.c.l.b16 %v284
      %v422 = vunpack.c.l.b16 %v285
      %v423 = vunpack.c.l.b16 %v286
      %v424 = vunpack.c.l.b16 %v287
      %v425 = vunpack.c.l.b16 %v288
      %v426 = vunpack.c.l.b16 %v289
      %v427 = vunpack.c.l.b16 %v290
      %v428 = vunpack.c.l.b16 %v291
      %v429 = vunpack.c.l.b16 %v292
      %v430 = vunpack.c.l.b16 %v293
      %v431 = vunpack.c.l.b16 %v294
      %v432 = vunpack.c.l.b16 %v295
      %v433 = vunpack.c.l.b16 %v296
      %v434 = vunpack.c.l.b16 %v297
      %v435 = vunpack.c.l.b16 %v298
      %v436 = vunpack.c.l.b16 %v299
      %v437 = vunpack.c.l.b16 %v300
      %v438 = vunpack.c.l.b16 %v301
      %v439 = vunpack.c.l.b16 %v302
      %v440 = vunpack.c.l.b16 %v303
      %v441 = vunpack.c.l.b16 %v304
      %v442 = vunpack.c.l.b16 %v305
      %v443 = vunpack.c.l.b16 %v306
      %v444 = vunpack.c.l.b16 %v307
      %v445 = vunpack.c.l.b16 %v308
      %v446 = vpack.c.b16 %v383, %v382
      %v447 = vpack.c.b16 %v385, %v384
      %v448 = vpack.c.b16 %v387, %v386
      %v449 = vpack.c.b16 %v389, %v388
      %v450 = vpack.c.b16 %v391, %v390
      %v451 = vpack.c.b16 %v393, %v392
      %v452 = vpack.c.b16 %v395, %v394
      %v453 = vpack.c.b16 %v397, %v396
      %v454 = vpack.c.b16 %v399, %v398
      %v455 = vpack.c.b16 %v401, %v400
      %v456 = vpack.c.b16 %v403, %v402
      %v457 = vpack.c.b16 %v405, %v404
      %v458 = vpack.c.b16 %v407, %v406
      %v459 = vpack.c.b16 %v409, %v408
      %v460 = vpack.c.b16 %v411, %v410
      %v461 = vpack.c.b16 %v413, %v412
      %v462 = vpack.c.b16 %v415, %v414
      %v463 = vpack.c.b16 %v417, %v416
      %v464 = vpack.c.b16 %v419, %v418
      %v465 = vpack.c.b16 %v421, %v420
      %v466 = vpack.c.b16 %v423, %v422
      %v467 = vpack.c.b16 %v425, %v424
      %v468 = vpack.c.b16 %v427, %v426
      %v469 = vpack.c.b16 %v429, %v428
      %v470 = vpack.c.b16 %v431, %v430
      %v471 = vpack.c.b16 %v433, %v432
      %v472 = vpack.c.b16 %v435, %v434
      %v473 = vpack.c.b16 %v437, %v436
      %v474 = vpack.c.b16 %v439, %v438
      %v475 = vpack.c.b16 %v441, %v440
      %v476 = vpack.c.b16 %v443, %v442
      %v477 = vpack.c.b16 %v445, %v444
      %v480 = vunpack.c.l.b16 %v309
      %v481 = vunpack.c.l.b16 %v310
      %v482 = vpack.c.b16 %v481, %v480
      %vm484 = vcmask 130048
      %v486 = vsel %vm484, %v446, 0
      %v489 = vsel %vm484, %v447, 0
      %v492 = vsel %vm484, %v448, 0
      %v495 = vsel %vm484, %v449, 0
      %v498 = vsel %vm484, %v450, 0
      %v501 = vsel %vm484, %v451, 0
      %v504 = vsel %vm484, %v452, 0
      %v507 = vsel %vm484, %v453, 0
      %v510 = vsel %vm484, %v454, 0
      %v513 = vsel %vm484, %v455, 0
      %v516 = vsel %vm484, %v456, 0
      %v519 = vsel %vm484, %v457, 0
      %v522 = vsel %vm484, %v458, 0
      %v525 = vsel %vm484, %v459, 0
      %v528 = vsel %vm484, %v460, 0
      %v531 = vsel %vm484, %v461, 0
      %v534 = vsel %vm484, %v462, 0
      %v537 = vsel %vm484, %v463, 0
      %v540 = vsel %vm484, %v464, 0
      %v543 = vsel %vm484, %v465, 0
      %v546 = vsel %vm484, %v466, 0
      %v549 = vsel %vm484, %v467, 0
      %v552 = vsel %vm484, %v468, 0
      %v555 = vsel %vm484, %v469, 0
      %v558 = vsel %vm484, %v470, 0
      %v561 = vsel %vm484, %v471, 0
      %v564 = vsel %vm484, %v472, 0
      %v567 = vsel %vm484, %v473, 0
      %v570 = vsel %vm484, %v474, 0
      %v573 = vsel %vm484, %v475, 0
      %v576 = vsel %vm484, %v476, 0
      %v579 = vsel %vm484, %v477, 0
      %581 = vmatprep.subr.bf16.mxu0 0
      %582 = vmatpush1.bf16.msra.mxu0 %v482
      %583 = vmatprep.subr.bf16.mxu0 0
      %584 = vmatpush1.bf16.msra.mxu0 0
      %585 = vmatprep.subr.bf16.mxu0 0
      %586 = vmatpush1.bf16.msra.mxu0 0
      %587 = vmatprep.subr.bf16.mxu0 0
      %588 = vmatpush1.bf16.msra.mxu0 0
      %589 = vmatprep.subr.bf16.mxu0 0
      %590 = vmatpush1.bf16.msra.mxu0 0
      %591 = vmatprep.subr.bf16.mxu0 0
      %592 = vmatpush1.bf16.msra.mxu0 0
      %593 = vmatprep.subr.bf16.mxu0 0
      %594 = vmatpush1.bf16.msra.mxu0 0
      %595 = vmatprep.subr.bf16.mxu0 0
      %596 = vmatpush1.bf16.msra.mxu0 0
      %597 = vmatprep.subr.bf16.mxu0 0
      %598 = vmatpush1.bf16.msra.mxu0 0
      %599 = vmatprep.subr.bf16.mxu0 0
      %600 = vmatpush1.bf16.msra.mxu0 0
      %601 = vmatprep.subr.bf16.mxu0 0
      %602 = vmatpush1.bf16.msra.mxu0 0
      %603 = vmatprep.subr.bf16.mxu0 0
      %604 = vmatpush1.bf16.msra.mxu0 0
      %605 = vmatprep.subr.bf16.mxu0 0
      %606 = vmatpush1.bf16.msra.mxu0 0
      %607 = vmatprep.subr.bf16.mxu0 0
      %608 = vmatpush1.bf16.msra.mxu0 0
      %609 = vmatprep.subr.bf16.mxu0 0
      %610 = vmatpush1.bf16.msra.mxu0 0
      %611 = vmatprep.subr.bf16.mxu0 0
      %612 = vmatpush1.bf16.msra.mxu0 0
      %613 = vmatprep.mubr.bf16.mxu0 0
      %614 = vmatmul.mubr.bf16.gmra.mrb[0].mxu0 %v486
      %v615 = vpop.f32.mrb[0].mxu0
      %v616 = vadd.f32 %v316, %v615
      %v617 = vpop.f32.mrb[0].mxu0
      %v618 = vpop.f32.mrb[0].mxu0
      %v619 = vadd.f32 %v316, %v618
      %v620 = vpop.f32.mrb[0].mxu0
      %621 = vmatprep.mubr.bf16.mxu0 0
      %622 = vmatmul.mubr.bf16.gmra.mrb[0].mxu0 %v489
      %v623 = vpop.f32.mrb[0].mxu0
      %v624 = vadd.f32 %v316, %v623
      %v625 = vpop.f32.mrb[0].mxu0
      %v626 = vpop.f32.mrb[0].mxu0
      %v627 = vadd.f32 %v316, %v626
      %v628 = vpop.f32.mrb[0].mxu0
      %629 = vmatprep.mubr.bf16.mxu0 0
      %630 = vmatmul.mubr.bf16.gmra.mrb[0].mxu0 %v492
      %v631 = vpop.f32.mrb[0].mxu0
      %v632 = vadd.f32 %v316, %v631
      %v633 = vpop.f32.mrb[0].mxu0
      %v634 = vpop.f32.mrb[0].mxu0
      %v635 = vadd.f32 %v316, %v634
      %v636 = vpop.f32.mrb[0].mxu0
      %637 = vmatprep.mubr.bf16.mxu0 0
      %638 = vmatmul.mubr.bf16.gmra.mrb[0].mxu0 %v495
      %v639 = vpop.f32.mrb[0].mxu0
      %v640 = vadd.f32 %v316, %v639
      %v641 = vpop.f32.mrb[0].mxu0
      %v642 = vpop.f32.mrb[0].mxu0
      %v643 = vadd.f32 %v316, %v642
      %v644 = vpop.f32.mrb[0].mxu0
      %645 = vmatprep.mubr.bf16.mxu0 0
      %646 = vmatmul.mubr.bf16.gmra.mrb[0].mxu0 %v498
      %v647 = vpop.f32.mrb[0].mxu0
      %v648 = vadd.f32 %v316, %v647
      %v649 = vpop.f32.mrb[0].mxu0
      %v650 = vpop.f32.mrb[0].mxu0
      %v651 = vadd.f32 %v316, %v650
      %v652 = vpop.f32.mrb[0].mxu0
      %653 = vmatprep.mubr.bf16.mxu0 0
      %654 = vmatmul.mubr.bf16.gmra.mrb[0].mxu0 %v501
      %v655 = vpop.f32.mrb[0].mxu0
      %v656 = vadd.f32 %v316, %v655
      %v657 = vpop.f32.mrb[0].mxu0
      %v658 = vpop.f32.mrb[0].mxu0
      %v659 = vadd.f32 %v316, %v658
      %v660 = vpop.f32.mrb[0].mxu0
      %661 = vmatprep.mubr.bf16.mxu0 0
      %662 = vmatmul.mubr.bf16.gmra.mrb[0].mxu0 %v504
      %v663 = vpop.f32.mrb[0].mxu0
      %v664 = vadd.f32 %v316, %v663
      %v665 = vpop.f32.mrb[0].mxu0
      %v666 = vpop.f32.mrb[0].mxu0
      %v667 = vadd.f32 %v316, %v666
      %v668 = vpop.f32.mrb[0].mxu0
      %669 = vmatprep.mubr.bf16.mxu0 0
      %670 = vmatmul.mubr.bf16.gmra.mrb[0].mxu0 %v507
      %v671 = vpop.f32.mrb[0].mxu0
      %v672 = vadd.f32 %v316, %v671
      %v673 = vpop.f32.mrb[0].mxu0
      %v674 = vpop.f32.mrb[0].mxu0
      %v675 = vadd.f32 %v316, %v674
      %v676 = vpop.f32.mrb[0].mxu0
      %677 = vmatprep.mubr.bf16.mxu0 0
      %678 = vmatmul.mubr.bf16.gmra.mrb[0].mxu0 %v510
      %v679 = vpop.f32.mrb[0].mxu0
      %v680 = vadd.f32 %v316, %v679
      %v681 = vpop.f32.mrb[0].mxu0
      %v682 = vpop.f32.mrb[0].mxu0
      %v683 = vadd.f32 %v316, %v682
      %v684 = vpop.f32.mrb[0].mxu0
      %685 = vmatprep.mubr.bf16.mxu0 0
      %686 = vmatmul.mubr.bf16.gmra.mrb[0].mxu0 %v513
      %v687 = vpop.f32.mrb[0].mxu0
      %v688 = vadd.f32 %v316, %v687
      %v689 = vpop.f32.mrb[0].mxu0
      %v690 = vpop.f32.mrb[0].mxu0
      %v691 = vadd.f32 %v316, %v690
      %v692 = vpop.f32.mrb[0].mxu0
      %693 = vmatprep.mubr.bf16.mxu0 0
      %694 = vmatmul.mubr.bf16.gmra.mrb[0].mxu0 %v516
      %v695 = vpop.f32.mrb[0].mxu0
      %v696 = vadd.f32 %v316, %v695
      %v697 = vpop.f32.mrb[0].mxu0
      %v698 = vpop.f32.mrb[0].mxu0
      %v699 = vadd.f32 %v316, %v698
      %v700 = vpop.f32.mrb[0].mxu0
      %701 = vmatprep.mubr.bf16.mxu0 0
      %702 = vmatmul.mubr.bf16.gmra.mrb[0].mxu0 %v519
      %v703 = vpop.f32.mrb[0].mxu0
      %v704 = vadd.f32 %v316, %v703
      %v705 = vpop.f32.mrb[0].mxu0
      %v706 = vpop.f32.mrb[0].mxu0
      %v707 = vadd.f32 %v316, %v706
      %v708 = vpop.f32.mrb[0].mxu0
      %709 = vmatprep.mubr.bf16.mxu0 0
      %710 = vmatmul.mubr.bf16.gmra.mrb[0].mxu0 %v522
      %v711 = vpop.f32.mrb[0].mxu0
      %v712 = vadd.f32 %v316, %v711
      %v713 = vpop.f32.mrb[0].mxu0
      %v714 = vpop.f32.mrb[0].mxu0
      %v715 = vadd.f32 %v316, %v714
      %v716 = vpop.f32.mrb[0].mxu0
      %717 = vmatprep.mubr.bf16.mxu0 0
      %718 = vmatmul.mubr.bf16.gmra.mrb[0].mxu0 %v525
      %v719 = vpop.f32.mrb[0].mxu0
      %v720 = vadd.f32 %v316, %v719
      %v721 = vpop.f32.mrb[0].mxu0
      %v722 = vpop.f32.mrb[0].mxu0
      %v723 = vadd.f32 %v316, %v722
      %v724 = vpop.f32.mrb[0].mxu0
      %725 = vmatprep.mubr.bf16.mxu0 0
      %726 = vmatmul.mubr.bf16.gmra.mrb[0].mxu0 %v528
      %v727 = vpop.f32.mrb[0].mxu0
      %v728 = vadd.f32 %v316, %v727
      %v729 = vpop.f32.mrb[0].mxu0
      %v730 = vpop.f32.mrb[0].mxu0
      %v731 = vadd.f32 %v316, %v730
      %v732 = vpop.f32.mrb[0].mxu0
      %733 = vmatprep.mubr.bf16.mxu0 0
      %734 = vmatmul.mubr.bf16.gmra.mrb[0].mxu0 %v531
      %v735 = vpop.f32.mrb[0].mxu0
      %v736 = vadd.f32 %v316, %v735
      %v737 = vpop.f32.mrb[0].mxu0
      %v738 = vpop.f32.mrb[0].mxu0
      %v739 = vadd.f32 %v316, %v738
      %v740 = vpop.f32.mrb[0].mxu0
      %741 = vmatprep.mubr.bf16.mxu0 0
      %742 = vmatmul.mubr.bf16.gmra.mrb[0].mxu0 %v534
      %v743 = vpop.f32.mrb[0].mxu0
      %v744 = vadd.f32 %v316, %v743
      %v745 = vpop.f32.mrb[0].mxu0
      %v746 = vpop.f32.mrb[0].mxu0
      %v747 = vadd.f32 %v316, %v746
      %v748 = vpop.f32.mrb[0].mxu0
      %749 = vmatprep.mubr.bf16.mxu0 0
      %750 = vmatmul.mubr.bf16.gmra.mrb[0].mxu0 %v537
      %v751 = vpop.f32.mrb[0].mxu0
      %v752 = vadd.f32 %v316, %v751
      %v753 = vpop.f32.mrb[0].mxu0
      %v754 = vpop.f32.mrb[0].mxu0
      %v755 = vadd.f32 %v316, %v754
      %v756 = vpop.f32.mrb[0].mxu0
      %757 = vmatprep.mubr.bf16.mxu0 0
      %758 = vmatmul.mubr.bf16.gmra.mrb[0].mxu0 %v540
      %v759 = vpop.f32.mrb[0].mxu0
      %v760 = vadd.f32 %v316, %v759
      %v761 = vpop.f32.mrb[0].mxu0
      %v762 = vpop.f32.mrb[0].mxu0
      %v763 = vadd.f32 %v316, %v762
      %v764 = vpop.f32.mrb[0].mxu0
      %765 = vmatprep.mubr.bf16.mxu0 0
      %766 = vmatmul.mubr.bf16.gmra.mrb[0].mxu0 %v543
      %v767 = vpop.f32.mrb[0].mxu0
      %v768 = vadd.f32 %v316, %v767
      %v769 = vpop.f32.mrb[0].mxu0
      %v770 = vpop.f32.mrb[0].mxu0
      %v771 = vadd.f32 %v316, %v770
      %v772 = vpop.f32.mrb[0].mxu0
      %773 = vmatprep.mubr.bf16.mxu0 0
      %774 = vmatmul.mubr.bf16.gmra.mrb[0].mxu0 %v546
      %v775 = vpop.f32.mrb[0].mxu0
      %v776 = vadd.f32 %v316, %v775
      %v777 = vpop.f32.mrb[0].mxu0
      %v778 = vpop.f32.mrb[0].mxu0
      %v779 = vadd.f32 %v316, %v778
      %v780 = vpop.f32.mrb[0].mxu0
      %781 = vmatprep.mubr.bf16.mxu0 0
      %782 = vmatmul.mubr.bf16.gmra.mrb[0].mxu0 %v549
      %v783 = vpop.f32.mrb[0].mxu0
      %v784 = vadd.f32 %v316, %v783
      %v785 = vpop.f32.mrb[0].mxu0
      %v786 = vpop.f32.mrb[0].mxu0
      %v787 = vadd.f32 %v316, %v786
      %v788 = vpop.f32.mrb[0].mxu0
      %789 = vmatprep.mubr.bf16.mxu0 0
      %790 = vmatmul.mubr.bf16.gmra.mrb[0].mxu0 %v552
      %v791 = vpop.f32.mrb[0].mxu0
      %v792 = vadd.f32 %v316, %v791
      %v793 = vpop.f32.mrb[0].mxu0
      %v794 = vpop.f32.mrb[0].mxu0
      %v795 = vadd.f32 %v316, %v794
      %v796 = vpop.f32.mrb[0].mxu0
      %797 = vmatprep.mubr.bf16.mxu0 0
      %798 = vmatmul.mubr.bf16.gmra.mrb[0].mxu0 %v555
      %v799 = vpop.f32.mrb[0].mxu0
      %v800 = vadd.f32 %v316, %v799
      %v801 = vpop.f32.mrb[0].mxu0
      %v802 = vpop.f32.mrb[0].mxu0
      %v803 = vadd.f32 %v316, %v802
      %v804 = vpop.f32.mrb[0].mxu0
      %805 = vmatprep.mubr.bf16.mxu0 0
      %806 = vmatmul.mubr.bf16.gmra.mrb[0].mxu0 %v558
      %v807 = vpop.f32.mrb[0].mxu0
      %v808 = vadd.f32 %v316, %v807
      %v809 = vpop.f32.mrb[0].mxu0
      %v810 = vpop.f32.mrb[0].mxu0
      %v811 = vadd.f32 %v316, %v810
      %v812 = vpop.f32.mrb[0].mxu0
      %813 = vmatprep.mubr.bf16.mxu0 0
      %814 = vmatmul.mubr.bf16.gmra.mrb[0].mxu0 %v561
      %v815 = vpop.f32.mrb[0].mxu0
      %v816 = vadd.f32 %v316, %v815
      %v817 = vpop.f32.mrb[0].mxu0
      %v818 = vpop.f32.mrb[0].mxu0
      %v819 = vadd.f32 %v316, %v818
      %v820 = vpop.f32.mrb[0].mxu0
      %821 = vmatprep.mubr.bf16.mxu0 0
      %822 = vmatmul.mubr.bf16.gmra.mrb[0].mxu0 %v564
      %v823 = vpop.f32.mrb[0].mxu0
      %v824 = vadd.f32 %v316, %v823
      %v825 = vpop.f32.mrb[0].mxu0
      %v826 = vpop.f32.mrb[0].mxu0
      %v827 = vadd.f32 %v316, %v826
      %v828 = vpop.f32.mrb[0].mxu0
      %829 = vmatprep.mubr.bf16.mxu0 0
      %830 = vmatmul.mubr.bf16.gmra.mrb[0].mxu0 %v567
      %v831 = vpop.f32.mrb[0].mxu0
      %v832 = vadd.f32 %v316, %v831
      %v833 = vpop.f32.mrb[0].mxu0
      %v834 = vpop.f32.mrb[0].mxu0
      %v835 = vadd.f32 %v316, %v834
      %v836 = vpop.f32.mrb[0].mxu0
      %837 = vmatprep.mubr.bf16.mxu0 0
      %838 = vmatmul.mubr.bf16.gmra.mrb[0].mxu0 %v570
      %v839 = vpop.f32.mrb[0].mxu0
      %v840 = vadd.f32 %v316, %v839
      %v841 = vpop.f32.mrb[0].mxu0
      %v842 = vpop.f32.mrb[0].mxu0
      %v843 = vadd.f32 %v316, %v842
      %v844 = vpop.f32.mrb[0].mxu0
      %845 = vmatprep.mubr.bf16.mxu0 0
      %846 = vmatmul.mubr.bf16.gmra.mrb[0].mxu0 %v573
      %v847 = vpop.f32.mrb[0].mxu0
      %v848 = vadd.f32 %v316, %v847
      %v849 = vpop.f32.mrb[0].mxu0
      %v850 = vpop.f32.mrb[0].mxu0
      %v851 = vadd.f32 %v316, %v850
      %v852 = vpop.f32.mrb[0].mxu0
      %853 = vmatprep.mubr.bf16.mxu0 0
      %854 = vmatmul.mubr.bf16.gmra.mrb[0].mxu0 %v576
      %v855 = vpop.f32.mrb[0].mxu0
      %v856 = vadd.f32 %v316, %v855
      %v857 = vpop.f32.mrb[0].mxu0
      %v858 = vpop.f32.mrb[0].mxu0
      %v859 = vadd.f32 %v316, %v858
      %v860 = vpop.f32.mrb[0].mxu0
      %861 = vmatprep.mubr.bf16.mxu0 0
      %862 = vmatmul.mubr.bf16.gmra.mrb[0].mxu0 %v579
      %v863 = vpop.f32.mrb[0].mxu0
      %v864 = vadd.f32 %v316, %v863
      %v865 = vpop.f32.mrb[0].mxu0
      %v866 = vpop.f32.mrb[0].mxu0
      %v867 = vadd.f32 %v316, %v866
      %v868 = vpop.f32.mrb[0].mxu0
      %869 = vdwg.mxu0
      %vm870 = vcmp.ge.f32.partialorder %v616, 0.0
      %vm871 = vcmp.ge.f32.partialorder %v619, 0.0
      %vm872 = vcmp.ge.f32.partialorder %v624, 0.0
      %vm873 = vcmp.ge.f32.partialorder %v627, 0.0
      %vm874 = vcmp.ge.f32.partialorder %v632, 0.0
      %vm875 = vcmp.ge.f32.partialorder %v635, 0.0
      %vm876 = vcmp.ge.f32.partialorder %v640, 0.0
      %vm877 = vcmp.ge.f32.partialorder %v643, 0.0
      %vm878 = vcmp.ge.f32.partialorder %v648, 0.0
      %vm879 = vcmp.ge.f32.partialorder %v651, 0.0
      %vm880 = vcmp.ge.f32.partialorder %v656, 0.0
      %vm881 = vcmp.ge.f32.partialorder %v659, 0.0
      %vm882 = vcmp.ge.f32.partialorder %v664, 0.0
      %vm883 = vcmp.ge.f32.partialorder %v667, 0.0
      %vm884 = vcmp.ge.f32.partialorder %v672, 0.0
      %vm885 = vcmp.ge.f32.partialorder %v675, 0.0
      %vm886 = vcmp.ge.f32.partialorder %v680, 0.0
      %vm887 = vcmp.ge.f32.partialorder %v683, 0.0
      %vm888 = vcmp.ge.f32.partialorder %v688, 0.0
      %vm889 = vcmp.ge.f32.partialorder %v691, 0.0
      %vm890 = vcmp.ge.f32.partialorder %v696, 0.0
      %vm891 = vcmp.ge.f32.partialorder %v699, 0.0
      %vm892 = vcmp.ge.f32.partialorder %v704, 0.0
      %vm893 = vcmp.ge.f32.partialorder %v707, 0.0
      %vm894 = vcmp.ge.f32.partialorder %v712, 0.0
      %vm895 = vcmp.ge.f32.partialorder %v715, 0.0
      %vm896 = vcmp.ge.f32.partialorder %v720, 0.0
      %vm897 = vcmp.ge.f32.partialorder %v723, 0.0
      %vm898 = vcmp.ge.f32.partialorder %v728, 0.0
      %vm899 = vcmp.ge.f32.partialorder %v731, 0.0
      %vm900 = vcmp.ge.f32.partialorder %v736, 0.0
      %vm901 = vcmp.ge.f32.partialorder %v739, 0.0
      %vm902 = vcmp.ge.f32.partialorder %v744, 0.0
      %vm903 = vcmp.ge.f32.partialorder %v747, 0.0
      %vm904 = vcmp.ge.f32.partialorder %v752, 0.0
      %vm905 = vcmp.ge.f32.partialorder %v755, 0.0
      %vm906 = vcmp.ge.f32.partialorder %v760, 0.0
      %vm907 = vcmp.ge.f32.partialorder %v763, 0.0
      %vm908 = vcmp.ge.f32.partialorder %v768, 0.0
      %vm909 = vcmp.ge.f32.partialorder %v771, 0.0
      %vm910 = vcmp.ge.f32.partialorder %v776, 0.0
      %vm911 = vcmp.ge.f32.partialorder %v779, 0.0
      %vm912 = vcmp.ge.f32.partialorder %v784, 0.0
      %vm913 = vcmp.ge.f32.partialorder %v787, 0.0
      %vm914 = vcmp.ge.f32.partialorder %v792, 0.0
      %vm915 = vcmp.ge.f32.partialorder %v795, 0.0
      %vm916 = vcmp.ge.f32.partialorder %v800, 0.0
      %vm917 = vcmp.ge.f32.partialorder %v803, 0.0
      %vm918 = vcmp.ge.f32.partialorder %v808, 0.0
      %vm919 = vcmp.ge.f32.partialorder %v811, 0.0
      %vm920 = vcmp.ge.f32.partialorder %v816, 0.0
      %vm921 = vcmp.ge.f32.partialorder %v819, 0.0
      %vm922 = vcmp.ge.f32.partialorder %v824, 0.0
      %vm923 = vcmp.ge.f32.partialorder %v827, 0.0
      %vm924 = vcmp.ge.f32.partialorder %v832, 0.0
      %vm925 = vcmp.ge.f32.partialorder %v835, 0.0
      %vm926 = vcmp.ge.f32.partialorder %v840, 0.0
      %vm927 = vcmp.ge.f32.partialorder %v843, 0.0
      %vm928 = vcmp.ge.f32.partialorder %v848, 0.0
      %vm929 = vcmp.ge.f32.partialorder %v851, 0.0
      %vm930 = vcmp.ge.f32.partialorder %v856, 0.0
      %vm931 = vcmp.ge.f32.partialorder %v859, 0.0
      %vm932 = vcmp.ge.f32.partialorder %v864, 0.0
      %vm933 = vcmp.ge.f32.partialorder %v867, 0.0
      %v934 = vmul.f32 %v616, 0.2
      %v935 = vmul.f32 %v619, 0.2
      %v936 = vmul.f32 %v624, 0.2
      %v937 = vmul.f32 %v627, 0.2
      %v938 = vmul.f32 %v632, 0.2
      %v939 = vmul.f32 %v635, 0.2
      %v940 = vmul.f32 %v640, 0.2
      %v941 = vmul.f32 %v643, 0.2
      %v942 = vmul.f32 %v648, 0.2
      %v943 = vmul.f32 %v651, 0.2
      %v944 = vmul.f32 %v656, 0.2
      %v945 = vmul.f32 %v659, 0.2
      %v946 = vmul.f32 %v664, 0.2
      %v947 = vmul.f32 %v667, 0.2
      %v948 = vmul.f32 %v672, 0.2
      %v949 = vmul.f32 %v675, 0.2
      %v950 = vmul.f32 %v680, 0.2
      %v951 = vmul.f32 %v683, 0.2
      %v952 = vmul.f32 %v688, 0.2
      %v953 = vmul.f32 %v691, 0.2
      %v954 = vmul.f32 %v696, 0.2
      %v955 = vmul.f32 %v699, 0.2
      %v956 = vmul.f32 %v704, 0.2
      %v957 = vmul.f32 %v707, 0.2
      %v958 = vmul.f32 %v712, 0.2
      %v959 = vmul.f32 %v715, 0.2
      %v960 = vmul.f32 %v720, 0.2
      %v961 = vmul.f32 %v723, 0.2
      %v962 = vmul.f32 %v728, 0.2
      %v963 = vmul.f32 %v731, 0.2
      %v964 = vmul.f32 %v736, 0.2
      %v965 = vmul.f32 %v739, 0.2
      %v966 = vmul.f32 %v744, 0.2
      %v967 = vmul.f32 %v747, 0.2
      %v968 = vmul.f32 %v752, 0.2
      %v969 = vmul.f32 %v755, 0.2
      %v970 = vmul.f32 %v760, 0.2
      %v971 = vmul.f32 %v763, 0.2
      %v972 = vmul.f32 %v768, 0.2
      %v973 = vmul.f32 %v771, 0.2
      %v974 = vmul.f32 %v776, 0.2
      %v975 = vmul.f32 %v779, 0.2
      %v976 = vmul.f32 %v784, 0.2
      %v977 = vmul.f32 %v787, 0.2
      %v978 = vmul.f32 %v792, 0.2
      %v979 = vmul.f32 %v795, 0.2
      %v980 = vmul.f32 %v800, 0.2
      %v981 = vmul.f32 %v803, 0.2
      %v982 = vmul.f32 %v808, 0.2
      %v983 = vmul.f32 %v811, 0.2
      %v984 = vmul.f32 %v816, 0.2
      %v985 = vmul.f32 %v819, 0.2
      %v986 = vmul.f32 %v824, 0.2
      %v987 = vmul.f32 %v827, 0.2
      %v988 = vmul.f32 %v832, 0.2
      %v989 = vmul.f32 %v835, 0.2
      %v990 = vmul.f32 %v840, 0.2
      %v991 = vmul.f32 %v843, 0.2
      %v992 = vmul.f32 %v848, 0.2
      %v993 = vmul.f32 %v851, 0.2
      %v994 = vmul.f32 %v856, 0.2
      %v995 = vmul.f32 %v859, 0.2
      %v996 = vmul.f32 %v864, 0.2
      %v997 = vmul.f32 %v867, 0.2
      %v998 = vsel %vm870, %v616, %v934
      %v999 = vsel %vm871, %v619, %v935
      %v1000 = vsel %vm872, %v624, %v936
      %v1001 = vsel %vm873, %v627, %v937
      %v1002 = vsel %vm874, %v632, %v938
      %v1003 = vsel %vm875, %v635, %v939
      %v1004 = vsel %vm876, %v640, %v940
      %v1005 = vsel %vm877, %v643, %v941
      %v1006 = vsel %vm878, %v648, %v942
      %v1007 = vsel %vm879, %v651, %v943
      %v1008 = vsel %vm880, %v656, %v944
      %v1009 = vsel %vm881, %v659, %v945
      %v1010 = vsel %vm882, %v664, %v946
      %v1011 = vsel %vm883, %v667, %v947
      %v1012 = vsel %vm884, %v672, %v948
      %v1013 = vsel %vm885, %v675, %v949
      %v1014 = vsel %vm886, %v680, %v950
      %v1015 = vsel %vm887, %v683, %v951
      %v1016 = vsel %vm888, %v688, %v952
      %v1017 = vsel %vm889, %v691, %v953
      %v1018 = vsel %vm890, %v696, %v954
      %v1019 = vsel %vm891, %v699, %v955
      %v1020 = vsel %vm892, %v704, %v956
      %v1021 = vsel %vm893, %v707, %v957
      %v1022 = vsel %vm894, %v712, %v958
      %v1023 = vsel %vm895, %v715, %v959
      %v1024 = vsel %vm896, %v720, %v960
      %v1025 = vsel %vm897, %v723, %v961
      %v1026 = vsel %vm898, %v728, %v962
      %v1027 = vsel %vm899, %v731, %v963
      %v1028 = vsel %vm900, %v736, %v964
      %v1029 = vsel %vm901, %v739, %v965
      %v1030 = vsel %vm902, %v744, %v966
      %v1031 = vsel %vm903, %v747, %v967
      %v1032 = vsel %vm904, %v752, %v968
      %v1033 = vsel %vm905, %v755, %v969
      %v1034 = vsel %vm906, %v760, %v970
      %v1035 = vsel %vm907, %v763, %v971
      %v1036 = vsel %vm908, %v768, %v972
      %v1037 = vsel %vm909, %v771, %v973
      %v1038 = vsel %vm910, %v776, %v974
      %v1039 = vsel %vm911, %v779, %v975
      %v1040 = vsel %vm912, %v784, %v976
      %v1041 = vsel %vm913, %v787, %v977
      %v1042 = vsel %vm914, %v792, %v978
      %v1043 = vsel %vm915, %v795, %v979
      %v1044 = vsel %vm916, %v800, %v980
      %v1045 = vsel %vm917, %v803, %v981
      %v1046 = vsel %vm918, %v808, %v982
      %v1047 = vsel %vm919, %v811, %v983
      %v1048 = vsel %vm920, %v816, %v984
      %v1049 = vsel %vm921, %v819, %v985
      %v1050 = vsel %vm922, %v824, %v986
      %v1051 = vsel %vm923, %v827, %v987
      %v1052 = vsel %vm924, %v832, %v988
      %v1053 = vsel %vm925, %v835, %v989
      %v1054 = vsel %vm926, %v840, %v990
      %v1055 = vsel %vm927, %v843, %v991
      %v1056 = vsel %vm928, %v848, %v992
      %v1057 = vsel %vm929, %v851, %v993
      %v1058 = vsel %vm930, %v856, %v994
      %v1059 = vsel %vm931, %v859, %v995
      %v1060 = vsel %vm932, %v864, %v996
      %v1061 = vsel %vm933, %v867, %v997
      %v1062 = vpack.c.bf16 %v999, %v998
      %v1063 = vpack.c.bf16 %v1001, %v1000
      %v1064 = vpack.c.bf16 %v1003, %v1002
      %v1065 = vpack.c.bf16 %v1005, %v1004
      %v1066 = vpack.c.bf16 %v1007, %v1006
      %v1067 = vpack.c.bf16 %v1009, %v1008
      %v1068 = vpack.c.bf16 %v1011, %v1010
      %v1069 = vpack.c.bf16 %v1013, %v1012
      %v1070 = vpack.c.bf16 %v1015, %v1014
      %v1071 = vpack.c.bf16 %v1017, %v1016
      %v1072 = vpack.c.bf16 %v1019, %v1018
      %v1073 = vpack.c.bf16 %v1021, %v1020
      %v1074 = vpack.c.bf16 %v1023, %v1022
      %v1075 = vpack.c.bf16 %v1025, %v1024
      %v1076 = vpack.c.bf16 %v1027, %v1026
      %v1077 = vpack.c.bf16 %v1029, %v1028
      %v1078 = vpack.c.bf16 %v1031, %v1030
      %v1079 = vpack.c.bf16 %v1033, %v1032
      %v1080 = vpack.c.bf16 %v1035, %v1034
      %v1081 = vpack.c.bf16 %v1037, %v1036
      %v1082 = vpack.c.bf16 %v1039, %v1038
      %v1083 = vpack.c.bf16 %v1041, %v1040
      %v1084 = vpack.c.bf16 %v1043, %v1042
      %v1085 = vpack.c.bf16 %v1045, %v1044
      %v1086 = vpack.c.bf16 %v1047, %v1046
      %v1087 = vpack.c.bf16 %v1049, %v1048
      %v1088 = vpack.c.bf16 %v1051, %v1050
      %v1089 = vpack.c.bf16 %v1053, %v1052
      %v1090 = vpack.c.bf16 %v1055, %v1054
      %v1091 = vpack.c.bf16 %v1057, %v1056
      %v1092 = vpack.c.bf16 %v1059, %v1058
      %v1093 = vpack.c.bf16 %v1061, %v1060
      %v1126 = vunpack.c.l.b16 %v1062
      %v1127 = vunpack.c.h.b16 %v1062
      %v1128 = vunpack.c.l.b16 %v1063
      %v1129 = vunpack.c.h.b16 %v1063
      %v1130 = vunpack.c.l.b16 %v1064
      %v1131 = vunpack.c.h.b16 %v1064
      %v1132 = vunpack.c.l.b16 %v1065
      %v1133 = vunpack.c.h.b16 %v1065
      %v1134 = vunpack.c.l.b16 %v1066
      %v1135 = vunpack.c.h.b16 %v1066
      %v1136 = vunpack.c.l.b16 %v1067
      %v1137 = vunpack.c.h.b16 %v1067
      %v1138 = vunpack.c.l.b16 %v1068
      %v1139 = vunpack.c.h.b16 %v1068
      %v1140 = vunpack.c.l.b16 %v1069
      %v1141 = vunpack.c.h.b16 %v1069
      %v1142 = vunpack.c.l.b16 %v1070
      %v1143 = vunpack.c.h.b16 %v1070
      %v1144 = vunpack.c.l.b16 %v1071
      %v1145 = vunpack.c.h.b16 %v1071
      %v1146 = vunpack.c.l.b16 %v1072
      %v1147 = vunpack.c.h.b16 %v1072
      %v1148 = vunpack.c.l.b16 %v1073
      %v1149 = vunpack.c.h.b16 %v1073
      %v1150 = vunpack.c.l.b16 %v1074
      %v1151 = vunpack.c.h.b16 %v1074
      %v1152 = vunpack.c.l.b16 %v1075
      %v1153 = vunpack.c.h.b16 %v1075
      %v1154 = vunpack.c.l.b16 %v1076
      %v1155 = vunpack.c.h.b16 %v1076
      %v1156 = vunpack.c.l.b16 %v1077
      %v1157 = vunpack.c.h.b16 %v1077
      %v1158 = vunpack.c.l.b16 %v1078
      %v1159 = vunpack.c.h.b16 %v1078
      %v1160 = vunpack.c.l.b16 %v1079
      %v1161 = vunpack.c.h.b16 %v1079
      %v1162 = vunpack.c.l.b16 %v1080
      %v1163 = vunpack.c.h.b16 %v1080
      %v1164 = vunpack.c.l.b16 %v1081
      %v1165 = vunpack.c.h.b16 %v1081
      %v1166 = vunpack.c.l.b16 %v1082
      %v1167 = vunpack.c.h.b16 %v1082
      %v1168 = vunpack.c.l.b16 %v1083
      %v1169 = vunpack.c.h.b16 %v1083
      %v1170 = vunpack.c.l.b16 %v1084
      %v1171 = vunpack.c.h.b16 %v1084
      %v1172 = vunpack.c.l.b16 %v1085
      %v1173 = vunpack.c.h.b16 %v1085
      %v1174 = vunpack.c.l.b16 %v1086
      %v1175 = vunpack.c.h.b16 %v1086
      %v1176 = vunpack.c.l.b16 %v1087
      %v1177 = vunpack.c.h.b16 %v1087
      %v1178 = vunpack.c.l.b16 %v1088
      %v1179 = vunpack.c.h.b16 %v1088
      %v1180 = vunpack.c.l.b16 %v1089
      %v1181 = vunpack.c.h.b16 %v1089
      %v1182 = vunpack.c.l.b16 %v1090
      %v1183 = vunpack.c.h.b16 %v1090
      %v1184 = vunpack.c.l.b16 %v1091
      %v1185 = vunpack.c.h.b16 %v1091
      %v1186 = vunpack.c.l.b16 %v1092
      %v1187 = vunpack.c.h.b16 %v1092
      %v1188 = vunpack.c.l.b16 %v1093
      %v1189 = vunpack.c.h.b16 %v1093
      %v1190 = vpack.c.b16 %v1126, %v1126
      %v1191 = vpack.c.b16 %v1127, %v1127
      %v1192 = vpack.c.b16 %v1128, %v1128
      %v1193 = vpack.c.b16 %v1129, %v1129
      %v1194 = vpack.c.b16 %v1130, %v1130
      %v1195 = vpack.c.b16 %v1131, %v1131
      %v1196 = vpack.c.b16 %v1132, %v1132
      %v1197 = vpack.c.b16 %v1133, %v1133
      %v1198 = vpack.c.b16 %v1134, %v1134
      %v1199 = vpack.c.b16 %v1135, %v1135
      %v1200 = vpack.c.b16 %v1136, %v1136
      %v1201 = vpack.c.b16 %v1137, %v1137
      %v1202 = vpack.c.b16 %v1138, %v1138
      %v1203 = vpack.c.b16 %v1139, %v1139
      %v1204 = vpack.c.b16 %v1140, %v1140
      %v1205 = vpack.c.b16 %v1141, %v1141
      %v1206 = vpack.c.b16 %v1142, %v1142
      %v1207 = vpack.c.b16 %v1143, %v1143
      %v1208 = vpack.c.b16 %v1144, %v1144
      %v1209 = vpack.c.b16 %v1145, %v1145
      %v1210 = vpack.c.b16 %v1146, %v1146
      %v1211 = vpack.c.b16 %v1147, %v1147
      %v1212 = vpack.c.b16 %v1148, %v1148
      %v1213 = vpack.c.b16 %v1149, %v1149
      %v1214 = vpack.c.b16 %v1150, %v1150
      %v1215 = vpack.c.b16 %v1151, %v1151
      %v1216 = vpack.c.b16 %v1152, %v1152
      %v1217 = vpack.c.b16 %v1153, %v1153
      %v1218 = vpack.c.b16 %v1154, %v1154
      %v1219 = vpack.c.b16 %v1155, %v1155
      %v1220 = vpack.c.b16 %v1156, %v1156
      %v1221 = vpack.c.b16 %v1157, %v1157
      %v1222 = vpack.c.b16 %v1158, %v1158
      %v1223 = vpack.c.b16 %v1159, %v1159
      %v1224 = vpack.c.b16 %v1160, %v1160
      %v1225 = vpack.c.b16 %v1161, %v1161
      %v1226 = vpack.c.b16 %v1162, %v1162
      %v1227 = vpack.c.b16 %v1163, %v1163
      %v1228 = vpack.c.b16 %v1164, %v1164
      %v1229 = vpack.c.b16 %v1165, %v1165
      %v1230 = vpack.c.b16 %v1166, %v1166
      %v1231 = vpack.c.b16 %v1167, %v1167
      %v1232 = vpack.c.b16 %v1168, %v1168
      %v1233 = vpack.c.b16 %v1169, %v1169
      %v1234 = vpack.c.b16 %v1170, %v1170
      %v1235 = vpack.c.b16 %v1171, %v1171
      %v1236 = vpack.c.b16 %v1172, %v1172
      %v1237 = vpack.c.b16 %v1173, %v1173
      %v1238 = vpack.c.b16 %v1174, %v1174
      %v1239 = vpack.c.b16 %v1175, %v1175
      %v1240 = vpack.c.b16 %v1176, %v1176
      %v1241 = vpack.c.b16 %v1177, %v1177
      %v1242 = vpack.c.b16 %v1178, %v1178
      %v1243 = vpack.c.b16 %v1179, %v1179
      %v1244 = vpack.c.b16 %v1180, %v1180
      %v1245 = vpack.c.b16 %v1181, %v1181
      %v1246 = vpack.c.b16 %v1182, %v1182
      %v1247 = vpack.c.b16 %v1183, %v1183
      %v1248 = vpack.c.b16 %v1184, %v1184
      %v1249 = vpack.c.b16 %v1185, %v1185
      %v1250 = vpack.c.b16 %v1186, %v1186
      %v1251 = vpack.c.b16 %v1187, %v1187
      %v1252 = vpack.c.b16 %v1188, %v1188
      %v1253 = vpack.c.b16 %v1189, %v1189
      %vm1318 = vcmask 11264
      %1319 = vst.msk [vmem:[%s242] sm:$0xf] %vm1318, %v1190
      %1320 = vst.msk [vmem:[%s242 + $0x4] sm:$0xf] %vm1318, %v1191
      %1321 = vst.msk [vmem:[%s242 + $0x8] sm:$0xf] %vm1318, %v1192
      %1322 = vst.msk [vmem:[%s242 + $0xc] sm:$0xf] %vm1318, %v1193
      %1323 = vst.msk [vmem:[%s242 + $0x10] sm:$0xf] %vm1318, %v1194
      %1324 = vst.msk [vmem:[%s242 + $0x14] sm:$0xf] %vm1318, %v1195
      %1325 = vst.msk [vmem:[%s242 + $0x18] sm:$0xf] %vm1318, %v1196
      %1326 = vst.msk [vmem:[%s242 + $0x1c] sm:$0xf] %vm1318, %v1197
      %1327 = vst.msk [vmem:[%s242 + $0x20] sm:$0xf] %vm1318, %v1198
      %1328 = vst.msk [vmem:[%s242 + $0x24] sm:$0xf] %vm1318, %v1199
      %1329 = vst.msk [vmem:[%s242 + $0x28] sm:$0xf] %vm1318, %v1200
      %1330 = vst.msk [vmem:[%s242 + $0x2c] sm:$0xf] %vm1318, %v1201
      %1331 = vst.msk [vmem:[%s242 + $0x30] sm:$0xf] %vm1318, %v1202
      %1332 = vst.msk [vmem:[%s242 + $0x34] sm:$0xf] %vm1318, %v1203
      %1333 = vst.msk [vmem:[%s242 + $0x38] sm:$0xf] %vm1318, %v1204
      %1334 = vst.msk [vmem:[%s242 + $0x3c] sm:$0xf] %vm1318, %v1205
      %1335 = vst.msk [vmem:[%s242 + $0x40] sm:$0xf] %vm1318, %v1206
      %1336 = vst.msk [vmem:[%s242 + $0x44] sm:$0xf] %vm1318, %v1207
      %1337 = vst.msk [vmem:[%s242 + $0x48] sm:$0xf] %vm1318, %v1208
      %1338 = vst.msk [vmem:[%s242 + $0x4c] sm:$0xf] %vm1318, %v1209
      %1339 = vst.msk [vmem:[%s242 + $0x50] sm:$0xf] %vm1318, %v1210
      %1340 = vst.msk [vmem:[%s242 + $0x54] sm:$0xf] %vm1318, %v1211
      %1341 = vst.msk [vmem:[%s242 + $0x58] sm:$0xf] %vm1318, %v1212
      %1342 = vst.msk [vmem:[%s242 + $0x5c] sm:$0xf] %vm1318, %v1213
      %1343 = vst.msk [vmem:[%s242 + $0x60] sm:$0xf] %vm1318, %v1214
      %1344 = vst.msk [vmem:[%s242 + $0x64] sm:$0xf] %vm1318, %v1215
      %1345 = vst.msk [vmem:[%s242 + $0x68] sm:$0xf] %vm1318, %v1216
      %1346 = vst.msk [vmem:[%s242 + $0x6c] sm:$0xf] %vm1318, %v1217
      %1347 = vst.msk [vmem:[%s242 + $0x70] sm:$0xf] %vm1318, %v1218
      %1348 = vst.msk [vmem:[%s242 + $0x74] sm:$0xf] %vm1318, %v1219
      %1349 = vst.msk [vmem:[%s242 + $0x78] sm:$0xf] %vm1318, %v1220
      %1350 = vst.msk [vmem:[%s242 + $0x7c] sm:$0xf] %vm1318, %v1221
      %1351 = vst.msk [vmem:[%s242 + $0x80] sm:$0xf] %vm1318, %v1222
      %1352 = vst.msk [vmem:[%s242 + $0x84] sm:$0xf] %vm1318, %v1223
      %1353 = vst.msk [vmem:[%s242 + $0x88] sm:$0xf] %vm1318, %v1224
      %1354 = vst.msk [vmem:[%s242 + $0x8c] sm:$0xf] %vm1318, %v1225
      %1355 = vst.msk [vmem:[%s242 + $0x90] sm:$0xf] %vm1318, %v1226
      %1356 = vst.msk [vmem:[%s242 + $0x94] sm:$0xf] %vm1318, %v1227
      %1357 = vst.msk [vmem:[%s242 + $0x98] sm:$0xf] %vm1318, %v1228
      %1358 = vst.msk [vmem:[%s242 + $0x9c] sm:$0xf] %vm1318, %v1229
      %1359 = vst.msk [vmem:[%s242 + $0xa0] sm:$0xf] %vm1318, %v1230
      %1360 = vst.msk [vmem:[%s242 + $0xa4] sm:$0xf] %vm1318, %v1231
      %1361 = vst.msk [vmem:[%s242 + $0xa8] sm:$0xf] %vm1318, %v1232
      %1362 = vst.msk [vmem:[%s242 + $0xac] sm:$0xf] %vm1318, %v1233
      %1363 = vst.msk [vmem:[%s242 + $0xb0] sm:$0xf] %vm1318, %v1234
      %1364 = vst.msk [vmem:[%s242 + $0xb4] sm:$0xf] %vm1318, %v1235
      %1365 = vst.msk [vmem:[%s242 + $0xb8] sm:$0xf] %vm1318, %v1236
      %1366 = vst.msk [vmem:[%s242 + $0xbc] sm:$0xf] %vm1318, %v1237
      %1367 = vst.msk [vmem:[%s242 + $0xc0] sm:$0xf] %vm1318, %v1238
      %1368 = vst.msk [vmem:[%s242 + $0xc4] sm:$0xf] %vm1318, %v1239
      %1369 = vst.msk [vmem:[%s242 + $0xc8] sm:$0xf] %vm1318, %v1240
      %1370 = vst.msk [vmem:[%s242 + $0xcc] sm:$0xf] %vm1318, %v1241
      %1371 = vst.msk [vmem:[%s242 + $0xd0] sm:$0xf] %vm1318, %v1242
      %1372 = vst.msk [vmem:[%s242 + $0xd4] sm:$0xf] %vm1318, %v1243
      %1373 = vst.msk [vmem:[%s242 + $0xd8] sm:$0xf] %vm1318, %v1244
      %1374 = vst.msk [vmem:[%s242 + $0xdc] sm:$0xf] %vm1318, %v1245
      %1375 = vst.msk [vmem:[%s242 + $0xe0] sm:$0xf] %vm1318, %v1246
      %1376 = vst.msk [vmem:[%s242 + $0xe4] sm:$0xf] %vm1318, %v1247
      %1377 = vst.msk [vmem:[%s242 + $0xe8] sm:$0xf] %vm1318, %v1248
      %1378 = vst.msk [vmem:[%s242 + $0xec] sm:$0xf] %vm1318, %v1249
      %1379 = vst.msk [vmem:[%s242 + $0xf0] sm:$0xf] %vm1318, %v1250
      %1380 = vst.msk [vmem:[%s242 + $0xf4] sm:$0xf] %vm1318, %v1251
      %1381 = vst.msk [vmem:[%s242 + $0xf8] sm:$0xf] %vm1318, %v1252
      %1382 = vst.msk [vmem:[%s242 + $0xfc] sm:$0xf] %vm1318, %v1253
      %s1383 = smul.u32 64, %s19
      %p1384 = scmp.lt.s32.totalorder %s18, 1
      %s1385 = scalar_select %p1384, %s18, 1
      %p1386 = scmp.lt.s32.totalorder %s1383, 63
      %s1387 = scalar_select %p1386, %s1383, 63
      %s1388 = smul.addr %s1385, 64
      %s1389 = sadd.s32 %s1387, %s1388
      %s1390 = smul.addr %s1389, 4
      %s1391 = scalar_lea.vmem %s3, %s1390
      // Predicated region
      $region33: #{mstau_pred_forward.7} parent=31 // pred_check
        %p1392 = pneg %p126
      $region34: #{mstau_pred_forward.7} parent=31 // pred_check_branch
        %1394 = sbr.rel (%p1392) target = $region36
      $region35: #{mstau_pred_forward.7} parent=31 // pred_region
        %s1395 = smul.u32 64, %s19
      $region36: #{mstau_pred_forward.7} parent=31 // pred_fallthru
        _
    $region32: #{mstau_pred_forward.7} parent=5 // pred_fallthru
      _
    %p1396 = scmp.le.s32.totalorder 2, %s9
    // Predicated region
    $region37: #{mstau_pred_forward.7} parent=5 // pred_check
      %p1397 = pneg %p1396
    $region38: #{mstau_pred_forward.7} parent=5 // pred_check_branch
      %1399 = sbr.rel (%p1397) target = $region40
    $region39: #{mstau_pred_forward.7} parent=5 // pred_region
      %s1400 = ssub.s32 %s9, 2
      // Predicated region
      $region41: #{mstau_pred_forward.7} parent=39 // pred_check
        %p1401 = pneg %p132
      $region42: #{mstau_pred_forward.7} parent=39 // pred_check_branch
        %1403 = sbr.rel (%p1401) target = $region44
      $region43: #{mstau_pred_forward.7} parent=39 // pred_region
        %s1404 = smul.u32 64, %s21
        %p1405 = scmp.lt.s32.totalorder %s20, 1
        %s1406 = scalar_select %p1405, %s20, 1
        %p1407 = scmp.lt.s32.totalorder %s1404, 63
        %s1408 = scalar_select %p1407, %s1404, 63
        %s1409 = smul.addr %s1406, 64
        %s1410 = sadd.s32 %s1408, %s1409
        %s1411 = smul.addr %s1410, 4
        %s1412 = scalar_lea.vmem %s3, %s1411
      $region44: #{mstau_pred_forward.7} parent=39 // pred_fallthru
        _
    $region40: #{mstau_pred_forward.7} parent=5 // pred_fallthru
      _
  $region6: #{mstau_pred_forward.7} parent=0 // loop_footer
    %s13 = sadd.s32 1, %s9
  $region7: #{mstau_pred_forward.7} parent=0 // loop_footer_branch
    %8 = sbr.rel target = $region3
  $region8: #{mstau_pred_forward.7} parent=0 // loop_exit
    _

</llo_original>
